<compile_context>
chip_gen: v7x
topology: tpu7x:2x2x1
jax: 0.10.0
libtpu: 0.0.40
codegen_flags: <defaults>
</compile_context>

<pallas_src>
import numpy as np
import jax
import jax.numpy as jnp
from jax.experimental import pallas as pl
from jax.experimental.pallas import tpu as pltpu

TWO_PI = 2.0 * np.pi


def _make_kernel(split_output: bool, apply_avals: bool):
    """Build the kernel body specialized at trace time on the two static flags."""

    def kernel(*refs):
        if apply_avals:
            x_ref, b_ref, a_ref = refs[:3]
            out_refs = refs[3:]
        else:
            x_ref, b_ref = refs[:2]
            out_refs = refs[2:]

        # x_ref: [TB, dims], b_ref: [dims, half] (2*pi already folded in).
        # K=dims matmul stays on the MXU: the vex slot is idle (kernel is VALU-bound
        # on the sin/cos polynomials), so this is effectively free.
        proj = jnp.dot(x_ref[...], b_ref[...], preferred_element_type=jnp.float32)
        s = jnp.sin(proj)
        c = jnp.cos(proj)

        if apply_avals:
            # Hoist ONE broadcast and reuse it for both halves (JAX does not CSE
            # broadcast_in_dim; two implicit broadcasts would hit the saturated VALU).
            a_b = jnp.broadcast_to(a_ref[...], proj.shape)
            s = a_b * s
            c = a_b * c

        if split_output:
            sin_ref, cos_ref = out_refs
            sin_ref[...] = s
            cos_ref[...] = c
        else:
            (out_ref,) = out_refs
            half = proj.shape[-1]
            out_ref[:, :half] = s          # lane-aligned slab [0, half)
            out_ref[:, half:] = c          # lane-aligned slab [half, 2*half)

    return kernel


def gaussian_encoding(x, bvals, avals, *, tile_n=512):
    """Pallas forward of GaussianEncoding.

    x:     [..., dims]
    bvals: [half, dims]   (module parameter, NOT transposed / NOT pre-scaled)
    avals: [half]
    returns [..., 2*half]
    """
    orig_shape = x.shape
    dims = int(orig_shape[-1])
    half = int(bvals.shape[0])
    emb = 2 * half

    lead = orig_shape[:-1]
    n = 1
    for d in lead:
        n *= int(d)
    x2 = x.reshape(n, dims).astype(jnp.float32)

    # Fold 2*pi into the (transposed) projection matrix once, outside the kernel.
    b_scaled = (TWO_PI * bvals.T).astype(jnp.float32)        # [dims, half]

    # Skip the avals multiply entirely when avals is the module's ones-init.
    # (Only possible when avals is concrete; traced avals fall back to the general path.)
    try:
        apply_avals = not bool(np.all(np.asarray(avals) == 1.0))
    except Exception:  # jax tracer etc.
        apply_avals = True
    a_row = avals.reshape(1, half).astype(jnp.float32)       # [1, half]

    split_output = (half % 128) != 0

    # ---- Tile sizing ----------------------------------------------------------
    # Large point tiles amortize per-step overhead; keep the sublane dim a multiple
    # of 8.  Keep >=4 grid steps when the problem is big enough so the "parallel"
    # axis feeds both v7x TensorCores with double-buffering intact.  At emb=256 the
    # per-step VMEM footprint (<= ~1 MiB double-buffered output) is far below every
    # generation's scoped VMEM, so no vmem_limit_bytes override is needed.
    n8 = ((n + 7) // 8) * 8
    tn = max(8, min(int(tile_n), n8))
    if n8 >= 4 * 128:
        tn = min(tn, max(128, ((pl.cdiv(n8, 4) + 7) // 8) * 8))

    # Partial last block (n % tn != 0) is masked by Pallas: OOB input rows compute
    # garbage that is never written back, so no pad / slice round-trip through HBM.
    grid = (pl.cdiv(n, tn),)

    kernel = _make_kernel(split_output, apply_avals)

    in_specs = [
        pl.BlockSpec((tn, dims), lambda i: (i, 0)),          # x tile per grid step
        pl.BlockSpec((dims, half), lambda i: (0, 0)),        # bvals resident in VMEM
    ]
    operands = [x2, b_scaled]
    if apply_avals:
        in_specs.append(pl.BlockSpec((1, half), lambda i: (0, 0)))   # avals resident
        operands.append(a_row)

    flops = 2 * n * dims * half + (2 * n * emb if apply_avals else 0)
    cost = pl.CostEstimate(
        flops=flops,
        transcendentals=n * emb,                              # one sin/cos per output elem
        bytes_accessed=4 * (n * dims + dims * half
                            + (half if apply_avals else 0) + n * emb),
    )
    cparams = pltpu.CompilerParams(dimension_semantics=("parallel",))  # megacore on v7x

    if split_output:
        # half not a multiple of 128: two separate lane-dense outputs, concat in the
        # wrapper (avoids masked stores at a non-128 lane offset inside the kernel).
        sin_o, cos_o = pl.pallas_call(
            kernel,
            out_shape=(jax.ShapeDtypeStruct((n, half), jnp.float32),
                       jax.ShapeDtypeStruct((n, half), jnp.float32)),
            grid=grid,
            in_specs=in_specs,
            out_specs=(pl.BlockSpec((tn, half), lambda i: (i, 0)),
                       pl.BlockSpec((tn, half), lambda i: (i, 0))),
            compiler_params=cparams,
            cost_estimate=cost,
        )(*operands)
        out = jnp.concatenate([sin_o, cos_o], axis=-1)
    else:
        out = pl.pallas_call(
            kernel,
            out_shape=jax.ShapeDtypeStruct((n, emb), jnp.float32),
            grid=grid,
            in_specs=in_specs,
            out_specs=pl.BlockSpec((tn, emb), lambda i: (i, 0)),
            compiler_params=cparams,
            cost_estimate=cost,
        )(*operands)

    return out.reshape(*lead, emb)


def gaussian_encoding_ref(x, bvals, avals):
    """Pure-JAX reference (mirrors the PyTorch forward exactly)."""
    proj = TWO_PI * (x @ bvals.T)
    return jnp.concatenate([avals * jnp.sin(proj), avals * jnp.cos(proj)], axis=-1)


def _check(x, bvals, avals, atol=2e-4):
    out = jax.block_until_ready(gaussian_encoding(x, bvals, avals))
    ref = gaussian_encoding_ref(x, bvals, avals)
    assert out.shape == ref.shape, (out.shape, ref.shape)
    err = float(jnp.max(jnp.abs(out - ref)))
    assert err <= atol, f"max abs err = {err}"
    return err


if __name__ == "__main__":
    key = jax.random.PRNGKey(0)
    k1, k2, k3, k4 = jax.random.split(key, 4)

    # --- Case 1: module defaults (gaussian=True, embedding_size=256, dims=2,
    #             scale=10, avals=ones).  Batch of 2 x 500 2-D points ->
    #             flat lane-dense output, avals-skip path, partial last block.
    emb1, dims1, scale1 = 256, 2, 10.0
    bvals1 = jax.random.normal(k1, (emb1 // 2, dims1), jnp.float32) * scale1
    avals1 = jnp.ones((emb1 // 2,), jnp.float32)
    x1 = jax.random.uniform(k2, (2, 500, dims1), jnp.float32)
    _check(x1, bvals1, avals1)

    # --- Case 2: embedding_size=192 (half=96, not a multiple of 128) with non-ones
    #             avals -> split-output + avals-multiply path.
    emb2, dims2, scale2 = 192, 2, 4.0
    bvals2 = jax.random.normal(k3, (emb2 // 2, dims2), jnp.float32) * scale2
    avals2 = jax.random.uniform(k4, (emb2 // 2,), jnp.float32) + 0.5
    x2 = jax.random.uniform(k2, (64, dims2), jnp.float32)
    _check(x2, bvals2, avals2)

    # --- Case 3: half=128 with non-ones avals -> flat output + avals-multiply path.
    avals3 = jax.random.uniform(k4, (emb1 // 2,), jnp.float32) + 0.5
    _check(x1, bvals1, avals3)

    print("KERNEL_OK")
</pallas_src>

<mosaic_0001>
module attributes {stable_mosaic.version = 11 : i64} {
  func.func @kernel(%arg0: i32, %arg1: memref<256x2xf32, #tpu.memory_space<vmem>>, %arg2: memref<2x128xf32, #tpu.memory_space<vmem>>, %arg3: memref<256x256xf32, #tpu.memory_space<vmem>>) attributes {dimension_semantics = [#tpu.dimension_semantics<parallel>], iteration_bounds = array<i64: 4>, scalar_prefetch = 0 : i64, scratch_operands = 0 : i64, tpu.core_type = #tpu.core_type<tc>, window_params = [{transform_indices = @transform_0, window_bounds = array<i64: 256, 2>}, {pipeline_mode = #tpu.pipeline_mode<synchronous>, transform_indices = @transform_1, window_bounds = array<i64: 2, 128>}, {transform_indices = @transform_2, window_bounds = array<i64: 256, 256>}]} {
    %c0 = arith.constant 0 : index
    %c0_0 = arith.constant 0 : index
    %0 = vector.load %arg1[%c0, %c0_0] : memref<256x2xf32, #tpu.memory_space<vmem>>, vector<256x2xf32>
    %c0_1 = arith.constant 0 : index
    %c0_2 = arith.constant 0 : index
    %1 = vector.load %arg2[%c0_1, %c0_2] : memref<2x128xf32, #tpu.memory_space<vmem>>, vector<2x128xf32>
    %cst = arith.constant dense<0.000000e+00> : vector<256x128xf32>
    %2 = tpu.matmul %0, %1, %cst {dimension_numbers = #tpu.dot_dimension_numbers<[1], [0], [0], [1], [0, 0, 1, 1], [], []>} : vector<256x2xf32>, vector<2x128xf32>, vector<256x128xf32> -> vector<256x128xf32>
    %3 = math.sin %2 : vector<256x128xf32>
    %4 = math.cos %2 : vector<256x128xf32>
    %c0_3 = arith.constant 0 : index
    %c0_4 = arith.constant 0 : index
    %5 = vector.load %arg3[%c0_3, %c0_4] : memref<256x256xf32, #tpu.memory_space<vmem>>, vector<256x128xf32>
    tpu.vector_store %arg3[%c0_3, %c0_4], %3 {strides = array<i32>} : memref<256x256xf32, #tpu.memory_space<vmem>>, vector<256x128xf32>,
    %c0_5 = arith.constant 0 : index
    %c128 = arith.constant 128 : index
    %6 = vector.load %arg3[%c0_5, %c128] : memref<256x256xf32, #tpu.memory_space<vmem>>, vector<256x128xf32>
    tpu.vector_store %arg3[%c0_5, %c128], %4 {strides = array<i32>} : memref<256x256xf32, #tpu.memory_space<vmem>>, vector<256x128xf32>,
    return
  }
  func.func @transform_0(%arg0: i32) -> (i32, i32) {
    %c0_i32 = arith.constant 0 : i32
    %c0_i32_0 = arith.constant 0 : i32
    return %arg0, %c0_i32 : i32, i32
  }
  func.func @transform_1(%arg0: i32) -> (i32, i32) {
    %c0_i32 = arith.constant 0 : i32
    %c0_i32_0 = arith.constant 0 : i32
    %c0_i32_1 = arith.constant 0 : i32
    return %c0_i32, %c0_i32_0 : i32, i32
  }
  func.func @transform_2(%arg0: i32) -> (i32, i32) {
    %c0_i32 = arith.constant 0 : i32
    %c0_i32_0 = arith.constant 0 : i32
    return %arg0, %c0_i32 : i32, i32
  }
}

</mosaic_0001>

<llo_original>
// kernel: tpu_custom_call.1
$region0: #{tpu_custom_call.1}
  #allocation0 [shape = 'u32[]', space=smem, size = 0x4, offset = 0x4, fixed_abs, tag = 'smem constant byte address 0x4 - core index']
  #allocation1 [shape = 'u32[144,128]{1,0:T(1,128)}', space=vmem, size = 0x12000, scoped, tag = 'internal scratch']
  %s0 = inlined_call_operand.vmem [shape: f32[1000,2], index: 0, kind: input, shape index: {}]
  %s1 = inlined_call_operand.vmem [shape: f32[2,128], index: 1, kind: input, shape index: {}]
  %s2 = inlined_call_operand.hbm [shape: f32[1000,256], index: 2, kind: output, shape index: {}]
  %s3 = sld [smem:[#allocation0]]
  $region41: #{tpu_custom_call.1} parent=0
    _
  %s5 = ssub.s32 1, %s3
  %s6 = scalar_select 0, %s5, %s3
  $region1: #{tpu_custom_call.1} parent=0
    #allocation2 [shape = 'u8[524288]{0}', space=vmem, size = 0x80000, scoped, tag = 'output window, operand 0']
    #allocation3 [shape = 's32[2]{0}', space=sflag, size = 0x8, scoped, tag = 'scoped memory for tpu_custom_call.1']
    %7 = vsyncpa [#allocation3], 0
    %s8 = scalar_lea.sflag [#allocation3], 1
    %9 = vsyncpa %s8, 0
    loop: start=0, step=1, limit=6
    $region2: #{tpu_custom_call.1} parent=1 // loop_pre_header
      _
    $region3: #{tpu_custom_call.1} parent=1 // loop_header
      %s11 = sphi 0, %s15
      %p12 = scmp.ge.s32.totalorder %s11, 6
      %s21 = sphi 0, %s23
      %s24 = sphi 0, %s21
      %s25 = sphi 0, %s24
      %s41 = sphi 0, %s25
      %s45 = sphi 0, %s45
      %s47 = sphi 0, %s45
      %s48 = sphi 0, %s47
      %s62 = sphi 0, %s48
      %s68 = sphi 0, %s70
      %s71 = sphi 0, %s68
      %s72 = sphi 0, %s71
      %s88 = sphi 0, %s72
    $region4: #{tpu_custom_call.1} parent=1 // loop_header_branch
      %14 = sbr.rel (%p12) target = $region8
    $region5: #{tpu_custom_call.1} parent=1 // loop_body
      %s16 = ssub.s32 %s11, 1
      %s17 = ssub.s32 %s11, 2
      %s18 = sadd.s32 %s11, 1
      %s19 = ssub.s32 %s11, %s18
      %p20 = scmp.eq.s32.totalorder %s19, 0
      %s22 = sadd.s32 %s21, 1
      %s23 = scalar_select %p20, %s21, %s22
      %p26 = pneg %p20
      %p27 = scmp.eq.s32.totalorder %s11, 3
      %p28 = por %p26, %p27
      %p29 = scmp.ne.s32.totalorder %s21, %s24
      %p30 = scmp.eq.s32.totalorder %s11, 0
      %p31 = por %p29, %p30
      %p32 = scmp.ne.s32.totalorder %s21, %s24
      %p33 = scmp.eq.s32.totalorder %s16, 3
      %p34 = por %p32, %p33
      %p35 = scmp.ne.s32.totalorder %s24, %s25
      %p36 = scmp.eq.s32.totalorder %s16, 0
      %p37 = por %p35, %p36
      %p38 = scmp.ne.s32.totalorder %s24, %s25
      %p39 = scmp.eq.s32.totalorder %s17, 3
      %p40 = por %p38, %p39
      %p42 = scmp.ne.s32.totalorder %s25, %s41
      %p43 = scmp.eq.s32.totalorder %s17, 0
      %p44 = por %p42, %p43
      %s46 = sadd.s32 %s45, 1
      %p49 = scmp.eq.s32.totalorder %s11, 3
      %p50 = scmp.ne.s32.totalorder %s45, %s47
      %p51 = scmp.eq.s32.totalorder %s11, 0
      %p52 = por %p50, %p51
      %p53 = scmp.ne.s32.totalorder %s45, %s47
      %p54 = scmp.eq.s32.totalorder %s16, 3
      %p55 = por %p53, %p54
      %p56 = scmp.ne.s32.totalorder %s47, %s48
      %p57 = scmp.eq.s32.totalorder %s16, 0
      %p58 = por %p56, %p57
      %p59 = scmp.ne.s32.totalorder %s47, %s48
      %p60 = scmp.eq.s32.totalorder %s17, 3
      %p61 = por %p59, %p60
      %p63 = scmp.ne.s32.totalorder %s48, %s62
      %p64 = scmp.eq.s32.totalorder %s17, 0
      %p65 = por %p63, %p64
      %s66 = ssub.s32 %s11, %s18
      %p67 = scmp.eq.s32.totalorder %s66, 0
      %s69 = sadd.s32 %s68, 1
      %s70 = scalar_select %p67, %s68, %s69
      %p73 = pneg %p67
      %p74 = scmp.eq.s32.totalorder %s11, 3
      %p75 = por %p73, %p74
      %p76 = scmp.ne.s32.totalorder %s68, %s71
      %p77 = scmp.eq.s32.totalorder %s11, 0
      %p78 = por %p76, %p77
      %p79 = scmp.ne.s32.totalorder %s68, %s71
      %p80 = scmp.eq.s32.totalorder %s16, 3
      %p81 = por %p79, %p80
      %p82 = scmp.ne.s32.totalorder %s71, %s72
      %p83 = scmp.eq.s32.totalorder %s16, 0
      %p84 = por %p82, %p83
      %p85 = scmp.ne.s32.totalorder %s71, %s72
      %p86 = scmp.eq.s32.totalorder %s17, 3
      %p87 = por %p85, %p86
      %p89 = scmp.ne.s32.totalorder %s72, %s88
      %p90 = scmp.eq.s32.totalorder %s17, 0
      %p91 = por %p89, %p90
      %p92 = scmp.le.s32.totalorder 1, %s11
      %p93 = scmp.lt.s32.totalorder %s11, 5
      %p94 = pnand %p92, %p93
      %p95 = pneg %p94
      // Predicated region
      $region9: #{tpu_custom_call.1} parent=5 // pred_check
        _
      $region10: #{tpu_custom_call.1} parent=5 // pred_check_branch
        %97 = sbr.rel (%p94) target = $region12
      $region11: #{tpu_custom_call.1} parent=5 // pred_region
        %s98 = ssub.s32 %s11, 1
        // Predicated region
        $region13: #{tpu_custom_call.1} parent=11 // pred_check
          %p99 = pneg %p58
        $region14: #{tpu_custom_call.1} parent=11 // pred_check_branch
          %101 = sbr.rel (%p99) target = $region16
        $region15: #{tpu_custom_call.1} parent=11 // pred_region
          _
        $region16: #{tpu_custom_call.1} parent=11 // pred_fallthru
          _
      $region12: #{tpu_custom_call.1} parent=5 // pred_fallthru
        _
      %p102 = scmp.lt.s32.totalorder %s11, 4
      // Predicated region
      $region17: #{tpu_custom_call.1} parent=5 // pred_check
        %p103 = pneg %p102
      $region18: #{tpu_custom_call.1} parent=5 // pred_check_branch
        %105 = sbr.rel (%p103) target = $region20
      $region19: #{tpu_custom_call.1} parent=5 // pred_region
        // Predicated region
        $region21: #{tpu_custom_call.1} parent=19 // pred_check
          %p106 = pneg %p31
        $region22: #{tpu_custom_call.1} parent=19 // pred_check_branch
          %108 = sbr.rel (%p106) target = $region24
        $region23: #{tpu_custom_call.1} parent=19 // pred_region
          %s109 = smul.u32 32, %s11
          %s110 = ssub.s32 125, %s109
          %p111 = scmp.lt.s32.totalorder %s110, 32
          %s112 = scalar_select %p111, %s110, 32
          %s113 = smul.u32 128, %s112
          %p114 = scmp.lt.s32.totalorder %s109, 124
          %s115 = scalar_select %p114, %s109, 124
          %s116 = smul.addr %s115, 8
          %s117 = scalar_lea.vmem %s0, %s116
          %s118 = smul.u32 32, %s11
          %s119 = ssub.s32 125, %s118
          %p120 = scmp.lt.s32.totalorder %s119, 32
          %s121 = scalar_select %p120, %s119, 32
          %s122 = smul.u32 128, %s121
        $region24: #{tpu_custom_call.1} parent=19 // pred_fallthru
          _
      $region20: #{tpu_custom_call.1} parent=5 // pred_fallthru
        _
      %p123 = scmp.le.s32.totalorder 1, %s11
      %p124 = scmp.lt.s32.totalorder %s11, 5
      %p125 = pnand %p123, %p124
      %p126 = pneg %p125
      // Predicated region
      $region25: #{tpu_custom_call.1} parent=5 // pred_check
        _
      $region26: #{tpu_custom_call.1} parent=5 // pred_check_branch
        %128 = sbr.rel (%p125) target = $region28
      $region27: #{tpu_custom_call.1} parent=5 // pred_region
        %s129 = ssub.s32 %s11, 1
        %s130 = smul.u32 32, %s16
        %s131 = ssub.s32 125, %s130
        %p132 = scmp.lt.s32.totalorder %s131, 32
        %s133 = scalar_select %p132, %s131, 32
        %s134 = smul.u32 128, %s133
        %p135 = scmp.lt.s32.totalorder %s130, 124
        %s136 = scalar_select %p135, %s130, 124
        %s137 = smul.addr %s136, 8
        %s138 = scalar_lea.vmem %s0, %s137
        %p139 = pneg %p37
        %p140 = pneg %p34
        %p141 = pneg %p58
        %p142 = pneg %p55
        %p143 = pneg %p84
        %p144 = pneg %p81
        %s145 = sand.u32 %s71, 1
        %s146 = scalar_lea.sflag [#allocation3], %s145
        %s147 = sand.u32 %s71, 1
        %s148 = smul.addr %s147, 512
        %s149 = scalar_lea.vmem [#allocation2], %s148
        %s150 = smul.u32 32, %s16
        %s151 = ssub.s32 125, %s150
        %p152 = scmp.lt.s32.totalorder %s151, 32
        %s153 = scalar_select %p152, %s151, 32
        %s154 = smul.u32 128, %s153
        %p155 = scmp.lt.s32.totalorder %s150, 124
        %s156 = scalar_select %p155, %s150, 124
        %s157 = smul.addr %s156, 8
        %s158 = scalar_lea.vmem %s0, %s157
        %s159 = smul.u32 32, %s16
        %s160 = ssub.s32 125, %s159
        %p161 = scmp.lt.s32.totalorder %s160, 32
        %s162 = scalar_select %p161, %s160, 32
        %s163 = smul.u32 128, %s162
        %s164 = smul.u32 32, %s16
        %s165 = ssub.s32 125, %s164
        %p166 = scmp.lt.s32.totalorder %s165, 32
        %s167 = scalar_select %p166, %s165, 32
        %s168 = smul.u32 128, %s167
        %s169 = smul.u32 %s168, 2
        %v170 = vld [vmem:[%s158] sm:$0xff]
        %v171 = vld [vmem:[%s158 + $0x8] sm:$0xff]
        %v172 = vld [vmem:[%s158 + $0x10] sm:$0xff]
        %v173 = vld [vmem:[%s158 + $0x18] sm:$0xff]
        %v174 = vld [vmem:[%s158 + $0x20] sm:$0xff]
        %v175 = vld [vmem:[%s158 + $0x28] sm:$0xff]
        %v176 = vld [vmem:[%s158 + $0x30] sm:$0xff]
        %v177 = vld [vmem:[%s158 + $0x38] sm:$0xff]
        %v178 = vld [vmem:[%s158 + $0x40] sm:$0xff]
        %v179 = vld [vmem:[%s158 + $0x48] sm:$0xff]
        %v180 = vld [vmem:[%s158 + $0x50] sm:$0xff]
        %v181 = vld [vmem:[%s158 + $0x58] sm:$0xff]
        %v182 = vld [vmem:[%s158 + $0x60] sm:$0xff]
        %v183 = vld [vmem:[%s158 + $0x68] sm:$0xff]
        %v184 = vld [vmem:[%s158 + $0x70] sm:$0xff]
        %v185 = vld [vmem:[%s158 + $0x78] sm:$0xff]
        %v186 = vld [vmem:[%s158 + $0x80] sm:$0xff]
        %v187 = vld [vmem:[%s158 + $0x88] sm:$0xff]
        %v188 = vld [vmem:[%s158 + $0x90] sm:$0xff]
        %v189 = vld [vmem:[%s158 + $0x98] sm:$0xff]
        %v190 = vld [vmem:[%s158 + $0xa0] sm:$0xff]
        %v191 = vld [vmem:[%s158 + $0xa8] sm:$0xff]
        %v192 = vld [vmem:[%s158 + $0xb0] sm:$0xff]
        %v193 = vld [vmem:[%s158 + $0xb8] sm:$0xff]
        %v194 = vld [vmem:[%s158 + $0xc0] sm:$0xff]
        %v195 = vld [vmem:[%s158 + $0xc8] sm:$0xff]
        %v196 = vld [vmem:[%s158 + $0xd0] sm:$0xff]
        %v197 = vld [vmem:[%s158 + $0xd8] sm:$0xff]
        %v198 = vld [vmem:[%s158 + $0xe0] sm:$0xff]
        %v199 = vld [vmem:[%s158 + $0xe8] sm:$0xff]
        %v200 = vld [vmem:[%s158 + $0xf0] sm:$0xff]
        %v201 = vld [vmem:[%s158 + $0xf8] sm:$0xff]
        %v202 = vld [vmem:[%s1] sm:$0x3]
        %vm203 = vcmask 15360
        %v205 = vsel %vm203, %v170, 0
        %v208 = vsel %vm203, %v171, 0
        %v211 = vsel %vm203, %v172, 0
        %v214 = vsel %vm203, %v173, 0
        %v217 = vsel %vm203, %v174, 0
        %v220 = vsel %vm203, %v175, 0
        %v223 = vsel %vm203, %v176, 0
        %v226 = vsel %vm203, %v177, 0
        %v229 = vsel %vm203, %v178, 0
        %v232 = vsel %vm203, %v179, 0
        %v235 = vsel %vm203, %v180, 0
        %v238 = vsel %vm203, %v181, 0
        %v241 = vsel %vm203, %v182, 0
        %v244 = vsel %vm203, %v183, 0
        %v247 = vsel %vm203, %v184, 0
        %v250 = vsel %vm203, %v185, 0
        %v253 = vsel %vm203, %v186, 0
        %v256 = vsel %vm203, %v187, 0
        %v259 = vsel %vm203, %v188, 0
        %v262 = vsel %vm203, %v189, 0
        %v265 = vsel %vm203, %v190, 0
        %v268 = vsel %vm203, %v191, 0
        %v271 = vsel %vm203, %v192, 0
        %v274 = vsel %vm203, %v193, 0
        %v277 = vsel %vm203, %v194, 0
        %v280 = vsel %vm203, %v195, 0
        %v283 = vsel %vm203, %v196, 0
        %v286 = vsel %vm203, %v197, 0
        %v289 = vsel %vm203, %v198, 0
        %v292 = vsel %vm203, %v199, 0
        %v295 = vsel %vm203, %v200, 0
        %v298 = vsel %vm203, %v201, 0
        %vm300 = vcmask 1041408
        %v302 = vsel %vm300, %v202, 0
        %304 = vmatprep.subr.mxu0 0.0
        %305 = vmatpush1.msra.mxu0 %v302
        %306 = vmatprep.subr.mxu0 0.0
        %307 = vmatpush1.msra.mxu0 0.0
        %308 = vmatprep.subr.mxu0 0.0
        %309 = vmatpush1.msra.mxu0 0.0
        %310 = vmatprep.subr.mxu0 0.0
        %311 = vmatpush1.msra.mxu0 0.0
        %312 = vmatprep.subr.mxu0 0.0
        %313 = vmatpush1.msra.mxu0 0.0
        %314 = vmatprep.subr.mxu0 0.0
        %315 = vmatpush1.msra.mxu0 0.0
        %316 = vmatprep.subr.mxu0 0.0
        %317 = vmatpush1.msra.mxu0 0.0
        %318 = vmatprep.subr.mxu0 0.0
        %319 = vmatpush1.msra.mxu0 0.0
        %320 = vmatprep.subr.mxu0 0.0
        %321 = vmatpush1.msra.mxu0 0.0
        %322 = vmatprep.subr.mxu0 0.0
        %323 = vmatpush1.msra.mxu0 0.0
        %324 = vmatprep.subr.mxu0 0.0
        %325 = vmatpush1.msra.mxu0 0.0
        %326 = vmatprep.subr.mxu0 0.0
        %327 = vmatpush1.msra.mxu0 0.0
        %328 = vmatprep.subr.mxu0 0.0
        %329 = vmatpush1.msra.mxu0 0.0
        %330 = vmatprep.subr.mxu0 0.0
        %331 = vmatpush1.msra.mxu0 0.0
        %332 = vmatprep.subr.mxu0 0.0
        %333 = vmatpush1.msra.mxu0 0.0
        %334 = vmatprep.subr.mxu0 0.0
        %335 = vmatpush1.msra.mxu0 0.0
        %336 = vmatprep.subr.mxu0 0.0
        %337 = vmatpush1.msra.mxu0 0.0
        %338 = vmatprep.subr.mxu0 0.0
        %339 = vmatpush1.msra.mxu0 0.0
        %340 = vmatprep.subr.mxu0 0.0
        %341 = vmatpush1.msra.mxu0 0.0
        %342 = vmatprep.subr.mxu0 0.0
        %343 = vmatpush1.msra.mxu0 0.0
        %344 = vmatprep.subr.mxu0 0.0
        %345 = vmatpush1.msra.mxu0 0.0
        %346 = vmatprep.subr.mxu0 0.0
        %347 = vmatpush1.msra.mxu0 0.0
        %348 = vmatprep.subr.mxu0 0.0
        %349 = vmatpush1.msra.mxu0 0.0
        %350 = vmatprep.subr.mxu0 0.0
        %351 = vmatpush1.msra.mxu0 0.0
        %352 = vmatprep.subr.mxu0 0.0
        %353 = vmatpush1.msra.mxu0 0.0
        %354 = vmatprep.subr.mxu0 0.0
        %355 = vmatpush1.msra.mxu0 0.0
        %356 = vmatprep.subr.mxu0 0.0
        %357 = vmatpush1.msra.mxu0 0.0
        %358 = vmatprep.subr.mxu0 0.0
        %359 = vmatpush1.msra.mxu0 0.0
        %360 = vmatprep.subr.mxu0 0.0
        %361 = vmatpush1.msra.mxu0 0.0
        %362 = vmatprep.subr.mxu0 0.0
        %363 = vmatpush1.msra.mxu0 0.0
        %364 = vmatprep.subr.mxu0 0.0
        %365 = vmatpush1.msra.mxu0 0.0
        %366 = vmatprep.subr.mxu0 0.0
        %367 = vmatpush1.msra.mxu0 0.0
        %368 = vmatprep.mubr.f32.mxu0 0.0
        %369 = vmatmul.mubr.f32.gmra.mrb[0].mxu0 %v205
        %v370 = vpop.f32.mrb[0].mxu0
        %v371 = vadd.f32 0.0, %v370
        %v372 = vpop.f32.mrb[0].mxu0
        %373 = vmatprep.mubr.f32.mxu0 0.0
        %374 = vmatmul.mubr.f32.gmra.mrb[0].mxu0 %v208
        %v375 = vpop.f32.mrb[0].mxu0
        %v376 = vadd.f32 0.0, %v375
        %v377 = vpop.f32.mrb[0].mxu0
        %378 = vmatprep.mubr.f32.mxu0 0.0
        %379 = vmatmul.mubr.f32.gmra.mrb[0].mxu0 %v211
        %v380 = vpop.f32.mrb[0].mxu0
        %v381 = vadd.f32 0.0, %v380
        %v382 = vpop.f32.mrb[0].mxu0
        %383 = vmatprep.mubr.f32.mxu0 0.0
        %384 = vmatmul.mubr.f32.gmra.mrb[0].mxu0 %v214
        %v385 = vpop.f32.mrb[0].mxu0
        %v386 = vadd.f32 0.0, %v385
        %v387 = vpop.f32.mrb[0].mxu0
        %388 = vmatprep.mubr.f32.mxu0 0.0
        %389 = vmatmul.mubr.f32.gmra.mrb[0].mxu0 %v217
        %v390 = vpop.f32.mrb[0].mxu0
        %v391 = vadd.f32 0.0, %v390
        %v392 = vpop.f32.mrb[0].mxu0
        %393 = vmatprep.mubr.f32.mxu0 0.0
        %394 = vmatmul.mubr.f32.gmra.mrb[0].mxu0 %v220
        %v395 = vpop.f32.mrb[0].mxu0
        %v396 = vadd.f32 0.0, %v395
        %v397 = vpop.f32.mrb[0].mxu0
        %398 = vmatprep.mubr.f32.mxu0 0.0
        %399 = vmatmul.mubr.f32.gmra.mrb[0].mxu0 %v223
        %v400 = vpop.f32.mrb[0].mxu0
        %v401 = vadd.f32 0.0, %v400
        %v402 = vpop.f32.mrb[0].mxu0
        %403 = vmatprep.mubr.f32.mxu0 0.0
        %404 = vmatmul.mubr.f32.gmra.mrb[0].mxu0 %v226
        %v405 = vpop.f32.mrb[0].mxu0
        %v406 = vadd.f32 0.0, %v405
        %v407 = vpop.f32.mrb[0].mxu0
        %408 = vmatprep.mubr.f32.mxu0 0.0
        %409 = vmatmul.mubr.f32.gmra.mrb[0].mxu0 %v229
        %v410 = vpop.f32.mrb[0].mxu0
        %v411 = vadd.f32 0.0, %v410
        %v412 = vpop.f32.mrb[0].mxu0
        %413 = vmatprep.mubr.f32.mxu0 0.0
        %414 = vmatmul.mubr.f32.gmra.mrb[0].mxu0 %v232
        %v415 = vpop.f32.mrb[0].mxu0
        %v416 = vadd.f32 0.0, %v415
        %v417 = vpop.f32.mrb[0].mxu0
        %418 = vmatprep.mubr.f32.mxu0 0.0
        %419 = vmatmul.mubr.f32.gmra.mrb[0].mxu0 %v235
        %v420 = vpop.f32.mrb[0].mxu0
        %v421 = vadd.f32 0.0, %v420
        %v422 = vpop.f32.mrb[0].mxu0
        %423 = vmatprep.mubr.f32.mxu0 0.0
        %424 = vmatmul.mubr.f32.gmra.mrb[0].mxu0 %v238
        %v425 = vpop.f32.mrb[0].mxu0
        %v426 = vadd.f32 0.0, %v425
        %v427 = vpop.f32.mrb[0].mxu0
        %428 = vmatprep.mubr.f32.mxu0 0.0
        %429 = vmatmul.mubr.f32.gmra.mrb[0].mxu0 %v241
        %v430 = vpop.f32.mrb[0].mxu0
        %v431 = vadd.f32 0.0, %v430
        %v432 = vpop.f32.mrb[0].mxu0
        %433 = vmatprep.mubr.f32.mxu0 0.0
        %434 = vmatmul.mubr.f32.gmra.mrb[0].mxu0 %v244
        %v435 = vpop.f32.mrb[0].mxu0
        %v436 = vadd.f32 0.0, %v435
        %v437 = vpop.f32.mrb[0].mxu0
        %438 = vmatprep.mubr.f32.mxu0 0.0
        %439 = vmatmul.mubr.f32.gmra.mrb[0].mxu0 %v247
        %v440 = vpop.f32.mrb[0].mxu0
        %v441 = vadd.f32 0.0, %v440
        %v442 = vpop.f32.mrb[0].mxu0
        %443 = vmatprep.mubr.f32.mxu0 0.0
        %444 = vmatmul.mubr.f32.gmra.mrb[0].mxu0 %v250
        %v445 = vpop.f32.mrb[0].mxu0
        %v446 = vadd.f32 0.0, %v445
        %v447 = vpop.f32.mrb[0].mxu0
        %448 = vmatprep.mubr.f32.mxu0 0.0
        %449 = vmatmul.mubr.f32.gmra.mrb[0].mxu0 %v253
        %v450 = vpop.f32.mrb[0].mxu0
        %v451 = vadd.f32 0.0, %v450
        %v452 = vpop.f32.mrb[0].mxu0
        %453 = vmatprep.mubr.f32.mxu0 0.0
        %454 = vmatmul.mubr.f32.gmra.mrb[0].mxu0 %v256
        %v455 = vpop.f32.mrb[0].mxu0
        %v456 = vadd.f32 0.0, %v455
        %v457 = vpop.f32.mrb[0].mxu0
        %458 = vmatprep.mubr.f32.mxu0 0.0
        %459 = vmatmul.mubr.f32.gmra.mrb[0].mxu0 %v259
        %v460 = vpop.f32.mrb[0].mxu0
        %v461 = vadd.f32 0.0, %v460
        %v462 = vpop.f32.mrb[0].mxu0
        %463 = vmatprep.mubr.f32.mxu0 0.0
        %464 = vmatmul.mubr.f32.gmra.mrb[0].mxu0 %v262
        %v465 = vpop.f32.mrb[0].mxu0
        %v466 = vadd.f32 0.0, %v465
        %v467 = vpop.f32.mrb[0].mxu0
        %468 = vmatprep.mubr.f32.mxu0 0.0
        %469 = vmatmul.mubr.f32.gmra.mrb[0].mxu0 %v265
        %v470 = vpop.f32.mrb[0].mxu0
        %v471 = vadd.f32 0.0, %v470
        %v472 = vpop.f32.mrb[0].mxu0
        %473 = vmatprep.mubr.f32.mxu0 0.0
        %474 = vmatmul.mubr.f32.gmra.mrb[0].mxu0 %v268
        %v475 = vpop.f32.mrb[0].mxu0
        %v476 = vadd.f32 0.0, %v475
        %v477 = vpop.f32.mrb[0].mxu0
        %478 = vmatprep.mubr.f32.mxu0 0.0
        %479 = vmatmul.mubr.f32.gmra.mrb[0].mxu0 %v271
        %v480 = vpop.f32.mrb[0].mxu0
        %v481 = vadd.f32 0.0, %v480
        %v482 = vpop.f32.mrb[0].mxu0
        %483 = vmatprep.mubr.f32.mxu0 0.0
        %484 = vmatmul.mubr.f32.gmra.mrb[0].mxu0 %v274
        %v485 = vpop.f32.mrb[0].mxu0
        %v486 = vadd.f32 0.0, %v485
        %v487 = vpop.f32.mrb[0].mxu0
        %488 = vmatprep.mubr.f32.mxu0 0.0
        %489 = vmatmul.mubr.f32.gmra.mrb[0].mxu0 %v277
        %v490 = vpop.f32.mrb[0].mxu0
        %v491 = vadd.f32 0.0, %v490
        %v492 = vpop.f32.mrb[0].mxu0
        %493 = vmatprep.mubr.f32.mxu0 0.0
        %494 = vmatmul.mubr.f32.gmra.mrb[0].mxu0 %v280
        %v495 = vpop.f32.mrb[0].mxu0
        %v496 = vadd.f32 0.0, %v495
        %v497 = vpop.f32.mrb[0].mxu0
        %498 = vmatprep.mubr.f32.mxu0 0.0
        %499 = vmatmul.mubr.f32.gmra.mrb[0].mxu0 %v283
        %v500 = vpop.f32.mrb[0].mxu0
        %v501 = vadd.f32 0.0, %v500
        %v502 = vpop.f32.mrb[0].mxu0
        %503 = vmatprep.mubr.f32.mxu0 0.0
        %504 = vmatmul.mubr.f32.gmra.mrb[0].mxu0 %v286
        %v505 = vpop.f32.mrb[0].mxu0
        %v506 = vadd.f32 0.0, %v505
        %v507 = vpop.f32.mrb[0].mxu0
        %508 = vmatprep.mubr.f32.mxu0 0.0
        %509 = vmatmul.mubr.f32.gmra.mrb[0].mxu0 %v289
        %v510 = vpop.f32.mrb[0].mxu0
        %v511 = vadd.f32 0.0, %v510
        %v512 = vpop.f32.mrb[0].mxu0
        %513 = vmatprep.mubr.f32.mxu0 0.0
        %514 = vmatmul.mubr.f32.gmra.mrb[0].mxu0 %v292
        %v515 = vpop.f32.mrb[0].mxu0
        %v516 = vadd.f32 0.0, %v515
        %v517 = vpop.f32.mrb[0].mxu0
        %518 = vmatprep.mubr.f32.mxu0 0.0
        %519 = vmatmul.mubr.f32.gmra.mrb[0].mxu0 %v295
        %v520 = vpop.f32.mrb[0].mxu0
        %v521 = vadd.f32 0.0, %v520
        %v522 = vpop.f32.mrb[0].mxu0
        %523 = vmatprep.mubr.f32.mxu0 0.0
        %524 = vmatmul.mubr.f32.gmra.mrb[0].mxu0 %v298
        %v525 = vpop.f32.mrb[0].mxu0
        %v526 = vadd.f32 0.0, %v525
        %v527 = vpop.f32.mrb[0].mxu0
        %528 = vdwg.mxu0
        %v529 = vand.u32 2147483647, %v371
        %vm530 = vcmp.le.f32.partialorder %v529, 0.7853982
        %vm531 = vcmp.lt.s32.totalorder %v371, 0
        %v532 = vand.u32 %v371, 2139095040
        %v533 = vshrl.u32 %v532, 23
        %v534 = vsub.s32 %v533, 127
        %v535 = vand.u32 2147483647, %v371
        %v536 = vand.u32 %v535, 8388607
        %v537 = vor.u32 %v536, 8388608
        %v538 = vsub.s32 0, %v537
        %v539 = vadd.s32 %v534, 1
        %vm540 = vcmp.gt.s32.totalorder %v539, 0
        %v541 = vsel %vm540, %v539, 0
        %v542 = vshrl.u32 %v541, 5
        %v543 = vand.u32 %v541, 31
        %v544 = vsub.s32 32, %v543
        %v545 = vshrl.u32 683565275, %v544
        %v546 = vshll.u32 683565275, %v543
        %v547 = vshrl.u32 2475754826, %v544
        %v548 = vor.u32 %v546, %v547
        %v549 = vshll.u32 2475754826, %v543
        %v550 = vshrl.u32 2131351028, %v544
        %v551 = vor.u32 %v549, %v550
        %v552 = vshll.u32 2131351028, %v543
        %v553 = vshrl.u32 2102212464, %v544
        %v554 = vor.u32 %v552, %v553
        %v555 = vshll.u32 2102212464, %v543
        %v556 = vshrl.u32 920167782, %v544
        %v557 = vor.u32 %v555, %v556
        %v558 = vshll.u32 920167782, %v543
        %v559 = vshrl.u32 1326507024, %v544
        %v560 = vor.u32 %v558, %v559
        %vm561 = vcmp.lt.s32.totalorder %v542, 1
        %vm562 = vcmp.lt.s32.totalorder %v542, 2
        %vm563 = vcmp.lt.s32.totalorder %v542, 3
        %vm564 = vcmp.lt.s32.totalorder %v542, 4
        %v565 = vsel %vm561, %v545, %v548
        %v566 = vsel %vm564, %v554, 2102212464
        %v567 = vsel %vm563, %v551, %v566
        %v568 = vsel %vm562, %v565, %v567
        %v569 = vsel %vm561, %v548, %v551
        %v570 = vsel %vm564, %v557, 920167782
        %v571 = vsel %vm563, %v554, %v570
        %v572 = vsel %vm562, %v569, %v571
        %v573 = vsel %vm561, %v551, %v554
        %v574 = vsel %vm564, %v560, 1326507024
        %v575 = vsel %vm563, %v557, %v574
        %v576 = vsel %vm562, %v573, %v575
        %v577 = vshll.u32 %v537, 8
        %v578 = vmul.u32.u64.compose %v577, %v576
        %v579 = vextract.low.u32 %v578
        %v580 = vextract.high.u32 %v578
        %v581 = vmul.u32.u64.compose %v577, %v572
        %v582 = vextract.low.u32 %v581
        %v583 = vextract.high.u32 %v581
        %v584 = vmul.u32 %v577, %v568
        %v585 = vadd.s32 %v580, %v582
        %vm586 = vc.u32 %v580, %v582
        %v587 = vadd.s32 %v583, 1
        %v588 = vsel %vm586, %v587, %v583
        %v589 = vadd.s32 %v584, %v588
        %v590 = vadd.s32 %v589, 536870912
        %v591 = vshrl.u32 %v590, 30
        %v592 = vshll.u32 %v591, 30
        %v593 = vsub.s32 %v589, %v592
        %vm594 = vcmp.lt.s32.totalorder %v593, 0
        %v595 = vsub.s32 0, %v593
        %v596 = vsel %vm594, %v595, %v593
        %v597 = vclz %v596
        %v598 = vsub.s32 %v597, 2
        %vm599 = vcmp.gt.s32.totalorder 0, %v598
        %v600 = vsel %vm599, 0, %v598
        %v601 = vsub.s32 32, %v600
        %v602 = vshll.u32 %v593, %v600
        %v603 = vshrl.u32 %v585, %v601
        %v604 = vor.u32 %v602, %v603
        %v605 = vsub.s32 4294967266, %v600
        %v606 = vadd.s32 %v605, 127
        %v607 = vshll.u32 %v606, 23
        %v608 = vor.u32 4788187, %v607
        %v609 = vand.u32 2147483647, %v608
        %v611 = vcvt.s32.f32 %v604
        %v612 = vmul.f32 %v611, %v609
        %v613 = vxor.u32 %v612, 2147483648
        %v614 = vsel %vm531, %v613, %v612
        %v615 = vsub.s32 4, %v591
        %v616 = vsel %vm531, %v615, %v591
        %v617 = vsel %vm530, %v371, %v614
        %v618 = vsel %vm530, 0, %v616
        %v619 = vcosq.f32.pop %v617
        %v620 = vsinq.f32.pop %v617
        %vm621 = vweird.f32 %v371
        %v622 = vadd.s32 %v618, 3
        %v623 = vand.u32 %v622, 3
        %vm624 = vcmp.lt.s32.totalorder %v623, 2
        %vm625 = vcmp.eq.s32.totalorder %v623, 0
        %v626 = vxor.u32 %v620, 2147483648
        %v627 = vsel %vm625, %v619, %v626
        %vm628 = vcmp.eq.s32.totalorder %v623, 2
        %v629 = vxor.u32 %v619, 2147483648
        %v630 = vsel %vm628, %v629, %v620
        %v631 = vsel %vm624, %v627, %v630
        %v632 = vsel %vm621, nan, %v631
        %v633 = vand.u32 2147483647, %v376
        %vm634 = vcmp.le.f32.partialorder %v633, 0.7853982
        %vm635 = vcmp.lt.s32.totalorder %v376, 0
        %v636 = vand.u32 %v376, 2139095040
        %v637 = vshrl.u32 %v636, 23
        %v638 = vsub.s32 %v637, 127
        %v639 = vand.u32 2147483647, %v376
        %v640 = vand.u32 %v639, 8388607
        %v641 = vor.u32 %v640, 8388608
        %v642 = vsub.s32 0, %v641
        %v643 = vadd.s32 %v638, 1
        %vm644 = vcmp.gt.s32.totalorder %v643, 0
        %v645 = vsel %vm644, %v643, 0
        %v646 = vshrl.u32 %v645, 5
        %v647 = vand.u32 %v645, 31
        %v648 = vsub.s32 32, %v647
        %v649 = vshrl.u32 683565275, %v648
        %v650 = vshll.u32 683565275, %v647
        %v651 = vshrl.u32 2475754826, %v648
        %v652 = vor.u32 %v650, %v651
        %v653 = vshll.u32 2475754826, %v647
        %v654 = vshrl.u32 2131351028, %v648
        %v655 = vor.u32 %v653, %v654
        %v656 = vshll.u32 2131351028, %v647
        %v657 = vshrl.u32 2102212464, %v648
        %v658 = vor.u32 %v656, %v657
        %v659 = vshll.u32 2102212464, %v647
        %v660 = vshrl.u32 920167782, %v648
        %v661 = vor.u32 %v659, %v660
        %v662 = vshll.u32 920167782, %v647
        %v663 = vshrl.u32 1326507024, %v648
        %v664 = vor.u32 %v662, %v663
        %vm665 = vcmp.lt.s32.totalorder %v646, 1
        %vm666 = vcmp.lt.s32.totalorder %v646, 2
        %vm667 = vcmp.lt.s32.totalorder %v646, 3
        %vm668 = vcmp.lt.s32.totalorder %v646, 4
        %v669 = vsel %vm665, %v649, %v652
        %v670 = vsel %vm668, %v658, 2102212464
        %v671 = vsel %vm667, %v655, %v670
        %v672 = vsel %vm666, %v669, %v671
        %v673 = vsel %vm665, %v652, %v655
        %v674 = vsel %vm668, %v661, 920167782
        %v675 = vsel %vm667, %v658, %v674
        %v676 = vsel %vm666, %v673, %v675
        %v677 = vsel %vm665, %v655, %v658
        %v678 = vsel %vm668, %v664, 1326507024
        %v679 = vsel %vm667, %v661, %v678
        %v680 = vsel %vm666, %v677, %v679
        %v681 = vshll.u32 %v641, 8
        %v682 = vmul.u32.u64.compose %v681, %v680
        %v683 = vextract.low.u32 %v682
        %v684 = vextract.high.u32 %v682
        %v685 = vmul.u32.u64.compose %v681, %v676
        %v686 = vextract.low.u32 %v685
        %v687 = vextract.high.u32 %v685
        %v688 = vmul.u32 %v681, %v672
        %v689 = vadd.s32 %v684, %v686
        %vm690 = vc.u32 %v684, %v686
        %v691 = vadd.s32 %v687, 1
        %v692 = vsel %vm690, %v691, %v687
        %v693 = vadd.s32 %v688, %v692
        %v694 = vadd.s32 %v693, 536870912
        %v695 = vshrl.u32 %v694, 30
        %v696 = vshll.u32 %v695, 30
        %v697 = vsub.s32 %v693, %v696
        %vm698 = vcmp.lt.s32.totalorder %v697, 0
        %v699 = vsub.s32 0, %v697
        %v700 = vsel %vm698, %v699, %v697
        %v701 = vclz %v700
        %v702 = vsub.s32 %v701, 2
        %vm703 = vcmp.gt.s32.totalorder 0, %v702
        %v704 = vsel %vm703, 0, %v702
        %v705 = vsub.s32 32, %v704
        %v706 = vshll.u32 %v697, %v704
        %v707 = vshrl.u32 %v689, %v705
        %v708 = vor.u32 %v706, %v707
        %v709 = vsub.s32 4294967266, %v704
        %v710 = vadd.s32 %v709, 127
        %v711 = vshll.u32 %v710, 23
        %v712 = vor.u32 4788187, %v711
        %v713 = vand.u32 2147483647, %v712
        %v715 = vcvt.s32.f32 %v708
        %v716 = vmul.f32 %v715, %v713
        %v717 = vxor.u32 %v716, 2147483648
        %v718 = vsel %vm635, %v717, %v716
        %v719 = vsub.s32 4, %v695
        %v720 = vsel %vm635, %v719, %v695
        %v721 = vsel %vm634, %v376, %v718
        %v722 = vsel %vm634, 0, %v720
        %v723 = vcosq.f32.pop %v721
        %v724 = vsinq.f32.pop %v721
        %vm725 = vweird.f32 %v376
        %v726 = vadd.s32 %v722, 3
        %v727 = vand.u32 %v726, 3
        %vm728 = vcmp.lt.s32.totalorder %v727, 2
        %vm729 = vcmp.eq.s32.totalorder %v727, 0
        %v730 = vxor.u32 %v724, 2147483648
        %v731 = vsel %vm729, %v723, %v730
        %vm732 = vcmp.eq.s32.totalorder %v727, 2
        %v733 = vxor.u32 %v723, 2147483648
        %v734 = vsel %vm732, %v733, %v724
        %v735 = vsel %vm728, %v731, %v734
        %v736 = vsel %vm725, nan, %v735
        %v737 = vand.u32 2147483647, %v381
        %vm738 = vcmp.le.f32.partialorder %v737, 0.7853982
        %vm739 = vcmp.lt.s32.totalorder %v381, 0
        %v740 = vand.u32 %v381, 2139095040
        %v741 = vshrl.u32 %v740, 23
        %v742 = vsub.s32 %v741, 127
        %v743 = vand.u32 2147483647, %v381
        %v744 = vand.u32 %v743, 8388607
        %v745 = vor.u32 %v744, 8388608
        %v746 = vsub.s32 0, %v745
        %v747 = vadd.s32 %v742, 1
        %vm748 = vcmp.gt.s32.totalorder %v747, 0
        %v749 = vsel %vm748, %v747, 0
        %v750 = vshrl.u32 %v749, 5
        %v751 = vand.u32 %v749, 31
        %v752 = vsub.s32 32, %v751
        %v753 = vshrl.u32 683565275, %v752
        %v754 = vshll.u32 683565275, %v751
        %v755 = vshrl.u32 2475754826, %v752
        %v756 = vor.u32 %v754, %v755
        %v757 = vshll.u32 2475754826, %v751
        %v758 = vshrl.u32 2131351028, %v752
        %v759 = vor.u32 %v757, %v758
        %v760 = vshll.u32 2131351028, %v751
        %v761 = vshrl.u32 2102212464, %v752
        %v762 = vor.u32 %v760, %v761
        %v763 = vshll.u32 2102212464, %v751
        %v764 = vshrl.u32 920167782, %v752
        %v765 = vor.u32 %v763, %v764
        %v766 = vshll.u32 920167782, %v751
        %v767 = vshrl.u32 1326507024, %v752
        %v768 = vor.u32 %v766, %v767
        %vm769 = vcmp.lt.s32.totalorder %v750, 1
        %vm770 = vcmp.lt.s32.totalorder %v750, 2
        %vm771 = vcmp.lt.s32.totalorder %v750, 3
        %vm772 = vcmp.lt.s32.totalorder %v750, 4
        %v773 = vsel %vm769, %v753, %v756
        %v774 = vsel %vm772, %v762, 2102212464
        %v775 = vsel %vm771, %v759, %v774
        %v776 = vsel %vm770, %v773, %v775
        %v777 = vsel %vm769, %v756, %v759
        %v778 = vsel %vm772, %v765, 920167782
        %v779 = vsel %vm771, %v762, %v778
        %v780 = vsel %vm770, %v777, %v779
        %v781 = vsel %vm769, %v759, %v762
        %v782 = vsel %vm772, %v768, 1326507024
        %v783 = vsel %vm771, %v765, %v782
        %v784 = vsel %vm770, %v781, %v783
        %v785 = vshll.u32 %v745, 8
        %v786 = vmul.u32.u64.compose %v785, %v784
        %v787 = vextract.low.u32 %v786
        %v788 = vextract.high.u32 %v786
        %v789 = vmul.u32.u64.compose %v785, %v780
        %v790 = vextract.low.u32 %v789
        %v791 = vextract.high.u32 %v789
        %v792 = vmul.u32 %v785, %v776
        %v793 = vadd.s32 %v788, %v790
        %vm794 = vc.u32 %v788, %v790
        %v795 = vadd.s32 %v791, 1
        %v796 = vsel %vm794, %v795, %v791
        %v797 = vadd.s32 %v792, %v796
        %v798 = vadd.s32 %v797, 536870912
        %v799 = vshrl.u32 %v798, 30
        %v800 = vshll.u32 %v799, 30
        %v801 = vsub.s32 %v797, %v800
        %vm802 = vcmp.lt.s32.totalorder %v801, 0
        %v803 = vsub.s32 0, %v801
        %v804 = vsel %vm802, %v803, %v801
        %v805 = vclz %v804
        %v806 = vsub.s32 %v805, 2
        %vm807 = vcmp.gt.s32.totalorder 0, %v806
        %v808 = vsel %vm807, 0, %v806
        %v809 = vsub.s32 32, %v808
        %v810 = vshll.u32 %v801, %v808
        %v811 = vshrl.u32 %v793, %v809
        %v812 = vor.u32 %v810, %v811
        %v813 = vsub.s32 4294967266, %v808
        %v814 = vadd.s32 %v813, 127
        %v815 = vshll.u32 %v814, 23
        %v816 = vor.u32 4788187, %v815
        %v817 = vand.u32 2147483647, %v816
        %v819 = vcvt.s32.f32 %v812
        %v820 = vmul.f32 %v819, %v817
        %v821 = vxor.u32 %v820, 2147483648
        %v822 = vsel %vm739, %v821, %v820
        %v823 = vsub.s32 4, %v799
        %v824 = vsel %vm739, %v823, %v799
        %v825 = vsel %vm738, %v381, %v822
        %v826 = vsel %vm738, 0, %v824
        %v827 = vcosq.f32.pop %v825
        %v828 = vsinq.f32.pop %v825
        %vm829 = vweird.f32 %v381
        %v830 = vadd.s32 %v826, 3
        %v831 = vand.u32 %v830, 3
        %vm832 = vcmp.lt.s32.totalorder %v831, 2
        %vm833 = vcmp.eq.s32.totalorder %v831, 0
        %v834 = vxor.u32 %v828, 2147483648
        %v835 = vsel %vm833, %v827, %v834
        %vm836 = vcmp.eq.s32.totalorder %v831, 2
        %v837 = vxor.u32 %v827, 2147483648
        %v838 = vsel %vm836, %v837, %v828
        %v839 = vsel %vm832, %v835, %v838
        %v840 = vsel %vm829, nan, %v839
        %v841 = vand.u32 2147483647, %v386
        %vm842 = vcmp.le.f32.partialorder %v841, 0.7853982
        %vm843 = vcmp.lt.s32.totalorder %v386, 0
        %v844 = vand.u32 %v386, 2139095040
        %v845 = vshrl.u32 %v844, 23
        %v846 = vsub.s32 %v845, 127
        %v847 = vand.u32 2147483647, %v386
        %v848 = vand.u32 %v847, 8388607
        %v849 = vor.u32 %v848, 8388608
        %v850 = vsub.s32 0, %v849
        %v851 = vadd.s32 %v846, 1
        %vm852 = vcmp.gt.s32.totalorder %v851, 0
        %v853 = vsel %vm852, %v851, 0
        %v854 = vshrl.u32 %v853, 5
        %v855 = vand.u32 %v853, 31
        %v856 = vsub.s32 32, %v855
        %v857 = vshrl.u32 683565275, %v856
        %v858 = vshll.u32 683565275, %v855
        %v859 = vshrl.u32 2475754826, %v856
        %v860 = vor.u32 %v858, %v859
        %v861 = vshll.u32 2475754826, %v855
        %v862 = vshrl.u32 2131351028, %v856
        %v863 = vor.u32 %v861, %v862
        %v864 = vshll.u32 2131351028, %v855
        %v865 = vshrl.u32 2102212464, %v856
        %v866 = vor.u32 %v864, %v865
        %v867 = vshll.u32 2102212464, %v855
        %v868 = vshrl.u32 920167782, %v856
        %v869 = vor.u32 %v867, %v868
        %v870 = vshll.u32 920167782, %v855
        %v871 = vshrl.u32 1326507024, %v856
        %v872 = vor.u32 %v870, %v871
        %vm873 = vcmp.lt.s32.totalorder %v854, 1
        %vm874 = vcmp.lt.s32.totalorder %v854, 2
        %vm875 = vcmp.lt.s32.totalorder %v854, 3
        %vm876 = vcmp.lt.s32.totalorder %v854, 4
        %v877 = vsel %vm873, %v857, %v860
        %v878 = vsel %vm876, %v866, 2102212464
        %v879 = vsel %vm875, %v863, %v878
        %v880 = vsel %vm874, %v877, %v879
        %v881 = vsel %vm873, %v860, %v863
        %v882 = vsel %vm876, %v869, 920167782
        %v883 = vsel %vm875, %v866, %v882
        %v884 = vsel %vm874, %v881, %v883
        %v885 = vsel %vm873, %v863, %v866
        %v886 = vsel %vm876, %v872, 1326507024
        %v887 = vsel %vm875, %v869, %v886
        %v888 = vsel %vm874, %v885, %v887
        %v889 = vshll.u32 %v849, 8
        %v890 = vmul.u32.u64.compose %v889, %v888
        %v891 = vextract.low.u32 %v890
        %v892 = vextract.high.u32 %v890
        %v893 = vmul.u32.u64.compose %v889, %v884
        %v894 = vextract.low.u32 %v893
        %v895 = vextract.high.u32 %v893
        %v896 = vmul.u32 %v889, %v880
        %v897 = vadd.s32 %v892, %v894
        %vm898 = vc.u32 %v892, %v894
        %v899 = vadd.s32 %v895, 1
        %v900 = vsel %vm898, %v899, %v895
        %v901 = vadd.s32 %v896, %v900
        %v902 = vadd.s32 %v901, 536870912
        %v903 = vshrl.u32 %v902, 30
        %v904 = vshll.u32 %v903, 30
        %v905 = vsub.s32 %v901, %v904
        %vm906 = vcmp.lt.s32.totalorder %v905, 0
        %v907 = vsub.s32 0, %v905
        %v908 = vsel %vm906, %v907, %v905
        %v909 = vclz %v908
        %v910 = vsub.s32 %v909, 2
        %vm911 = vcmp.gt.s32.totalorder 0, %v910
        %v912 = vsel %vm911, 0, %v910
        %v913 = vsub.s32 32, %v912
        %v914 = vshll.u32 %v905, %v912
        %v915 = vshrl.u32 %v897, %v913
        %v916 = vor.u32 %v914, %v915
        %v917 = vsub.s32 4294967266, %v912
        %v918 = vadd.s32 %v917, 127
        %v919 = vshll.u32 %v918, 23
        %v920 = vor.u32 4788187, %v919
        %v921 = vand.u32 2147483647, %v920
        %v923 = vcvt.s32.f32 %v916
        %v924 = vmul.f32 %v923, %v921
        %v925 = vxor.u32 %v924, 2147483648
        %v926 = vsel %vm843, %v925, %v924
        %v927 = vsub.s32 4, %v903
        %v928 = vsel %vm843, %v927, %v903
        %v929 = vsel %vm842, %v386, %v926
        %v930 = vsel %vm842, 0, %v928
        %v931 = vcosq.f32.pop %v929
        %v932 = vsinq.f32.pop %v929
        %vm933 = vweird.f32 %v386
        %v934 = vadd.s32 %v930, 3
        %v935 = vand.u32 %v934, 3
        %vm936 = vcmp.lt.s32.totalorder %v935, 2
        %vm937 = vcmp.eq.s32.totalorder %v935, 0
        %v938 = vxor.u32 %v932, 2147483648
        %v939 = vsel %vm937, %v931, %v938
        %vm940 = vcmp.eq.s32.totalorder %v935, 2
        %v941 = vxor.u32 %v931, 2147483648
        %v942 = vsel %vm940, %v941, %v932
        %v943 = vsel %vm936, %v939, %v942
        %v944 = vsel %vm933, nan, %v943
        %v945 = vand.u32 2147483647, %v391
        %vm946 = vcmp.le.f32.partialorder %v945, 0.7853982
        %vm947 = vcmp.lt.s32.totalorder %v391, 0
        %v948 = vand.u32 %v391, 2139095040
        %v949 = vshrl.u32 %v948, 23
        %v950 = vsub.s32 %v949, 127
        %v951 = vand.u32 2147483647, %v391
        %v952 = vand.u32 %v951, 8388607
        %v953 = vor.u32 %v952, 8388608
        %v954 = vsub.s32 0, %v953
        %v955 = vadd.s32 %v950, 1
        %vm956 = vcmp.gt.s32.totalorder %v955, 0
        %v957 = vsel %vm956, %v955, 0
        %v958 = vshrl.u32 %v957, 5
        %v959 = vand.u32 %v957, 31
        %v960 = vsub.s32 32, %v959
        %v961 = vshrl.u32 683565275, %v960
        %v962 = vshll.u32 683565275, %v959
        %v963 = vshrl.u32 2475754826, %v960
        %v964 = vor.u32 %v962, %v963
        %v965 = vshll.u32 2475754826, %v959
        %v966 = vshrl.u32 2131351028, %v960
        %v967 = vor.u32 %v965, %v966
        %v968 = vshll.u32 2131351028, %v959
        %v969 = vshrl.u32 2102212464, %v960
        %v970 = vor.u32 %v968, %v969
        %v971 = vshll.u32 2102212464, %v959
        %v972 = vshrl.u32 920167782, %v960
        %v973 = vor.u32 %v971, %v972
        %v974 = vshll.u32 920167782, %v959
        %v975 = vshrl.u32 1326507024, %v960
        %v976 = vor.u32 %v974, %v975
        %vm977 = vcmp.lt.s32.totalorder %v958, 1
        %vm978 = vcmp.lt.s32.totalorder %v958, 2
        %vm979 = vcmp.lt.s32.totalorder %v958, 3
        %vm980 = vcmp.lt.s32.totalorder %v958, 4
        %v981 = vsel %vm977, %v961, %v964
        %v982 = vsel %vm980, %v970, 2102212464
        %v983 = vsel %vm979, %v967, %v982
        %v984 = vsel %vm978, %v981, %v983
        %v985 = vsel %vm977, %v964, %v967
        %v986 = vsel %vm980, %v973, 920167782
        %v987 = vsel %vm979, %v970, %v986
        %v988 = vsel %vm978, %v985, %v987
        %v989 = vsel %vm977, %v967, %v970
        %v990 = vsel %vm980, %v976, 1326507024
        %v991 = vsel %vm979, %v973, %v990
        %v992 = vsel %vm978, %v989, %v991
        %v993 = vshll.u32 %v953, 8
        %v994 = vmul.u32.u64.compose %v993, %v992
        %v995 = vextract.low.u32 %v994
        %v996 = vextract.high.u32 %v994
        %v997 = vmul.u32.u64.compose %v993, %v988
        %v998 = vextract.low.u32 %v997
        %v999 = vextract.high.u32 %v997
        %v1000 = vmul.u32 %v993, %v984
        %v1001 = vadd.s32 %v996, %v998
        %vm1002 = vc.u32 %v996, %v998
        %v1003 = vadd.s32 %v999, 1
        %v1004 = vsel %vm1002, %v1003, %v999
        %v1005 = vadd.s32 %v1000, %v1004
        %v1006 = vadd.s32 %v1005, 536870912
        %v1007 = vshrl.u32 %v1006, 30
        %v1008 = vshll.u32 %v1007, 30
        %v1009 = vsub.s32 %v1005, %v1008
        %vm1010 = vcmp.lt.s32.totalorder %v1009, 0
        %v1011 = vsub.s32 0, %v1009
        %v1012 = vsel %vm1010, %v1011, %v1009
        %v1013 = vclz %v1012
        %v1014 = vsub.s32 %v1013, 2
        %vm1015 = vcmp.gt.s32.totalorder 0, %v1014
        %v1016 = vsel %vm1015, 0, %v1014
        %v1017 = vsub.s32 32, %v1016
        %v1018 = vshll.u32 %v1009, %v1016
        %v1019 = vshrl.u32 %v1001, %v1017
        %v1020 = vor.u32 %v1018, %v1019
        %v1021 = vsub.s32 4294967266, %v1016
        %v1022 = vadd.s32 %v1021, 127
        %v1023 = vshll.u32 %v1022, 23
        %v1024 = vor.u32 4788187, %v1023
        %v1025 = vand.u32 2147483647, %v1024
        %v1027 = vcvt.s32.f32 %v1020
        %v1028 = vmul.f32 %v1027, %v1025
        %v1029 = vxor.u32 %v1028, 2147483648
        %v1030 = vsel %vm947, %v1029, %v1028
        %v1031 = vsub.s32 4, %v1007
        %v1032 = vsel %vm947, %v1031, %v1007
        %v1033 = vsel %vm946, %v391, %v1030
        %v1034 = vsel %vm946, 0, %v1032
        %v1035 = vcosq.f32.pop %v1033
        %v1036 = vsinq.f32.pop %v1033
        %vm1037 = vweird.f32 %v391
        %v1038 = vadd.s32 %v1034, 3
        %v1039 = vand.u32 %v1038, 3
        %vm1040 = vcmp.lt.s32.totalorder %v1039, 2
        %vm1041 = vcmp.eq.s32.totalorder %v1039, 0
        %v1042 = vxor.u32 %v1036, 2147483648
        %v1043 = vsel %vm1041, %v1035, %v1042
        %vm1044 = vcmp.eq.s32.totalorder %v1039, 2
        %v1045 = vxor.u32 %v1035, 2147483648
        %v1046 = vsel %vm1044, %v1045, %v1036
        %v1047 = vsel %vm1040, %v1043, %v1046
        %v1048 = vsel %vm1037, nan, %v1047
        %v1049 = vand.u32 2147483647, %v396
        %vm1050 = vcmp.le.f32.partialorder %v1049, 0.7853982
        %vm1051 = vcmp.lt.s32.totalorder %v396, 0
        %v1052 = vand.u32 %v396, 2139095040
        %v1053 = vshrl.u32 %v1052, 23
        %v1054 = vsub.s32 %v1053, 127
        %v1055 = vand.u32 2147483647, %v396
        %v1056 = vand.u32 %v1055, 8388607
        %v1057 = vor.u32 %v1056, 8388608
        %v1058 = vsub.s32 0, %v1057
        %v1059 = vadd.s32 %v1054, 1
        %vm1060 = vcmp.gt.s32.totalorder %v1059, 0
        %v1061 = vsel %vm1060, %v1059, 0
        %v1062 = vshrl.u32 %v1061, 5
        %v1063 = vand.u32 %v1061, 31
        %v1064 = vsub.s32 32, %v1063
        %v1065 = vshrl.u32 683565275, %v1064
        %v1066 = vshll.u32 683565275, %v1063
        %v1067 = vshrl.u32 2475754826, %v1064
        %v1068 = vor.u32 %v1066, %v1067
        %v1069 = vshll.u32 2475754826, %v1063
        %v1070 = vshrl.u32 2131351028, %v1064
        %v1071 = vor.u32 %v1069, %v1070
        %v1072 = vshll.u32 2131351028, %v1063
        %v1073 = vshrl.u32 2102212464, %v1064
        %v1074 = vor.u32 %v1072, %v1073
        %v1075 = vshll.u32 2102212464, %v1063
        %v1076 = vshrl.u32 920167782, %v1064
        %v1077 = vor.u32 %v1075, %v1076
        %v1078 = vshll.u32 920167782, %v1063
        %v1079 = vshrl.u32 1326507024, %v1064
        %v1080 = vor.u32 %v1078, %v1079
        %vm1081 = vcmp.lt.s32.totalorder %v1062, 1
        %vm1082 = vcmp.lt.s32.totalorder %v1062, 2
        %vm1083 = vcmp.lt.s32.totalorder %v1062, 3
        %vm1084 = vcmp.lt.s32.totalorder %v1062, 4
        %v1085 = vsel %vm1081, %v1065, %v1068
        %v1086 = vsel %vm1084, %v1074, 2102212464
        %v1087 = vsel %vm1083, %v1071, %v1086
        %v1088 = vsel %vm1082, %v1085, %v1087
        %v1089 = vsel %vm1081, %v1068, %v1071
        %v1090 = vsel %vm1084, %v1077, 920167782
        %v1091 = vsel %vm1083, %v1074, %v1090
        %v1092 = vsel %vm1082, %v1089, %v1091
        %v1093 = vsel %vm1081, %v1071, %v1074
        %v1094 = vsel %vm1084, %v1080, 1326507024
        %v1095 = vsel %vm1083, %v1077, %v1094
        %v1096 = vsel %vm1082, %v1093, %v1095
        %v1097 = vshll.u32 %v1057, 8
        %v1098 = vmul.u32.u64.compose %v1097, %v1096
        %v1099 = vextract.low.u32 %v1098
        %v1100 = vextract.high.u32 %v1098
        %v1101 = vmul.u32.u64.compose %v1097, %v1092
        %v1102 = vextract.low.u32 %v1101
        %v1103 = vextract.high.u32 %v1101
        %v1104 = vmul.u32 %v1097, %v1088
        %v1105 = vadd.s32 %v1100, %v1102
        %vm1106 = vc.u32 %v1100, %v1102
        %v1107 = vadd.s32 %v1103, 1
        %v1108 = vsel %vm1106, %v1107, %v1103
        %v1109 = vadd.s32 %v1104, %v1108
        %v1110 = vadd.s32 %v1109, 536870912
        %v1111 = vshrl.u32 %v1110, 30
        %v1112 = vshll.u32 %v1111, 30
        %v1113 = vsub.s32 %v1109, %v1112
        %vm1114 = vcmp.lt.s32.totalorder %v1113, 0
        %v1115 = vsub.s32 0, %v1113
        %v1116 = vsel %vm1114, %v1115, %v1113
        %v1117 = vclz %v1116
        %v1118 = vsub.s32 %v1117, 2
        %vm1119 = vcmp.gt.s32.totalorder 0, %v1118
        %v1120 = vsel %vm1119, 0, %v1118
        %v1121 = vsub.s32 32, %v1120
        %v1122 = vshll.u32 %v1113, %v1120
        %v1123 = vshrl.u32 %v1105, %v1121
        %v1124 = vor.u32 %v1122, %v1123
        %v1125 = vsub.s32 4294967266, %v1120
        %v1126 = vadd.s32 %v1125, 127
        %v1127 = vshll.u32 %v1126, 23
        %v1128 = vor.u32 4788187, %v1127
        %v1129 = vand.u32 2147483647, %v1128
        %v1131 = vcvt.s32.f32 %v1124
        %v1132 = vmul.f32 %v1131, %v1129
        %v1133 = vxor.u32 %v1132, 2147483648
        %v1134 = vsel %vm1051, %v1133, %v1132
        %v1135 = vsub.s32 4, %v1111
        %v1136 = vsel %vm1051, %v1135, %v1111
        %v1137 = vsel %vm1050, %v396, %v1134
        %v1138 = vsel %vm1050, 0, %v1136
        %v1139 = vcosq.f32.pop %v1137
        %v1140 = vsinq.f32.pop %v1137
        %vm1141 = vweird.f32 %v396
        %v1142 = vadd.s32 %v1138, 3
        %v1143 = vand.u32 %v1142, 3
        %vm1144 = vcmp.lt.s32.totalorder %v1143, 2
        %vm1145 = vcmp.eq.s32.totalorder %v1143, 0
        %v1146 = vxor.u32 %v1140, 2147483648
        %v1147 = vsel %vm1145, %v1139, %v1146
        %vm1148 = vcmp.eq.s32.totalorder %v1143, 2
        %v1149 = vxor.u32 %v1139, 2147483648
        %v1150 = vsel %vm1148, %v1149, %v1140
        %v1151 = vsel %vm1144, %v1147, %v1150
        %v1152 = vsel %vm1141, nan, %v1151
        %v1153 = vand.u32 2147483647, %v401
        %vm1154 = vcmp.le.f32.partialorder %v1153, 0.7853982
        %vm1155 = vcmp.lt.s32.totalorder %v401, 0
        %v1156 = vand.u32 %v401, 2139095040
        %v1157 = vshrl.u32 %v1156, 23
        %v1158 = vsub.s32 %v1157, 127
        %v1159 = vand.u32 2147483647, %v401
        %v1160 = vand.u32 %v1159, 8388607
        %v1161 = vor.u32 %v1160, 8388608
        %v1162 = vsub.s32 0, %v1161
        %v1163 = vadd.s32 %v1158, 1
        %vm1164 = vcmp.gt.s32.totalorder %v1163, 0
        %v1165 = vsel %vm1164, %v1163, 0
        %v1166 = vshrl.u32 %v1165, 5
        %v1167 = vand.u32 %v1165, 31
        %v1168 = vsub.s32 32, %v1167
        %v1169 = vshrl.u32 683565275, %v1168
        %v1170 = vshll.u32 683565275, %v1167
        %v1171 = vshrl.u32 2475754826, %v1168
        %v1172 = vor.u32 %v1170, %v1171
        %v1173 = vshll.u32 2475754826, %v1167
        %v1174 = vshrl.u32 2131351028, %v1168
        %v1175 = vor.u32 %v1173, %v1174
        %v1176 = vshll.u32 2131351028, %v1167
        %v1177 = vshrl.u32 2102212464, %v1168
        %v1178 = vor.u32 %v1176, %v1177
        %v1179 = vshll.u32 2102212464, %v1167
        %v1180 = vshrl.u32 920167782, %v1168
        %v1181 = vor.u32 %v1179, %v1180
        %v1182 = vshll.u32 920167782, %v1167
        %v1183 = vshrl.u32 1326507024, %v1168
        %v1184 = vor.u32 %v1182, %v1183
        %vm1185 = vcmp.lt.s32.totalorder %v1166, 1
        %vm1186 = vcmp.lt.s32.totalorder %v1166, 2
        %vm1187 = vcmp.lt.s32.totalorder %v1166, 3
        %vm1188 = vcmp.lt.s32.totalorder %v1166, 4
        %v1189 = vsel %vm1185, %v1169, %v1172
        %v1190 = vsel %vm1188, %v1178, 2102212464
        %v1191 = vsel %vm1187, %v1175, %v1190
        %v1192 = vsel %vm1186, %v1189, %v1191
        %v1193 = vsel %vm1185, %v1172, %v1175
        %v1194 = vsel %vm1188, %v1181, 920167782
        %v1195 = vsel %vm1187, %v1178, %v1194
        %v1196 = vsel %vm1186, %v1193, %v1195
        %v1197 = vsel %vm1185, %v1175, %v1178
        %v1198 = vsel %vm1188, %v1184, 1326507024
        %v1199 = vsel %vm1187, %v1181, %v1198
        %v1200 = vsel %vm1186, %v1197, %v1199
        %v1201 = vshll.u32 %v1161, 8
        %v1202 = vmul.u32.u64.compose %v1201, %v1200
        %v1203 = vextract.low.u32 %v1202
        %v1204 = vextract.high.u32 %v1202
        %v1205 = vmul.u32.u64.compose %v1201, %v1196
        %v1206 = vextract.low.u32 %v1205
        %v1207 = vextract.high.u32 %v1205
        %v1208 = vmul.u32 %v1201, %v1192
        %v1209 = vadd.s32 %v1204, %v1206
        %vm1210 = vc.u32 %v1204, %v1206
        %v1211 = vadd.s32 %v1207, 1
        %v1212 = vsel %vm1210, %v1211, %v1207
        %v1213 = vadd.s32 %v1208, %v1212
        %v1214 = vadd.s32 %v1213, 536870912
        %v1215 = vshrl.u32 %v1214, 30
        %v1216 = vshll.u32 %v1215, 30
        %v1217 = vsub.s32 %v1213, %v1216
        %vm1218 = vcmp.lt.s32.totalorder %v1217, 0
        %v1219 = vsub.s32 0, %v1217
        %v1220 = vsel %vm1218, %v1219, %v1217
        %v1221 = vclz %v1220
        %v1222 = vsub.s32 %v1221, 2
        %vm1223 = vcmp.gt.s32.totalorder 0, %v1222
        %v1224 = vsel %vm1223, 0, %v1222
        %v1225 = vsub.s32 32, %v1224
        %v1226 = vshll.u32 %v1217, %v1224
        %v1227 = vshrl.u32 %v1209, %v1225
        %v1228 = vor.u32 %v1226, %v1227
        %v1229 = vsub.s32 4294967266, %v1224
        %v1230 = vadd.s32 %v1229, 127
        %v1231 = vshll.u32 %v1230, 23
        %v1232 = vor.u32 4788187, %v1231
        %v1233 = vand.u32 2147483647, %v1232
        %v1235 = vcvt.s32.f32 %v1228
        %v1236 = vmul.f32 %v1235, %v1233
        %v1237 = vxor.u32 %v1236, 2147483648
        %v1238 = vsel %vm1155, %v1237, %v1236
        %v1239 = vsub.s32 4, %v1215
        %v1240 = vsel %vm1155, %v1239, %v1215
        %v1241 = vsel %vm1154, %v401, %v1238
        %v1242 = vsel %vm1154, 0, %v1240
        %v1243 = vcosq.f32.pop %v1241
        %v1244 = vsinq.f32.pop %v1241
        %vm1245 = vweird.f32 %v401
        %v1246 = vadd.s32 %v1242, 3
        %v1247 = vand.u32 %v1246, 3
        %vm1248 = vcmp.lt.s32.totalorder %v1247, 2
        %vm1249 = vcmp.eq.s32.totalorder %v1247, 0
        %v1250 = vxor.u32 %v1244, 2147483648
        %v1251 = vsel %vm1249, %v1243, %v1250
        %vm1252 = vcmp.eq.s32.totalorder %v1247, 2
        %v1253 = vxor.u32 %v1243, 2147483648
        %v1254 = vsel %vm1252, %v1253, %v1244
        %v1255 = vsel %vm1248, %v1251, %v1254
        %v1256 = vsel %vm1245, nan, %v1255
        %v1257 = vand.u32 2147483647, %v406
        %vm1258 = vcmp.le.f32.partialorder %v1257, 0.7853982
        %vm1259 = vcmp.lt.s32.totalorder %v406, 0
        %v1260 = vand.u32 %v406, 2139095040
        %v1261 = vshrl.u32 %v1260, 23
        %v1262 = vsub.s32 %v1261, 127
        %v1263 = vand.u32 2147483647, %v406
        %v1264 = vand.u32 %v1263, 8388607
        %v1265 = vor.u32 %v1264, 8388608
        %v1266 = vsub.s32 0, %v1265
        %v1267 = vadd.s32 %v1262, 1
        %vm1268 = vcmp.gt.s32.totalorder %v1267, 0
        %v1269 = vsel %vm1268, %v1267, 0
        %v1270 = vshrl.u32 %v1269, 5
        %v1271 = vand.u32 %v1269, 31
        %v1272 = vsub.s32 32, %v1271
        %v1273 = vshrl.u32 683565275, %v1272
        %v1274 = vshll.u32 683565275, %v1271
        %v1275 = vshrl.u32 2475754826, %v1272
        %v1276 = vor.u32 %v1274, %v1275
        %v1277 = vshll.u32 2475754826, %v1271
        %v1278 = vshrl.u32 2131351028, %v1272
        %v1279 = vor.u32 %v1277, %v1278
        %v1280 = vshll.u32 2131351028, %v1271
        %v1281 = vshrl.u32 2102212464, %v1272
        %v1282 = vor.u32 %v1280, %v1281
        %v1283 = vshll.u32 2102212464, %v1271
        %v1284 = vshrl.u32 920167782, %v1272
        %v1285 = vor.u32 %v1283, %v1284
        %v1286 = vshll.u32 920167782, %v1271
        %v1287 = vshrl.u32 1326507024, %v1272
        %v1288 = vor.u32 %v1286, %v1287
        %vm1289 = vcmp.lt.s32.totalorder %v1270, 1
        %vm1290 = vcmp.lt.s32.totalorder %v1270, 2
        %vm1291 = vcmp.lt.s32.totalorder %v1270, 3
        %vm1292 = vcmp.lt.s32.totalorder %v1270, 4
        %v1293 = vsel %vm1289, %v1273, %v1276
        %v1294 = vsel %vm1292, %v1282, 2102212464
        %v1295 = vsel %vm1291, %v1279, %v1294
        %v1296 = vsel %vm1290, %v1293, %v1295
        %v1297 = vsel %vm1289, %v1276, %v1279
        %v1298 = vsel %vm1292, %v1285, 920167782
        %v1299 = vsel %vm1291, %v1282, %v1298
        %v1300 = vsel %vm1290, %v1297, %v1299
        %v1301 = vsel %vm1289, %v1279, %v1282
        %v1302 = vsel %vm1292, %v1288, 1326507024
        %v1303 = vsel %vm1291, %v1285, %v1302
        %v1304 = vsel %vm1290, %v1301, %v1303
        %v1305 = vshll.u32 %v1265, 8
        %v1306 = vmul.u32.u64.compose %v1305, %v1304
        %v1307 = vextract.low.u32 %v1306
        %v1308 = vextract.high.u32 %v1306
        %v1309 = vmul.u32.u64.compose %v1305, %v1300
        %v1310 = vextract.low.u32 %v1309
        %v1311 = vextract.high.u32 %v1309
        %v1312 = vmul.u32 %v1305, %v1296
        %v1313 = vadd.s32 %v1308, %v1310
        %vm1314 = vc.u32 %v1308, %v1310
        %v1315 = vadd.s32 %v1311, 1
        %v1316 = vsel %vm1314, %v1315, %v1311
        %v1317 = vadd.s32 %v1312, %v1316
        %v1318 = vadd.s32 %v1317, 536870912
        %v1319 = vshrl.u32 %v1318, 30
        %v1320 = vshll.u32 %v1319, 30
        %v1321 = vsub.s32 %v1317, %v1320
        %vm1322 = vcmp.lt.s32.totalorder %v1321, 0
        %v1323 = vsub.s32 0, %v1321
        %v1324 = vsel %vm1322, %v1323, %v1321
        %v1325 = vclz %v1324
        %v1326 = vsub.s32 %v1325, 2
        %vm1327 = vcmp.gt.s32.totalorder 0, %v1326
        %v1328 = vsel %vm1327, 0, %v1326
        %v1329 = vsub.s32 32, %v1328
        %v1330 = vshll.u32 %v1321, %v1328
        %v1331 = vshrl.u32 %v1313, %v1329
        %v1332 = vor.u32 %v1330, %v1331
        %v1333 = vsub.s32 4294967266, %v1328
        %v1334 = vadd.s32 %v1333, 127
        %v1335 = vshll.u32 %v1334, 23
        %v1336 = vor.u32 4788187, %v1335
        %v1337 = vand.u32 2147483647, %v1336
        %v1339 = vcvt.s32.f32 %v1332
        %v1340 = vmul.f32 %v1339, %v1337
        %v1341 = vxor.u32 %v1340, 2147483648
        %v1342 = vsel %vm1259, %v1341, %v1340
        %v1343 = vsub.s32 4, %v1319
        %v1344 = vsel %vm1259, %v1343, %v1319
        %v1345 = vsel %vm1258, %v406, %v1342
        %v1346 = vsel %vm1258, 0, %v1344
        %v1347 = vcosq.f32.pop %v1345
        %v1348 = vsinq.f32.pop %v1345
        %vm1349 = vweird.f32 %v406
        %v1350 = vadd.s32 %v1346, 3
        %v1351 = vand.u32 %v1350, 3
        %vm1352 = vcmp.lt.s32.totalorder %v1351, 2
        %vm1353 = vcmp.eq.s32.totalorder %v1351, 0
        %v1354 = vxor.u32 %v1348, 2147483648
        %v1355 = vsel %vm1353, %v1347, %v1354
        %vm1356 = vcmp.eq.s32.totalorder %v1351, 2
        %v1357 = vxor.u32 %v1347, 2147483648
        %v1358 = vsel %vm1356, %v1357, %v1348
        %v1359 = vsel %vm1352, %v1355, %v1358
        %v1360 = vsel %vm1349, nan, %v1359
        %v1361 = vand.u32 2147483647, %v411
        %vm1362 = vcmp.le.f32.partialorder %v1361, 0.7853982
        %vm1363 = vcmp.lt.s32.totalorder %v411, 0
        %v1364 = vand.u32 %v411, 2139095040
        %v1365 = vshrl.u32 %v1364, 23
        %v1366 = vsub.s32 %v1365, 127
        %v1367 = vand.u32 2147483647, %v411
        %v1368 = vand.u32 %v1367, 8388607
        %v1369 = vor.u32 %v1368, 8388608
        %v1370 = vsub.s32 0, %v1369
        %v1371 = vadd.s32 %v1366, 1
        %vm1372 = vcmp.gt.s32.totalorder %v1371, 0
        %v1373 = vsel %vm1372, %v1371, 0
        %v1374 = vshrl.u32 %v1373, 5
        %v1375 = vand.u32 %v1373, 31
        %v1376 = vsub.s32 32, %v1375
        %v1377 = vshrl.u32 683565275, %v1376
        %v1378 = vshll.u32 683565275, %v1375
        %v1379 = vshrl.u32 2475754826, %v1376
        %v1380 = vor.u32 %v1378, %v1379
        %v1381 = vshll.u32 2475754826, %v1375
        %v1382 = vshrl.u32 2131351028, %v1376
        %v1383 = vor.u32 %v1381, %v1382
        %v1384 = vshll.u32 2131351028, %v1375
        %v1385 = vshrl.u32 2102212464, %v1376
        %v1386 = vor.u32 %v1384, %v1385
        %v1387 = vshll.u32 2102212464, %v1375
        %v1388 = vshrl.u32 920167782, %v1376
        %v1389 = vor.u32 %v1387, %v1388
        %v1390 = vshll.u32 920167782, %v1375
        %v1391 = vshrl.u32 1326507024, %v1376
        %v1392 = vor.u32 %v1390, %v1391
        %vm1393 = vcmp.lt.s32.totalorder %v1374, 1
        %vm1394 = vcmp.lt.s32.totalorder %v1374, 2
        %vm1395 = vcmp.lt.s32.totalorder %v1374, 3
        %vm1396 = vcmp.lt.s32.totalorder %v1374, 4
        %v1397 = vsel %vm1393, %v1377, %v1380
        %v1398 = vsel %vm1396, %v1386, 2102212464
        %v1399 = vsel %vm1395, %v1383, %v1398
        %v1400 = vsel %vm1394, %v1397, %v1399
        %v1401 = vsel %vm1393, %v1380, %v1383
        %v1402 = vsel %vm1396, %v1389, 920167782
        %v1403 = vsel %vm1395, %v1386, %v1402
        %v1404 = vsel %vm1394, %v1401, %v1403
        %v1405 = vsel %vm1393, %v1383, %v1386
        %v1406 = vsel %vm1396, %v1392, 1326507024
        %v1407 = vsel %vm1395, %v1389, %v1406
        %v1408 = vsel %vm1394, %v1405, %v1407
        %v1409 = vshll.u32 %v1369, 8
        %v1410 = vmul.u32.u64.compose %v1409, %v1408
        %v1411 = vextract.low.u32 %v1410
        %v1412 = vextract.high.u32 %v1410
        %v1413 = vmul.u32.u64.compose %v1409, %v1404
        %v1414 = vextract.low.u32 %v1413
        %v1415 = vextract.high.u32 %v1413
        %v1416 = vmul.u32 %v1409, %v1400
        %v1417 = vadd.s32 %v1412, %v1414
        %vm1418 = vc.u32 %v1412, %v1414
        %v1419 = vadd.s32 %v1415, 1
        %v1420 = vsel %vm1418, %v1419, %v1415
        %v1421 = vadd.s32 %v1416, %v1420
        %v1422 = vadd.s32 %v1421, 536870912
        %v1423 = vshrl.u32 %v1422, 30
        %v1424 = vshll.u32 %v1423, 30
        %v1425 = vsub.s32 %v1421, %v1424
        %vm1426 = vcmp.lt.s32.totalorder %v1425, 0
        %v1427 = vsub.s32 0, %v1425
        %v1428 = vsel %vm1426, %v1427, %v1425
        %v1429 = vclz %v1428
        %v1430 = vsub.s32 %v1429, 2
        %vm1431 = vcmp.gt.s32.totalorder 0, %v1430
        %v1432 = vsel %vm1431, 0, %v1430
        %v1433 = vsub.s32 32, %v1432
        %v1434 = vshll.u32 %v1425, %v1432
        %v1435 = vshrl.u32 %v1417, %v1433
        %v1436 = vor.u32 %v1434, %v1435
        %v1437 = vsub.s32 4294967266, %v1432
        %v1438 = vadd.s32 %v1437, 127
        %v1439 = vshll.u32 %v1438, 23
        %v1440 = vor.u32 4788187, %v1439
        %v1441 = vand.u32 2147483647, %v1440
        %v1443 = vcvt.s32.f32 %v1436
        %v1444 = vmul.f32 %v1443, %v1441
        %v1445 = vxor.u32 %v1444, 2147483648
        %v1446 = vsel %vm1363, %v1445, %v1444
        %v1447 = vsub.s32 4, %v1423
        %v1448 = vsel %vm1363, %v1447, %v1423
        %v1449 = vsel %vm1362, %v411, %v1446
        %v1450 = vsel %vm1362, 0, %v1448
        %v1451 = vcosq.f32.pop %v1449
        %v1452 = vsinq.f32.pop %v1449
        %vm1453 = vweird.f32 %v411
        %v1454 = vadd.s32 %v1450, 3
        %v1455 = vand.u32 %v1454, 3
        %vm1456 = vcmp.lt.s32.totalorder %v1455, 2
        %vm1457 = vcmp.eq.s32.totalorder %v1455, 0
        %v1458 = vxor.u32 %v1452, 2147483648
        %v1459 = vsel %vm1457, %v1451, %v1458
        %vm1460 = vcmp.eq.s32.totalorder %v1455, 2
        %v1461 = vxor.u32 %v1451, 2147483648
        %v1462 = vsel %vm1460, %v1461, %v1452
        %v1463 = vsel %vm1456, %v1459, %v1462
        %v1464 = vsel %vm1453, nan, %v1463
        %v1465 = vand.u32 2147483647, %v416
        %vm1466 = vcmp.le.f32.partialorder %v1465, 0.7853982
        %vm1467 = vcmp.lt.s32.totalorder %v416, 0
        %v1468 = vand.u32 %v416, 2139095040
        %v1469 = vshrl.u32 %v1468, 23
        %v1470 = vsub.s32 %v1469, 127
        %v1471 = vand.u32 2147483647, %v416
        %v1472 = vand.u32 %v1471, 8388607
        %v1473 = vor.u32 %v1472, 8388608
        %v1474 = vsub.s32 0, %v1473
        %v1475 = vadd.s32 %v1470, 1
        %vm1476 = vcmp.gt.s32.totalorder %v1475, 0
        %v1477 = vsel %vm1476, %v1475, 0
        %v1478 = vshrl.u32 %v1477, 5
        %v1479 = vand.u32 %v1477, 31
        %v1480 = vsub.s32 32, %v1479
        %v1481 = vshrl.u32 683565275, %v1480
        %v1482 = vshll.u32 683565275, %v1479
        %v1483 = vshrl.u32 2475754826, %v1480
        %v1484 = vor.u32 %v1482, %v1483
        %v1485 = vshll.u32 2475754826, %v1479
        %v1486 = vshrl.u32 2131351028, %v1480
        %v1487 = vor.u32 %v1485, %v1486
        %v1488 = vshll.u32 2131351028, %v1479
        %v1489 = vshrl.u32 2102212464, %v1480
        %v1490 = vor.u32 %v1488, %v1489
        %v1491 = vshll.u32 2102212464, %v1479
        %v1492 = vshrl.u32 920167782, %v1480
        %v1493 = vor.u32 %v1491, %v1492
        %v1494 = vshll.u32 920167782, %v1479
        %v1495 = vshrl.u32 1326507024, %v1480
        %v1496 = vor.u32 %v1494, %v1495
        %vm1497 = vcmp.lt.s32.totalorder %v1478, 1
        %vm1498 = vcmp.lt.s32.totalorder %v1478, 2
        %vm1499 = vcmp.lt.s32.totalorder %v1478, 3
        %vm1500 = vcmp.lt.s32.totalorder %v1478, 4
        %v1501 = vsel %vm1497, %v1481, %v1484
        %v1502 = vsel %vm1500, %v1490, 2102212464
        %v1503 = vsel %vm1499, %v1487, %v1502
        %v1504 = vsel %vm1498, %v1501, %v1503
        %v1505 = vsel %vm1497, %v1484, %v1487
        %v1506 = vsel %vm1500, %v1493, 920167782
        %v1507 = vsel %vm1499, %v1490, %v1506
        %v1508 = vsel %vm1498, %v1505, %v1507
        %v1509 = vsel %vm1497, %v1487, %v1490
        %v1510 = vsel %vm1500, %v1496, 1326507024
        %v1511 = vsel %vm1499, %v1493, %v1510
        %v1512 = vsel %vm1498, %v1509, %v1511
        %v1513 = vshll.u32 %v1473, 8
        %v1514 = vmul.u32.u64.compose %v1513, %v1512
        %v1515 = vextract.low.u32 %v1514
        %v1516 = vextract.high.u32 %v1514
        %v1517 = vmul.u32.u64.compose %v1513, %v1508
        %v1518 = vextract.low.u32 %v1517
        %v1519 = vextract.high.u32 %v1517
        %v1520 = vmul.u32 %v1513, %v1504
        %v1521 = vadd.s32 %v1516, %v1518
        %vm1522 = vc.u32 %v1516, %v1518
        %v1523 = vadd.s32 %v1519, 1
        %v1524 = vsel %vm1522, %v1523, %v1519
        %v1525 = vadd.s32 %v1520, %v1524
        %v1526 = vadd.s32 %v1525, 536870912
        %v1527 = vshrl.u32 %v1526, 30
        %v1528 = vshll.u32 %v1527, 30
        %v1529 = vsub.s32 %v1525, %v1528
        %vm1530 = vcmp.lt.s32.totalorder %v1529, 0
        %v1531 = vsub.s32 0, %v1529
        %v1532 = vsel %vm1530, %v1531, %v1529
        %v1533 = vclz %v1532
        %v1534 = vsub.s32 %v1533, 2
        %vm1535 = vcmp.gt.s32.totalorder 0, %v1534
        %v1536 = vsel %vm1535, 0, %v1534
        %v1537 = vsub.s32 32, %v1536
        %v1538 = vshll.u32 %v1529, %v1536
        %v1539 = vshrl.u32 %v1521, %v1537
        %v1540 = vor.u32 %v1538, %v1539
        %v1541 = vsub.s32 4294967266, %v1536
        %v1542 = vadd.s32 %v1541, 127
        %v1543 = vshll.u32 %v1542, 23
        %v1544 = vor.u32 4788187, %v1543
        %v1545 = vand.u32 2147483647, %v1544
        %v1547 = vcvt.s32.f32 %v1540
        %v1548 = vmul.f32 %v1547, %v1545
        %v1549 = vxor.u32 %v1548, 2147483648
        %v1550 = vsel %vm1467, %v1549, %v1548
        %v1551 = vsub.s32 4, %v1527
        %v1552 = vsel %vm1467, %v1551, %v1527
        %v1553 = vsel %vm1466, %v416, %v1550
        %v1554 = vsel %vm1466, 0, %v1552
        %v1555 = vcosq.f32.pop %v1553
        %v1556 = vsinq.f32.pop %v1553
        %vm1557 = vweird.f32 %v416
        %v1558 = vadd.s32 %v1554, 3
        %v1559 = vand.u32 %v1558, 3
        %vm1560 = vcmp.lt.s32.totalorder %v1559, 2
        %vm1561 = vcmp.eq.s32.totalorder %v1559, 0
        %v1562 = vxor.u32 %v1556, 2147483648
        %v1563 = vsel %vm1561, %v1555, %v1562
        %vm1564 = vcmp.eq.s32.totalorder %v1559, 2
        %v1565 = vxor.u32 %v1555, 2147483648
        %v1566 = vsel %vm1564, %v1565, %v1556
        %v1567 = vsel %vm1560, %v1563, %v1566
        %v1568 = vsel %vm1557, nan, %v1567
        %v1569 = vand.u32 2147483647, %v421
        %vm1570 = vcmp.le.f32.partialorder %v1569, 0.7853982
        %vm1571 = vcmp.lt.s32.totalorder %v421, 0
        %v1572 = vand.u32 %v421, 2139095040
        %v1573 = vshrl.u32 %v1572, 23
        %v1574 = vsub.s32 %v1573, 127
        %v1575 = vand.u32 2147483647, %v421
        %v1576 = vand.u32 %v1575, 8388607
        %v1577 = vor.u32 %v1576, 8388608
        %v1578 = vsub.s32 0, %v1577
        %v1579 = vadd.s32 %v1574, 1
        %vm1580 = vcmp.gt.s32.totalorder %v1579, 0
        %v1581 = vsel %vm1580, %v1579, 0
        %v1582 = vshrl.u32 %v1581, 5
        %v1583 = vand.u32 %v1581, 31
        %v1584 = vsub.s32 32, %v1583
        %v1585 = vshrl.u32 683565275, %v1584
        %v1586 = vshll.u32 683565275, %v1583
        %v1587 = vshrl.u32 2475754826, %v1584
        %v1588 = vor.u32 %v1586, %v1587
        %v1589 = vshll.u32 2475754826, %v1583
        %v1590 = vshrl.u32 2131351028, %v1584
        %v1591 = vor.u32 %v1589, %v1590
        %v1592 = vshll.u32 2131351028, %v1583
        %v1593 = vshrl.u32 2102212464, %v1584
        %v1594 = vor.u32 %v1592, %v1593
        %v1595 = vshll.u32 2102212464, %v1583
        %v1596 = vshrl.u32 920167782, %v1584
        %v1597 = vor.u32 %v1595, %v1596
        %v1598 = vshll.u32 920167782, %v1583
        %v1599 = vshrl.u32 1326507024, %v1584
        %v1600 = vor.u32 %v1598, %v1599
        %vm1601 = vcmp.lt.s32.totalorder %v1582, 1
        %vm1602 = vcmp.lt.s32.totalorder %v1582, 2
        %vm1603 = vcmp.lt.s32.totalorder %v1582, 3
        %vm1604 = vcmp.lt.s32.totalorder %v1582, 4
        %v1605 = vsel %vm1601, %v1585, %v1588
        %v1606 = vsel %vm1604, %v1594, 2102212464
        %v1607 = vsel %vm1603, %v1591, %v1606
        %v1608 = vsel %vm1602, %v1605, %v1607
        %v1609 = vsel %vm1601, %v1588, %v1591
        %v1610 = vsel %vm1604, %v1597, 920167782
        %v1611 = vsel %vm1603, %v1594, %v1610
        %v1612 = vsel %vm1602, %v1609, %v1611
        %v1613 = vsel %vm1601, %v1591, %v1594
        %v1614 = vsel %vm1604, %v1600, 1326507024
        %v1615 = vsel %vm1603, %v1597, %v1614
        %v1616 = vsel %vm1602, %v1613, %v1615
        %v1617 = vshll.u32 %v1577, 8
        %v1618 = vmul.u32.u64.compose %v1617, %v1616
        %v1619 = vextract.low.u32 %v1618
        %v1620 = vextract.high.u32 %v1618
        %v1621 = vmul.u32.u64.compose %v1617, %v1612
        %v1622 = vextract.low.u32 %v1621
        %v1623 = vextract.high.u32 %v1621
        %v1624 = vmul.u32 %v1617, %v1608
        %v1625 = vadd.s32 %v1620, %v1622
        %vm1626 = vc.u32 %v1620, %v1622
        %v1627 = vadd.s32 %v1623, 1
        %v1628 = vsel %vm1626, %v1627, %v1623
        %v1629 = vadd.s32 %v1624, %v1628
        %v1630 = vadd.s32 %v1629, 536870912
        %v1631 = vshrl.u32 %v1630, 30
        %v1632 = vshll.u32 %v1631, 30
        %v1633 = vsub.s32 %v1629, %v1632
        %vm1634 = vcmp.lt.s32.totalorder %v1633, 0
        %v1635 = vsub.s32 0, %v1633
        %v1636 = vsel %vm1634, %v1635, %v1633
        %v1637 = vclz %v1636
        %v1638 = vsub.s32 %v1637, 2
        %vm1639 = vcmp.gt.s32.totalorder 0, %v1638
        %v1640 = vsel %vm1639, 0, %v1638
        %v1641 = vsub.s32 32, %v1640
        %v1642 = vshll.u32 %v1633, %v1640
        %v1643 = vshrl.u32 %v1625, %v1641
        %v1644 = vor.u32 %v1642, %v1643
        %v1645 = vsub.s32 4294967266, %v1640
        %v1646 = vadd.s32 %v1645, 127
        %v1647 = vshll.u32 %v1646, 23
        %v1648 = vor.u32 4788187, %v1647
        %v1649 = vand.u32 2147483647, %v1648
        %v1651 = vcvt.s32.f32 %v1644
        %v1652 = vmul.f32 %v1651, %v1649
        %v1653 = vxor.u32 %v1652, 2147483648
        %v1654 = vsel %vm1571, %v1653, %v1652
        %v1655 = vsub.s32 4, %v1631
        %v1656 = vsel %vm1571, %v1655, %v1631
        %v1657 = vsel %vm1570, %v421, %v1654
        %v1658 = vsel %vm1570, 0, %v1656
        %v1659 = vcosq.f32.pop %v1657
        %v1660 = vsinq.f32.pop %v1657
        %vm1661 = vweird.f32 %v421
        %v1662 = vadd.s32 %v1658, 3
        %v1663 = vand.u32 %v1662, 3
        %vm1664 = vcmp.lt.s32.totalorder %v1663, 2
        %vm1665 = vcmp.eq.s32.totalorder %v1663, 0
        %v1666 = vxor.u32 %v1660, 2147483648
        %v1667 = vsel %vm1665, %v1659, %v1666
        %vm1668 = vcmp.eq.s32.totalorder %v1663, 2
        %v1669 = vxor.u32 %v1659, 2147483648
        %v1670 = vsel %vm1668, %v1669, %v1660
        %v1671 = vsel %vm1664, %v1667, %v1670
        %v1672 = vsel %vm1661, nan, %v1671
        %v1673 = vand.u32 2147483647, %v426
        %vm1674 = vcmp.le.f32.partialorder %v1673, 0.7853982
        %vm1675 = vcmp.lt.s32.totalorder %v426, 0
        %v1676 = vand.u32 %v426, 2139095040
        %v1677 = vshrl.u32 %v1676, 23
        %v1678 = vsub.s32 %v1677, 127
        %v1679 = vand.u32 2147483647, %v426
        %v1680 = vand.u32 %v1679, 8388607
        %v1681 = vor.u32 %v1680, 8388608
        %v1682 = vsub.s32 0, %v1681
        %v1683 = vadd.s32 %v1678, 1
        %vm1684 = vcmp.gt.s32.totalorder %v1683, 0
        %v1685 = vsel %vm1684, %v1683, 0
        %v1686 = vshrl.u32 %v1685, 5
        %v1687 = vand.u32 %v1685, 31
        %v1688 = vsub.s32 32, %v1687
        %v1689 = vshrl.u32 683565275, %v1688
        %v1690 = vshll.u32 683565275, %v1687
        %v1691 = vshrl.u32 2475754826, %v1688
        %v1692 = vor.u32 %v1690, %v1691
        %v1693 = vshll.u32 2475754826, %v1687
        %v1694 = vshrl.u32 2131351028, %v1688
        %v1695 = vor.u32 %v1693, %v1694
        %v1696 = vshll.u32 2131351028, %v1687
        %v1697 = vshrl.u32 2102212464, %v1688
        %v1698 = vor.u32 %v1696, %v1697
        %v1699 = vshll.u32 2102212464, %v1687
        %v1700 = vshrl.u32 920167782, %v1688
        %v1701 = vor.u32 %v1699, %v1700
        %v1702 = vshll.u32 920167782, %v1687
        %v1703 = vshrl.u32 1326507024, %v1688
        %v1704 = vor.u32 %v1702, %v1703
        %vm1705 = vcmp.lt.s32.totalorder %v1686, 1
        %vm1706 = vcmp.lt.s32.totalorder %v1686, 2
        %vm1707 = vcmp.lt.s32.totalorder %v1686, 3
        %vm1708 = vcmp.lt.s32.totalorder %v1686, 4
        %v1709 = vsel %vm1705, %v1689, %v1692
        %v1710 = vsel %vm1708, %v1698, 2102212464
        %v1711 = vsel %vm1707, %v1695, %v1710
        %v1712 = vsel %vm1706, %v1709, %v1711
        %v1713 = vsel %vm1705, %v1692, %v1695
        %v1714 = vsel %vm1708, %v1701, 920167782
        %v1715 = vsel %vm1707, %v1698, %v1714
        %v1716 = vsel %vm1706, %v1713, %v1715
        %v1717 = vsel %vm1705, %v1695, %v1698
        %v1718 = vsel %vm1708, %v1704, 1326507024
        %v1719 = vsel %vm1707, %v1701, %v1718
        %v1720 = vsel %vm1706, %v1717, %v1719
        %v1721 = vshll.u32 %v1681, 8
        %v1722 = vmul.u32.u64.compose %v1721, %v1720
        %v1723 = vextract.low.u32 %v1722
        %v1724 = vextract.high.u32 %v1722
        %v1725 = vmul.u32.u64.compose %v1721, %v1716
        %v1726 = vextract.low.u32 %v1725
        %v1727 = vextract.high.u32 %v1725
        %v1728 = vmul.u32 %v1721, %v1712
        %v1729 = vadd.s32 %v1724, %v1726
        %vm1730 = vc.u32 %v1724, %v1726
        %v1731 = vadd.s32 %v1727, 1
        %v1732 = vsel %vm1730, %v1731, %v1727
        %v1733 = vadd.s32 %v1728, %v1732
        %v1734 = vadd.s32 %v1733, 536870912
        %v1735 = vshrl.u32 %v1734, 30
        %v1736 = vshll.u32 %v1735, 30
        %v1737 = vsub.s32 %v1733, %v1736
        %vm1738 = vcmp.lt.s32.totalorder %v1737, 0
        %v1739 = vsub.s32 0, %v1737
        %v1740 = vsel %vm1738, %v1739, %v1737
        %v1741 = vclz %v1740
        %v1742 = vsub.s32 %v1741, 2
        %vm1743 = vcmp.gt.s32.totalorder 0, %v1742
        %v1744 = vsel %vm1743, 0, %v1742
        %v1745 = vsub.s32 32, %v1744
        %v1746 = vshll.u32 %v1737, %v1744
        %v1747 = vshrl.u32 %v1729, %v1745
        %v1748 = vor.u32 %v1746, %v1747
        %v1749 = vsub.s32 4294967266, %v1744
        %v1750 = vadd.s32 %v1749, 127
        %v1751 = vshll.u32 %v1750, 23
        %v1752 = vor.u32 4788187, %v1751
        %v1753 = vand.u32 2147483647, %v1752
        %v1755 = vcvt.s32.f32 %v1748
        %v1756 = vmul.f32 %v1755, %v1753
        %v1757 = vxor.u32 %v1756, 2147483648
        %v1758 = vsel %vm1675, %v1757, %v1756
        %v1759 = vsub.s32 4, %v1735
        %v1760 = vsel %vm1675, %v1759, %v1735
        %v1761 = vsel %vm1674, %v426, %v1758
        %v1762 = vsel %vm1674, 0, %v1760
        %v1763 = vcosq.f32.pop %v1761
        %v1764 = vsinq.f32.pop %v1761
        %vm1765 = vweird.f32 %v426
        %v1766 = vadd.s32 %v1762, 3
        %v1767 = vand.u32 %v1766, 3
        %vm1768 = vcmp.lt.s32.totalorder %v1767, 2
        %vm1769 = vcmp.eq.s32.totalorder %v1767, 0
        %v1770 = vxor.u32 %v1764, 2147483648
        %v1771 = vsel %vm1769, %v1763, %v1770
        %vm1772 = vcmp.eq.s32.totalorder %v1767, 2
        %v1773 = vxor.u32 %v1763, 2147483648
        %v1774 = vsel %vm1772, %v1773, %v1764
        %v1775 = vsel %vm1768, %v1771, %v1774
        %v1776 = vsel %vm1765, nan, %v1775
        %v1777 = vand.u32 2147483647, %v431
        %vm1778 = vcmp.le.f32.partialorder %v1777, 0.7853982
        %vm1779 = vcmp.lt.s32.totalorder %v431, 0
        %v1780 = vand.u32 %v431, 2139095040
        %v1781 = vshrl.u32 %v1780, 23
        %v1782 = vsub.s32 %v1781, 127
        %v1783 = vand.u32 2147483647, %v431
        %v1784 = vand.u32 %v1783, 8388607
        %v1785 = vor.u32 %v1784, 8388608
        %v1786 = vsub.s32 0, %v1785
        %v1787 = vadd.s32 %v1782, 1
        %vm1788 = vcmp.gt.s32.totalorder %v1787, 0
        %v1789 = vsel %vm1788, %v1787, 0
        %v1790 = vshrl.u32 %v1789, 5
        %v1791 = vand.u32 %v1789, 31
        %v1792 = vsub.s32 32, %v1791
        %v1793 = vshrl.u32 683565275, %v1792
        %v1794 = vshll.u32 683565275, %v1791
        %v1795 = vshrl.u32 2475754826, %v1792
        %v1796 = vor.u32 %v1794, %v1795
        %v1797 = vshll.u32 2475754826, %v1791
        %v1798 = vshrl.u32 2131351028, %v1792
        %v1799 = vor.u32 %v1797, %v1798
        %v1800 = vshll.u32 2131351028, %v1791
        %v1801 = vshrl.u32 2102212464, %v1792
        %v1802 = vor.u32 %v1800, %v1801
        %v1803 = vshll.u32 2102212464, %v1791
        %v1804 = vshrl.u32 920167782, %v1792
        %v1805 = vor.u32 %v1803, %v1804
        %v1806 = vshll.u32 920167782, %v1791
        %v1807 = vshrl.u32 1326507024, %v1792
        %v1808 = vor.u32 %v1806, %v1807
        %vm1809 = vcmp.lt.s32.totalorder %v1790, 1
        %vm1810 = vcmp.lt.s32.totalorder %v1790, 2
        %vm1811 = vcmp.lt.s32.totalorder %v1790, 3
        %vm1812 = vcmp.lt.s32.totalorder %v1790, 4
        %v1813 = vsel %vm1809, %v1793, %v1796
        %v1814 = vsel %vm1812, %v1802, 2102212464
        %v1815 = vsel %vm1811, %v1799, %v1814
        %v1816 = vsel %vm1810, %v1813, %v1815
        %v1817 = vsel %vm1809, %v1796, %v1799
        %v1818 = vsel %vm1812, %v1805, 920167782
        %v1819 = vsel %vm1811, %v1802, %v1818
        %v1820 = vsel %vm1810, %v1817, %v1819
        %v1821 = vsel %vm1809, %v1799, %v1802
        %v1822 = vsel %vm1812, %v1808, 1326507024
        %v1823 = vsel %vm1811, %v1805, %v1822
        %v1824 = vsel %vm1810, %v1821, %v1823
        %v1825 = vshll.u32 %v1785, 8
        %v1826 = vmul.u32.u64.compose %v1825, %v1824
        %v1827 = vextract.low.u32 %v1826
        %v1828 = vextract.high.u32 %v1826
        %v1829 = vmul.u32.u64.compose %v1825, %v1820
        %v1830 = vextract.low.u32 %v1829
        %v1831 = vextract.high.u32 %v1829
        %v1832 = vmul.u32 %v1825, %v1816
        %v1833 = vadd.s32 %v1828, %v1830
        %vm1834 = vc.u32 %v1828, %v1830
        %v1835 = vadd.s32 %v1831, 1
        %v1836 = vsel %vm1834, %v1835, %v1831
        %v1837 = vadd.s32 %v1832, %v1836
        %v1838 = vadd.s32 %v1837, 536870912
        %v1839 = vshrl.u32 %v1838, 30
        %v1840 = vshll.u32 %v1839, 30
        %v1841 = vsub.s32 %v1837, %v1840
        %vm1842 = vcmp.lt.s32.totalorder %v1841, 0
        %v1843 = vsub.s32 0, %v1841
        %v1844 = vsel %vm1842, %v1843, %v1841
        %v1845 = vclz %v1844
        %v1846 = vsub.s32 %v1845, 2
        %vm1847 = vcmp.gt.s32.totalorder 0, %v1846
        %v1848 = vsel %vm1847, 0, %v1846
        %v1849 = vsub.s32 32, %v1848
        %v1850 = vshll.u32 %v1841, %v1848
        %v1851 = vshrl.u32 %v1833, %v1849
        %v1852 = vor.u32 %v1850, %v1851
        %v1853 = vsub.s32 4294967266, %v1848
        %v1854 = vadd.s32 %v1853, 127
        %v1855 = vshll.u32 %v1854, 23
        %v1856 = vor.u32 4788187, %v1855
        %v1857 = vand.u32 2147483647, %v1856
        %v1859 = vcvt.s32.f32 %v1852
        %v1860 = vmul.f32 %v1859, %v1857
        %v1861 = vxor.u32 %v1860, 2147483648
        %v1862 = vsel %vm1779, %v1861, %v1860
        %v1863 = vsub.s32 4, %v1839
        %v1864 = vsel %vm1779, %v1863, %v1839
        %v1865 = vsel %vm1778, %v431, %v1862
        %v1866 = vsel %vm1778, 0, %v1864
        %v1867 = vcosq.f32.pop %v1865
        %v1868 = vsinq.f32.pop %v1865
        %vm1869 = vweird.f32 %v431
        %v1870 = vadd.s32 %v1866, 3
        %v1871 = vand.u32 %v1870, 3
        %vm1872 = vcmp.lt.s32.totalorder %v1871, 2
        %vm1873 = vcmp.eq.s32.totalorder %v1871, 0
        %v1874 = vxor.u32 %v1868, 2147483648
        %v1875 = vsel %vm1873, %v1867, %v1874
        %vm1876 = vcmp.eq.s32.totalorder %v1871, 2
        %v1877 = vxor.u32 %v1867, 2147483648
        %v1878 = vsel %vm1876, %v1877, %v1868
        %v1879 = vsel %vm1872, %v1875, %v1878
        %v1880 = vsel %vm1869, nan, %v1879
        %v1881 = vand.u32 2147483647, %v436
        %vm1882 = vcmp.le.f32.partialorder %v1881, 0.7853982
        %vm1883 = vcmp.lt.s32.totalorder %v436, 0
        %v1884 = vand.u32 %v436, 2139095040
        %v1885 = vshrl.u32 %v1884, 23
        %v1886 = vsub.s32 %v1885, 127
        %v1887 = vand.u32 2147483647, %v436
        %v1888 = vand.u32 %v1887, 8388607
        %v1889 = vor.u32 %v1888, 8388608
        %v1890 = vsub.s32 0, %v1889
        %v1891 = vadd.s32 %v1886, 1
        %vm1892 = vcmp.gt.s32.totalorder %v1891, 0
        %v1893 = vsel %vm1892, %v1891, 0
        %v1894 = vshrl.u32 %v1893, 5
        %v1895 = vand.u32 %v1893, 31
        %v1896 = vsub.s32 32, %v1895
        %v1897 = vshrl.u32 683565275, %v1896
        %v1898 = vshll.u32 683565275, %v1895
        %v1899 = vshrl.u32 2475754826, %v1896
        %v1900 = vor.u32 %v1898, %v1899
        %v1901 = vshll.u32 2475754826, %v1895
        %v1902 = vshrl.u32 2131351028, %v1896
        %v1903 = vor.u32 %v1901, %v1902
        %v1904 = vshll.u32 2131351028, %v1895
        %v1905 = vshrl.u32 2102212464, %v1896
        %v1906 = vor.u32 %v1904, %v1905
        %v1907 = vshll.u32 2102212464, %v1895
        %v1908 = vshrl.u32 920167782, %v1896
        %v1909 = vor.u32 %v1907, %v1908
        %v1910 = vshll.u32 920167782, %v1895
        %v1911 = vshrl.u32 1326507024, %v1896
        %v1912 = vor.u32 %v1910, %v1911
        %vm1913 = vcmp.lt.s32.totalorder %v1894, 1
        %vm1914 = vcmp.lt.s32.totalorder %v1894, 2
        %vm1915 = vcmp.lt.s32.totalorder %v1894, 3
        %vm1916 = vcmp.lt.s32.totalorder %v1894, 4
        %v1917 = vsel %vm1913, %v1897, %v1900
        %v1918 = vsel %vm1916, %v1906, 2102212464
        %v1919 = vsel %vm1915, %v1903, %v1918
        %v1920 = vsel %vm1914, %v1917, %v1919
        %v1921 = vsel %vm1913, %v1900, %v1903
        %v1922 = vsel %vm1916, %v1909, 920167782
        %v1923 = vsel %vm1915, %v1906, %v1922
        %v1924 = vsel %vm1914, %v1921, %v1923
        %v1925 = vsel %vm1913, %v1903, %v1906
        %v1926 = vsel %vm1916, %v1912, 1326507024
        %v1927 = vsel %vm1915, %v1909, %v1926
        %v1928 = vsel %vm1914, %v1925, %v1927
        %v1929 = vshll.u32 %v1889, 8
        %v1930 = vmul.u32.u64.compose %v1929, %v1928
        %v1931 = vextract.low.u32 %v1930
        %v1932 = vextract.high.u32 %v1930
        %v1933 = vmul.u32.u64.compose %v1929, %v1924
        %v1934 = vextract.low.u32 %v1933
        %v1935 = vextract.high.u32 %v1933
        %v1936 = vmul.u32 %v1929, %v1920
        %v1937 = vadd.s32 %v1932, %v1934
        %vm1938 = vc.u32 %v1932, %v1934
        %v1939 = vadd.s32 %v1935, 1
        %v1940 = vsel %vm1938, %v1939, %v1935
        %v1941 = vadd.s32 %v1936, %v1940
        %v1942 = vadd.s32 %v1941, 536870912
        %v1943 = vshrl.u32 %v1942, 30
        %v1944 = vshll.u32 %v1943, 30
        %v1945 = vsub.s32 %v1941, %v1944
        %vm1946 = vcmp.lt.s32.totalorder %v1945, 0
        %v1947 = vsub.s32 0, %v1945
        %v1948 = vsel %vm1946, %v1947, %v1945
        %v1949 = vclz %v1948
        %v1950 = vsub.s32 %v1949, 2
        %vm1951 = vcmp.gt.s32.totalorder 0, %v1950
        %v1952 = vsel %vm1951, 0, %v1950
        %v1953 = vsub.s32 32, %v1952
        %v1954 = vshll.u32 %v1945, %v1952
        %v1955 = vshrl.u32 %v1937, %v1953
        %v1956 = vor.u32 %v1954, %v1955
        %v1957 = vsub.s32 4294967266, %v1952
        %v1958 = vadd.s32 %v1957, 127
        %v1959 = vshll.u32 %v1958, 23
        %v1960 = vor.u32 4788187, %v1959
        %v1961 = vand.u32 2147483647, %v1960
        %v1963 = vcvt.s32.f32 %v1956
        %v1964 = vmul.f32 %v1963, %v1961
        %v1965 = vxor.u32 %v1964, 2147483648
        %v1966 = vsel %vm1883, %v1965, %v1964
        %v1967 = vsub.s32 4, %v1943
        %v1968 = vsel %vm1883, %v1967, %v1943
        %v1969 = vsel %vm1882, %v436, %v1966
        %v1970 = vsel %vm1882, 0, %v1968
        %v1971 = vcosq.f32.pop %v1969
        %v1972 = vsinq.f32.pop %v1969
        %vm1973 = vweird.f32 %v436
        %v1974 = vadd.s32 %v1970, 3
        %v1975 = vand.u32 %v1974, 3
        %vm1976 = vcmp.lt.s32.totalorder %v1975, 2
        %vm1977 = vcmp.eq.s32.totalorder %v1975, 0
        %v1978 = vxor.u32 %v1972, 2147483648
        %v1979 = vsel %vm1977, %v1971, %v1978
        %vm1980 = vcmp.eq.s32.totalorder %v1975, 2
        %v1981 = vxor.u32 %v1971, 2147483648
        %v1982 = vsel %vm1980, %v1981, %v1972
        %v1983 = vsel %vm1976, %v1979, %v1982
        %v1984 = vsel %vm1973, nan, %v1983
        %v1985 = vand.u32 2147483647, %v441
        %vm1986 = vcmp.le.f32.partialorder %v1985, 0.7853982
        %vm1987 = vcmp.lt.s32.totalorder %v441, 0
        %v1988 = vand.u32 %v441, 2139095040
        %v1989 = vshrl.u32 %v1988, 23
        %v1990 = vsub.s32 %v1989, 127
        %v1991 = vand.u32 2147483647, %v441
        %v1992 = vand.u32 %v1991, 8388607
        %v1993 = vor.u32 %v1992, 8388608
        %v1994 = vsub.s32 0, %v1993
        %v1995 = vadd.s32 %v1990, 1
        %vm1996 = vcmp.gt.s32.totalorder %v1995, 0
        %v1997 = vsel %vm1996, %v1995, 0
        %v1998 = vshrl.u32 %v1997, 5
        %v1999 = vand.u32 %v1997, 31
        %v2000 = vsub.s32 32, %v1999
        %v2001 = vshrl.u32 683565275, %v2000
        %v2002 = vshll.u32 683565275, %v1999
        %v2003 = vshrl.u32 2475754826, %v2000
        %v2004 = vor.u32 %v2002, %v2003
        %v2005 = vshll.u32 2475754826, %v1999
        %v2006 = vshrl.u32 2131351028, %v2000
        %v2007 = vor.u32 %v2005, %v2006
        %v2008 = vshll.u32 2131351028, %v1999
        %v2009 = vshrl.u32 2102212464, %v2000
        %v2010 = vor.u32 %v2008, %v2009
        %v2011 = vshll.u32 2102212464, %v1999
        %v2012 = vshrl.u32 920167782, %v2000
        %v2013 = vor.u32 %v2011, %v2012
        %v2014 = vshll.u32 920167782, %v1999
        %v2015 = vshrl.u32 1326507024, %v2000
        %v2016 = vor.u32 %v2014, %v2015
        %vm2017 = vcmp.lt.s32.totalorder %v1998, 1
        %vm2018 = vcmp.lt.s32.totalorder %v1998, 2
        %vm2019 = vcmp.lt.s32.totalorder %v1998, 3
        %vm2020 = vcmp.lt.s32.totalorder %v1998, 4
        %v2021 = vsel %vm2017, %v2001, %v2004
        %v2022 = vsel %vm2020, %v2010, 2102212464
        %v2023 = vsel %vm2019, %v2007, %v2022
        %v2024 = vsel %vm2018, %v2021, %v2023
        %v2025 = vsel %vm2017, %v2004, %v2007
        %v2026 = vsel %vm2020, %v2013, 920167782
        %v2027 = vsel %vm2019, %v2010, %v2026
        %v2028 = vsel %vm2018, %v2025, %v2027
        %v2029 = vsel %vm2017, %v2007, %v2010
        %v2030 = vsel %vm2020, %v2016, 1326507024
        %v2031 = vsel %vm2019, %v2013, %v2030
        %v2032 = vsel %vm2018, %v2029, %v2031
        %v2033 = vshll.u32 %v1993, 8
        %v2034 = vmul.u32.u64.compose %v2033, %v2032
        %v2035 = vextract.low.u32 %v2034
        %v2036 = vextract.high.u32 %v2034
        %v2037 = vmul.u32.u64.compose %v2033, %v2028
        %v2038 = vextract.low.u32 %v2037
        %v2039 = vextract.high.u32 %v2037
        %v2040 = vmul.u32 %v2033, %v2024
        %v2041 = vadd.s32 %v2036, %v2038
        %vm2042 = vc.u32 %v2036, %v2038
        %v2043 = vadd.s32 %v2039, 1
        %v2044 = vsel %vm2042, %v2043, %v2039
        %v2045 = vadd.s32 %v2040, %v2044
        %v2046 = vadd.s32 %v2045, 536870912
        %v2047 = vshrl.u32 %v2046, 30
        %v2048 = vshll.u32 %v2047, 30
        %v2049 = vsub.s32 %v2045, %v2048
        %vm2050 = vcmp.lt.s32.totalorder %v2049, 0
        %v2051 = vsub.s32 0, %v2049
        %v2052 = vsel %vm2050, %v2051, %v2049
        %v2053 = vclz %v2052
        %v2054 = vsub.s32 %v2053, 2
        %vm2055 = vcmp.gt.s32.totalorder 0, %v2054
        %v2056 = vsel %vm2055, 0, %v2054
        %v2057 = vsub.s32 32, %v2056
        %v2058 = vshll.u32 %v2049, %v2056
        %v2059 = vshrl.u32 %v2041, %v2057
        %v2060 = vor.u32 %v2058, %v2059
        %v2061 = vsub.s32 4294967266, %v2056
        %v2062 = vadd.s32 %v2061, 127
        %v2063 = vshll.u32 %v2062, 23
        %v2064 = vor.u32 4788187, %v2063
        %v2065 = vand.u32 2147483647, %v2064
        %v2067 = vcvt.s32.f32 %v2060
        %v2068 = vmul.f32 %v2067, %v2065
        %v2069 = vxor.u32 %v2068, 2147483648
        %v2070 = vsel %vm1987, %v2069, %v2068
        %v2071 = vsub.s32 4, %v2047
        %v2072 = vsel %vm1987, %v2071, %v2047
        %v2073 = vsel %vm1986, %v441, %v2070
        %v2074 = vsel %vm1986, 0, %v2072
        %v2075 = vcosq.f32.pop %v2073
        %v2076 = vsinq.f32.pop %v2073
        %vm2077 = vweird.f32 %v441
        %v2078 = vadd.s32 %v2074, 3
        %v2079 = vand.u32 %v2078, 3
        %vm2080 = vcmp.lt.s32.totalorder %v2079, 2
        %vm2081 = vcmp.eq.s32.totalorder %v2079, 0
        %v2082 = vxor.u32 %v2076, 2147483648
        %v2083 = vsel %vm2081, %v2075, %v2082
        %vm2084 = vcmp.eq.s32.totalorder %v2079, 2
        %v2085 = vxor.u32 %v2075, 2147483648
        %v2086 = vsel %vm2084, %v2085, %v2076
        %v2087 = vsel %vm2080, %v2083, %v2086
        %v2088 = vsel %vm2077, nan, %v2087
        %v2089 = vand.u32 2147483647, %v446
        %vm2090 = vcmp.le.f32.partialorder %v2089, 0.7853982
        %vm2091 = vcmp.lt.s32.totalorder %v446, 0
        %v2092 = vand.u32 %v446, 2139095040
        %v2093 = vshrl.u32 %v2092, 23
        %v2094 = vsub.s32 %v2093, 127
        %v2095 = vand.u32 2147483647, %v446
        %v2096 = vand.u32 %v2095, 8388607
        %v2097 = vor.u32 %v2096, 8388608
        %v2098 = vsub.s32 0, %v2097
        %v2099 = vadd.s32 %v2094, 1
        %vm2100 = vcmp.gt.s32.totalorder %v2099, 0
        %v2101 = vsel %vm2100, %v2099, 0
        %v2102 = vshrl.u32 %v2101, 5
        %v2103 = vand.u32 %v2101, 31
        %v2104 = vsub.s32 32, %v2103
        %v2105 = vshrl.u32 683565275, %v2104
        %v2106 = vshll.u32 683565275, %v2103
        %v2107 = vshrl.u32 2475754826, %v2104
        %v2108 = vor.u32 %v2106, %v2107
        %v2109 = vshll.u32 2475754826, %v2103
        %v2110 = vshrl.u32 2131351028, %v2104
        %v2111 = vor.u32 %v2109, %v2110
        %v2112 = vshll.u32 2131351028, %v2103
        %v2113 = vshrl.u32 2102212464, %v2104
        %v2114 = vor.u32 %v2112, %v2113
        %v2115 = vshll.u32 2102212464, %v2103
        %v2116 = vshrl.u32 920167782, %v2104
        %v2117 = vor.u32 %v2115, %v2116
        %v2118 = vshll.u32 920167782, %v2103
        %v2119 = vshrl.u32 1326507024, %v2104
        %v2120 = vor.u32 %v2118, %v2119
        %vm2121 = vcmp.lt.s32.totalorder %v2102, 1
        %vm2122 = vcmp.lt.s32.totalorder %v2102, 2
        %vm2123 = vcmp.lt.s32.totalorder %v2102, 3
        %vm2124 = vcmp.lt.s32.totalorder %v2102, 4
        %v2125 = vsel %vm2121, %v2105, %v2108
        %v2126 = vsel %vm2124, %v2114, 2102212464
        %v2127 = vsel %vm2123, %v2111, %v2126
        %v2128 = vsel %vm2122, %v2125, %v2127
        %v2129 = vsel %vm2121, %v2108, %v2111
        %v2130 = vsel %vm2124, %v2117, 920167782
        %v2131 = vsel %vm2123, %v2114, %v2130
        %v2132 = vsel %vm2122, %v2129, %v2131
        %v2133 = vsel %vm2121, %v2111, %v2114
        %v2134 = vsel %vm2124, %v2120, 1326507024
        %v2135 = vsel %vm2123, %v2117, %v2134
        %v2136 = vsel %vm2122, %v2133, %v2135
        %v2137 = vshll.u32 %v2097, 8
        %v2138 = vmul.u32.u64.compose %v2137, %v2136
        %v2139 = vextract.low.u32 %v2138
        %v2140 = vextract.high.u32 %v2138
        %v2141 = vmul.u32.u64.compose %v2137, %v2132
        %v2142 = vextract.low.u32 %v2141
        %v2143 = vextract.high.u32 %v2141
        %v2144 = vmul.u32 %v2137, %v2128
        %v2145 = vadd.s32 %v2140, %v2142
        %vm2146 = vc.u32 %v2140, %v2142
        %v2147 = vadd.s32 %v2143, 1
        %v2148 = vsel %vm2146, %v2147, %v2143
        %v2149 = vadd.s32 %v2144, %v2148
        %v2150 = vadd.s32 %v2149, 536870912
        %v2151 = vshrl.u32 %v2150, 30
        %v2152 = vshll.u32 %v2151, 30
        %v2153 = vsub.s32 %v2149, %v2152
        %vm2154 = vcmp.lt.s32.totalorder %v2153, 0
        %v2155 = vsub.s32 0, %v2153
        %v2156 = vsel %vm2154, %v2155, %v2153
        %v2157 = vclz %v2156
        %v2158 = vsub.s32 %v2157, 2
        %vm2159 = vcmp.gt.s32.totalorder 0, %v2158
        %v2160 = vsel %vm2159, 0, %v2158
        %v2161 = vsub.s32 32, %v2160
        %v2162 = vshll.u32 %v2153, %v2160
        %v2163 = vshrl.u32 %v2145, %v2161
        %v2164 = vor.u32 %v2162, %v2163
        %v2165 = vsub.s32 4294967266, %v2160
        %v2166 = vadd.s32 %v2165, 127
        %v2167 = vshll.u32 %v2166, 23
        %v2168 = vor.u32 4788187, %v2167
        %v2169 = vand.u32 2147483647, %v2168
        %v2171 = vcvt.s32.f32 %v2164
        %v2172 = vmul.f32 %v2171, %v2169
        %v2173 = vxor.u32 %v2172, 2147483648
        %v2174 = vsel %vm2091, %v2173, %v2172
        %v2175 = vsub.s32 4, %v2151
        %v2176 = vsel %vm2091, %v2175, %v2151
        %v2177 = vsel %vm2090, %v446, %v2174
        %v2178 = vsel %vm2090, 0, %v2176
        %v2179 = vcosq.f32.pop %v2177
        %v2180 = vsinq.f32.pop %v2177
        %vm2181 = vweird.f32 %v446
        %v2182 = vadd.s32 %v2178, 3
        %v2183 = vand.u32 %v2182, 3
        %vm2184 = vcmp.lt.s32.totalorder %v2183, 2
        %vm2185 = vcmp.eq.s32.totalorder %v2183, 0
        %v2186 = vxor.u32 %v2180, 2147483648
        %v2187 = vsel %vm2185, %v2179, %v2186
        %vm2188 = vcmp.eq.s32.totalorder %v2183, 2
        %v2189 = vxor.u32 %v2179, 2147483648
        %v2190 = vsel %vm2188, %v2189, %v2180
        %v2191 = vsel %vm2184, %v2187, %v2190
        %v2192 = vsel %vm2181, nan, %v2191
        %v2193 = vand.u32 2147483647, %v451
        %vm2194 = vcmp.le.f32.partialorder %v2193, 0.7853982
        %vm2195 = vcmp.lt.s32.totalorder %v451, 0
        %v2196 = vand.u32 %v451, 2139095040
        %v2197 = vshrl.u32 %v2196, 23
        %v2198 = vsub.s32 %v2197, 127
        %v2199 = vand.u32 2147483647, %v451
        %v2200 = vand.u32 %v2199, 8388607
        %v2201 = vor.u32 %v2200, 8388608
        %v2202 = vsub.s32 0, %v2201
        %v2203 = vadd.s32 %v2198, 1
        %vm2204 = vcmp.gt.s32.totalorder %v2203, 0
        %v2205 = vsel %vm2204, %v2203, 0
        %v2206 = vshrl.u32 %v2205, 5
        %v2207 = vand.u32 %v2205, 31
        %v2208 = vsub.s32 32, %v2207
        %v2209 = vshrl.u32 683565275, %v2208
        %v2210 = vshll.u32 683565275, %v2207
        %v2211 = vshrl.u32 2475754826, %v2208
        %v2212 = vor.u32 %v2210, %v2211
        %v2213 = vshll.u32 2475754826, %v2207
        %v2214 = vshrl.u32 2131351028, %v2208
        %v2215 = vor.u32 %v2213, %v2214
        %v2216 = vshll.u32 2131351028, %v2207
        %v2217 = vshrl.u32 2102212464, %v2208
        %v2218 = vor.u32 %v2216, %v2217
        %v2219 = vshll.u32 2102212464, %v2207
        %v2220 = vshrl.u32 920167782, %v2208
        %v2221 = vor.u32 %v2219, %v2220
        %v2222 = vshll.u32 920167782, %v2207
        %v2223 = vshrl.u32 1326507024, %v2208
        %v2224 = vor.u32 %v2222, %v2223
        %vm2225 = vcmp.lt.s32.totalorder %v2206, 1
        %vm2226 = vcmp.lt.s32.totalorder %v2206, 2
        %vm2227 = vcmp.lt.s32.totalorder %v2206, 3
        %vm2228 = vcmp.lt.s32.totalorder %v2206, 4
        %v2229 = vsel %vm2225, %v2209, %v2212
        %v2230 = vsel %vm2228, %v2218, 2102212464
        %v2231 = vsel %vm2227, %v2215, %v2230
        %v2232 = vsel %vm2226, %v2229, %v2231
        %v2233 = vsel %vm2225, %v2212, %v2215
        %v2234 = vsel %vm2228, %v2221, 920167782
        %v2235 = vsel %vm2227, %v2218, %v2234
        %v2236 = vsel %vm2226, %v2233, %v2235
        %v2237 = vsel %vm2225, %v2215, %v2218
        %v2238 = vsel %vm2228, %v2224, 1326507024
        %v2239 = vsel %vm2227, %v2221, %v2238
        %v2240 = vsel %vm2226, %v2237, %v2239
        %v2241 = vshll.u32 %v2201, 8
        %v2242 = vmul.u32.u64.compose %v2241, %v2240
        %v2243 = vextract.low.u32 %v2242
        %v2244 = vextract.high.u32 %v2242
        %v2245 = vmul.u32.u64.compose %v2241, %v2236
        %v2246 = vextract.low.u32 %v2245
        %v2247 = vextract.high.u32 %v2245
        %v2248 = vmul.u32 %v2241, %v2232
        %v2249 = vadd.s32 %v2244, %v2246
        %vm2250 = vc.u32 %v2244, %v2246
        %v2251 = vadd.s32 %v2247, 1
        %v2252 = vsel %vm2250, %v2251, %v2247
        %v2253 = vadd.s32 %v2248, %v2252
        %v2254 = vadd.s32 %v2253, 536870912
        %v2255 = vshrl.u32 %v2254, 30
        %v2256 = vshll.u32 %v2255, 30
        %v2257 = vsub.s32 %v2253, %v2256
        %vm2258 = vcmp.lt.s32.totalorder %v2257, 0
        %v2259 = vsub.s32 0, %v2257
        %v2260 = vsel %vm2258, %v2259, %v2257
        %v2261 = vclz %v2260
        %v2262 = vsub.s32 %v2261, 2
        %vm2263 = vcmp.gt.s32.totalorder 0, %v2262
        %v2264 = vsel %vm2263, 0, %v2262
        %v2265 = vsub.s32 32, %v2264
        %v2266 = vshll.u32 %v2257, %v2264
        %v2267 = vshrl.u32 %v2249, %v2265
        %v2268 = vor.u32 %v2266, %v2267
        %v2269 = vsub.s32 4294967266, %v2264
        %v2270 = vadd.s32 %v2269, 127
        %v2271 = vshll.u32 %v2270, 23
        %v2272 = vor.u32 4788187, %v2271
        %v2273 = vand.u32 2147483647, %v2272
        %v2275 = vcvt.s32.f32 %v2268
        %v2276 = vmul.f32 %v2275, %v2273
        %v2277 = vxor.u32 %v2276, 2147483648
        %v2278 = vsel %vm2195, %v2277, %v2276
        %v2279 = vsub.s32 4, %v2255
        %v2280 = vsel %vm2195, %v2279, %v2255
        %v2281 = vsel %vm2194, %v451, %v2278
        %v2282 = vsel %vm2194, 0, %v2280
        %v2283 = vcosq.f32.pop %v2281
        %v2284 = vsinq.f32.pop %v2281
        %vm2285 = vweird.f32 %v451
        %v2286 = vadd.s32 %v2282, 3
        %v2287 = vand.u32 %v2286, 3
        %vm2288 = vcmp.lt.s32.totalorder %v2287, 2
        %vm2289 = vcmp.eq.s32.totalorder %v2287, 0
        %v2290 = vxor.u32 %v2284, 2147483648
        %v2291 = vsel %vm2289, %v2283, %v2290
        %vm2292 = vcmp.eq.s32.totalorder %v2287, 2
        %v2293 = vxor.u32 %v2283, 2147483648
        %v2294 = vsel %vm2292, %v2293, %v2284
        %v2295 = vsel %vm2288, %v2291, %v2294
        %v2296 = vsel %vm2285, nan, %v2295
        %v2297 = vand.u32 2147483647, %v456
        %vm2298 = vcmp.le.f32.partialorder %v2297, 0.7853982
        %vm2299 = vcmp.lt.s32.totalorder %v456, 0
        %v2300 = vand.u32 %v456, 2139095040
        %v2301 = vshrl.u32 %v2300, 23
        %v2302 = vsub.s32 %v2301, 127
        %v2303 = vand.u32 2147483647, %v456
        %v2304 = vand.u32 %v2303, 8388607
        %v2305 = vor.u32 %v2304, 8388608
        %v2306 = vsub.s32 0, %v2305
        %v2307 = vadd.s32 %v2302, 1
        %vm2308 = vcmp.gt.s32.totalorder %v2307, 0
        %v2309 = vsel %vm2308, %v2307, 0
        %v2310 = vshrl.u32 %v2309, 5
        %v2311 = vand.u32 %v2309, 31
        %v2312 = vsub.s32 32, %v2311
        %v2313 = vshrl.u32 683565275, %v2312
        %v2314 = vshll.u32 683565275, %v2311
        %v2315 = vshrl.u32 2475754826, %v2312
        %v2316 = vor.u32 %v2314, %v2315
        %v2317 = vshll.u32 2475754826, %v2311
        %v2318 = vshrl.u32 2131351028, %v2312
        %v2319 = vor.u32 %v2317, %v2318
        %v2320 = vshll.u32 2131351028, %v2311
        %v2321 = vshrl.u32 2102212464, %v2312
        %v2322 = vor.u32 %v2320, %v2321
        %v2323 = vshll.u32 2102212464, %v2311
        %v2324 = vshrl.u32 920167782, %v2312
        %v2325 = vor.u32 %v2323, %v2324
        %v2326 = vshll.u32 920167782, %v2311
        %v2327 = vshrl.u32 1326507024, %v2312
        %v2328 = vor.u32 %v2326, %v2327
        %vm2329 = vcmp.lt.s32.totalorder %v2310, 1
        %vm2330 = vcmp.lt.s32.totalorder %v2310, 2
        %vm2331 = vcmp.lt.s32.totalorder %v2310, 3
        %vm2332 = vcmp.lt.s32.totalorder %v2310, 4
        %v2333 = vsel %vm2329, %v2313, %v2316
        %v2334 = vsel %vm2332, %v2322, 2102212464
        %v2335 = vsel %vm2331, %v2319, %v2334
        %v2336 = vsel %vm2330, %v2333, %v2335
        %v2337 = vsel %vm2329, %v2316, %v2319
        %v2338 = vsel %vm2332, %v2325, 920167782
        %v2339 = vsel %vm2331, %v2322, %v2338
        %v2340 = vsel %vm2330, %v2337, %v2339
        %v2341 = vsel %vm2329, %v2319, %v2322
        %v2342 = vsel %vm2332, %v2328, 1326507024
        %v2343 = vsel %vm2331, %v2325, %v2342
        %v2344 = vsel %vm2330, %v2341, %v2343
        %v2345 = vshll.u32 %v2305, 8
        %v2346 = vmul.u32.u64.compose %v2345, %v2344
        %v2347 = vextract.low.u32 %v2346
        %v2348 = vextract.high.u32 %v2346
        %v2349 = vmul.u32.u64.compose %v2345, %v2340
        %v2350 = vextract.low.u32 %v2349
        %v2351 = vextract.high.u32 %v2349
        %v2352 = vmul.u32 %v2345, %v2336
        %v2353 = vadd.s32 %v2348, %v2350
        %vm2354 = vc.u32 %v2348, %v2350
        %v2355 = vadd.s32 %v2351, 1
        %v2356 = vsel %vm2354, %v2355, %v2351
        %v2357 = vadd.s32 %v2352, %v2356
        %v2358 = vadd.s32 %v2357, 536870912
        %v2359 = vshrl.u32 %v2358, 30
        %v2360 = vshll.u32 %v2359, 30
        %v2361 = vsub.s32 %v2357, %v2360
        %vm2362 = vcmp.lt.s32.totalorder %v2361, 0
        %v2363 = vsub.s32 0, %v2361
        %v2364 = vsel %vm2362, %v2363, %v2361
        %v2365 = vclz %v2364
        %v2366 = vsub.s32 %v2365, 2
        %vm2367 = vcmp.gt.s32.totalorder 0, %v2366
        %v2368 = vsel %vm2367, 0, %v2366
        %v2369 = vsub.s32 32, %v2368
        %v2370 = vshll.u32 %v2361, %v2368
        %v2371 = vshrl.u32 %v2353, %v2369
        %v2372 = vor.u32 %v2370, %v2371
        %v2373 = vsub.s32 4294967266, %v2368
        %v2374 = vadd.s32 %v2373, 127
        %v2375 = vshll.u32 %v2374, 23
        %v2376 = vor.u32 4788187, %v2375
        %v2377 = vand.u32 2147483647, %v2376
        %v2379 = vcvt.s32.f32 %v2372
        %v2380 = vmul.f32 %v2379, %v2377
        %v2381 = vxor.u32 %v2380, 2147483648
        %v2382 = vsel %vm2299, %v2381, %v2380
        %v2383 = vsub.s32 4, %v2359
        %v2384 = vsel %vm2299, %v2383, %v2359
        %v2385 = vsel %vm2298, %v456, %v2382
        %v2386 = vsel %vm2298, 0, %v2384
        %v2387 = vcosq.f32.pop %v2385
        %v2388 = vsinq.f32.pop %v2385
        %vm2389 = vweird.f32 %v456
        %v2390 = vadd.s32 %v2386, 3
        %v2391 = vand.u32 %v2390, 3
        %vm2392 = vcmp.lt.s32.totalorder %v2391, 2
        %vm2393 = vcmp.eq.s32.totalorder %v2391, 0
        %v2394 = vxor.u32 %v2388, 2147483648
        %v2395 = vsel %vm2393, %v2387, %v2394
        %vm2396 = vcmp.eq.s32.totalorder %v2391, 2
        %v2397 = vxor.u32 %v2387, 2147483648
        %v2398 = vsel %vm2396, %v2397, %v2388
        %v2399 = vsel %vm2392, %v2395, %v2398
        %v2400 = vsel %vm2389, nan, %v2399
        %v2401 = vand.u32 2147483647, %v461
        %vm2402 = vcmp.le.f32.partialorder %v2401, 0.7853982
        %vm2403 = vcmp.lt.s32.totalorder %v461, 0
        %v2404 = vand.u32 %v461, 2139095040
        %v2405 = vshrl.u32 %v2404, 23
        %v2406 = vsub.s32 %v2405, 127
        %v2407 = vand.u32 2147483647, %v461
        %v2408 = vand.u32 %v2407, 8388607
        %v2409 = vor.u32 %v2408, 8388608
        %v2410 = vsub.s32 0, %v2409
        %v2411 = vadd.s32 %v2406, 1
        %vm2412 = vcmp.gt.s32.totalorder %v2411, 0
        %v2413 = vsel %vm2412, %v2411, 0
        %v2414 = vshrl.u32 %v2413, 5
        %v2415 = vand.u32 %v2413, 31
        %v2416 = vsub.s32 32, %v2415
        %v2417 = vshrl.u32 683565275, %v2416
        %v2418 = vshll.u32 683565275, %v2415
        %v2419 = vshrl.u32 2475754826, %v2416
        %v2420 = vor.u32 %v2418, %v2419
        %v2421 = vshll.u32 2475754826, %v2415
        %v2422 = vshrl.u32 2131351028, %v2416
        %v2423 = vor.u32 %v2421, %v2422
        %v2424 = vshll.u32 2131351028, %v2415
        %v2425 = vshrl.u32 2102212464, %v2416
        %v2426 = vor.u32 %v2424, %v2425
        %v2427 = vshll.u32 2102212464, %v2415
        %v2428 = vshrl.u32 920167782, %v2416
        %v2429 = vor.u32 %v2427, %v2428
        %v2430 = vshll.u32 920167782, %v2415
        %v2431 = vshrl.u32 1326507024, %v2416
        %v2432 = vor.u32 %v2430, %v2431
        %vm2433 = vcmp.lt.s32.totalorder %v2414, 1
        %vm2434 = vcmp.lt.s32.totalorder %v2414, 2
        %vm2435 = vcmp.lt.s32.totalorder %v2414, 3
        %vm2436 = vcmp.lt.s32.totalorder %v2414, 4
        %v2437 = vsel %vm2433, %v2417, %v2420
        %v2438 = vsel %vm2436, %v2426, 2102212464
        %v2439 = vsel %vm2435, %v2423, %v2438
        %v2440 = vsel %vm2434, %v2437, %v2439
        %v2441 = vsel %vm2433, %v2420, %v2423
        %v2442 = vsel %vm2436, %v2429, 920167782
        %v2443 = vsel %vm2435, %v2426, %v2442
        %v2444 = vsel %vm2434, %v2441, %v2443
        %v2445 = vsel %vm2433, %v2423, %v2426
        %v2446 = vsel %vm2436, %v2432, 1326507024
        %v2447 = vsel %vm2435, %v2429, %v2446
        %v2448 = vsel %vm2434, %v2445, %v2447
        %v2449 = vshll.u32 %v2409, 8
        %v2450 = vmul.u32.u64.compose %v2449, %v2448
        %v2451 = vextract.low.u32 %v2450
        %v2452 = vextract.high.u32 %v2450
        %v2453 = vmul.u32.u64.compose %v2449, %v2444
        %v2454 = vextract.low.u32 %v2453
        %v2455 = vextract.high.u32 %v2453
        %v2456 = vmul.u32 %v2449, %v2440
        %v2457 = vadd.s32 %v2452, %v2454
        %vm2458 = vc.u32 %v2452, %v2454
        %v2459 = vadd.s32 %v2455, 1
        %v2460 = vsel %vm2458, %v2459, %v2455
        %v2461 = vadd.s32 %v2456, %v2460
        %v2462 = vadd.s32 %v2461, 536870912
        %v2463 = vshrl.u32 %v2462, 30
        %v2464 = vshll.u32 %v2463, 30
        %v2465 = vsub.s32 %v2461, %v2464
        %vm2466 = vcmp.lt.s32.totalorder %v2465, 0
        %v2467 = vsub.s32 0, %v2465
        %v2468 = vsel %vm2466, %v2467, %v2465
        %v2469 = vclz %v2468
        %v2470 = vsub.s32 %v2469, 2
        %vm2471 = vcmp.gt.s32.totalorder 0, %v2470
        %v2472 = vsel %vm2471, 0, %v2470
        %v2473 = vsub.s32 32, %v2472
        %v2474 = vshll.u32 %v2465, %v2472
        %v2475 = vshrl.u32 %v2457, %v2473
        %v2476 = vor.u32 %v2474, %v2475
        %v2477 = vsub.s32 4294967266, %v2472
        %v2478 = vadd.s32 %v2477, 127
        %v2479 = vshll.u32 %v2478, 23
        %v2480 = vor.u32 4788187, %v2479
        %v2481 = vand.u32 2147483647, %v2480
        %v2483 = vcvt.s32.f32 %v2476
        %v2484 = vmul.f32 %v2483, %v2481
        %v2485 = vxor.u32 %v2484, 2147483648
        %v2486 = vsel %vm2403, %v2485, %v2484
        %v2487 = vsub.s32 4, %v2463
        %v2488 = vsel %vm2403, %v2487, %v2463
        %v2489 = vsel %vm2402, %v461, %v2486
        %v2490 = vsel %vm2402, 0, %v2488
        %v2491 = vcosq.f32.pop %v2489
        %v2492 = vsinq.f32.pop %v2489
        %vm2493 = vweird.f32 %v461
        %v2494 = vadd.s32 %v2490, 3
        %v2495 = vand.u32 %v2494, 3
        %vm2496 = vcmp.lt.s32.totalorder %v2495, 2
        %vm2497 = vcmp.eq.s32.totalorder %v2495, 0
        %v2498 = vxor.u32 %v2492, 2147483648
        %v2499 = vsel %vm2497, %v2491, %v2498
        %vm2500 = vcmp.eq.s32.totalorder %v2495, 2
        %v2501 = vxor.u32 %v2491, 2147483648
        %v2502 = vsel %vm2500, %v2501, %v2492
        %v2503 = vsel %vm2496, %v2499, %v2502
        %v2504 = vsel %vm2493, nan, %v2503
        %v2505 = vand.u32 2147483647, %v466
        %vm2506 = vcmp.le.f32.partialorder %v2505, 0.7853982
        %vm2507 = vcmp.lt.s32.totalorder %v466, 0
        %v2508 = vand.u32 %v466, 2139095040
        %v2509 = vshrl.u32 %v2508, 23
        %v2510 = vsub.s32 %v2509, 127
        %v2511 = vand.u32 2147483647, %v466
        %v2512 = vand.u32 %v2511, 8388607
        %v2513 = vor.u32 %v2512, 8388608
        %v2514 = vsub.s32 0, %v2513
        %v2515 = vadd.s32 %v2510, 1
        %vm2516 = vcmp.gt.s32.totalorder %v2515, 0
        %v2517 = vsel %vm2516, %v2515, 0
        %v2518 = vshrl.u32 %v2517, 5
        %v2519 = vand.u32 %v2517, 31
        %v2520 = vsub.s32 32, %v2519
        %v2521 = vshrl.u32 683565275, %v2520
        %v2522 = vshll.u32 683565275, %v2519
        %v2523 = vshrl.u32 2475754826, %v2520
        %v2524 = vor.u32 %v2522, %v2523
        %v2525 = vshll.u32 2475754826, %v2519
        %v2526 = vshrl.u32 2131351028, %v2520
        %v2527 = vor.u32 %v2525, %v2526
        %v2528 = vshll.u32 2131351028, %v2519
        %v2529 = vshrl.u32 2102212464, %v2520
        %v2530 = vor.u32 %v2528, %v2529
        %v2531 = vshll.u32 2102212464, %v2519
        %v2532 = vshrl.u32 920167782, %v2520
        %v2533 = vor.u32 %v2531, %v2532
        %v2534 = vshll.u32 920167782, %v2519
        %v2535 = vshrl.u32 1326507024, %v2520
        %v2536 = vor.u32 %v2534, %v2535
        %vm2537 = vcmp.lt.s32.totalorder %v2518, 1
        %vm2538 = vcmp.lt.s32.totalorder %v2518, 2
        %vm2539 = vcmp.lt.s32.totalorder %v2518, 3
        %vm2540 = vcmp.lt.s32.totalorder %v2518, 4
        %v2541 = vsel %vm2537, %v2521, %v2524
        %v2542 = vsel %vm2540, %v2530, 2102212464
        %v2543 = vsel %vm2539, %v2527, %v2542
        %v2544 = vsel %vm2538, %v2541, %v2543
        %v2545 = vsel %vm2537, %v2524, %v2527
        %v2546 = vsel %vm2540, %v2533, 920167782
        %v2547 = vsel %vm2539, %v2530, %v2546
        %v2548 = vsel %vm2538, %v2545, %v2547
        %v2549 = vsel %vm2537, %v2527, %v2530
        %v2550 = vsel %vm2540, %v2536, 1326507024
        %v2551 = vsel %vm2539, %v2533, %v2550
        %v2552 = vsel %vm2538, %v2549, %v2551
        %v2553 = vshll.u32 %v2513, 8
        %v2554 = vmul.u32.u64.compose %v2553, %v2552
        %v2555 = vextract.low.u32 %v2554
        %v2556 = vextract.high.u32 %v2554
        %v2557 = vmul.u32.u64.compose %v2553, %v2548
        %v2558 = vextract.low.u32 %v2557
        %v2559 = vextract.high.u32 %v2557
        %v2560 = vmul.u32 %v2553, %v2544
        %v2561 = vadd.s32 %v2556, %v2558
        %vm2562 = vc.u32 %v2556, %v2558
        %v2563 = vadd.s32 %v2559, 1
        %v2564 = vsel %vm2562, %v2563, %v2559
        %v2565 = vadd.s32 %v2560, %v2564
        %v2566 = vadd.s32 %v2565, 536870912
        %v2567 = vshrl.u32 %v2566, 30
        %v2568 = vshll.u32 %v2567, 30
        %v2569 = vsub.s32 %v2565, %v2568
        %vm2570 = vcmp.lt.s32.totalorder %v2569, 0
        %v2571 = vsub.s32 0, %v2569
        %v2572 = vsel %vm2570, %v2571, %v2569
        %v2573 = vclz %v2572
        %v2574 = vsub.s32 %v2573, 2
        %vm2575 = vcmp.gt.s32.totalorder 0, %v2574
        %v2576 = vsel %vm2575, 0, %v2574
        %v2577 = vsub.s32 32, %v2576
        %v2578 = vshll.u32 %v2569, %v2576
        %v2579 = vshrl.u32 %v2561, %v2577
        %v2580 = vor.u32 %v2578, %v2579
        %v2581 = vsub.s32 4294967266, %v2576
        %v2582 = vadd.s32 %v2581, 127
        %v2583 = vshll.u32 %v2582, 23
        %v2584 = vor.u32 4788187, %v2583
        %v2585 = vand.u32 2147483647, %v2584
        %v2587 = vcvt.s32.f32 %v2580
        %v2588 = vmul.f32 %v2587, %v2585
        %v2589 = vxor.u32 %v2588, 2147483648
        %v2590 = vsel %vm2507, %v2589, %v2588
        %v2591 = vsub.s32 4, %v2567
        %v2592 = vsel %vm2507, %v2591, %v2567
        %v2593 = vsel %vm2506, %v466, %v2590
        %v2594 = vsel %vm2506, 0, %v2592
        %v2595 = vcosq.f32.pop %v2593
        %v2596 = vsinq.f32.pop %v2593
        %vm2597 = vweird.f32 %v466
        %v2598 = vadd.s32 %v2594, 3
        %v2599 = vand.u32 %v2598, 3
        %vm2600 = vcmp.lt.s32.totalorder %v2599, 2
        %vm2601 = vcmp.eq.s32.totalorder %v2599, 0
        %v2602 = vxor.u32 %v2596, 2147483648
        %v2603 = vsel %vm2601, %v2595, %v2602
        %vm2604 = vcmp.eq.s32.totalorder %v2599, 2
        %v2605 = vxor.u32 %v2595, 2147483648
        %v2606 = vsel %vm2604, %v2605, %v2596
        %v2607 = vsel %vm2600, %v2603, %v2606
        %v2608 = vsel %vm2597, nan, %v2607
        %v2609 = vand.u32 2147483647, %v471
        %vm2610 = vcmp.le.f32.partialorder %v2609, 0.7853982
        %vm2611 = vcmp.lt.s32.totalorder %v471, 0
        %v2612 = vand.u32 %v471, 2139095040
        %v2613 = vshrl.u32 %v2612, 23
        %v2614 = vsub.s32 %v2613, 127
        %v2615 = vand.u32 2147483647, %v471
        %v2616 = vand.u32 %v2615, 8388607
        %v2617 = vor.u32 %v2616, 8388608
        %v2618 = vsub.s32 0, %v2617
        %v2619 = vadd.s32 %v2614, 1
        %vm2620 = vcmp.gt.s32.totalorder %v2619, 0
        %v2621 = vsel %vm2620, %v2619, 0
        %v2622 = vshrl.u32 %v2621, 5
        %v2623 = vand.u32 %v2621, 31
        %v2624 = vsub.s32 32, %v2623
        %v2625 = vshrl.u32 683565275, %v2624
        %v2626 = vshll.u32 683565275, %v2623
        %v2627 = vshrl.u32 2475754826, %v2624
        %v2628 = vor.u32 %v2626, %v2627
        %v2629 = vshll.u32 2475754826, %v2623
        %v2630 = vshrl.u32 2131351028, %v2624
        %v2631 = vor.u32 %v2629, %v2630
        %v2632 = vshll.u32 2131351028, %v2623
        %v2633 = vshrl.u32 2102212464, %v2624
        %v2634 = vor.u32 %v2632, %v2633
        %v2635 = vshll.u32 2102212464, %v2623
        %v2636 = vshrl.u32 920167782, %v2624
        %v2637 = vor.u32 %v2635, %v2636
        %v2638 = vshll.u32 920167782, %v2623
        %v2639 = vshrl.u32 1326507024, %v2624
        %v2640 = vor.u32 %v2638, %v2639
        %vm2641 = vcmp.lt.s32.totalorder %v2622, 1
        %vm2642 = vcmp.lt.s32.totalorder %v2622, 2
        %vm2643 = vcmp.lt.s32.totalorder %v2622, 3
        %vm2644 = vcmp.lt.s32.totalorder %v2622, 4
        %v2645 = vsel %vm2641, %v2625, %v2628
        %v2646 = vsel %vm2644, %v2634, 2102212464
        %v2647 = vsel %vm2643, %v2631, %v2646
        %v2648 = vsel %vm2642, %v2645, %v2647
        %v2649 = vsel %vm2641, %v2628, %v2631
        %v2650 = vsel %vm2644, %v2637, 920167782
        %v2651 = vsel %vm2643, %v2634, %v2650
        %v2652 = vsel %vm2642, %v2649, %v2651
        %v2653 = vsel %vm2641, %v2631, %v2634
        %v2654 = vsel %vm2644, %v2640, 1326507024
        %v2655 = vsel %vm2643, %v2637, %v2654
        %v2656 = vsel %vm2642, %v2653, %v2655
        %v2657 = vshll.u32 %v2617, 8
        %v2658 = vmul.u32.u64.compose %v2657, %v2656
        %v2659 = vextract.low.u32 %v2658
        %v2660 = vextract.high.u32 %v2658
        %v2661 = vmul.u32.u64.compose %v2657, %v2652
        %v2662 = vextract.low.u32 %v2661
        %v2663 = vextract.high.u32 %v2661
        %v2664 = vmul.u32 %v2657, %v2648
        %v2665 = vadd.s32 %v2660, %v2662
        %vm2666 = vc.u32 %v2660, %v2662
        %v2667 = vadd.s32 %v2663, 1
        %v2668 = vsel %vm2666, %v2667, %v2663
        %v2669 = vadd.s32 %v2664, %v2668
        %v2670 = vadd.s32 %v2669, 536870912
        %v2671 = vshrl.u32 %v2670, 30
        %v2672 = vshll.u32 %v2671, 30
        %v2673 = vsub.s32 %v2669, %v2672
        %vm2674 = vcmp.lt.s32.totalorder %v2673, 0
        %v2675 = vsub.s32 0, %v2673
        %v2676 = vsel %vm2674, %v2675, %v2673
        %v2677 = vclz %v2676
        %v2678 = vsub.s32 %v2677, 2
        %vm2679 = vcmp.gt.s32.totalorder 0, %v2678
        %v2680 = vsel %vm2679, 0, %v2678
        %v2681 = vsub.s32 32, %v2680
        %v2682 = vshll.u32 %v2673, %v2680
        %v2683 = vshrl.u32 %v2665, %v2681
        %v2684 = vor.u32 %v2682, %v2683
        %v2685 = vsub.s32 4294967266, %v2680
        %v2686 = vadd.s32 %v2685, 127
        %v2687 = vshll.u32 %v2686, 23
        %v2688 = vor.u32 4788187, %v2687
        %v2689 = vand.u32 2147483647, %v2688
        %v2691 = vcvt.s32.f32 %v2684
        %v2692 = vmul.f32 %v2691, %v2689
        %v2693 = vxor.u32 %v2692, 2147483648
        %v2694 = vsel %vm2611, %v2693, %v2692
        %v2695 = vsub.s32 4, %v2671
        %v2696 = vsel %vm2611, %v2695, %v2671
        %v2697 = vsel %vm2610, %v471, %v2694
        %v2698 = vsel %vm2610, 0, %v2696
        %v2699 = vcosq.f32.pop %v2697
        %v2700 = vsinq.f32.pop %v2697
        %vm2701 = vweird.f32 %v471
        %v2702 = vadd.s32 %v2698, 3
        %v2703 = vand.u32 %v2702, 3
        %vm2704 = vcmp.lt.s32.totalorder %v2703, 2
        %vm2705 = vcmp.eq.s32.totalorder %v2703, 0
        %v2706 = vxor.u32 %v2700, 2147483648
        %v2707 = vsel %vm2705, %v2699, %v2706
        %vm2708 = vcmp.eq.s32.totalorder %v2703, 2
        %v2709 = vxor.u32 %v2699, 2147483648
        %v2710 = vsel %vm2708, %v2709, %v2700
        %v2711 = vsel %vm2704, %v2707, %v2710
        %v2712 = vsel %vm2701, nan, %v2711
        %v2713 = vand.u32 2147483647, %v476
        %vm2714 = vcmp.le.f32.partialorder %v2713, 0.7853982
        %vm2715 = vcmp.lt.s32.totalorder %v476, 0
        %v2716 = vand.u32 %v476, 2139095040
        %v2717 = vshrl.u32 %v2716, 23
        %v2718 = vsub.s32 %v2717, 127
        %v2719 = vand.u32 2147483647, %v476
        %v2720 = vand.u32 %v2719, 8388607
        %v2721 = vor.u32 %v2720, 8388608
        %v2722 = vsub.s32 0, %v2721
        %v2723 = vadd.s32 %v2718, 1
        %vm2724 = vcmp.gt.s32.totalorder %v2723, 0
        %v2725 = vsel %vm2724, %v2723, 0
        %v2726 = vshrl.u32 %v2725, 5
        %v2727 = vand.u32 %v2725, 31
        %v2728 = vsub.s32 32, %v2727
        %v2729 = vshrl.u32 683565275, %v2728
        %v2730 = vshll.u32 683565275, %v2727
        %v2731 = vshrl.u32 2475754826, %v2728
        %v2732 = vor.u32 %v2730, %v2731
        %v2733 = vshll.u32 2475754826, %v2727
        %v2734 = vshrl.u32 2131351028, %v2728
        %v2735 = vor.u32 %v2733, %v2734
        %v2736 = vshll.u32 2131351028, %v2727
        %v2737 = vshrl.u32 2102212464, %v2728
        %v2738 = vor.u32 %v2736, %v2737
        %v2739 = vshll.u32 2102212464, %v2727
        %v2740 = vshrl.u32 920167782, %v2728
        %v2741 = vor.u32 %v2739, %v2740
        %v2742 = vshll.u32 920167782, %v2727
        %v2743 = vshrl.u32 1326507024, %v2728
        %v2744 = vor.u32 %v2742, %v2743
        %vm2745 = vcmp.lt.s32.totalorder %v2726, 1
        %vm2746 = vcmp.lt.s32.totalorder %v2726, 2
        %vm2747 = vcmp.lt.s32.totalorder %v2726, 3
        %vm2748 = vcmp.lt.s32.totalorder %v2726, 4
        %v2749 = vsel %vm2745, %v2729, %v2732
        %v2750 = vsel %vm2748, %v2738, 2102212464
        %v2751 = vsel %vm2747, %v2735, %v2750
        %v2752 = vsel %vm2746, %v2749, %v2751
        %v2753 = vsel %vm2745, %v2732, %v2735
        %v2754 = vsel %vm2748, %v2741, 920167782
        %v2755 = vsel %vm2747, %v2738, %v2754
        %v2756 = vsel %vm2746, %v2753, %v2755
        %v2757 = vsel %vm2745, %v2735, %v2738
        %v2758 = vsel %vm2748, %v2744, 1326507024
        %v2759 = vsel %vm2747, %v2741, %v2758
        %v2760 = vsel %vm2746, %v2757, %v2759
        %v2761 = vshll.u32 %v2721, 8
        %v2762 = vmul.u32.u64.compose %v2761, %v2760
        %v2763 = vextract.low.u32 %v2762
        %v2764 = vextract.high.u32 %v2762
        %v2765 = vmul.u32.u64.compose %v2761, %v2756
        %v2766 = vextract.low.u32 %v2765
        %v2767 = vextract.high.u32 %v2765
        %v2768 = vmul.u32 %v2761, %v2752
        %v2769 = vadd.s32 %v2764, %v2766
        %vm2770 = vc.u32 %v2764, %v2766
        %v2771 = vadd.s32 %v2767, 1
        %v2772 = vsel %vm2770, %v2771, %v2767
        %v2773 = vadd.s32 %v2768, %v2772
        %v2774 = vadd.s32 %v2773, 536870912
        %v2775 = vshrl.u32 %v2774, 30
        %v2776 = vshll.u32 %v2775, 30
        %v2777 = vsub.s32 %v2773, %v2776
        %vm2778 = vcmp.lt.s32.totalorder %v2777, 0
        %v2779 = vsub.s32 0, %v2777
        %v2780 = vsel %vm2778, %v2779, %v2777
        %v2781 = vclz %v2780
        %v2782 = vsub.s32 %v2781, 2
        %vm2783 = vcmp.gt.s32.totalorder 0, %v2782
        %v2784 = vsel %vm2783, 0, %v2782
        %v2785 = vsub.s32 32, %v2784
        %v2786 = vshll.u32 %v2777, %v2784
        %v2787 = vshrl.u32 %v2769, %v2785
        %v2788 = vor.u32 %v2786, %v2787
        %v2789 = vsub.s32 4294967266, %v2784
        %v2790 = vadd.s32 %v2789, 127
        %v2791 = vshll.u32 %v2790, 23
        %v2792 = vor.u32 4788187, %v2791
        %v2793 = vand.u32 2147483647, %v2792
        %v2795 = vcvt.s32.f32 %v2788
        %v2796 = vmul.f32 %v2795, %v2793
        %v2797 = vxor.u32 %v2796, 2147483648
        %v2798 = vsel %vm2715, %v2797, %v2796
        %v2799 = vsub.s32 4, %v2775
        %v2800 = vsel %vm2715, %v2799, %v2775
        %v2801 = vsel %vm2714, %v476, %v2798
        %v2802 = vsel %vm2714, 0, %v2800
        %v2803 = vcosq.f32.pop %v2801
        %v2804 = vsinq.f32.pop %v2801
        %vm2805 = vweird.f32 %v476
        %v2806 = vadd.s32 %v2802, 3
        %v2807 = vand.u32 %v2806, 3
        %vm2808 = vcmp.lt.s32.totalorder %v2807, 2
        %vm2809 = vcmp.eq.s32.totalorder %v2807, 0
        %v2810 = vxor.u32 %v2804, 2147483648
        %v2811 = vsel %vm2809, %v2803, %v2810
        %vm2812 = vcmp.eq.s32.totalorder %v2807, 2
        %v2813 = vxor.u32 %v2803, 2147483648
        %v2814 = vsel %vm2812, %v2813, %v2804
        %v2815 = vsel %vm2808, %v2811, %v2814
        %v2816 = vsel %vm2805, nan, %v2815
        %v2817 = vand.u32 2147483647, %v481
        %vm2818 = vcmp.le.f32.partialorder %v2817, 0.7853982
        %vm2819 = vcmp.lt.s32.totalorder %v481, 0
        %v2820 = vand.u32 %v481, 2139095040
        %v2821 = vshrl.u32 %v2820, 23
        %v2822 = vsub.s32 %v2821, 127
        %v2823 = vand.u32 2147483647, %v481
        %v2824 = vand.u32 %v2823, 8388607
        %v2825 = vor.u32 %v2824, 8388608
        %v2826 = vsub.s32 0, %v2825
        %v2827 = vadd.s32 %v2822, 1
        %vm2828 = vcmp.gt.s32.totalorder %v2827, 0
        %v2829 = vsel %vm2828, %v2827, 0
        %v2830 = vshrl.u32 %v2829, 5
        %v2831 = vand.u32 %v2829, 31
        %v2832 = vsub.s32 32, %v2831
        %v2833 = vshrl.u32 683565275, %v2832
        %v2834 = vshll.u32 683565275, %v2831
        %v2835 = vshrl.u32 2475754826, %v2832
        %v2836 = vor.u32 %v2834, %v2835
        %v2837 = vshll.u32 2475754826, %v2831
        %v2838 = vshrl.u32 2131351028, %v2832
        %v2839 = vor.u32 %v2837, %v2838
        %v2840 = vshll.u32 2131351028, %v2831
        %v2841 = vshrl.u32 2102212464, %v2832
        %v2842 = vor.u32 %v2840, %v2841
        %v2843 = vshll.u32 2102212464, %v2831
        %v2844 = vshrl.u32 920167782, %v2832
        %v2845 = vor.u32 %v2843, %v2844
        %v2846 = vshll.u32 920167782, %v2831
        %v2847 = vshrl.u32 1326507024, %v2832
        %v2848 = vor.u32 %v2846, %v2847
        %vm2849 = vcmp.lt.s32.totalorder %v2830, 1
        %vm2850 = vcmp.lt.s32.totalorder %v2830, 2
        %vm2851 = vcmp.lt.s32.totalorder %v2830, 3
        %vm2852 = vcmp.lt.s32.totalorder %v2830, 4
        %v2853 = vsel %vm2849, %v2833, %v2836
        %v2854 = vsel %vm2852, %v2842, 2102212464
        %v2855 = vsel %vm2851, %v2839, %v2854
        %v2856 = vsel %vm2850, %v2853, %v2855
        %v2857 = vsel %vm2849, %v2836, %v2839
        %v2858 = vsel %vm2852, %v2845, 920167782
        %v2859 = vsel %vm2851, %v2842, %v2858
        %v2860 = vsel %vm2850, %v2857, %v2859
        %v2861 = vsel %vm2849, %v2839, %v2842
        %v2862 = vsel %vm2852, %v2848, 1326507024
        %v2863 = vsel %vm2851, %v2845, %v2862
        %v2864 = vsel %vm2850, %v2861, %v2863
        %v2865 = vshll.u32 %v2825, 8
        %v2866 = vmul.u32.u64.compose %v2865, %v2864
        %v2867 = vextract.low.u32 %v2866
        %v2868 = vextract.high.u32 %v2866
        %v2869 = vmul.u32.u64.compose %v2865, %v2860
        %v2870 = vextract.low.u32 %v2869
        %v2871 = vextract.high.u32 %v2869
        %v2872 = vmul.u32 %v2865, %v2856
        %v2873 = vadd.s32 %v2868, %v2870
        %vm2874 = vc.u32 %v2868, %v2870
        %v2875 = vadd.s32 %v2871, 1
        %v2876 = vsel %vm2874, %v2875, %v2871
        %v2877 = vadd.s32 %v2872, %v2876
        %v2878 = vadd.s32 %v2877, 536870912
        %v2879 = vshrl.u32 %v2878, 30
        %v2880 = vshll.u32 %v2879, 30
        %v2881 = vsub.s32 %v2877, %v2880
        %vm2882 = vcmp.lt.s32.totalorder %v2881, 0
        %v2883 = vsub.s32 0, %v2881
        %v2884 = vsel %vm2882, %v2883, %v2881
        %v2885 = vclz %v2884
        %v2886 = vsub.s32 %v2885, 2
        %vm2887 = vcmp.gt.s32.totalorder 0, %v2886
        %v2888 = vsel %vm2887, 0, %v2886
        %v2889 = vsub.s32 32, %v2888
        %v2890 = vshll.u32 %v2881, %v2888
        %v2891 = vshrl.u32 %v2873, %v2889
        %v2892 = vor.u32 %v2890, %v2891
        %v2893 = vsub.s32 4294967266, %v2888
        %v2894 = vadd.s32 %v2893, 127
        %v2895 = vshll.u32 %v2894, 23
        %v2896 = vor.u32 4788187, %v2895
        %v2897 = vand.u32 2147483647, %v2896
        %v2899 = vcvt.s32.f32 %v2892
        %v2900 = vmul.f32 %v2899, %v2897
        %v2901 = vxor.u32 %v2900, 2147483648
        %v2902 = vsel %vm2819, %v2901, %v2900
        %v2903 = vsub.s32 4, %v2879
        %v2904 = vsel %vm2819, %v2903, %v2879
        %v2905 = vsel %vm2818, %v481, %v2902
        %v2906 = vsel %vm2818, 0, %v2904
        %v2907 = vcosq.f32.pop %v2905
        %v2908 = vsinq.f32.pop %v2905
        %vm2909 = vweird.f32 %v481
        %v2910 = vadd.s32 %v2906, 3
        %v2911 = vand.u32 %v2910, 3
        %vm2912 = vcmp.lt.s32.totalorder %v2911, 2
        %vm2913 = vcmp.eq.s32.totalorder %v2911, 0
        %v2914 = vxor.u32 %v2908, 2147483648
        %v2915 = vsel %vm2913, %v2907, %v2914
        %vm2916 = vcmp.eq.s32.totalorder %v2911, 2
        %v2917 = vxor.u32 %v2907, 2147483648
        %v2918 = vsel %vm2916, %v2917, %v2908
        %v2919 = vsel %vm2912, %v2915, %v2918
        %v2920 = vsel %vm2909, nan, %v2919
        %v2921 = vand.u32 2147483647, %v486
        %vm2922 = vcmp.le.f32.partialorder %v2921, 0.7853982
        %vm2923 = vcmp.lt.s32.totalorder %v486, 0
        %v2924 = vand.u32 %v486, 2139095040
        %v2925 = vshrl.u32 %v2924, 23
        %v2926 = vsub.s32 %v2925, 127
        %v2927 = vand.u32 2147483647, %v486
        %v2928 = vand.u32 %v2927, 8388607
        %v2929 = vor.u32 %v2928, 8388608
        %v2930 = vsub.s32 0, %v2929
        %v2931 = vadd.s32 %v2926, 1
        %vm2932 = vcmp.gt.s32.totalorder %v2931, 0
        %v2933 = vsel %vm2932, %v2931, 0
        %v2934 = vshrl.u32 %v2933, 5
        %v2935 = vand.u32 %v2933, 31
        %v2936 = vsub.s32 32, %v2935
        %v2937 = vshrl.u32 683565275, %v2936
        %v2938 = vshll.u32 683565275, %v2935
        %v2939 = vshrl.u32 2475754826, %v2936
        %v2940 = vor.u32 %v2938, %v2939
        %v2941 = vshll.u32 2475754826, %v2935
        %v2942 = vshrl.u32 2131351028, %v2936
        %v2943 = vor.u32 %v2941, %v2942
        %v2944 = vshll.u32 2131351028, %v2935
        %v2945 = vshrl.u32 2102212464, %v2936
        %v2946 = vor.u32 %v2944, %v2945
        %v2947 = vshll.u32 2102212464, %v2935
        %v2948 = vshrl.u32 920167782, %v2936
        %v2949 = vor.u32 %v2947, %v2948
        %v2950 = vshll.u32 920167782, %v2935
        %v2951 = vshrl.u32 1326507024, %v2936
        %v2952 = vor.u32 %v2950, %v2951
        %vm2953 = vcmp.lt.s32.totalorder %v2934, 1
        %vm2954 = vcmp.lt.s32.totalorder %v2934, 2
        %vm2955 = vcmp.lt.s32.totalorder %v2934, 3
        %vm2956 = vcmp.lt.s32.totalorder %v2934, 4
        %v2957 = vsel %vm2953, %v2937, %v2940
        %v2958 = vsel %vm2956, %v2946, 2102212464
        %v2959 = vsel %vm2955, %v2943, %v2958
        %v2960 = vsel %vm2954, %v2957, %v2959
        %v2961 = vsel %vm2953, %v2940, %v2943
        %v2962 = vsel %vm2956, %v2949, 920167782
        %v2963 = vsel %vm2955, %v2946, %v2962
        %v2964 = vsel %vm2954, %v2961, %v2963
        %v2965 = vsel %vm2953, %v2943, %v2946
        %v2966 = vsel %vm2956, %v2952, 1326507024
        %v2967 = vsel %vm2955, %v2949, %v2966
        %v2968 = vsel %vm2954, %v2965, %v2967
        %v2969 = vshll.u32 %v2929, 8
        %v2970 = vmul.u32.u64.compose %v2969, %v2968
        %v2971 = vextract.low.u32 %v2970
        %v2972 = vextract.high.u32 %v2970
        %v2973 = vmul.u32.u64.compose %v2969, %v2964
        %v2974 = vextract.low.u32 %v2973
        %v2975 = vextract.high.u32 %v2973
        %v2976 = vmul.u32 %v2969, %v2960
        %v2977 = vadd.s32 %v2972, %v2974
        %vm2978 = vc.u32 %v2972, %v2974
        %v2979 = vadd.s32 %v2975, 1
        %v2980 = vsel %vm2978, %v2979, %v2975
        %v2981 = vadd.s32 %v2976, %v2980
        %v2982 = vadd.s32 %v2981, 536870912
        %v2983 = vshrl.u32 %v2982, 30
        %v2984 = vshll.u32 %v2983, 30
        %v2985 = vsub.s32 %v2981, %v2984
        %vm2986 = vcmp.lt.s32.totalorder %v2985, 0
        %v2987 = vsub.s32 0, %v2985
        %v2988 = vsel %vm2986, %v2987, %v2985
        %v2989 = vclz %v2988
        %v2990 = vsub.s32 %v2989, 2
        %vm2991 = vcmp.gt.s32.totalorder 0, %v2990
        %v2992 = vsel %vm2991, 0, %v2990
        %v2993 = vsub.s32 32, %v2992
        %v2994 = vshll.u32 %v2985, %v2992
        %v2995 = vshrl.u32 %v2977, %v2993
        %v2996 = vor.u32 %v2994, %v2995
        %v2997 = vsub.s32 4294967266, %v2992
        %v2998 = vadd.s32 %v2997, 127
        %v2999 = vshll.u32 %v2998, 23
        %v3000 = vor.u32 4788187, %v2999
        %v3001 = vand.u32 2147483647, %v3000
        %v3003 = vcvt.s32.f32 %v2996
        %v3004 = vmul.f32 %v3003, %v3001
        %v3005 = vxor.u32 %v3004, 2147483648
        %v3006 = vsel %vm2923, %v3005, %v3004
        %v3007 = vsub.s32 4, %v2983
        %v3008 = vsel %vm2923, %v3007, %v2983
        %v3009 = vsel %vm2922, %v486, %v3006
        %v3010 = vsel %vm2922, 0, %v3008
        %v3011 = vcosq.f32.pop %v3009
        %v3012 = vsinq.f32.pop %v3009
        %vm3013 = vweird.f32 %v486
        %v3014 = vadd.s32 %v3010, 3
        %v3015 = vand.u32 %v3014, 3
        %vm3016 = vcmp.lt.s32.totalorder %v3015, 2
        %vm3017 = vcmp.eq.s32.totalorder %v3015, 0
        %v3018 = vxor.u32 %v3012, 2147483648
        %v3019 = vsel %vm3017, %v3011, %v3018
        %vm3020 = vcmp.eq.s32.totalorder %v3015, 2
        %v3021 = vxor.u32 %v3011, 2147483648
        %v3022 = vsel %vm3020, %v3021, %v3012
        %v3023 = vsel %vm3016, %v3019, %v3022
        %v3024 = vsel %vm3013, nan, %v3023
        %v3025 = vand.u32 2147483647, %v491
        %vm3026 = vcmp.le.f32.partialorder %v3025, 0.7853982
        %vm3027 = vcmp.lt.s32.totalorder %v491, 0
        %v3028 = vand.u32 %v491, 2139095040
        %v3029 = vshrl.u32 %v3028, 23
        %v3030 = vsub.s32 %v3029, 127
        %v3031 = vand.u32 2147483647, %v491
        %v3032 = vand.u32 %v3031, 8388607
        %v3033 = vor.u32 %v3032, 8388608
        %v3034 = vsub.s32 0, %v3033
        %v3035 = vadd.s32 %v3030, 1
        %vm3036 = vcmp.gt.s32.totalorder %v3035, 0
        %v3037 = vsel %vm3036, %v3035, 0
        %v3038 = vshrl.u32 %v3037, 5
        %v3039 = vand.u32 %v3037, 31
        %v3040 = vsub.s32 32, %v3039
        %v3041 = vshrl.u32 683565275, %v3040
        %v3042 = vshll.u32 683565275, %v3039
        %v3043 = vshrl.u32 2475754826, %v3040
        %v3044 = vor.u32 %v3042, %v3043
        %v3045 = vshll.u32 2475754826, %v3039
        %v3046 = vshrl.u32 2131351028, %v3040
        %v3047 = vor.u32 %v3045, %v3046
        %v3048 = vshll.u32 2131351028, %v3039
        %v3049 = vshrl.u32 2102212464, %v3040
        %v3050 = vor.u32 %v3048, %v3049
        %v3051 = vshll.u32 2102212464, %v3039
        %v3052 = vshrl.u32 920167782, %v3040
        %v3053 = vor.u32 %v3051, %v3052
        %v3054 = vshll.u32 920167782, %v3039
        %v3055 = vshrl.u32 1326507024, %v3040
        %v3056 = vor.u32 %v3054, %v3055
        %vm3057 = vcmp.lt.s32.totalorder %v3038, 1
        %vm3058 = vcmp.lt.s32.totalorder %v3038, 2
        %vm3059 = vcmp.lt.s32.totalorder %v3038, 3
        %vm3060 = vcmp.lt.s32.totalorder %v3038, 4
        %v3061 = vsel %vm3057, %v3041, %v3044
        %v3062 = vsel %vm3060, %v3050, 2102212464
        %v3063 = vsel %vm3059, %v3047, %v3062
        %v3064 = vsel %vm3058, %v3061, %v3063
        %v3065 = vsel %vm3057, %v3044, %v3047
        %v3066 = vsel %vm3060, %v3053, 920167782
        %v3067 = vsel %vm3059, %v3050, %v3066
        %v3068 = vsel %vm3058, %v3065, %v3067
        %v3069 = vsel %vm3057, %v3047, %v3050
        %v3070 = vsel %vm3060, %v3056, 1326507024
        %v3071 = vsel %vm3059, %v3053, %v3070
        %v3072 = vsel %vm3058, %v3069, %v3071
        %v3073 = vshll.u32 %v3033, 8
        %v3074 = vmul.u32.u64.compose %v3073, %v3072
        %v3075 = vextract.low.u32 %v3074
        %v3076 = vextract.high.u32 %v3074
        %v3077 = vmul.u32.u64.compose %v3073, %v3068
        %v3078 = vextract.low.u32 %v3077
        %v3079 = vextract.high.u32 %v3077
        %v3080 = vmul.u32 %v3073, %v3064
        %v3081 = vadd.s32 %v3076, %v3078
        %vm3082 = vc.u32 %v3076, %v3078
        %v3083 = vadd.s32 %v3079, 1
        %v3084 = vsel %vm3082, %v3083, %v3079
        %v3085 = vadd.s32 %v3080, %v3084
        %v3086 = vadd.s32 %v3085, 536870912
        %v3087 = vshrl.u32 %v3086, 30
        %v3088 = vshll.u32 %v3087, 30
        %v3089 = vsub.s32 %v3085, %v3088
        %vm3090 = vcmp.lt.s32.totalorder %v3089, 0
        %v3091 = vsub.s32 0, %v3089
        %v3092 = vsel %vm3090, %v3091, %v3089
        %v3093 = vclz %v3092
        %v3094 = vsub.s32 %v3093, 2
        %vm3095 = vcmp.gt.s32.totalorder 0, %v3094
        %v3096 = vsel %vm3095, 0, %v3094
        %v3097 = vsub.s32 32, %v3096
        %v3098 = vshll.u32 %v3089, %v3096
        %v3099 = vshrl.u32 %v3081, %v3097
        %v3100 = vor.u32 %v3098, %v3099
        %v3101 = vsub.s32 4294967266, %v3096
        %v3102 = vadd.s32 %v3101, 127
        %v3103 = vshll.u32 %v3102, 23
        %v3104 = vor.u32 4788187, %v3103
        %v3105 = vand.u32 2147483647, %v3104
        %v3107 = vcvt.s32.f32 %v3100
        %v3108 = vmul.f32 %v3107, %v3105
        %v3109 = vxor.u32 %v3108, 2147483648
        %v3110 = vsel %vm3027, %v3109, %v3108
        %v3111 = vsub.s32 4, %v3087
        %v3112 = vsel %vm3027, %v3111, %v3087
        %v3113 = vsel %vm3026, %v491, %v3110
        %v3114 = vsel %vm3026, 0, %v3112
        %v3115 = vcosq.f32.pop %v3113
        %v3116 = vsinq.f32.pop %v3113
        %vm3117 = vweird.f32 %v491
        %v3118 = vadd.s32 %v3114, 3
        %v3119 = vand.u32 %v3118, 3
        %vm3120 = vcmp.lt.s32.totalorder %v3119, 2
        %vm3121 = vcmp.eq.s32.totalorder %v3119, 0
        %v3122 = vxor.u32 %v3116, 2147483648
        %v3123 = vsel %vm3121, %v3115, %v3122
        %vm3124 = vcmp.eq.s32.totalorder %v3119, 2
        %v3125 = vxor.u32 %v3115, 2147483648
        %v3126 = vsel %vm3124, %v3125, %v3116
        %v3127 = vsel %vm3120, %v3123, %v3126
        %v3128 = vsel %vm3117, nan, %v3127
        %v3129 = vand.u32 2147483647, %v496
        %vm3130 = vcmp.le.f32.partialorder %v3129, 0.7853982
        %vm3131 = vcmp.lt.s32.totalorder %v496, 0
        %v3132 = vand.u32 %v496, 2139095040
        %v3133 = vshrl.u32 %v3132, 23
        %v3134 = vsub.s32 %v3133, 127
        %v3135 = vand.u32 2147483647, %v496
        %v3136 = vand.u32 %v3135, 8388607
        %v3137 = vor.u32 %v3136, 8388608
        %v3138 = vsub.s32 0, %v3137
        %v3139 = vadd.s32 %v3134, 1
        %vm3140 = vcmp.gt.s32.totalorder %v3139, 0
        %v3141 = vsel %vm3140, %v3139, 0
        %v3142 = vshrl.u32 %v3141, 5
        %v3143 = vand.u32 %v3141, 31
        %v3144 = vsub.s32 32, %v3143
        %v3145 = vshrl.u32 683565275, %v3144
        %v3146 = vshll.u32 683565275, %v3143
        %v3147 = vshrl.u32 2475754826, %v3144
        %v3148 = vor.u32 %v3146, %v3147
        %v3149 = vshll.u32 2475754826, %v3143
        %v3150 = vshrl.u32 2131351028, %v3144
        %v3151 = vor.u32 %v3149, %v3150
        %v3152 = vshll.u32 2131351028, %v3143
        %v3153 = vshrl.u32 2102212464, %v3144
        %v3154 = vor.u32 %v3152, %v3153
        %v3155 = vshll.u32 2102212464, %v3143
        %v3156 = vshrl.u32 920167782, %v3144
        %v3157 = vor.u32 %v3155, %v3156
        %v3158 = vshll.u32 920167782, %v3143
        %v3159 = vshrl.u32 1326507024, %v3144
        %v3160 = vor.u32 %v3158, %v3159
        %vm3161 = vcmp.lt.s32.totalorder %v3142, 1
        %vm3162 = vcmp.lt.s32.totalorder %v3142, 2
        %vm3163 = vcmp.lt.s32.totalorder %v3142, 3
        %vm3164 = vcmp.lt.s32.totalorder %v3142, 4
        %v3165 = vsel %vm3161, %v3145, %v3148
        %v3166 = vsel %vm3164, %v3154, 2102212464
        %v3167 = vsel %vm3163, %v3151, %v3166
        %v3168 = vsel %vm3162, %v3165, %v3167
        %v3169 = vsel %vm3161, %v3148, %v3151
        %v3170 = vsel %vm3164, %v3157, 920167782
        %v3171 = vsel %vm3163, %v3154, %v3170
        %v3172 = vsel %vm3162, %v3169, %v3171
        %v3173 = vsel %vm3161, %v3151, %v3154
        %v3174 = vsel %vm3164, %v3160, 1326507024
        %v3175 = vsel %vm3163, %v3157, %v3174
        %v3176 = vsel %vm3162, %v3173, %v3175
        %v3177 = vshll.u32 %v3137, 8
        %v3178 = vmul.u32.u64.compose %v3177, %v3176
        %v3179 = vextract.low.u32 %v3178
        %v3180 = vextract.high.u32 %v3178
        %v3181 = vmul.u32.u64.compose %v3177, %v3172
        %v3182 = vextract.low.u32 %v3181
        %v3183 = vextract.high.u32 %v3181
        %v3184 = vmul.u32 %v3177, %v3168
        %v3185 = vadd.s32 %v3180, %v3182
        %vm3186 = vc.u32 %v3180, %v3182
        %v3187 = vadd.s32 %v3183, 1
        %v3188 = vsel %vm3186, %v3187, %v3183
        %v3189 = vadd.s32 %v3184, %v3188
        %v3190 = vadd.s32 %v3189, 536870912
        %v3191 = vshrl.u32 %v3190, 30
        %v3192 = vshll.u32 %v3191, 30
        %v3193 = vsub.s32 %v3189, %v3192
        %vm3194 = vcmp.lt.s32.totalorder %v3193, 0
        %v3195 = vsub.s32 0, %v3193
        %v3196 = vsel %vm3194, %v3195, %v3193
        %v3197 = vclz %v3196
        %v3198 = vsub.s32 %v3197, 2
        %vm3199 = vcmp.gt.s32.totalorder 0, %v3198
        %v3200 = vsel %vm3199, 0, %v3198
        %v3201 = vsub.s32 32, %v3200
        %v3202 = vshll.u32 %v3193, %v3200
        %v3203 = vshrl.u32 %v3185, %v3201
        %v3204 = vor.u32 %v3202, %v3203
        %v3205 = vsub.s32 4294967266, %v3200
        %v3206 = vadd.s32 %v3205, 127
        %v3207 = vshll.u32 %v3206, 23
        %v3208 = vor.u32 4788187, %v3207
        %v3209 = vand.u32 2147483647, %v3208
        %v3211 = vcvt.s32.f32 %v3204
        %v3212 = vmul.f32 %v3211, %v3209
        %v3213 = vxor.u32 %v3212, 2147483648
        %v3214 = vsel %vm3131, %v3213, %v3212
        %v3215 = vsub.s32 4, %v3191
        %v3216 = vsel %vm3131, %v3215, %v3191
        %v3217 = vsel %vm3130, %v496, %v3214
        %v3218 = vsel %vm3130, 0, %v3216
        %v3219 = vcosq.f32.pop %v3217
        %v3220 = vsinq.f32.pop %v3217
        %vm3221 = vweird.f32 %v496
        %v3222 = vadd.s32 %v3218, 3
        %v3223 = vand.u32 %v3222, 3
        %vm3224 = vcmp.lt.s32.totalorder %v3223, 2
        %vm3225 = vcmp.eq.s32.totalorder %v3223, 0
        %v3226 = vxor.u32 %v3220, 2147483648
        %v3227 = vsel %vm3225, %v3219, %v3226
        %vm3228 = vcmp.eq.s32.totalorder %v3223, 2
        %v3229 = vxor.u32 %v3219, 2147483648
        %v3230 = vsel %vm3228, %v3229, %v3220
        %v3231 = vsel %vm3224, %v3227, %v3230
        %v3232 = vsel %vm3221, nan, %v3231
        %v3233 = vand.u32 2147483647, %v501
        %vm3234 = vcmp.le.f32.partialorder %v3233, 0.7853982
        %vm3235 = vcmp.lt.s32.totalorder %v501, 0
        %v3236 = vand.u32 %v501, 2139095040
        %v3237 = vshrl.u32 %v3236, 23
        %v3238 = vsub.s32 %v3237, 127
        %v3239 = vand.u32 2147483647, %v501
        %v3240 = vand.u32 %v3239, 8388607
        %v3241 = vor.u32 %v3240, 8388608
        %v3242 = vsub.s32 0, %v3241
        %v3243 = vadd.s32 %v3238, 1
        %vm3244 = vcmp.gt.s32.totalorder %v3243, 0
        %v3245 = vsel %vm3244, %v3243, 0
        %v3246 = vshrl.u32 %v3245, 5
        %v3247 = vand.u32 %v3245, 31
        %v3248 = vsub.s32 32, %v3247
        %v3249 = vshrl.u32 683565275, %v3248
        %v3250 = vshll.u32 683565275, %v3247
        %v3251 = vshrl.u32 2475754826, %v3248
        %v3252 = vor.u32 %v3250, %v3251
        %v3253 = vshll.u32 2475754826, %v3247
        %v3254 = vshrl.u32 2131351028, %v3248
        %v3255 = vor.u32 %v3253, %v3254
        %v3256 = vshll.u32 2131351028, %v3247
        %v3257 = vshrl.u32 2102212464, %v3248
        %v3258 = vor.u32 %v3256, %v3257
        %v3259 = vshll.u32 2102212464, %v3247
        %v3260 = vshrl.u32 920167782, %v3248
        %v3261 = vor.u32 %v3259, %v3260
        %v3262 = vshll.u32 920167782, %v3247
        %v3263 = vshrl.u32 1326507024, %v3248
        %v3264 = vor.u32 %v3262, %v3263
        %vm3265 = vcmp.lt.s32.totalorder %v3246, 1
        %vm3266 = vcmp.lt.s32.totalorder %v3246, 2
        %vm3267 = vcmp.lt.s32.totalorder %v3246, 3
        %vm3268 = vcmp.lt.s32.totalorder %v3246, 4
        %v3269 = vsel %vm3265, %v3249, %v3252
        %v3270 = vsel %vm3268, %v3258, 2102212464
        %v3271 = vsel %vm3267, %v3255, %v3270
        %v3272 = vsel %vm3266, %v3269, %v3271
        %v3273 = vsel %vm3265, %v3252, %v3255
        %v3274 = vsel %vm3268, %v3261, 920167782
        %v3275 = vsel %vm3267, %v3258, %v3274
        %v3276 = vsel %vm3266, %v3273, %v3275
        %v3277 = vsel %vm3265, %v3255, %v3258
        %v3278 = vsel %vm3268, %v3264, 1326507024
        %v3279 = vsel %vm3267, %v3261, %v3278
        %v3280 = vsel %vm3266, %v3277, %v3279
        %v3281 = vshll.u32 %v3241, 8
        %v3282 = vmul.u32.u64.compose %v3281, %v3280
        %v3283 = vextract.low.u32 %v3282
        %v3284 = vextract.high.u32 %v3282
        %v3285 = vmul.u32.u64.compose %v3281, %v3276
        %v3286 = vextract.low.u32 %v3285
        %v3287 = vextract.high.u32 %v3285
        %v3288 = vmul.u32 %v3281, %v3272
        %v3289 = vadd.s32 %v3284, %v3286
        %vm3290 = vc.u32 %v3284, %v3286
        %v3291 = vadd.s32 %v3287, 1
        %v3292 = vsel %vm3290, %v3291, %v3287
        %v3293 = vadd.s32 %v3288, %v3292
        %v3294 = vadd.s32 %v3293, 536870912
        %v3295 = vshrl.u32 %v3294, 30
        %v3296 = vshll.u32 %v3295, 30
        %v3297 = vsub.s32 %v3293, %v3296
        %vm3298 = vcmp.lt.s32.totalorder %v3297, 0
        %v3299 = vsub.s32 0, %v3297
        %v3300 = vsel %vm3298, %v3299, %v3297
        %v3301 = vclz %v3300
        %v3302 = vsub.s32 %v3301, 2
        %vm3303 = vcmp.gt.s32.totalorder 0, %v3302
        %v3304 = vsel %vm3303, 0, %v3302
        %v3305 = vsub.s32 32, %v3304
        %v3306 = vshll.u32 %v3297, %v3304
        %v3307 = vshrl.u32 %v3289, %v3305
        %v3308 = vor.u32 %v3306, %v3307
        %v3309 = vsub.s32 4294967266, %v3304
        %v3310 = vadd.s32 %v3309, 127
        %v3311 = vshll.u32 %v3310, 23
        %v3312 = vor.u32 4788187, %v3311
        %v3313 = vand.u32 2147483647, %v3312
        %v3315 = vcvt.s32.f32 %v3308
        %v3316 = vmul.f32 %v3315, %v3313
        %v3317 = vxor.u32 %v3316, 2147483648
        %v3318 = vsel %vm3235, %v3317, %v3316
        %v3319 = vsub.s32 4, %v3295
        %v3320 = vsel %vm3235, %v3319, %v3295
        %v3321 = vsel %vm3234, %v501, %v3318
        %v3322 = vsel %vm3234, 0, %v3320
        %v3323 = vcosq.f32.pop %v3321
        %v3324 = vsinq.f32.pop %v3321
        %vm3325 = vweird.f32 %v501
        %v3326 = vadd.s32 %v3322, 3
        %v3327 = vand.u32 %v3326, 3
        %vm3328 = vcmp.lt.s32.totalorder %v3327, 2
        %vm3329 = vcmp.eq.s32.totalorder %v3327, 0
        %v3330 = vxor.u32 %v3324, 2147483648
        %v3331 = vsel %vm3329, %v3323, %v3330
        %vm3332 = vcmp.eq.s32.totalorder %v3327, 2
        %v3333 = vxor.u32 %v3323, 2147483648
        %v3334 = vsel %vm3332, %v3333, %v3324
        %v3335 = vsel %vm3328, %v3331, %v3334
        %v3336 = vsel %vm3325, nan, %v3335
        %v3337 = vand.u32 2147483647, %v506
        %vm3338 = vcmp.le.f32.partialorder %v3337, 0.7853982
        %vm3339 = vcmp.lt.s32.totalorder %v506, 0
        %v3340 = vand.u32 %v506, 2139095040
        %v3341 = vshrl.u32 %v3340, 23
        %v3342 = vsub.s32 %v3341, 127
        %v3343 = vand.u32 2147483647, %v506
        %v3344 = vand.u32 %v3343, 8388607
        %v3345 = vor.u32 %v3344, 8388608
        %v3346 = vsub.s32 0, %v3345
        %v3347 = vadd.s32 %v3342, 1
        %vm3348 = vcmp.gt.s32.totalorder %v3347, 0
        %v3349 = vsel %vm3348, %v3347, 0
        %v3350 = vshrl.u32 %v3349, 5
        %v3351 = vand.u32 %v3349, 31
        %v3352 = vsub.s32 32, %v3351
        %v3353 = vshrl.u32 683565275, %v3352
        %v3354 = vshll.u32 683565275, %v3351
        %v3355 = vshrl.u32 2475754826, %v3352
        %v3356 = vor.u32 %v3354, %v3355
        %v3357 = vshll.u32 2475754826, %v3351
        %v3358 = vshrl.u32 2131351028, %v3352
        %v3359 = vor.u32 %v3357, %v3358
        %v3360 = vshll.u32 2131351028, %v3351
        %v3361 = vshrl.u32 2102212464, %v3352
        %v3362 = vor.u32 %v3360, %v3361
        %v3363 = vshll.u32 2102212464, %v3351
        %v3364 = vshrl.u32 920167782, %v3352
        %v3365 = vor.u32 %v3363, %v3364
        %v3366 = vshll.u32 920167782, %v3351
        %v3367 = vshrl.u32 1326507024, %v3352
        %v3368 = vor.u32 %v3366, %v3367
        %vm3369 = vcmp.lt.s32.totalorder %v3350, 1
        %vm3370 = vcmp.lt.s32.totalorder %v3350, 2
        %vm3371 = vcmp.lt.s32.totalorder %v3350, 3
        %vm3372 = vcmp.lt.s32.totalorder %v3350, 4
        %v3373 = vsel %vm3369, %v3353, %v3356
        %v3374 = vsel %vm3372, %v3362, 2102212464
        %v3375 = vsel %vm3371, %v3359, %v3374
        %v3376 = vsel %vm3370, %v3373, %v3375
        %v3377 = vsel %vm3369, %v3356, %v3359
        %v3378 = vsel %vm3372, %v3365, 920167782
        %v3379 = vsel %vm3371, %v3362, %v3378
        %v3380 = vsel %vm3370, %v3377, %v3379
        %v3381 = vsel %vm3369, %v3359, %v3362
        %v3382 = vsel %vm3372, %v3368, 1326507024
        %v3383 = vsel %vm3371, %v3365, %v3382
        %v3384 = vsel %vm3370, %v3381, %v3383
        %v3385 = vshll.u32 %v3345, 8
        %v3386 = vmul.u32.u64.compose %v3385, %v3384
        %v3387 = vextract.low.u32 %v3386
        %v3388 = vextract.high.u32 %v3386
        %v3389 = vmul.u32.u64.compose %v3385, %v3380
        %v3390 = vextract.low.u32 %v3389
        %v3391 = vextract.high.u32 %v3389
        %v3392 = vmul.u32 %v3385, %v3376
        %v3393 = vadd.s32 %v3388, %v3390
        %vm3394 = vc.u32 %v3388, %v3390
        %v3395 = vadd.s32 %v3391, 1
        %v3396 = vsel %vm3394, %v3395, %v3391
        %v3397 = vadd.s32 %v3392, %v3396
        %v3398 = vadd.s32 %v3397, 536870912
        %v3399 = vshrl.u32 %v3398, 30
        %v3400 = vshll.u32 %v3399, 30
        %v3401 = vsub.s32 %v3397, %v3400
        %vm3402 = vcmp.lt.s32.totalorder %v3401, 0
        %v3403 = vsub.s32 0, %v3401
        %v3404 = vsel %vm3402, %v3403, %v3401
        %v3405 = vclz %v3404
        %v3406 = vsub.s32 %v3405, 2
        %vm3407 = vcmp.gt.s32.totalorder 0, %v3406
        %v3408 = vsel %vm3407, 0, %v3406
        %v3409 = vsub.s32 32, %v3408
        %v3410 = vshll.u32 %v3401, %v3408
        %v3411 = vshrl.u32 %v3393, %v3409
        %v3412 = vor.u32 %v3410, %v3411
        %v3413 = vsub.s32 4294967266, %v3408
        %v3414 = vadd.s32 %v3413, 127
        %v3415 = vshll.u32 %v3414, 23
        %v3416 = vor.u32 4788187, %v3415
        %v3417 = vand.u32 2147483647, %v3416
        %v3419 = vcvt.s32.f32 %v3412
        %v3420 = vmul.f32 %v3419, %v3417
        %v3421 = vxor.u32 %v3420, 2147483648
        %v3422 = vsel %vm3339, %v3421, %v3420
        %v3423 = vsub.s32 4, %v3399
        %v3424 = vsel %vm3339, %v3423, %v3399
        %v3425 = vsel %vm3338, %v506, %v3422
        %v3426 = vsel %vm3338, 0, %v3424
        %v3427 = vcosq.f32.pop %v3425
        %v3428 = vsinq.f32.pop %v3425
        %vm3429 = vweird.f32 %v506
        %v3430 = vadd.s32 %v3426, 3
        %v3431 = vand.u32 %v3430, 3
        %vm3432 = vcmp.lt.s32.totalorder %v3431, 2
        %vm3433 = vcmp.eq.s32.totalorder %v3431, 0
        %v3434 = vxor.u32 %v3428, 2147483648
        %v3435 = vsel %vm3433, %v3427, %v3434
        %vm3436 = vcmp.eq.s32.totalorder %v3431, 2
        %v3437 = vxor.u32 %v3427, 2147483648
        %v3438 = vsel %vm3436, %v3437, %v3428
        %v3439 = vsel %vm3432, %v3435, %v3438
        %v3440 = vsel %vm3429, nan, %v3439
        %v3441 = vand.u32 2147483647, %v511
        %vm3442 = vcmp.le.f32.partialorder %v3441, 0.7853982
        %vm3443 = vcmp.lt.s32.totalorder %v511, 0
        %v3444 = vand.u32 %v511, 2139095040
        %v3445 = vshrl.u32 %v3444, 23
        %v3446 = vsub.s32 %v3445, 127
        %v3447 = vand.u32 2147483647, %v511
        %v3448 = vand.u32 %v3447, 8388607
        %v3449 = vor.u32 %v3448, 8388608
        %v3450 = vsub.s32 0, %v3449
        %v3451 = vadd.s32 %v3446, 1
        %vm3452 = vcmp.gt.s32.totalorder %v3451, 0
        %v3453 = vsel %vm3452, %v3451, 0
        %v3454 = vshrl.u32 %v3453, 5
        %v3455 = vand.u32 %v3453, 31
        %v3456 = vsub.s32 32, %v3455
        %v3457 = vshrl.u32 683565275, %v3456
        %v3458 = vshll.u32 683565275, %v3455
        %v3459 = vshrl.u32 2475754826, %v3456
        %v3460 = vor.u32 %v3458, %v3459
        %v3461 = vshll.u32 2475754826, %v3455
        %v3462 = vshrl.u32 2131351028, %v3456
        %v3463 = vor.u32 %v3461, %v3462
        %v3464 = vshll.u32 2131351028, %v3455
        %v3465 = vshrl.u32 2102212464, %v3456
        %v3466 = vor.u32 %v3464, %v3465
        %v3467 = vshll.u32 2102212464, %v3455
        %v3468 = vshrl.u32 920167782, %v3456
        %v3469 = vor.u32 %v3467, %v3468
        %v3470 = vshll.u32 920167782, %v3455
        %v3471 = vshrl.u32 1326507024, %v3456
        %v3472 = vor.u32 %v3470, %v3471
        %vm3473 = vcmp.lt.s32.totalorder %v3454, 1
        %vm3474 = vcmp.lt.s32.totalorder %v3454, 2
        %vm3475 = vcmp.lt.s32.totalorder %v3454, 3
        %vm3476 = vcmp.lt.s32.totalorder %v3454, 4
        %v3477 = vsel %vm3473, %v3457, %v3460
        %v3478 = vsel %vm3476, %v3466, 2102212464
        %v3479 = vsel %vm3475, %v3463, %v3478
        %v3480 = vsel %vm3474, %v3477, %v3479
        %v3481 = vsel %vm3473, %v3460, %v3463
        %v3482 = vsel %vm3476, %v3469, 920167782
        %v3483 = vsel %vm3475, %v3466, %v3482
        %v3484 = vsel %vm3474, %v3481, %v3483
        %v3485 = vsel %vm3473, %v3463, %v3466
        %v3486 = vsel %vm3476, %v3472, 1326507024
        %v3487 = vsel %vm3475, %v3469, %v3486
        %v3488 = vsel %vm3474, %v3485, %v3487
        %v3489 = vshll.u32 %v3449, 8
        %v3490 = vmul.u32.u64.compose %v3489, %v3488
        %v3491 = vextract.low.u32 %v3490
        %v3492 = vextract.high.u32 %v3490
        %v3493 = vmul.u32.u64.compose %v3489, %v3484
        %v3494 = vextract.low.u32 %v3493
        %v3495 = vextract.high.u32 %v3493
        %v3496 = vmul.u32 %v3489, %v3480
        %v3497 = vadd.s32 %v3492, %v3494
        %vm3498 = vc.u32 %v3492, %v3494
        %v3499 = vadd.s32 %v3495, 1
        %v3500 = vsel %vm3498, %v3499, %v3495
        %v3501 = vadd.s32 %v3496, %v3500
        %v3502 = vadd.s32 %v3501, 536870912
        %v3503 = vshrl.u32 %v3502, 30
        %v3504 = vshll.u32 %v3503, 30
        %v3505 = vsub.s32 %v3501, %v3504
        %vm3506 = vcmp.lt.s32.totalorder %v3505, 0
        %v3507 = vsub.s32 0, %v3505
        %v3508 = vsel %vm3506, %v3507, %v3505
        %v3509 = vclz %v3508
        %v3510 = vsub.s32 %v3509, 2
        %vm3511 = vcmp.gt.s32.totalorder 0, %v3510
        %v3512 = vsel %vm3511, 0, %v3510
        %v3513 = vsub.s32 32, %v3512
        %v3514 = vshll.u32 %v3505, %v3512
        %v3515 = vshrl.u32 %v3497, %v3513
        %v3516 = vor.u32 %v3514, %v3515
        %v3517 = vsub.s32 4294967266, %v3512
        %v3518 = vadd.s32 %v3517, 127
        %v3519 = vshll.u32 %v3518, 23
        %v3520 = vor.u32 4788187, %v3519
        %v3521 = vand.u32 2147483647, %v3520
        %v3523 = vcvt.s32.f32 %v3516
        %v3524 = vmul.f32 %v3523, %v3521
        %v3525 = vxor.u32 %v3524, 2147483648
        %v3526 = vsel %vm3443, %v3525, %v3524
        %v3527 = vsub.s32 4, %v3503
        %v3528 = vsel %vm3443, %v3527, %v3503
        %v3529 = vsel %vm3442, %v511, %v3526
        %v3530 = vsel %vm3442, 0, %v3528
        %v3531 = vcosq.f32.pop %v3529
        %v3532 = vsinq.f32.pop %v3529
        %vm3533 = vweird.f32 %v511
        %v3534 = vadd.s32 %v3530, 3
        %v3535 = vand.u32 %v3534, 3
        %vm3536 = vcmp.lt.s32.totalorder %v3535, 2
        %vm3537 = vcmp.eq.s32.totalorder %v3535, 0
        %v3538 = vxor.u32 %v3532, 2147483648
        %v3539 = vsel %vm3537, %v3531, %v3538
        %vm3540 = vcmp.eq.s32.totalorder %v3535, 2
        %v3541 = vxor.u32 %v3531, 2147483648
        %v3542 = vsel %vm3540, %v3541, %v3532
        %v3543 = vsel %vm3536, %v3539, %v3542
        %v3544 = vsel %vm3533, nan, %v3543
        %v3545 = vand.u32 2147483647, %v516
        %vm3546 = vcmp.le.f32.partialorder %v3545, 0.7853982
        %vm3547 = vcmp.lt.s32.totalorder %v516, 0
        %v3548 = vand.u32 %v516, 2139095040
        %v3549 = vshrl.u32 %v3548, 23
        %v3550 = vsub.s32 %v3549, 127
        %v3551 = vand.u32 2147483647, %v516
        %v3552 = vand.u32 %v3551, 8388607
        %v3553 = vor.u32 %v3552, 8388608
        %v3554 = vsub.s32 0, %v3553
        %v3555 = vadd.s32 %v3550, 1
        %vm3556 = vcmp.gt.s32.totalorder %v3555, 0
        %v3557 = vsel %vm3556, %v3555, 0
        %v3558 = vshrl.u32 %v3557, 5
        %v3559 = vand.u32 %v3557, 31
        %v3560 = vsub.s32 32, %v3559
        %v3561 = vshrl.u32 683565275, %v3560
        %v3562 = vshll.u32 683565275, %v3559
        %v3563 = vshrl.u32 2475754826, %v3560
        %v3564 = vor.u32 %v3562, %v3563
        %v3565 = vshll.u32 2475754826, %v3559
        %v3566 = vshrl.u32 2131351028, %v3560
        %v3567 = vor.u32 %v3565, %v3566
        %v3568 = vshll.u32 2131351028, %v3559
        %v3569 = vshrl.u32 2102212464, %v3560
        %v3570 = vor.u32 %v3568, %v3569
        %v3571 = vshll.u32 2102212464, %v3559
        %v3572 = vshrl.u32 920167782, %v3560
        %v3573 = vor.u32 %v3571, %v3572
        %v3574 = vshll.u32 920167782, %v3559
        %v3575 = vshrl.u32 1326507024, %v3560
        %v3576 = vor.u32 %v3574, %v3575
        %vm3577 = vcmp.lt.s32.totalorder %v3558, 1
        %vm3578 = vcmp.lt.s32.totalorder %v3558, 2
        %vm3579 = vcmp.lt.s32.totalorder %v3558, 3
        %vm3580 = vcmp.lt.s32.totalorder %v3558, 4
        %v3581 = vsel %vm3577, %v3561, %v3564
        %v3582 = vsel %vm3580, %v3570, 2102212464
        %v3583 = vsel %vm3579, %v3567, %v3582
        %v3584 = vsel %vm3578, %v3581, %v3583
        %v3585 = vsel %vm3577, %v3564, %v3567
        %v3586 = vsel %vm3580, %v3573, 920167782
        %v3587 = vsel %vm3579, %v3570, %v3586
        %v3588 = vsel %vm3578, %v3585, %v3587
        %v3589 = vsel %vm3577, %v3567, %v3570
        %v3590 = vsel %vm3580, %v3576, 1326507024
        %v3591 = vsel %vm3579, %v3573, %v3590
        %v3592 = vsel %vm3578, %v3589, %v3591
        %v3593 = vshll.u32 %v3553, 8
        %v3594 = vmul.u32.u64.compose %v3593, %v3592
        %v3595 = vextract.low.u32 %v3594
        %v3596 = vextract.high.u32 %v3594
        %v3597 = vmul.u32.u64.compose %v3593, %v3588
        %v3598 = vextract.low.u32 %v3597
        %v3599 = vextract.high.u32 %v3597
        %v3600 = vmul.u32 %v3593, %v3584
        %v3601 = vadd.s32 %v3596, %v3598
        %vm3602 = vc.u32 %v3596, %v3598
        %v3603 = vadd.s32 %v3599, 1
        %v3604 = vsel %vm3602, %v3603, %v3599
        %v3605 = vadd.s32 %v3600, %v3604
        %v3606 = vadd.s32 %v3605, 536870912
        %v3607 = vshrl.u32 %v3606, 30
        %v3608 = vshll.u32 %v3607, 30
        %v3609 = vsub.s32 %v3605, %v3608
        %vm3610 = vcmp.lt.s32.totalorder %v3609, 0
        %v3611 = vsub.s32 0, %v3609
        %v3612 = vsel %vm3610, %v3611, %v3609
        %v3613 = vclz %v3612
        %v3614 = vsub.s32 %v3613, 2
        %vm3615 = vcmp.gt.s32.totalorder 0, %v3614
        %v3616 = vsel %vm3615, 0, %v3614
        %v3617 = vsub.s32 32, %v3616
        %v3618 = vshll.u32 %v3609, %v3616
        %v3619 = vshrl.u32 %v3601, %v3617
        %v3620 = vor.u32 %v3618, %v3619
        %v3621 = vsub.s32 4294967266, %v3616
        %v3622 = vadd.s32 %v3621, 127
        %v3623 = vshll.u32 %v3622, 23
        %v3624 = vor.u32 4788187, %v3623
        %v3625 = vand.u32 2147483647, %v3624
        %v3627 = vcvt.s32.f32 %v3620
        %v3628 = vmul.f32 %v3627, %v3625
        %v3629 = vxor.u32 %v3628, 2147483648
        %v3630 = vsel %vm3547, %v3629, %v3628
        %v3631 = vsub.s32 4, %v3607
        %v3632 = vsel %vm3547, %v3631, %v3607
        %v3633 = vsel %vm3546, %v516, %v3630
        %v3634 = vsel %vm3546, 0, %v3632
        %v3635 = vcosq.f32.pop %v3633
        %v3636 = vsinq.f32.pop %v3633
        %vm3637 = vweird.f32 %v516
        %v3638 = vadd.s32 %v3634, 3
        %v3639 = vand.u32 %v3638, 3
        %vm3640 = vcmp.lt.s32.totalorder %v3639, 2
        %vm3641 = vcmp.eq.s32.totalorder %v3639, 0
        %v3642 = vxor.u32 %v3636, 2147483648
        %v3643 = vsel %vm3641, %v3635, %v3642
        %vm3644 = vcmp.eq.s32.totalorder %v3639, 2
        %v3645 = vxor.u32 %v3635, 2147483648
        %v3646 = vsel %vm3644, %v3645, %v3636
        %v3647 = vsel %vm3640, %v3643, %v3646
        %v3648 = vsel %vm3637, nan, %v3647
        %v3649 = vand.u32 2147483647, %v521
        %vm3650 = vcmp.le.f32.partialorder %v3649, 0.7853982
        %vm3651 = vcmp.lt.s32.totalorder %v521, 0
        %v3652 = vand.u32 %v521, 2139095040
        %v3653 = vshrl.u32 %v3652, 23
        %v3654 = vsub.s32 %v3653, 127
        %v3655 = vand.u32 2147483647, %v521
        %v3656 = vand.u32 %v3655, 8388607
        %v3657 = vor.u32 %v3656, 8388608
        %v3658 = vsub.s32 0, %v3657
        %v3659 = vadd.s32 %v3654, 1
        %vm3660 = vcmp.gt.s32.totalorder %v3659, 0
        %v3661 = vsel %vm3660, %v3659, 0
        %v3662 = vshrl.u32 %v3661, 5
        %v3663 = vand.u32 %v3661, 31
        %v3664 = vsub.s32 32, %v3663
        %v3665 = vshrl.u32 683565275, %v3664
        %v3666 = vshll.u32 683565275, %v3663
        %v3667 = vshrl.u32 2475754826, %v3664
        %v3668 = vor.u32 %v3666, %v3667
        %v3669 = vshll.u32 2475754826, %v3663
        %v3670 = vshrl.u32 2131351028, %v3664
        %v3671 = vor.u32 %v3669, %v3670
        %v3672 = vshll.u32 2131351028, %v3663
        %v3673 = vshrl.u32 2102212464, %v3664
        %v3674 = vor.u32 %v3672, %v3673
        %v3675 = vshll.u32 2102212464, %v3663
        %v3676 = vshrl.u32 920167782, %v3664
        %v3677 = vor.u32 %v3675, %v3676
        %v3678 = vshll.u32 920167782, %v3663
        %v3679 = vshrl.u32 1326507024, %v3664
        %v3680 = vor.u32 %v3678, %v3679
        %vm3681 = vcmp.lt.s32.totalorder %v3662, 1
        %vm3682 = vcmp.lt.s32.totalorder %v3662, 2
        %vm3683 = vcmp.lt.s32.totalorder %v3662, 3
        %vm3684 = vcmp.lt.s32.totalorder %v3662, 4
        %v3685 = vsel %vm3681, %v3665, %v3668
        %v3686 = vsel %vm3684, %v3674, 2102212464
        %v3687 = vsel %vm3683, %v3671, %v3686
        %v3688 = vsel %vm3682, %v3685, %v3687
        %v3689 = vsel %vm3681, %v3668, %v3671
        %v3690 = vsel %vm3684, %v3677, 920167782
        %v3691 = vsel %vm3683, %v3674, %v3690
        %v3692 = vsel %vm3682, %v3689, %v3691
        %v3693 = vsel %vm3681, %v3671, %v3674
        %v3694 = vsel %vm3684, %v3680, 1326507024
        %v3695 = vsel %vm3683, %v3677, %v3694
        %v3696 = vsel %vm3682, %v3693, %v3695
        %v3697 = vshll.u32 %v3657, 8
        %v3698 = vmul.u32.u64.compose %v3697, %v3696
        %v3699 = vextract.low.u32 %v3698
        %v3700 = vextract.high.u32 %v3698
        %v3701 = vmul.u32.u64.compose %v3697, %v3692
        %v3702 = vextract.low.u32 %v3701
        %v3703 = vextract.high.u32 %v3701
        %v3704 = vmul.u32 %v3697, %v3688
        %v3705 = vadd.s32 %v3700, %v3702
        %vm3706 = vc.u32 %v3700, %v3702
        %v3707 = vadd.s32 %v3703, 1
        %v3708 = vsel %vm3706, %v3707, %v3703
        %v3709 = vadd.s32 %v3704, %v3708
        %v3710 = vadd.s32 %v3709, 536870912
        %v3711 = vshrl.u32 %v3710, 30
        %v3712 = vshll.u32 %v3711, 30
        %v3713 = vsub.s32 %v3709, %v3712
        %vm3714 = vcmp.lt.s32.totalorder %v3713, 0
        %v3715 = vsub.s32 0, %v3713
        %v3716 = vsel %vm3714, %v3715, %v3713
        %v3717 = vclz %v3716
        %v3718 = vsub.s32 %v3717, 2
        %vm3719 = vcmp.gt.s32.totalorder 0, %v3718
        %v3720 = vsel %vm3719, 0, %v3718
        %v3721 = vsub.s32 32, %v3720
        %v3722 = vshll.u32 %v3713, %v3720
        %v3723 = vshrl.u32 %v3705, %v3721
        %v3724 = vor.u32 %v3722, %v3723
        %v3725 = vsub.s32 4294967266, %v3720
        %v3726 = vadd.s32 %v3725, 127
        %v3727 = vshll.u32 %v3726, 23
        %v3728 = vor.u32 4788187, %v3727
        %v3729 = vand.u32 2147483647, %v3728
        %v3731 = vcvt.s32.f32 %v3724
        %v3732 = vmul.f32 %v3731, %v3729
        %v3733 = vxor.u32 %v3732, 2147483648
        %v3734 = vsel %vm3651, %v3733, %v3732
        %v3735 = vsub.s32 4, %v3711
        %v3736 = vsel %vm3651, %v3735, %v3711
        %v3737 = vsel %vm3650, %v521, %v3734
        %v3738 = vsel %vm3650, 0, %v3736
        %v3739 = vcosq.f32.pop %v3737
        %v3740 = vsinq.f32.pop %v3737
        %vm3741 = vweird.f32 %v521
        %v3742 = vadd.s32 %v3738, 3
        %v3743 = vand.u32 %v3742, 3
        %vm3744 = vcmp.lt.s32.totalorder %v3743, 2
        %vm3745 = vcmp.eq.s32.totalorder %v3743, 0
        %v3746 = vxor.u32 %v3740, 2147483648
        %v3747 = vsel %vm3745, %v3739, %v3746
        %vm3748 = vcmp.eq.s32.totalorder %v3743, 2
        %v3749 = vxor.u32 %v3739, 2147483648
        %v3750 = vsel %vm3748, %v3749, %v3740
        %v3751 = vsel %vm3744, %v3747, %v3750
        %v3752 = vsel %vm3741, nan, %v3751
        %v3753 = vand.u32 2147483647, %v526
        %vm3754 = vcmp.le.f32.partialorder %v3753, 0.7853982
        %vm3755 = vcmp.lt.s32.totalorder %v526, 0
        %v3756 = vand.u32 %v526, 2139095040
        %v3757 = vshrl.u32 %v3756, 23
        %v3758 = vsub.s32 %v3757, 127
        %v3759 = vand.u32 2147483647, %v526
        %v3760 = vand.u32 %v3759, 8388607
        %v3761 = vor.u32 %v3760, 8388608
        %v3762 = vsub.s32 0, %v3761
        %v3763 = vadd.s32 %v3758, 1
        %vm3764 = vcmp.gt.s32.totalorder %v3763, 0
        %v3765 = vsel %vm3764, %v3763, 0
        %v3766 = vshrl.u32 %v3765, 5
        %v3767 = vand.u32 %v3765, 31
        %v3768 = vsub.s32 32, %v3767
        %v3769 = vshrl.u32 683565275, %v3768
        %v3770 = vshll.u32 683565275, %v3767
        %v3771 = vshrl.u32 2475754826, %v3768
        %v3772 = vor.u32 %v3770, %v3771
        %v3773 = vshll.u32 2475754826, %v3767
        %v3774 = vshrl.u32 2131351028, %v3768
        %v3775 = vor.u32 %v3773, %v3774
        %v3776 = vshll.u32 2131351028, %v3767
        %v3777 = vshrl.u32 2102212464, %v3768
        %v3778 = vor.u32 %v3776, %v3777
        %v3779 = vshll.u32 2102212464, %v3767
        %v3780 = vshrl.u32 920167782, %v3768
        %v3781 = vor.u32 %v3779, %v3780
        %v3782 = vshll.u32 920167782, %v3767
        %v3783 = vshrl.u32 1326507024, %v3768
        %v3784 = vor.u32 %v3782, %v3783
        %vm3785 = vcmp.lt.s32.totalorder %v3766, 1
        %vm3786 = vcmp.lt.s32.totalorder %v3766, 2
        %vm3787 = vcmp.lt.s32.totalorder %v3766, 3
        %vm3788 = vcmp.lt.s32.totalorder %v3766, 4
        %v3789 = vsel %vm3785, %v3769, %v3772
        %v3790 = vsel %vm3788, %v3778, 2102212464
        %v3791 = vsel %vm3787, %v3775, %v3790
        %v3792 = vsel %vm3786, %v3789, %v3791
        %v3793 = vsel %vm3785, %v3772, %v3775
        %v3794 = vsel %vm3788, %v3781, 920167782
        %v3795 = vsel %vm3787, %v3778, %v3794
        %v3796 = vsel %vm3786, %v3793, %v3795
        %v3797 = vsel %vm3785, %v3775, %v3778
        %v3798 = vsel %vm3788, %v3784, 1326507024
        %v3799 = vsel %vm3787, %v3781, %v3798
        %v3800 = vsel %vm3786, %v3797, %v3799
        %v3801 = vshll.u32 %v3761, 8
        %v3802 = vmul.u32.u64.compose %v3801, %v3800
        %v3803 = vextract.low.u32 %v3802
        %v3804 = vextract.high.u32 %v3802
        %v3805 = vmul.u32.u64.compose %v3801, %v3796
        %v3806 = vextract.low.u32 %v3805
        %v3807 = vextract.high.u32 %v3805
        %v3808 = vmul.u32 %v3801, %v3792
        %v3809 = vadd.s32 %v3804, %v3806
        %vm3810 = vc.u32 %v3804, %v3806
        %v3811 = vadd.s32 %v3807, 1
        %v3812 = vsel %vm3810, %v3811, %v3807
        %v3813 = vadd.s32 %v3808, %v3812
        %v3814 = vadd.s32 %v3813, 536870912
        %v3815 = vshrl.u32 %v3814, 30
        %v3816 = vshll.u32 %v3815, 30
        %v3817 = vsub.s32 %v3813, %v3816
        %vm3818 = vcmp.lt.s32.totalorder %v3817, 0
        %v3819 = vsub.s32 0, %v3817
        %v3820 = vsel %vm3818, %v3819, %v3817
        %v3821 = vclz %v3820
        %v3822 = vsub.s32 %v3821, 2
        %vm3823 = vcmp.gt.s32.totalorder 0, %v3822
        %v3824 = vsel %vm3823, 0, %v3822
        %v3825 = vsub.s32 32, %v3824
        %v3826 = vshll.u32 %v3817, %v3824
        %v3827 = vshrl.u32 %v3809, %v3825
        %v3828 = vor.u32 %v3826, %v3827
        %v3829 = vsub.s32 4294967266, %v3824
        %v3830 = vadd.s32 %v3829, 127
        %v3831 = vshll.u32 %v3830, 23
        %v3832 = vor.u32 4788187, %v3831
        %v3833 = vand.u32 2147483647, %v3832
        %v3835 = vcvt.s32.f32 %v3828
        %v3836 = vmul.f32 %v3835, %v3833
        %v3837 = vxor.u32 %v3836, 2147483648
        %v3838 = vsel %vm3755, %v3837, %v3836
        %v3839 = vsub.s32 4, %v3815
        %v3840 = vsel %vm3755, %v3839, %v3815
        %v3841 = vsel %vm3754, %v526, %v3838
        %v3842 = vsel %vm3754, 0, %v3840
        %v3843 = vcosq.f32.pop %v3841
        %v3844 = vsinq.f32.pop %v3841
        %vm3845 = vweird.f32 %v526
        %v3846 = vadd.s32 %v3842, 3
        %v3847 = vand.u32 %v3846, 3
        %vm3848 = vcmp.lt.s32.totalorder %v3847, 2
        %vm3849 = vcmp.eq.s32.totalorder %v3847, 0
        %v3850 = vxor.u32 %v3844, 2147483648
        %v3851 = vsel %vm3849, %v3843, %v3850
        %vm3852 = vcmp.eq.s32.totalorder %v3847, 2
        %v3853 = vxor.u32 %v3843, 2147483648
        %v3854 = vsel %vm3852, %v3853, %v3844
        %v3855 = vsel %vm3848, %v3851, %v3854
        %v3856 = vsel %vm3845, nan, %v3855
        %v3857 = vand.u32 2147483647, %v371
        %vm3858 = vcmp.le.f32.partialorder %v3857, 0.7853982
        %vm3859 = vcmp.lt.s32.totalorder %v371, 0
        %v3860 = vand.u32 %v371, 2139095040
        %v3861 = vshrl.u32 %v3860, 23
        %v3862 = vsub.s32 %v3861, 127
        %v3863 = vand.u32 2147483647, %v371
        %v3864 = vand.u32 %v3863, 8388607
        %v3865 = vor.u32 %v3864, 8388608
        %v3866 = vsub.s32 0, %v3865
        %v3867 = vadd.s32 %v3862, 1
        %vm3868 = vcmp.gt.s32.totalorder %v3867, 0
        %v3869 = vsel %vm3868, %v3867, 0
        %v3870 = vshrl.u32 %v3869, 5
        %v3871 = vand.u32 %v3869, 31
        %v3872 = vsub.s32 32, %v3871
        %v3873 = vshrl.u32 683565275, %v3872
        %v3874 = vshll.u32 683565275, %v3871
        %v3875 = vshrl.u32 2475754826, %v3872
        %v3876 = vor.u32 %v3874, %v3875
        %v3877 = vshll.u32 2475754826, %v3871
        %v3878 = vshrl.u32 2131351028, %v3872
        %v3879 = vor.u32 %v3877, %v3878
        %v3880 = vshll.u32 2131351028, %v3871
        %v3881 = vshrl.u32 2102212464, %v3872
        %v3882 = vor.u32 %v3880, %v3881
        %v3883 = vshll.u32 2102212464, %v3871
        %v3884 = vshrl.u32 920167782, %v3872
        %v3885 = vor.u32 %v3883, %v3884
        %v3886 = vshll.u32 920167782, %v3871
        %v3887 = vshrl.u32 1326507024, %v3872
        %v3888 = vor.u32 %v3886, %v3887
        %vm3889 = vcmp.lt.s32.totalorder %v3870, 1
        %vm3890 = vcmp.lt.s32.totalorder %v3870, 2
        %vm3891 = vcmp.lt.s32.totalorder %v3870, 3
        %vm3892 = vcmp.lt.s32.totalorder %v3870, 4
        %v3893 = vsel %vm3889, %v3873, %v3876
        %v3894 = vsel %vm3892, %v3882, 2102212464
        %v3895 = vsel %vm3891, %v3879, %v3894
        %v3896 = vsel %vm3890, %v3893, %v3895
        %v3897 = vsel %vm3889, %v3876, %v3879
        %v3898 = vsel %vm3892, %v3885, 920167782
        %v3899 = vsel %vm3891, %v3882, %v3898
        %v3900 = vsel %vm3890, %v3897, %v3899
        %v3901 = vsel %vm3889, %v3879, %v3882
        %v3902 = vsel %vm3892, %v3888, 1326507024
        %v3903 = vsel %vm3891, %v3885, %v3902
        %v3904 = vsel %vm3890, %v3901, %v3903
        %v3905 = vshll.u32 %v3865, 8
        %v3906 = vmul.u32.u64.compose %v3905, %v3904
        %v3907 = vextract.low.u32 %v3906
        %v3908 = vextract.high.u32 %v3906
        %v3909 = vmul.u32.u64.compose %v3905, %v3900
        %v3910 = vextract.low.u32 %v3909
        %v3911 = vextract.high.u32 %v3909
        %v3912 = vmul.u32 %v3905, %v3896
        %v3913 = vadd.s32 %v3908, %v3910
        %vm3914 = vc.u32 %v3908, %v3910
        %v3915 = vadd.s32 %v3911, 1
        %v3916 = vsel %vm3914, %v3915, %v3911
        %v3917 = vadd.s32 %v3912, %v3916
        %v3918 = vadd.s32 %v3917, 536870912
        %v3919 = vshrl.u32 %v3918, 30
        %v3920 = vshll.u32 %v3919, 30
        %v3921 = vsub.s32 %v3917, %v3920
        %vm3922 = vcmp.lt.s32.totalorder %v3921, 0
        %v3923 = vsub.s32 0, %v3921
        %v3924 = vsel %vm3922, %v3923, %v3921
        %v3925 = vclz %v3924
        %v3926 = vsub.s32 %v3925, 2
        %vm3927 = vcmp.gt.s32.totalorder 0, %v3926
        %v3928 = vsel %vm3927, 0, %v3926
        %v3929 = vsub.s32 32, %v3928
        %v3930 = vshll.u32 %v3921, %v3928
        %v3931 = vshrl.u32 %v3913, %v3929
        %v3932 = vor.u32 %v3930, %v3931
        %v3933 = vsub.s32 4294967266, %v3928
        %v3934 = vadd.s32 %v3933, 127
        %v3935 = vshll.u32 %v3934, 23
        %v3936 = vor.u32 4788187, %v3935
        %v3937 = vand.u32 2147483647, %v3936
        %v3939 = vcvt.s32.f32 %v3932
        %v3940 = vmul.f32 %v3939, %v3937
        %v3941 = vxor.u32 %v3940, 2147483648
        %v3942 = vsel %vm3859, %v3941, %v3940
        %v3943 = vsub.s32 4, %v3919
        %v3944 = vsel %vm3859, %v3943, %v3919
        %v3945 = vsel %vm3858, %v371, %v3942
        %v3946 = vsel %vm3858, 0, %v3944
        %v3947 = vcosq.f32.pop %v3945
        %v3948 = vsinq.f32.pop %v3945
        %vm3949 = vweird.f32 %v371
        %v3950 = vand.u32 %v3946, 3
        %vm3951 = vcmp.lt.s32.totalorder %v3950, 2
        %vm3952 = vcmp.eq.s32.totalorder %v3950, 0
        %v3953 = vxor.u32 %v3948, 2147483648
        %v3954 = vsel %vm3952, %v3947, %v3953
        %vm3955 = vcmp.eq.s32.totalorder %v3950, 2
        %v3956 = vxor.u32 %v3947, 2147483648
        %v3957 = vsel %vm3955, %v3956, %v3948
        %v3958 = vsel %vm3951, %v3954, %v3957
        %v3959 = vsel %vm3949, nan, %v3958
        %v3960 = vand.u32 2147483647, %v376
        %vm3961 = vcmp.le.f32.partialorder %v3960, 0.7853982
        %vm3962 = vcmp.lt.s32.totalorder %v376, 0
        %v3963 = vand.u32 %v376, 2139095040
        %v3964 = vshrl.u32 %v3963, 23
        %v3965 = vsub.s32 %v3964, 127
        %v3966 = vand.u32 2147483647, %v376
        %v3967 = vand.u32 %v3966, 8388607
        %v3968 = vor.u32 %v3967, 8388608
        %v3969 = vsub.s32 0, %v3968
        %v3970 = vadd.s32 %v3965, 1
        %vm3971 = vcmp.gt.s32.totalorder %v3970, 0
        %v3972 = vsel %vm3971, %v3970, 0
        %v3973 = vshrl.u32 %v3972, 5
        %v3974 = vand.u32 %v3972, 31
        %v3975 = vsub.s32 32, %v3974
        %v3976 = vshrl.u32 683565275, %v3975
        %v3977 = vshll.u32 683565275, %v3974
        %v3978 = vshrl.u32 2475754826, %v3975
        %v3979 = vor.u32 %v3977, %v3978
        %v3980 = vshll.u32 2475754826, %v3974
        %v3981 = vshrl.u32 2131351028, %v3975
        %v3982 = vor.u32 %v3980, %v3981
        %v3983 = vshll.u32 2131351028, %v3974
        %v3984 = vshrl.u32 2102212464, %v3975
        %v3985 = vor.u32 %v3983, %v3984
        %v3986 = vshll.u32 2102212464, %v3974
        %v3987 = vshrl.u32 920167782, %v3975
        %v3988 = vor.u32 %v3986, %v3987
        %v3989 = vshll.u32 920167782, %v3974
        %v3990 = vshrl.u32 1326507024, %v3975
        %v3991 = vor.u32 %v3989, %v3990
        %vm3992 = vcmp.lt.s32.totalorder %v3973, 1
        %vm3993 = vcmp.lt.s32.totalorder %v3973, 2
        %vm3994 = vcmp.lt.s32.totalorder %v3973, 3
        %vm3995 = vcmp.lt.s32.totalorder %v3973, 4
        %v3996 = vsel %vm3992, %v3976, %v3979
        %v3997 = vsel %vm3995, %v3985, 2102212464
        %v3998 = vsel %vm3994, %v3982, %v3997
        %v3999 = vsel %vm3993, %v3996, %v3998
        %v4000 = vsel %vm3992, %v3979, %v3982
        %v4001 = vsel %vm3995, %v3988, 920167782
        %v4002 = vsel %vm3994, %v3985, %v4001
        %v4003 = vsel %vm3993, %v4000, %v4002
        %v4004 = vsel %vm3992, %v3982, %v3985
        %v4005 = vsel %vm3995, %v3991, 1326507024
        %v4006 = vsel %vm3994, %v3988, %v4005
        %v4007 = vsel %vm3993, %v4004, %v4006
        %v4008 = vshll.u32 %v3968, 8
        %v4009 = vmul.u32.u64.compose %v4008, %v4007
        %v4010 = vextract.low.u32 %v4009
        %v4011 = vextract.high.u32 %v4009
        %v4012 = vmul.u32.u64.compose %v4008, %v4003
        %v4013 = vextract.low.u32 %v4012
        %v4014 = vextract.high.u32 %v4012
        %v4015 = vmul.u32 %v4008, %v3999
        %v4016 = vadd.s32 %v4011, %v4013
        %vm4017 = vc.u32 %v4011, %v4013
        %v4018 = vadd.s32 %v4014, 1
        %v4019 = vsel %vm4017, %v4018, %v4014
        %v4020 = vadd.s32 %v4015, %v4019
        %v4021 = vadd.s32 %v4020, 536870912
        %v4022 = vshrl.u32 %v4021, 30
        %v4023 = vshll.u32 %v4022, 30
        %v4024 = vsub.s32 %v4020, %v4023
        %vm4025 = vcmp.lt.s32.totalorder %v4024, 0
        %v4026 = vsub.s32 0, %v4024
        %v4027 = vsel %vm4025, %v4026, %v4024
        %v4028 = vclz %v4027
        %v4029 = vsub.s32 %v4028, 2
        %vm4030 = vcmp.gt.s32.totalorder 0, %v4029
        %v4031 = vsel %vm4030, 0, %v4029
        %v4032 = vsub.s32 32, %v4031
        %v4033 = vshll.u32 %v4024, %v4031
        %v4034 = vshrl.u32 %v4016, %v4032
        %v4035 = vor.u32 %v4033, %v4034
        %v4036 = vsub.s32 4294967266, %v4031
        %v4037 = vadd.s32 %v4036, 127
        %v4038 = vshll.u32 %v4037, 23
        %v4039 = vor.u32 4788187, %v4038
        %v4040 = vand.u32 2147483647, %v4039
        %v4042 = vcvt.s32.f32 %v4035
        %v4043 = vmul.f32 %v4042, %v4040
        %v4044 = vxor.u32 %v4043, 2147483648
        %v4045 = vsel %vm3962, %v4044, %v4043
        %v4046 = vsub.s32 4, %v4022
        %v4047 = vsel %vm3962, %v4046, %v4022
        %v4048 = vsel %vm3961, %v376, %v4045
        %v4049 = vsel %vm3961, 0, %v4047
        %v4050 = vcosq.f32.pop %v4048
        %v4051 = vsinq.f32.pop %v4048
        %vm4052 = vweird.f32 %v376
        %v4053 = vand.u32 %v4049, 3
        %vm4054 = vcmp.lt.s32.totalorder %v4053, 2
        %vm4055 = vcmp.eq.s32.totalorder %v4053, 0
        %v4056 = vxor.u32 %v4051, 2147483648
        %v4057 = vsel %vm4055, %v4050, %v4056
        %vm4058 = vcmp.eq.s32.totalorder %v4053, 2
        %v4059 = vxor.u32 %v4050, 2147483648
        %v4060 = vsel %vm4058, %v4059, %v4051
        %v4061 = vsel %vm4054, %v4057, %v4060
        %v4062 = vsel %vm4052, nan, %v4061
        %v4063 = vand.u32 2147483647, %v381
        %vm4064 = vcmp.le.f32.partialorder %v4063, 0.7853982
        %vm4065 = vcmp.lt.s32.totalorder %v381, 0
        %v4066 = vand.u32 %v381, 2139095040
        %v4067 = vshrl.u32 %v4066, 23
        %v4068 = vsub.s32 %v4067, 127
        %v4069 = vand.u32 2147483647, %v381
        %v4070 = vand.u32 %v4069, 8388607
        %v4071 = vor.u32 %v4070, 8388608
        %v4072 = vsub.s32 0, %v4071
        %v4073 = vadd.s32 %v4068, 1
        %vm4074 = vcmp.gt.s32.totalorder %v4073, 0
        %v4075 = vsel %vm4074, %v4073, 0
        %v4076 = vshrl.u32 %v4075, 5
        %v4077 = vand.u32 %v4075, 31
        %v4078 = vsub.s32 32, %v4077
        %v4079 = vshrl.u32 683565275, %v4078
        %v4080 = vshll.u32 683565275, %v4077
        %v4081 = vshrl.u32 2475754826, %v4078
        %v4082 = vor.u32 %v4080, %v4081
        %v4083 = vshll.u32 2475754826, %v4077
        %v4084 = vshrl.u32 2131351028, %v4078
        %v4085 = vor.u32 %v4083, %v4084
        %v4086 = vshll.u32 2131351028, %v4077
        %v4087 = vshrl.u32 2102212464, %v4078
        %v4088 = vor.u32 %v4086, %v4087
        %v4089 = vshll.u32 2102212464, %v4077
        %v4090 = vshrl.u32 920167782, %v4078
        %v4091 = vor.u32 %v4089, %v4090
        %v4092 = vshll.u32 920167782, %v4077
        %v4093 = vshrl.u32 1326507024, %v4078
        %v4094 = vor.u32 %v4092, %v4093
        %vm4095 = vcmp.lt.s32.totalorder %v4076, 1
        %vm4096 = vcmp.lt.s32.totalorder %v4076, 2
        %vm4097 = vcmp.lt.s32.totalorder %v4076, 3
        %vm4098 = vcmp.lt.s32.totalorder %v4076, 4
        %v4099 = vsel %vm4095, %v4079, %v4082
        %v4100 = vsel %vm4098, %v4088, 2102212464
        %v4101 = vsel %vm4097, %v4085, %v4100
        %v4102 = vsel %vm4096, %v4099, %v4101
        %v4103 = vsel %vm4095, %v4082, %v4085
        %v4104 = vsel %vm4098, %v4091, 920167782
        %v4105 = vsel %vm4097, %v4088, %v4104
        %v4106 = vsel %vm4096, %v4103, %v4105
        %v4107 = vsel %vm4095, %v4085, %v4088
        %v4108 = vsel %vm4098, %v4094, 1326507024
        %v4109 = vsel %vm4097, %v4091, %v4108
        %v4110 = vsel %vm4096, %v4107, %v4109
        %v4111 = vshll.u32 %v4071, 8
        %v4112 = vmul.u32.u64.compose %v4111, %v4110
        %v4113 = vextract.low.u32 %v4112
        %v4114 = vextract.high.u32 %v4112
        %v4115 = vmul.u32.u64.compose %v4111, %v4106
        %v4116 = vextract.low.u32 %v4115
        %v4117 = vextract.high.u32 %v4115
        %v4118 = vmul.u32 %v4111, %v4102
        %v4119 = vadd.s32 %v4114, %v4116
        %vm4120 = vc.u32 %v4114, %v4116
        %v4121 = vadd.s32 %v4117, 1
        %v4122 = vsel %vm4120, %v4121, %v4117
        %v4123 = vadd.s32 %v4118, %v4122
        %v4124 = vadd.s32 %v4123, 536870912
        %v4125 = vshrl.u32 %v4124, 30
        %v4126 = vshll.u32 %v4125, 30
        %v4127 = vsub.s32 %v4123, %v4126
        %vm4128 = vcmp.lt.s32.totalorder %v4127, 0
        %v4129 = vsub.s32 0, %v4127
        %v4130 = vsel %vm4128, %v4129, %v4127
        %v4131 = vclz %v4130
        %v4132 = vsub.s32 %v4131, 2
        %vm4133 = vcmp.gt.s32.totalorder 0, %v4132
        %v4134 = vsel %vm4133, 0, %v4132
        %v4135 = vsub.s32 32, %v4134
        %v4136 = vshll.u32 %v4127, %v4134
        %v4137 = vshrl.u32 %v4119, %v4135
        %v4138 = vor.u32 %v4136, %v4137
        %v4139 = vsub.s32 4294967266, %v4134
        %v4140 = vadd.s32 %v4139, 127
        %v4141 = vshll.u32 %v4140, 23
        %v4142 = vor.u32 4788187, %v4141
        %v4143 = vand.u32 2147483647, %v4142
        %v4145 = vcvt.s32.f32 %v4138
        %v4146 = vmul.f32 %v4145, %v4143
        %v4147 = vxor.u32 %v4146, 2147483648
        %v4148 = vsel %vm4065, %v4147, %v4146
        %v4149 = vsub.s32 4, %v4125
        %v4150 = vsel %vm4065, %v4149, %v4125
        %v4151 = vsel %vm4064, %v381, %v4148
        %v4152 = vsel %vm4064, 0, %v4150
        %v4153 = vcosq.f32.pop %v4151
        %v4154 = vsinq.f32.pop %v4151
        %vm4155 = vweird.f32 %v381
        %v4156 = vand.u32 %v4152, 3
        %vm4157 = vcmp.lt.s32.totalorder %v4156, 2
        %vm4158 = vcmp.eq.s32.totalorder %v4156, 0
        %v4159 = vxor.u32 %v4154, 2147483648
        %v4160 = vsel %vm4158, %v4153, %v4159
        %vm4161 = vcmp.eq.s32.totalorder %v4156, 2
        %v4162 = vxor.u32 %v4153, 2147483648
        %v4163 = vsel %vm4161, %v4162, %v4154
        %v4164 = vsel %vm4157, %v4160, %v4163
        %v4165 = vsel %vm4155, nan, %v4164
        %v4166 = vand.u32 2147483647, %v386
        %vm4167 = vcmp.le.f32.partialorder %v4166, 0.7853982
        %vm4168 = vcmp.lt.s32.totalorder %v386, 0
        %v4169 = vand.u32 %v386, 2139095040
        %v4170 = vshrl.u32 %v4169, 23
        %v4171 = vsub.s32 %v4170, 127
        %v4172 = vand.u32 2147483647, %v386
        %v4173 = vand.u32 %v4172, 8388607
        %v4174 = vor.u32 %v4173, 8388608
        %v4175 = vsub.s32 0, %v4174
        %v4176 = vadd.s32 %v4171, 1
        %vm4177 = vcmp.gt.s32.totalorder %v4176, 0
        %v4178 = vsel %vm4177, %v4176, 0
        %v4179 = vshrl.u32 %v4178, 5
        %v4180 = vand.u32 %v4178, 31
        %v4181 = vsub.s32 32, %v4180
        %v4182 = vshrl.u32 683565275, %v4181
        %v4183 = vshll.u32 683565275, %v4180
        %v4184 = vshrl.u32 2475754826, %v4181
        %v4185 = vor.u32 %v4183, %v4184
        %v4186 = vshll.u32 2475754826, %v4180
        %v4187 = vshrl.u32 2131351028, %v4181
        %v4188 = vor.u32 %v4186, %v4187
        %v4189 = vshll.u32 2131351028, %v4180
        %v4190 = vshrl.u32 2102212464, %v4181
        %v4191 = vor.u32 %v4189, %v4190
        %v4192 = vshll.u32 2102212464, %v4180
        %v4193 = vshrl.u32 920167782, %v4181
        %v4194 = vor.u32 %v4192, %v4193
        %v4195 = vshll.u32 920167782, %v4180
        %v4196 = vshrl.u32 1326507024, %v4181
        %v4197 = vor.u32 %v4195, %v4196
        %vm4198 = vcmp.lt.s32.totalorder %v4179, 1
        %vm4199 = vcmp.lt.s32.totalorder %v4179, 2
        %vm4200 = vcmp.lt.s32.totalorder %v4179, 3
        %vm4201 = vcmp.lt.s32.totalorder %v4179, 4
        %v4202 = vsel %vm4198, %v4182, %v4185
        %v4203 = vsel %vm4201, %v4191, 2102212464
        %v4204 = vsel %vm4200, %v4188, %v4203
        %v4205 = vsel %vm4199, %v4202, %v4204
        %v4206 = vsel %vm4198, %v4185, %v4188
        %v4207 = vsel %vm4201, %v4194, 920167782
        %v4208 = vsel %vm4200, %v4191, %v4207
        %v4209 = vsel %vm4199, %v4206, %v4208
        %v4210 = vsel %vm4198, %v4188, %v4191
        %v4211 = vsel %vm4201, %v4197, 1326507024
        %v4212 = vsel %vm4200, %v4194, %v4211
        %v4213 = vsel %vm4199, %v4210, %v4212
        %v4214 = vshll.u32 %v4174, 8
        %v4215 = vmul.u32.u64.compose %v4214, %v4213
        %v4216 = vextract.low.u32 %v4215
        %v4217 = vextract.high.u32 %v4215
        %v4218 = vmul.u32.u64.compose %v4214, %v4209
        %v4219 = vextract.low.u32 %v4218
        %v4220 = vextract.high.u32 %v4218
        %v4221 = vmul.u32 %v4214, %v4205
        %v4222 = vadd.s32 %v4217, %v4219
        %vm4223 = vc.u32 %v4217, %v4219
        %v4224 = vadd.s32 %v4220, 1
        %v4225 = vsel %vm4223, %v4224, %v4220
        %v4226 = vadd.s32 %v4221, %v4225
        %v4227 = vadd.s32 %v4226, 536870912
        %v4228 = vshrl.u32 %v4227, 30
        %v4229 = vshll.u32 %v4228, 30
        %v4230 = vsub.s32 %v4226, %v4229
        %vm4231 = vcmp.lt.s32.totalorder %v4230, 0
        %v4232 = vsub.s32 0, %v4230
        %v4233 = vsel %vm4231, %v4232, %v4230
        %v4234 = vclz %v4233
        %v4235 = vsub.s32 %v4234, 2
        %vm4236 = vcmp.gt.s32.totalorder 0, %v4235
        %v4237 = vsel %vm4236, 0, %v4235
        %v4238 = vsub.s32 32, %v4237
        %v4239 = vshll.u32 %v4230, %v4237
        %v4240 = vshrl.u32 %v4222, %v4238
        %v4241 = vor.u32 %v4239, %v4240
        %v4242 = vsub.s32 4294967266, %v4237
        %v4243 = vadd.s32 %v4242, 127
        %v4244 = vshll.u32 %v4243, 23
        %v4245 = vor.u32 4788187, %v4244
        %v4246 = vand.u32 2147483647, %v4245
        %v4248 = vcvt.s32.f32 %v4241
        %v4249 = vmul.f32 %v4248, %v4246
        %v4250 = vxor.u32 %v4249, 2147483648
        %v4251 = vsel %vm4168, %v4250, %v4249
        %v4252 = vsub.s32 4, %v4228
        %v4253 = vsel %vm4168, %v4252, %v4228
        %v4254 = vsel %vm4167, %v386, %v4251
        %v4255 = vsel %vm4167, 0, %v4253
        %v4256 = vcosq.f32.pop %v4254
        %v4257 = vsinq.f32.pop %v4254
        %vm4258 = vweird.f32 %v386
        %v4259 = vand.u32 %v4255, 3
        %vm4260 = vcmp.lt.s32.totalorder %v4259, 2
        %vm4261 = vcmp.eq.s32.totalorder %v4259, 0
        %v4262 = vxor.u32 %v4257, 2147483648
        %v4263 = vsel %vm4261, %v4256, %v4262
        %vm4264 = vcmp.eq.s32.totalorder %v4259, 2
        %v4265 = vxor.u32 %v4256, 2147483648
        %v4266 = vsel %vm4264, %v4265, %v4257
        %v4267 = vsel %vm4260, %v4263, %v4266
        %v4268 = vsel %vm4258, nan, %v4267
        %v4269 = vand.u32 2147483647, %v391
        %vm4270 = vcmp.le.f32.partialorder %v4269, 0.7853982
        %vm4271 = vcmp.lt.s32.totalorder %v391, 0
        %v4272 = vand.u32 %v391, 2139095040
        %v4273 = vshrl.u32 %v4272, 23
        %v4274 = vsub.s32 %v4273, 127
        %v4275 = vand.u32 2147483647, %v391
        %v4276 = vand.u32 %v4275, 8388607
        %v4277 = vor.u32 %v4276, 8388608
        %v4278 = vsub.s32 0, %v4277
        %v4279 = vadd.s32 %v4274, 1
        %vm4280 = vcmp.gt.s32.totalorder %v4279, 0
        %v4281 = vsel %vm4280, %v4279, 0
        %v4282 = vshrl.u32 %v4281, 5
        %v4283 = vand.u32 %v4281, 31
        %v4284 = vsub.s32 32, %v4283
        %v4285 = vshrl.u32 683565275, %v4284
        %v4286 = vshll.u32 683565275, %v4283
        %v4287 = vshrl.u32 2475754826, %v4284
        %v4288 = vor.u32 %v4286, %v4287
        %v4289 = vshll.u32 2475754826, %v4283
        %v4290 = vshrl.u32 2131351028, %v4284
        %v4291 = vor.u32 %v4289, %v4290
        %v4292 = vshll.u32 2131351028, %v4283
        %v4293 = vshrl.u32 2102212464, %v4284
        %v4294 = vor.u32 %v4292, %v4293
        %v4295 = vshll.u32 2102212464, %v4283
        %v4296 = vshrl.u32 920167782, %v4284
        %v4297 = vor.u32 %v4295, %v4296
        %v4298 = vshll.u32 920167782, %v4283
        %v4299 = vshrl.u32 1326507024, %v4284
        %v4300 = vor.u32 %v4298, %v4299
        %vm4301 = vcmp.lt.s32.totalorder %v4282, 1
        %vm4302 = vcmp.lt.s32.totalorder %v4282, 2
        %vm4303 = vcmp.lt.s32.totalorder %v4282, 3
        %vm4304 = vcmp.lt.s32.totalorder %v4282, 4
        %v4305 = vsel %vm4301, %v4285, %v4288
        %v4306 = vsel %vm4304, %v4294, 2102212464
        %v4307 = vsel %vm4303, %v4291, %v4306
        %v4308 = vsel %vm4302, %v4305, %v4307
        %v4309 = vsel %vm4301, %v4288, %v4291
        %v4310 = vsel %vm4304, %v4297, 920167782
        %v4311 = vsel %vm4303, %v4294, %v4310
        %v4312 = vsel %vm4302, %v4309, %v4311
        %v4313 = vsel %vm4301, %v4291, %v4294
        %v4314 = vsel %vm4304, %v4300, 1326507024
        %v4315 = vsel %vm4303, %v4297, %v4314
        %v4316 = vsel %vm4302, %v4313, %v4315
        %v4317 = vshll.u32 %v4277, 8
        %v4318 = vmul.u32.u64.compose %v4317, %v4316
        %v4319 = vextract.low.u32 %v4318
        %v4320 = vextract.high.u32 %v4318
        %v4321 = vmul.u32.u64.compose %v4317, %v4312
        %v4322 = vextract.low.u32 %v4321
        %v4323 = vextract.high.u32 %v4321
        %v4324 = vmul.u32 %v4317, %v4308
        %v4325 = vadd.s32 %v4320, %v4322
        %vm4326 = vc.u32 %v4320, %v4322
        %v4327 = vadd.s32 %v4323, 1
        %v4328 = vsel %vm4326, %v4327, %v4323
        %v4329 = vadd.s32 %v4324, %v4328
        %v4330 = vadd.s32 %v4329, 536870912
        %v4331 = vshrl.u32 %v4330, 30
        %v4332 = vshll.u32 %v4331, 30
        %v4333 = vsub.s32 %v4329, %v4332
        %vm4334 = vcmp.lt.s32.totalorder %v4333, 0
        %v4335 = vsub.s32 0, %v4333
        %v4336 = vsel %vm4334, %v4335, %v4333
        %v4337 = vclz %v4336
        %v4338 = vsub.s32 %v4337, 2
        %vm4339 = vcmp.gt.s32.totalorder 0, %v4338
        %v4340 = vsel %vm4339, 0, %v4338
        %v4341 = vsub.s32 32, %v4340
        %v4342 = vshll.u32 %v4333, %v4340
        %v4343 = vshrl.u32 %v4325, %v4341
        %v4344 = vor.u32 %v4342, %v4343
        %v4345 = vsub.s32 4294967266, %v4340
        %v4346 = vadd.s32 %v4345, 127
        %v4347 = vshll.u32 %v4346, 23
        %v4348 = vor.u32 4788187, %v4347
        %v4349 = vand.u32 2147483647, %v4348
        %v4351 = vcvt.s32.f32 %v4344
        %v4352 = vmul.f32 %v4351, %v4349
        %v4353 = vxor.u32 %v4352, 2147483648
        %v4354 = vsel %vm4271, %v4353, %v4352
        %v4355 = vsub.s32 4, %v4331
        %v4356 = vsel %vm4271, %v4355, %v4331
        %v4357 = vsel %vm4270, %v391, %v4354
        %v4358 = vsel %vm4270, 0, %v4356
        %v4359 = vcosq.f32.pop %v4357
        %v4360 = vsinq.f32.pop %v4357
        %vm4361 = vweird.f32 %v391
        %v4362 = vand.u32 %v4358, 3
        %vm4363 = vcmp.lt.s32.totalorder %v4362, 2
        %vm4364 = vcmp.eq.s32.totalorder %v4362, 0
        %v4365 = vxor.u32 %v4360, 2147483648
        %v4366 = vsel %vm4364, %v4359, %v4365
        %vm4367 = vcmp.eq.s32.totalorder %v4362, 2
        %v4368 = vxor.u32 %v4359, 2147483648
        %v4369 = vsel %vm4367, %v4368, %v4360
        %v4370 = vsel %vm4363, %v4366, %v4369
        %v4371 = vsel %vm4361, nan, %v4370
        %v4372 = vand.u32 2147483647, %v396
        %vm4373 = vcmp.le.f32.partialorder %v4372, 0.7853982
        %vm4374 = vcmp.lt.s32.totalorder %v396, 0
        %v4375 = vand.u32 %v396, 2139095040
        %v4376 = vshrl.u32 %v4375, 23
        %v4377 = vsub.s32 %v4376, 127
        %v4378 = vand.u32 2147483647, %v396
        %v4379 = vand.u32 %v4378, 8388607
        %v4380 = vor.u32 %v4379, 8388608
        %v4381 = vsub.s32 0, %v4380
        %v4382 = vadd.s32 %v4377, 1
        %vm4383 = vcmp.gt.s32.totalorder %v4382, 0
        %v4384 = vsel %vm4383, %v4382, 0
        %v4385 = vshrl.u32 %v4384, 5
        %v4386 = vand.u32 %v4384, 31
        %v4387 = vsub.s32 32, %v4386
        %v4388 = vshrl.u32 683565275, %v4387
        %v4389 = vshll.u32 683565275, %v4386
        %v4390 = vshrl.u32 2475754826, %v4387
        %v4391 = vor.u32 %v4389, %v4390
        %v4392 = vshll.u32 2475754826, %v4386
        %v4393 = vshrl.u32 2131351028, %v4387
        %v4394 = vor.u32 %v4392, %v4393
        %v4395 = vshll.u32 2131351028, %v4386
        %v4396 = vshrl.u32 2102212464, %v4387
        %v4397 = vor.u32 %v4395, %v4396
        %v4398 = vshll.u32 2102212464, %v4386
        %v4399 = vshrl.u32 920167782, %v4387
        %v4400 = vor.u32 %v4398, %v4399
        %v4401 = vshll.u32 920167782, %v4386
        %v4402 = vshrl.u32 1326507024, %v4387
        %v4403 = vor.u32 %v4401, %v4402
        %vm4404 = vcmp.lt.s32.totalorder %v4385, 1
        %vm4405 = vcmp.lt.s32.totalorder %v4385, 2
        %vm4406 = vcmp.lt.s32.totalorder %v4385, 3
        %vm4407 = vcmp.lt.s32.totalorder %v4385, 4
        %v4408 = vsel %vm4404, %v4388, %v4391
        %v4409 = vsel %vm4407, %v4397, 2102212464
        %v4410 = vsel %vm4406, %v4394, %v4409
        %v4411 = vsel %vm4405, %v4408, %v4410
        %v4412 = vsel %vm4404, %v4391, %v4394
        %v4413 = vsel %vm4407, %v4400, 920167782
        %v4414 = vsel %vm4406, %v4397, %v4413
        %v4415 = vsel %vm4405, %v4412, %v4414
        %v4416 = vsel %vm4404, %v4394, %v4397
        %v4417 = vsel %vm4407, %v4403, 1326507024
        %v4418 = vsel %vm4406, %v4400, %v4417
        %v4419 = vsel %vm4405, %v4416, %v4418
        %v4420 = vshll.u32 %v4380, 8
        %v4421 = vmul.u32.u64.compose %v4420, %v4419
        %v4422 = vextract.low.u32 %v4421
        %v4423 = vextract.high.u32 %v4421
        %v4424 = vmul.u32.u64.compose %v4420, %v4415
        %v4425 = vextract.low.u32 %v4424
        %v4426 = vextract.high.u32 %v4424
        %v4427 = vmul.u32 %v4420, %v4411
        %v4428 = vadd.s32 %v4423, %v4425
        %vm4429 = vc.u32 %v4423, %v4425
        %v4430 = vadd.s32 %v4426, 1
        %v4431 = vsel %vm4429, %v4430, %v4426
        %v4432 = vadd.s32 %v4427, %v4431
        %v4433 = vadd.s32 %v4432, 536870912
        %v4434 = vshrl.u32 %v4433, 30
        %v4435 = vshll.u32 %v4434, 30
        %v4436 = vsub.s32 %v4432, %v4435
        %vm4437 = vcmp.lt.s32.totalorder %v4436, 0
        %v4438 = vsub.s32 0, %v4436
        %v4439 = vsel %vm4437, %v4438, %v4436
        %v4440 = vclz %v4439
        %v4441 = vsub.s32 %v4440, 2
        %vm4442 = vcmp.gt.s32.totalorder 0, %v4441
        %v4443 = vsel %vm4442, 0, %v4441
        %v4444 = vsub.s32 32, %v4443
        %v4445 = vshll.u32 %v4436, %v4443
        %v4446 = vshrl.u32 %v4428, %v4444
        %v4447 = vor.u32 %v4445, %v4446
        %v4448 = vsub.s32 4294967266, %v4443
        %v4449 = vadd.s32 %v4448, 127
        %v4450 = vshll.u32 %v4449, 23
        %v4451 = vor.u32 4788187, %v4450
        %v4452 = vand.u32 2147483647, %v4451
        %v4454 = vcvt.s32.f32 %v4447
        %v4455 = vmul.f32 %v4454, %v4452
        %v4456 = vxor.u32 %v4455, 2147483648
        %v4457 = vsel %vm4374, %v4456, %v4455
        %v4458 = vsub.s32 4, %v4434
        %v4459 = vsel %vm4374, %v4458, %v4434
        %v4460 = vsel %vm4373, %v396, %v4457
        %v4461 = vsel %vm4373, 0, %v4459
        %v4462 = vcosq.f32.pop %v4460
        %v4463 = vsinq.f32.pop %v4460
        %vm4464 = vweird.f32 %v396
        %v4465 = vand.u32 %v4461, 3
        %vm4466 = vcmp.lt.s32.totalorder %v4465, 2
        %vm4467 = vcmp.eq.s32.totalorder %v4465, 0
        %v4468 = vxor.u32 %v4463, 2147483648
        %v4469 = vsel %vm4467, %v4462, %v4468
        %vm4470 = vcmp.eq.s32.totalorder %v4465, 2
        %v4471 = vxor.u32 %v4462, 2147483648
        %v4472 = vsel %vm4470, %v4471, %v4463
        %v4473 = vsel %vm4466, %v4469, %v4472
        %v4474 = vsel %vm4464, nan, %v4473
        %v4475 = vand.u32 2147483647, %v401
        %vm4476 = vcmp.le.f32.partialorder %v4475, 0.7853982
        %vm4477 = vcmp.lt.s32.totalorder %v401, 0
        %v4478 = vand.u32 %v401, 2139095040
        %v4479 = vshrl.u32 %v4478, 23
        %v4480 = vsub.s32 %v4479, 127
        %v4481 = vand.u32 2147483647, %v401
        %v4482 = vand.u32 %v4481, 8388607
        %v4483 = vor.u32 %v4482, 8388608
        %v4484 = vsub.s32 0, %v4483
        %v4485 = vadd.s32 %v4480, 1
        %vm4486 = vcmp.gt.s32.totalorder %v4485, 0
        %v4487 = vsel %vm4486, %v4485, 0
        %v4488 = vshrl.u32 %v4487, 5
        %v4489 = vand.u32 %v4487, 31
        %v4490 = vsub.s32 32, %v4489
        %v4491 = vshrl.u32 683565275, %v4490
        %v4492 = vshll.u32 683565275, %v4489
        %v4493 = vshrl.u32 2475754826, %v4490
        %v4494 = vor.u32 %v4492, %v4493
        %v4495 = vshll.u32 2475754826, %v4489
        %v4496 = vshrl.u32 2131351028, %v4490
        %v4497 = vor.u32 %v4495, %v4496
        %v4498 = vshll.u32 2131351028, %v4489
        %v4499 = vshrl.u32 2102212464, %v4490
        %v4500 = vor.u32 %v4498, %v4499
        %v4501 = vshll.u32 2102212464, %v4489
        %v4502 = vshrl.u32 920167782, %v4490
        %v4503 = vor.u32 %v4501, %v4502
        %v4504 = vshll.u32 920167782, %v4489
        %v4505 = vshrl.u32 1326507024, %v4490
        %v4506 = vor.u32 %v4504, %v4505
        %vm4507 = vcmp.lt.s32.totalorder %v4488, 1
        %vm4508 = vcmp.lt.s32.totalorder %v4488, 2
        %vm4509 = vcmp.lt.s32.totalorder %v4488, 3
        %vm4510 = vcmp.lt.s32.totalorder %v4488, 4
        %v4511 = vsel %vm4507, %v4491, %v4494
        %v4512 = vsel %vm4510, %v4500, 2102212464
        %v4513 = vsel %vm4509, %v4497, %v4512
        %v4514 = vsel %vm4508, %v4511, %v4513
        %v4515 = vsel %vm4507, %v4494, %v4497
        %v4516 = vsel %vm4510, %v4503, 920167782
        %v4517 = vsel %vm4509, %v4500, %v4516
        %v4518 = vsel %vm4508, %v4515, %v4517
        %v4519 = vsel %vm4507, %v4497, %v4500
        %v4520 = vsel %vm4510, %v4506, 1326507024
        %v4521 = vsel %vm4509, %v4503, %v4520
        %v4522 = vsel %vm4508, %v4519, %v4521
        %v4523 = vshll.u32 %v4483, 8
        %v4524 = vmul.u32.u64.compose %v4523, %v4522
        %v4525 = vextract.low.u32 %v4524
        %v4526 = vextract.high.u32 %v4524
        %v4527 = vmul.u32.u64.compose %v4523, %v4518
        %v4528 = vextract.low.u32 %v4527
        %v4529 = vextract.high.u32 %v4527
        %v4530 = vmul.u32 %v4523, %v4514
        %v4531 = vadd.s32 %v4526, %v4528
        %vm4532 = vc.u32 %v4526, %v4528
        %v4533 = vadd.s32 %v4529, 1
        %v4534 = vsel %vm4532, %v4533, %v4529
        %v4535 = vadd.s32 %v4530, %v4534
        %v4536 = vadd.s32 %v4535, 536870912
        %v4537 = vshrl.u32 %v4536, 30
        %v4538 = vshll.u32 %v4537, 30
        %v4539 = vsub.s32 %v4535, %v4538
        %vm4540 = vcmp.lt.s32.totalorder %v4539, 0
        %v4541 = vsub.s32 0, %v4539
        %v4542 = vsel %vm4540, %v4541, %v4539
        %v4543 = vclz %v4542
        %v4544 = vsub.s32 %v4543, 2
        %vm4545 = vcmp.gt.s32.totalorder 0, %v4544
        %v4546 = vsel %vm4545, 0, %v4544
        %v4547 = vsub.s32 32, %v4546
        %v4548 = vshll.u32 %v4539, %v4546
        %v4549 = vshrl.u32 %v4531, %v4547
        %v4550 = vor.u32 %v4548, %v4549
        %v4551 = vsub.s32 4294967266, %v4546
        %v4552 = vadd.s32 %v4551, 127
        %v4553 = vshll.u32 %v4552, 23
        %v4554 = vor.u32 4788187, %v4553
        %v4555 = vand.u32 2147483647, %v4554
        %v4557 = vcvt.s32.f32 %v4550
        %v4558 = vmul.f32 %v4557, %v4555
        %v4559 = vxor.u32 %v4558, 2147483648
        %v4560 = vsel %vm4477, %v4559, %v4558
        %v4561 = vsub.s32 4, %v4537
        %v4562 = vsel %vm4477, %v4561, %v4537
        %v4563 = vsel %vm4476, %v401, %v4560
        %v4564 = vsel %vm4476, 0, %v4562
        %v4565 = vcosq.f32.pop %v4563
        %v4566 = vsinq.f32.pop %v4563
        %vm4567 = vweird.f32 %v401
        %v4568 = vand.u32 %v4564, 3
        %vm4569 = vcmp.lt.s32.totalorder %v4568, 2
        %vm4570 = vcmp.eq.s32.totalorder %v4568, 0
        %v4571 = vxor.u32 %v4566, 2147483648
        %v4572 = vsel %vm4570, %v4565, %v4571
        %vm4573 = vcmp.eq.s32.totalorder %v4568, 2
        %v4574 = vxor.u32 %v4565, 2147483648
        %v4575 = vsel %vm4573, %v4574, %v4566
        %v4576 = vsel %vm4569, %v4572, %v4575
        %v4577 = vsel %vm4567, nan, %v4576
        %v4578 = vand.u32 2147483647, %v406
        %vm4579 = vcmp.le.f32.partialorder %v4578, 0.7853982
        %vm4580 = vcmp.lt.s32.totalorder %v406, 0
        %v4581 = vand.u32 %v406, 2139095040
        %v4582 = vshrl.u32 %v4581, 23
        %v4583 = vsub.s32 %v4582, 127
        %v4584 = vand.u32 2147483647, %v406
        %v4585 = vand.u32 %v4584, 8388607
        %v4586 = vor.u32 %v4585, 8388608
        %v4587 = vsub.s32 0, %v4586
        %v4588 = vadd.s32 %v4583, 1
        %vm4589 = vcmp.gt.s32.totalorder %v4588, 0
        %v4590 = vsel %vm4589, %v4588, 0
        %v4591 = vshrl.u32 %v4590, 5
        %v4592 = vand.u32 %v4590, 31
        %v4593 = vsub.s32 32, %v4592
        %v4594 = vshrl.u32 683565275, %v4593
        %v4595 = vshll.u32 683565275, %v4592
        %v4596 = vshrl.u32 2475754826, %v4593
        %v4597 = vor.u32 %v4595, %v4596
        %v4598 = vshll.u32 2475754826, %v4592
        %v4599 = vshrl.u32 2131351028, %v4593
        %v4600 = vor.u32 %v4598, %v4599
        %v4601 = vshll.u32 2131351028, %v4592
        %v4602 = vshrl.u32 2102212464, %v4593
        %v4603 = vor.u32 %v4601, %v4602
        %v4604 = vshll.u32 2102212464, %v4592
        %v4605 = vshrl.u32 920167782, %v4593
        %v4606 = vor.u32 %v4604, %v4605
        %v4607 = vshll.u32 920167782, %v4592
        %v4608 = vshrl.u32 1326507024, %v4593
        %v4609 = vor.u32 %v4607, %v4608
        %vm4610 = vcmp.lt.s32.totalorder %v4591, 1
        %vm4611 = vcmp.lt.s32.totalorder %v4591, 2
        %vm4612 = vcmp.lt.s32.totalorder %v4591, 3
        %vm4613 = vcmp.lt.s32.totalorder %v4591, 4
        %v4614 = vsel %vm4610, %v4594, %v4597
        %v4615 = vsel %vm4613, %v4603, 2102212464
        %v4616 = vsel %vm4612, %v4600, %v4615
        %v4617 = vsel %vm4611, %v4614, %v4616
        %v4618 = vsel %vm4610, %v4597, %v4600
        %v4619 = vsel %vm4613, %v4606, 920167782
        %v4620 = vsel %vm4612, %v4603, %v4619
        %v4621 = vsel %vm4611, %v4618, %v4620
        %v4622 = vsel %vm4610, %v4600, %v4603
        %v4623 = vsel %vm4613, %v4609, 1326507024
        %v4624 = vsel %vm4612, %v4606, %v4623
        %v4625 = vsel %vm4611, %v4622, %v4624
        %v4626 = vshll.u32 %v4586, 8
        %v4627 = vmul.u32.u64.compose %v4626, %v4625
        %v4628 = vextract.low.u32 %v4627
        %v4629 = vextract.high.u32 %v4627
        %v4630 = vmul.u32.u64.compose %v4626, %v4621
        %v4631 = vextract.low.u32 %v4630
        %v4632 = vextract.high.u32 %v4630
        %v4633 = vmul.u32 %v4626, %v4617
        %v4634 = vadd.s32 %v4629, %v4631
        %vm4635 = vc.u32 %v4629, %v4631
        %v4636 = vadd.s32 %v4632, 1
        %v4637 = vsel %vm4635, %v4636, %v4632
        %v4638 = vadd.s32 %v4633, %v4637
        %v4639 = vadd.s32 %v4638, 536870912
        %v4640 = vshrl.u32 %v4639, 30
        %v4641 = vshll.u32 %v4640, 30
        %v4642 = vsub.s32 %v4638, %v4641
        %vm4643 = vcmp.lt.s32.totalorder %v4642, 0
        %v4644 = vsub.s32 0, %v4642
        %v4645 = vsel %vm4643, %v4644, %v4642
        %v4646 = vclz %v4645
        %v4647 = vsub.s32 %v4646, 2
        %vm4648 = vcmp.gt.s32.totalorder 0, %v4647
        %v4649 = vsel %vm4648, 0, %v4647
        %v4650 = vsub.s32 32, %v4649
        %v4651 = vshll.u32 %v4642, %v4649
        %v4652 = vshrl.u32 %v4634, %v4650
        %v4653 = vor.u32 %v4651, %v4652
        %v4654 = vsub.s32 4294967266, %v4649
        %v4655 = vadd.s32 %v4654, 127
        %v4656 = vshll.u32 %v4655, 23
        %v4657 = vor.u32 4788187, %v4656
        %v4658 = vand.u32 2147483647, %v4657
        %v4660 = vcvt.s32.f32 %v4653
        %v4661 = vmul.f32 %v4660, %v4658
        %v4662 = vxor.u32 %v4661, 2147483648
        %v4663 = vsel %vm4580, %v4662, %v4661
        %v4664 = vsub.s32 4, %v4640
        %v4665 = vsel %vm4580, %v4664, %v4640
        %v4666 = vsel %vm4579, %v406, %v4663
        %v4667 = vsel %vm4579, 0, %v4665
        %v4668 = vcosq.f32.pop %v4666
        %v4669 = vsinq.f32.pop %v4666
        %vm4670 = vweird.f32 %v406
        %v4671 = vand.u32 %v4667, 3
        %vm4672 = vcmp.lt.s32.totalorder %v4671, 2
        %vm4673 = vcmp.eq.s32.totalorder %v4671, 0
        %v4674 = vxor.u32 %v4669, 2147483648
        %v4675 = vsel %vm4673, %v4668, %v4674
        %vm4676 = vcmp.eq.s32.totalorder %v4671, 2
        %v4677 = vxor.u32 %v4668, 2147483648
        %v4678 = vsel %vm4676, %v4677, %v4669
        %v4679 = vsel %vm4672, %v4675, %v4678
        %v4680 = vsel %vm4670, nan, %v4679
        %v4681 = vand.u32 2147483647, %v411
        %vm4682 = vcmp.le.f32.partialorder %v4681, 0.7853982
        %vm4683 = vcmp.lt.s32.totalorder %v411, 0
        %v4684 = vand.u32 %v411, 2139095040
        %v4685 = vshrl.u32 %v4684, 23
        %v4686 = vsub.s32 %v4685, 127
        %v4687 = vand.u32 2147483647, %v411
        %v4688 = vand.u32 %v4687, 8388607
        %v4689 = vor.u32 %v4688, 8388608
        %v4690 = vsub.s32 0, %v4689
        %v4691 = vadd.s32 %v4686, 1
        %vm4692 = vcmp.gt.s32.totalorder %v4691, 0
        %v4693 = vsel %vm4692, %v4691, 0
        %v4694 = vshrl.u32 %v4693, 5
        %v4695 = vand.u32 %v4693, 31
        %v4696 = vsub.s32 32, %v4695
        %v4697 = vshrl.u32 683565275, %v4696
        %v4698 = vshll.u32 683565275, %v4695
        %v4699 = vshrl.u32 2475754826, %v4696
        %v4700 = vor.u32 %v4698, %v4699
        %v4701 = vshll.u32 2475754826, %v4695
        %v4702 = vshrl.u32 2131351028, %v4696
        %v4703 = vor.u32 %v4701, %v4702
        %v4704 = vshll.u32 2131351028, %v4695
        %v4705 = vshrl.u32 2102212464, %v4696
        %v4706 = vor.u32 %v4704, %v4705
        %v4707 = vshll.u32 2102212464, %v4695
        %v4708 = vshrl.u32 920167782, %v4696
        %v4709 = vor.u32 %v4707, %v4708
        %v4710 = vshll.u32 920167782, %v4695
        %v4711 = vshrl.u32 1326507024, %v4696
        %v4712 = vor.u32 %v4710, %v4711
        %vm4713 = vcmp.lt.s32.totalorder %v4694, 1
        %vm4714 = vcmp.lt.s32.totalorder %v4694, 2
        %vm4715 = vcmp.lt.s32.totalorder %v4694, 3
        %vm4716 = vcmp.lt.s32.totalorder %v4694, 4
        %v4717 = vsel %vm4713, %v4697, %v4700
        %v4718 = vsel %vm4716, %v4706, 2102212464
        %v4719 = vsel %vm4715, %v4703, %v4718
        %v4720 = vsel %vm4714, %v4717, %v4719
        %v4721 = vsel %vm4713, %v4700, %v4703
        %v4722 = vsel %vm4716, %v4709, 920167782
        %v4723 = vsel %vm4715, %v4706, %v4722
        %v4724 = vsel %vm4714, %v4721, %v4723
        %v4725 = vsel %vm4713, %v4703, %v4706
        %v4726 = vsel %vm4716, %v4712, 1326507024
        %v4727 = vsel %vm4715, %v4709, %v4726
        %v4728 = vsel %vm4714, %v4725, %v4727
        %v4729 = vshll.u32 %v4689, 8
        %v4730 = vmul.u32.u64.compose %v4729, %v4728
        %v4731 = vextract.low.u32 %v4730
        %v4732 = vextract.high.u32 %v4730
        %v4733 = vmul.u32.u64.compose %v4729, %v4724
        %v4734 = vextract.low.u32 %v4733
        %v4735 = vextract.high.u32 %v4733
        %v4736 = vmul.u32 %v4729, %v4720
        %v4737 = vadd.s32 %v4732, %v4734
        %vm4738 = vc.u32 %v4732, %v4734
        %v4739 = vadd.s32 %v4735, 1
        %v4740 = vsel %vm4738, %v4739, %v4735
        %v4741 = vadd.s32 %v4736, %v4740
        %v4742 = vadd.s32 %v4741, 536870912
        %v4743 = vshrl.u32 %v4742, 30
        %v4744 = vshll.u32 %v4743, 30
        %v4745 = vsub.s32 %v4741, %v4744
        %vm4746 = vcmp.lt.s32.totalorder %v4745, 0
        %v4747 = vsub.s32 0, %v4745
        %v4748 = vsel %vm4746, %v4747, %v4745
        %v4749 = vclz %v4748
        %v4750 = vsub.s32 %v4749, 2
        %vm4751 = vcmp.gt.s32.totalorder 0, %v4750
        %v4752 = vsel %vm4751, 0, %v4750
        %v4753 = vsub.s32 32, %v4752
        %v4754 = vshll.u32 %v4745, %v4752
        %v4755 = vshrl.u32 %v4737, %v4753
        %v4756 = vor.u32 %v4754, %v4755
        %v4757 = vsub.s32 4294967266, %v4752
        %v4758 = vadd.s32 %v4757, 127
        %v4759 = vshll.u32 %v4758, 23
        %v4760 = vor.u32 4788187, %v4759
        %v4761 = vand.u32 2147483647, %v4760
        %v4763 = vcvt.s32.f32 %v4756
        %v4764 = vmul.f32 %v4763, %v4761
        %v4765 = vxor.u32 %v4764, 2147483648
        %v4766 = vsel %vm4683, %v4765, %v4764
        %v4767 = vsub.s32 4, %v4743
        %v4768 = vsel %vm4683, %v4767, %v4743
        %v4769 = vsel %vm4682, %v411, %v4766
        %v4770 = vsel %vm4682, 0, %v4768
        %v4771 = vcosq.f32.pop %v4769
        %v4772 = vsinq.f32.pop %v4769
        %vm4773 = vweird.f32 %v411
        %v4774 = vand.u32 %v4770, 3
        %vm4775 = vcmp.lt.s32.totalorder %v4774, 2
        %vm4776 = vcmp.eq.s32.totalorder %v4774, 0
        %v4777 = vxor.u32 %v4772, 2147483648
        %v4778 = vsel %vm4776, %v4771, %v4777
        %vm4779 = vcmp.eq.s32.totalorder %v4774, 2
        %v4780 = vxor.u32 %v4771, 2147483648
        %v4781 = vsel %vm4779, %v4780, %v4772
        %v4782 = vsel %vm4775, %v4778, %v4781
        %v4783 = vsel %vm4773, nan, %v4782
        %v4784 = vand.u32 2147483647, %v416
        %vm4785 = vcmp.le.f32.partialorder %v4784, 0.7853982
        %vm4786 = vcmp.lt.s32.totalorder %v416, 0
        %v4787 = vand.u32 %v416, 2139095040
        %v4788 = vshrl.u32 %v4787, 23
        %v4789 = vsub.s32 %v4788, 127
        %v4790 = vand.u32 2147483647, %v416
        %v4791 = vand.u32 %v4790, 8388607
        %v4792 = vor.u32 %v4791, 8388608
        %v4793 = vsub.s32 0, %v4792
        %v4794 = vadd.s32 %v4789, 1
        %vm4795 = vcmp.gt.s32.totalorder %v4794, 0
        %v4796 = vsel %vm4795, %v4794, 0
        %v4797 = vshrl.u32 %v4796, 5
        %v4798 = vand.u32 %v4796, 31
        %v4799 = vsub.s32 32, %v4798
        %v4800 = vshrl.u32 683565275, %v4799
        %v4801 = vshll.u32 683565275, %v4798
        %v4802 = vshrl.u32 2475754826, %v4799
        %v4803 = vor.u32 %v4801, %v4802
        %v4804 = vshll.u32 2475754826, %v4798
        %v4805 = vshrl.u32 2131351028, %v4799
        %v4806 = vor.u32 %v4804, %v4805
        %v4807 = vshll.u32 2131351028, %v4798
        %v4808 = vshrl.u32 2102212464, %v4799
        %v4809 = vor.u32 %v4807, %v4808
        %v4810 = vshll.u32 2102212464, %v4798
        %v4811 = vshrl.u32 920167782, %v4799
        %v4812 = vor.u32 %v4810, %v4811
        %v4813 = vshll.u32 920167782, %v4798
        %v4814 = vshrl.u32 1326507024, %v4799
        %v4815 = vor.u32 %v4813, %v4814
        %vm4816 = vcmp.lt.s32.totalorder %v4797, 1
        %vm4817 = vcmp.lt.s32.totalorder %v4797, 2
        %vm4818 = vcmp.lt.s32.totalorder %v4797, 3
        %vm4819 = vcmp.lt.s32.totalorder %v4797, 4
        %v4820 = vsel %vm4816, %v4800, %v4803
        %v4821 = vsel %vm4819, %v4809, 2102212464
        %v4822 = vsel %vm4818, %v4806, %v4821
        %v4823 = vsel %vm4817, %v4820, %v4822
        %v4824 = vsel %vm4816, %v4803, %v4806
        %v4825 = vsel %vm4819, %v4812, 920167782
        %v4826 = vsel %vm4818, %v4809, %v4825
        %v4827 = vsel %vm4817, %v4824, %v4826
        %v4828 = vsel %vm4816, %v4806, %v4809
        %v4829 = vsel %vm4819, %v4815, 1326507024
        %v4830 = vsel %vm4818, %v4812, %v4829
        %v4831 = vsel %vm4817, %v4828, %v4830
        %v4832 = vshll.u32 %v4792, 8
        %v4833 = vmul.u32.u64.compose %v4832, %v4831
        %v4834 = vextract.low.u32 %v4833
        %v4835 = vextract.high.u32 %v4833
        %v4836 = vmul.u32.u64.compose %v4832, %v4827
        %v4837 = vextract.low.u32 %v4836
        %v4838 = vextract.high.u32 %v4836
        %v4839 = vmul.u32 %v4832, %v4823
        %v4840 = vadd.s32 %v4835, %v4837
        %vm4841 = vc.u32 %v4835, %v4837
        %v4842 = vadd.s32 %v4838, 1
        %v4843 = vsel %vm4841, %v4842, %v4838
        %v4844 = vadd.s32 %v4839, %v4843
        %v4845 = vadd.s32 %v4844, 536870912
        %v4846 = vshrl.u32 %v4845, 30
        %v4847 = vshll.u32 %v4846, 30
        %v4848 = vsub.s32 %v4844, %v4847
        %vm4849 = vcmp.lt.s32.totalorder %v4848, 0
        %v4850 = vsub.s32 0, %v4848
        %v4851 = vsel %vm4849, %v4850, %v4848
        %v4852 = vclz %v4851
        %v4853 = vsub.s32 %v4852, 2
        %vm4854 = vcmp.gt.s32.totalorder 0, %v4853
        %v4855 = vsel %vm4854, 0, %v4853
        %v4856 = vsub.s32 32, %v4855
        %v4857 = vshll.u32 %v4848, %v4855
        %v4858 = vshrl.u32 %v4840, %v4856
        %v4859 = vor.u32 %v4857, %v4858
        %v4860 = vsub.s32 4294967266, %v4855
        %v4861 = vadd.s32 %v4860, 127
        %v4862 = vshll.u32 %v4861, 23
        %v4863 = vor.u32 4788187, %v4862
        %v4864 = vand.u32 2147483647, %v4863
        %v4866 = vcvt.s32.f32 %v4859
        %v4867 = vmul.f32 %v4866, %v4864
        %v4868 = vxor.u32 %v4867, 2147483648
        %v4869 = vsel %vm4786, %v4868, %v4867
        %v4870 = vsub.s32 4, %v4846
        %v4871 = vsel %vm4786, %v4870, %v4846
        %v4872 = vsel %vm4785, %v416, %v4869
        %v4873 = vsel %vm4785, 0, %v4871
        %v4874 = vcosq.f32.pop %v4872
        %v4875 = vsinq.f32.pop %v4872
        %vm4876 = vweird.f32 %v416
        %v4877 = vand.u32 %v4873, 3
        %vm4878 = vcmp.lt.s32.totalorder %v4877, 2
        %vm4879 = vcmp.eq.s32.totalorder %v4877, 0
        %v4880 = vxor.u32 %v4875, 2147483648
        %v4881 = vsel %vm4879, %v4874, %v4880
        %vm4882 = vcmp.eq.s32.totalorder %v4877, 2
        %v4883 = vxor.u32 %v4874, 2147483648
        %v4884 = vsel %vm4882, %v4883, %v4875
        %v4885 = vsel %vm4878, %v4881, %v4884
        %v4886 = vsel %vm4876, nan, %v4885
        %v4887 = vand.u32 2147483647, %v421
        %vm4888 = vcmp.le.f32.partialorder %v4887, 0.7853982
        %vm4889 = vcmp.lt.s32.totalorder %v421, 0
        %v4890 = vand.u32 %v421, 2139095040
        %v4891 = vshrl.u32 %v4890, 23
        %v4892 = vsub.s32 %v4891, 127
        %v4893 = vand.u32 2147483647, %v421
        %v4894 = vand.u32 %v4893, 8388607
        %v4895 = vor.u32 %v4894, 8388608
        %v4896 = vsub.s32 0, %v4895
        %v4897 = vadd.s32 %v4892, 1
        %vm4898 = vcmp.gt.s32.totalorder %v4897, 0
        %v4899 = vsel %vm4898, %v4897, 0
        %v4900 = vshrl.u32 %v4899, 5
        %v4901 = vand.u32 %v4899, 31
        %v4902 = vsub.s32 32, %v4901
        %v4903 = vshrl.u32 683565275, %v4902
        %v4904 = vshll.u32 683565275, %v4901
        %v4905 = vshrl.u32 2475754826, %v4902
        %v4906 = vor.u32 %v4904, %v4905
        %v4907 = vshll.u32 2475754826, %v4901
        %v4908 = vshrl.u32 2131351028, %v4902
        %v4909 = vor.u32 %v4907, %v4908
        %v4910 = vshll.u32 2131351028, %v4901
        %v4911 = vshrl.u32 2102212464, %v4902
        %v4912 = vor.u32 %v4910, %v4911
        %v4913 = vshll.u32 2102212464, %v4901
        %v4914 = vshrl.u32 920167782, %v4902
        %v4915 = vor.u32 %v4913, %v4914
        %v4916 = vshll.u32 920167782, %v4901
        %v4917 = vshrl.u32 1326507024, %v4902
        %v4918 = vor.u32 %v4916, %v4917
        %vm4919 = vcmp.lt.s32.totalorder %v4900, 1
        %vm4920 = vcmp.lt.s32.totalorder %v4900, 2
        %vm4921 = vcmp.lt.s32.totalorder %v4900, 3
        %vm4922 = vcmp.lt.s32.totalorder %v4900, 4
        %v4923 = vsel %vm4919, %v4903, %v4906
        %v4924 = vsel %vm4922, %v4912, 2102212464
        %v4925 = vsel %vm4921, %v4909, %v4924
        %v4926 = vsel %vm4920, %v4923, %v4925
        %v4927 = vsel %vm4919, %v4906, %v4909
        %v4928 = vsel %vm4922, %v4915, 920167782
        %v4929 = vsel %vm4921, %v4912, %v4928
        %v4930 = vsel %vm4920, %v4927, %v4929
        %v4931 = vsel %vm4919, %v4909, %v4912
        %v4932 = vsel %vm4922, %v4918, 1326507024
        %v4933 = vsel %vm4921, %v4915, %v4932
        %v4934 = vsel %vm4920, %v4931, %v4933
        %v4935 = vshll.u32 %v4895, 8
        %v4936 = vmul.u32.u64.compose %v4935, %v4934
        %v4937 = vextract.low.u32 %v4936
        %v4938 = vextract.high.u32 %v4936
        %v4939 = vmul.u32.u64.compose %v4935, %v4930
        %v4940 = vextract.low.u32 %v4939
        %v4941 = vextract.high.u32 %v4939
        %v4942 = vmul.u32 %v4935, %v4926
        %v4943 = vadd.s32 %v4938, %v4940
        %vm4944 = vc.u32 %v4938, %v4940
        %v4945 = vadd.s32 %v4941, 1
        %v4946 = vsel %vm4944, %v4945, %v4941
        %v4947 = vadd.s32 %v4942, %v4946
        %v4948 = vadd.s32 %v4947, 536870912
        %v4949 = vshrl.u32 %v4948, 30
        %v4950 = vshll.u32 %v4949, 30
        %v4951 = vsub.s32 %v4947, %v4950
        %vm4952 = vcmp.lt.s32.totalorder %v4951, 0
        %v4953 = vsub.s32 0, %v4951
        %v4954 = vsel %vm4952, %v4953, %v4951
        %v4955 = vclz %v4954
        %v4956 = vsub.s32 %v4955, 2
        %vm4957 = vcmp.gt.s32.totalorder 0, %v4956
        %v4958 = vsel %vm4957, 0, %v4956
        %v4959 = vsub.s32 32, %v4958
        %v4960 = vshll.u32 %v4951, %v4958
        %v4961 = vshrl.u32 %v4943, %v4959
        %v4962 = vor.u32 %v4960, %v4961
        %v4963 = vsub.s32 4294967266, %v4958
        %v4964 = vadd.s32 %v4963, 127
        %v4965 = vshll.u32 %v4964, 23
        %v4966 = vor.u32 4788187, %v4965
        %v4967 = vand.u32 2147483647, %v4966
        %v4969 = vcvt.s32.f32 %v4962
        %v4970 = vmul.f32 %v4969, %v4967
        %v4971 = vxor.u32 %v4970, 2147483648
        %v4972 = vsel %vm4889, %v4971, %v4970
        %v4973 = vsub.s32 4, %v4949
        %v4974 = vsel %vm4889, %v4973, %v4949
        %v4975 = vsel %vm4888, %v421, %v4972
        %v4976 = vsel %vm4888, 0, %v4974
        %v4977 = vcosq.f32.pop %v4975
        %v4978 = vsinq.f32.pop %v4975
        %vm4979 = vweird.f32 %v421
        %v4980 = vand.u32 %v4976, 3
        %vm4981 = vcmp.lt.s32.totalorder %v4980, 2
        %vm4982 = vcmp.eq.s32.totalorder %v4980, 0
        %v4983 = vxor.u32 %v4978, 2147483648
        %v4984 = vsel %vm4982, %v4977, %v4983
        %vm4985 = vcmp.eq.s32.totalorder %v4980, 2
        %v4986 = vxor.u32 %v4977, 2147483648
        %v4987 = vsel %vm4985, %v4986, %v4978
        %v4988 = vsel %vm4981, %v4984, %v4987
        %v4989 = vsel %vm4979, nan, %v4988
        %v4990 = vand.u32 2147483647, %v426
        %vm4991 = vcmp.le.f32.partialorder %v4990, 0.7853982
        %vm4992 = vcmp.lt.s32.totalorder %v426, 0
        %v4993 = vand.u32 %v426, 2139095040
        %v4994 = vshrl.u32 %v4993, 23
        %v4995 = vsub.s32 %v4994, 127
        %v4996 = vand.u32 2147483647, %v426
        %v4997 = vand.u32 %v4996, 8388607
        %v4998 = vor.u32 %v4997, 8388608
        %v4999 = vsub.s32 0, %v4998
        %v5000 = vadd.s32 %v4995, 1
        %vm5001 = vcmp.gt.s32.totalorder %v5000, 0
        %v5002 = vsel %vm5001, %v5000, 0
        %v5003 = vshrl.u32 %v5002, 5
        %v5004 = vand.u32 %v5002, 31
        %v5005 = vsub.s32 32, %v5004
        %v5006 = vshrl.u32 683565275, %v5005
        %v5007 = vshll.u32 683565275, %v5004
        %v5008 = vshrl.u32 2475754826, %v5005
        %v5009 = vor.u32 %v5007, %v5008
        %v5010 = vshll.u32 2475754826, %v5004
        %v5011 = vshrl.u32 2131351028, %v5005
        %v5012 = vor.u32 %v5010, %v5011
        %v5013 = vshll.u32 2131351028, %v5004
        %v5014 = vshrl.u32 2102212464, %v5005
        %v5015 = vor.u32 %v5013, %v5014
        %v5016 = vshll.u32 2102212464, %v5004
        %v5017 = vshrl.u32 920167782, %v5005
        %v5018 = vor.u32 %v5016, %v5017
        %v5019 = vshll.u32 920167782, %v5004
        %v5020 = vshrl.u32 1326507024, %v5005
        %v5021 = vor.u32 %v5019, %v5020
        %vm5022 = vcmp.lt.s32.totalorder %v5003, 1
        %vm5023 = vcmp.lt.s32.totalorder %v5003, 2
        %vm5024 = vcmp.lt.s32.totalorder %v5003, 3
        %vm5025 = vcmp.lt.s32.totalorder %v5003, 4
        %v5026 = vsel %vm5022, %v5006, %v5009
        %v5027 = vsel %vm5025, %v5015, 2102212464
        %v5028 = vsel %vm5024, %v5012, %v5027
        %v5029 = vsel %vm5023, %v5026, %v5028
        %v5030 = vsel %vm5022, %v5009, %v5012
        %v5031 = vsel %vm5025, %v5018, 920167782
        %v5032 = vsel %vm5024, %v5015, %v5031
        %v5033 = vsel %vm5023, %v5030, %v5032
        %v5034 = vsel %vm5022, %v5012, %v5015
        %v5035 = vsel %vm5025, %v5021, 1326507024
        %v5036 = vsel %vm5024, %v5018, %v5035
        %v5037 = vsel %vm5023, %v5034, %v5036
        %v5038 = vshll.u32 %v4998, 8
        %v5039 = vmul.u32.u64.compose %v5038, %v5037
        %v5040 = vextract.low.u32 %v5039
        %v5041 = vextract.high.u32 %v5039
        %v5042 = vmul.u32.u64.compose %v5038, %v5033
        %v5043 = vextract.low.u32 %v5042
        %v5044 = vextract.high.u32 %v5042
        %v5045 = vmul.u32 %v5038, %v5029
        %v5046 = vadd.s32 %v5041, %v5043
        %vm5047 = vc.u32 %v5041, %v5043
        %v5048 = vadd.s32 %v5044, 1
        %v5049 = vsel %vm5047, %v5048, %v5044
        %v5050 = vadd.s32 %v5045, %v5049
        %v5051 = vadd.s32 %v5050, 536870912
        %v5052 = vshrl.u32 %v5051, 30
        %v5053 = vshll.u32 %v5052, 30
        %v5054 = vsub.s32 %v5050, %v5053
        %vm5055 = vcmp.lt.s32.totalorder %v5054, 0
        %v5056 = vsub.s32 0, %v5054
        %v5057 = vsel %vm5055, %v5056, %v5054
        %v5058 = vclz %v5057
        %v5059 = vsub.s32 %v5058, 2
        %vm5060 = vcmp.gt.s32.totalorder 0, %v5059
        %v5061 = vsel %vm5060, 0, %v5059
        %v5062 = vsub.s32 32, %v5061
        %v5063 = vshll.u32 %v5054, %v5061
        %v5064 = vshrl.u32 %v5046, %v5062
        %v5065 = vor.u32 %v5063, %v5064
        %v5066 = vsub.s32 4294967266, %v5061
        %v5067 = vadd.s32 %v5066, 127
        %v5068 = vshll.u32 %v5067, 23
        %v5069 = vor.u32 4788187, %v5068
        %v5070 = vand.u32 2147483647, %v5069
        %v5072 = vcvt.s32.f32 %v5065
        %v5073 = vmul.f32 %v5072, %v5070
        %v5074 = vxor.u32 %v5073, 2147483648
        %v5075 = vsel %vm4992, %v5074, %v5073
        %v5076 = vsub.s32 4, %v5052
        %v5077 = vsel %vm4992, %v5076, %v5052
        %v5078 = vsel %vm4991, %v426, %v5075
        %v5079 = vsel %vm4991, 0, %v5077
        %v5080 = vcosq.f32.pop %v5078
        %v5081 = vsinq.f32.pop %v5078
        %vm5082 = vweird.f32 %v426
        %v5083 = vand.u32 %v5079, 3
        %vm5084 = vcmp.lt.s32.totalorder %v5083, 2
        %vm5085 = vcmp.eq.s32.totalorder %v5083, 0
        %v5086 = vxor.u32 %v5081, 2147483648
        %v5087 = vsel %vm5085, %v5080, %v5086
        %vm5088 = vcmp.eq.s32.totalorder %v5083, 2
        %v5089 = vxor.u32 %v5080, 2147483648
        %v5090 = vsel %vm5088, %v5089, %v5081
        %v5091 = vsel %vm5084, %v5087, %v5090
        %v5092 = vsel %vm5082, nan, %v5091
        %v5093 = vand.u32 2147483647, %v431
        %vm5094 = vcmp.le.f32.partialorder %v5093, 0.7853982
        %vm5095 = vcmp.lt.s32.totalorder %v431, 0
        %v5096 = vand.u32 %v431, 2139095040
        %v5097 = vshrl.u32 %v5096, 23
        %v5098 = vsub.s32 %v5097, 127
        %v5099 = vand.u32 2147483647, %v431
        %v5100 = vand.u32 %v5099, 8388607
        %v5101 = vor.u32 %v5100, 8388608
        %v5102 = vsub.s32 0, %v5101
        %v5103 = vadd.s32 %v5098, 1
        %vm5104 = vcmp.gt.s32.totalorder %v5103, 0
        %v5105 = vsel %vm5104, %v5103, 0
        %v5106 = vshrl.u32 %v5105, 5
        %v5107 = vand.u32 %v5105, 31
        %v5108 = vsub.s32 32, %v5107
        %v5109 = vshrl.u32 683565275, %v5108
        %v5110 = vshll.u32 683565275, %v5107
        %v5111 = vshrl.u32 2475754826, %v5108
        %v5112 = vor.u32 %v5110, %v5111
        %v5113 = vshll.u32 2475754826, %v5107
        %v5114 = vshrl.u32 2131351028, %v5108
        %v5115 = vor.u32 %v5113, %v5114
        %v5116 = vshll.u32 2131351028, %v5107
        %v5117 = vshrl.u32 2102212464, %v5108
        %v5118 = vor.u32 %v5116, %v5117
        %v5119 = vshll.u32 2102212464, %v5107
        %v5120 = vshrl.u32 920167782, %v5108
        %v5121 = vor.u32 %v5119, %v5120
        %v5122 = vshll.u32 920167782, %v5107
        %v5123 = vshrl.u32 1326507024, %v5108
        %v5124 = vor.u32 %v5122, %v5123
        %vm5125 = vcmp.lt.s32.totalorder %v5106, 1
        %vm5126 = vcmp.lt.s32.totalorder %v5106, 2
        %vm5127 = vcmp.lt.s32.totalorder %v5106, 3
        %vm5128 = vcmp.lt.s32.totalorder %v5106, 4
        %v5129 = vsel %vm5125, %v5109, %v5112
        %v5130 = vsel %vm5128, %v5118, 2102212464
        %v5131 = vsel %vm5127, %v5115, %v5130
        %v5132 = vsel %vm5126, %v5129, %v5131
        %v5133 = vsel %vm5125, %v5112, %v5115
        %v5134 = vsel %vm5128, %v5121, 920167782
        %v5135 = vsel %vm5127, %v5118, %v5134
        %v5136 = vsel %vm5126, %v5133, %v5135
        %v5137 = vsel %vm5125, %v5115, %v5118
        %v5138 = vsel %vm5128, %v5124, 1326507024
        %v5139 = vsel %vm5127, %v5121, %v5138
        %v5140 = vsel %vm5126, %v5137, %v5139
        %v5141 = vshll.u32 %v5101, 8
        %v5142 = vmul.u32.u64.compose %v5141, %v5140
        %v5143 = vextract.low.u32 %v5142
        %v5144 = vextract.high.u32 %v5142
        %v5145 = vmul.u32.u64.compose %v5141, %v5136
        %v5146 = vextract.low.u32 %v5145
        %v5147 = vextract.high.u32 %v5145
        %v5148 = vmul.u32 %v5141, %v5132
        %v5149 = vadd.s32 %v5144, %v5146
        %vm5150 = vc.u32 %v5144, %v5146
        %v5151 = vadd.s32 %v5147, 1
        %v5152 = vsel %vm5150, %v5151, %v5147
        %v5153 = vadd.s32 %v5148, %v5152
        %v5154 = vadd.s32 %v5153, 536870912
        %v5155 = vshrl.u32 %v5154, 30
        %v5156 = vshll.u32 %v5155, 30
        %v5157 = vsub.s32 %v5153, %v5156
        %vm5158 = vcmp.lt.s32.totalorder %v5157, 0
        %v5159 = vsub.s32 0, %v5157
        %v5160 = vsel %vm5158, %v5159, %v5157
        %v5161 = vclz %v5160
        %v5162 = vsub.s32 %v5161, 2
        %vm5163 = vcmp.gt.s32.totalorder 0, %v5162
        %v5164 = vsel %vm5163, 0, %v5162
        %v5165 = vsub.s32 32, %v5164
        %v5166 = vshll.u32 %v5157, %v5164
        %v5167 = vshrl.u32 %v5149, %v5165
        %v5168 = vor.u32 %v5166, %v5167
        %v5169 = vsub.s32 4294967266, %v5164
        %v5170 = vadd.s32 %v5169, 127
        %v5171 = vshll.u32 %v5170, 23
        %v5172 = vor.u32 4788187, %v5171
        %v5173 = vand.u32 2147483647, %v5172
        %v5175 = vcvt.s32.f32 %v5168
        %v5176 = vmul.f32 %v5175, %v5173
        %v5177 = vxor.u32 %v5176, 2147483648
        %v5178 = vsel %vm5095, %v5177, %v5176
        %v5179 = vsub.s32 4, %v5155
        %v5180 = vsel %vm5095, %v5179, %v5155
        %v5181 = vsel %vm5094, %v431, %v5178
        %v5182 = vsel %vm5094, 0, %v5180
        %v5183 = vcosq.f32.pop %v5181
        %v5184 = vsinq.f32.pop %v5181
        %vm5185 = vweird.f32 %v431
        %v5186 = vand.u32 %v5182, 3
        %vm5187 = vcmp.lt.s32.totalorder %v5186, 2
        %vm5188 = vcmp.eq.s32.totalorder %v5186, 0
        %v5189 = vxor.u32 %v5184, 2147483648
        %v5190 = vsel %vm5188, %v5183, %v5189
        %vm5191 = vcmp.eq.s32.totalorder %v5186, 2
        %v5192 = vxor.u32 %v5183, 2147483648
        %v5193 = vsel %vm5191, %v5192, %v5184
        %v5194 = vsel %vm5187, %v5190, %v5193
        %v5195 = vsel %vm5185, nan, %v5194
        %v5196 = vand.u32 2147483647, %v436
        %vm5197 = vcmp.le.f32.partialorder %v5196, 0.7853982
        %vm5198 = vcmp.lt.s32.totalorder %v436, 0
        %v5199 = vand.u32 %v436, 2139095040
        %v5200 = vshrl.u32 %v5199, 23
        %v5201 = vsub.s32 %v5200, 127
        %v5202 = vand.u32 2147483647, %v436
        %v5203 = vand.u32 %v5202, 8388607
        %v5204 = vor.u32 %v5203, 8388608
        %v5205 = vsub.s32 0, %v5204
        %v5206 = vadd.s32 %v5201, 1
        %vm5207 = vcmp.gt.s32.totalorder %v5206, 0
        %v5208 = vsel %vm5207, %v5206, 0
        %v5209 = vshrl.u32 %v5208, 5
        %v5210 = vand.u32 %v5208, 31
        %v5211 = vsub.s32 32, %v5210
        %v5212 = vshrl.u32 683565275, %v5211
        %v5213 = vshll.u32 683565275, %v5210
        %v5214 = vshrl.u32 2475754826, %v5211
        %v5215 = vor.u32 %v5213, %v5214
        %v5216 = vshll.u32 2475754826, %v5210
        %v5217 = vshrl.u32 2131351028, %v5211
        %v5218 = vor.u32 %v5216, %v5217
        %v5219 = vshll.u32 2131351028, %v5210
        %v5220 = vshrl.u32 2102212464, %v5211
        %v5221 = vor.u32 %v5219, %v5220
        %v5222 = vshll.u32 2102212464, %v5210
        %v5223 = vshrl.u32 920167782, %v5211
        %v5224 = vor.u32 %v5222, %v5223
        %v5225 = vshll.u32 920167782, %v5210
        %v5226 = vshrl.u32 1326507024, %v5211
        %v5227 = vor.u32 %v5225, %v5226
        %vm5228 = vcmp.lt.s32.totalorder %v5209, 1
        %vm5229 = vcmp.lt.s32.totalorder %v5209, 2
        %vm5230 = vcmp.lt.s32.totalorder %v5209, 3
        %vm5231 = vcmp.lt.s32.totalorder %v5209, 4
        %v5232 = vsel %vm5228, %v5212, %v5215
        %v5233 = vsel %vm5231, %v5221, 2102212464
        %v5234 = vsel %vm5230, %v5218, %v5233
        %v5235 = vsel %vm5229, %v5232, %v5234
        %v5236 = vsel %vm5228, %v5215, %v5218
        %v5237 = vsel %vm5231, %v5224, 920167782
        %v5238 = vsel %vm5230, %v5221, %v5237
        %v5239 = vsel %vm5229, %v5236, %v5238
        %v5240 = vsel %vm5228, %v5218, %v5221
        %v5241 = vsel %vm5231, %v5227, 1326507024
        %v5242 = vsel %vm5230, %v5224, %v5241
        %v5243 = vsel %vm5229, %v5240, %v5242
        %v5244 = vshll.u32 %v5204, 8
        %v5245 = vmul.u32.u64.compose %v5244, %v5243
        %v5246 = vextract.low.u32 %v5245
        %v5247 = vextract.high.u32 %v5245
        %v5248 = vmul.u32.u64.compose %v5244, %v5239
        %v5249 = vextract.low.u32 %v5248
        %v5250 = vextract.high.u32 %v5248
        %v5251 = vmul.u32 %v5244, %v5235
        %v5252 = vadd.s32 %v5247, %v5249
        %vm5253 = vc.u32 %v5247, %v5249
        %v5254 = vadd.s32 %v5250, 1
        %v5255 = vsel %vm5253, %v5254, %v5250
        %v5256 = vadd.s32 %v5251, %v5255
        %v5257 = vadd.s32 %v5256, 536870912
        %v5258 = vshrl.u32 %v5257, 30
        %v5259 = vshll.u32 %v5258, 30
        %v5260 = vsub.s32 %v5256, %v5259
        %vm5261 = vcmp.lt.s32.totalorder %v5260, 0
        %v5262 = vsub.s32 0, %v5260
        %v5263 = vsel %vm5261, %v5262, %v5260
        %v5264 = vclz %v5263
        %v5265 = vsub.s32 %v5264, 2
        %vm5266 = vcmp.gt.s32.totalorder 0, %v5265
        %v5267 = vsel %vm5266, 0, %v5265
        %v5268 = vsub.s32 32, %v5267
        %v5269 = vshll.u32 %v5260, %v5267
        %v5270 = vshrl.u32 %v5252, %v5268
        %v5271 = vor.u32 %v5269, %v5270
        %v5272 = vsub.s32 4294967266, %v5267
        %v5273 = vadd.s32 %v5272, 127
        %v5274 = vshll.u32 %v5273, 23
        %v5275 = vor.u32 4788187, %v5274
        %v5276 = vand.u32 2147483647, %v5275
        %v5278 = vcvt.s32.f32 %v5271
        %v5279 = vmul.f32 %v5278, %v5276
        %v5280 = vxor.u32 %v5279, 2147483648
        %v5281 = vsel %vm5198, %v5280, %v5279
        %v5282 = vsub.s32 4, %v5258
        %v5283 = vsel %vm5198, %v5282, %v5258
        %v5284 = vsel %vm5197, %v436, %v5281
        %v5285 = vsel %vm5197, 0, %v5283
        %v5286 = vcosq.f32.pop %v5284
        %v5287 = vsinq.f32.pop %v5284
        %vm5288 = vweird.f32 %v436
        %v5289 = vand.u32 %v5285, 3
        %vm5290 = vcmp.lt.s32.totalorder %v5289, 2
        %vm5291 = vcmp.eq.s32.totalorder %v5289, 0
        %v5292 = vxor.u32 %v5287, 2147483648
        %v5293 = vsel %vm5291, %v5286, %v5292
        %vm5294 = vcmp.eq.s32.totalorder %v5289, 2
        %v5295 = vxor.u32 %v5286, 2147483648
        %v5296 = vsel %vm5294, %v5295, %v5287
        %v5297 = vsel %vm5290, %v5293, %v5296
        %v5298 = vsel %vm5288, nan, %v5297
        %v5299 = vand.u32 2147483647, %v441
        %vm5300 = vcmp.le.f32.partialorder %v5299, 0.7853982
        %vm5301 = vcmp.lt.s32.totalorder %v441, 0
        %v5302 = vand.u32 %v441, 2139095040
        %v5303 = vshrl.u32 %v5302, 23
        %v5304 = vsub.s32 %v5303, 127
        %v5305 = vand.u32 2147483647, %v441
        %v5306 = vand.u32 %v5305, 8388607
        %v5307 = vor.u32 %v5306, 8388608
        %v5308 = vsub.s32 0, %v5307
        %v5309 = vadd.s32 %v5304, 1
        %vm5310 = vcmp.gt.s32.totalorder %v5309, 0
        %v5311 = vsel %vm5310, %v5309, 0
        %v5312 = vshrl.u32 %v5311, 5
        %v5313 = vand.u32 %v5311, 31
        %v5314 = vsub.s32 32, %v5313
        %v5315 = vshrl.u32 683565275, %v5314
        %v5316 = vshll.u32 683565275, %v5313
        %v5317 = vshrl.u32 2475754826, %v5314
        %v5318 = vor.u32 %v5316, %v5317
        %v5319 = vshll.u32 2475754826, %v5313
        %v5320 = vshrl.u32 2131351028, %v5314
        %v5321 = vor.u32 %v5319, %v5320
        %v5322 = vshll.u32 2131351028, %v5313
        %v5323 = vshrl.u32 2102212464, %v5314
        %v5324 = vor.u32 %v5322, %v5323
        %v5325 = vshll.u32 2102212464, %v5313
        %v5326 = vshrl.u32 920167782, %v5314
        %v5327 = vor.u32 %v5325, %v5326
        %v5328 = vshll.u32 920167782, %v5313
        %v5329 = vshrl.u32 1326507024, %v5314
        %v5330 = vor.u32 %v5328, %v5329
        %vm5331 = vcmp.lt.s32.totalorder %v5312, 1
        %vm5332 = vcmp.lt.s32.totalorder %v5312, 2
        %vm5333 = vcmp.lt.s32.totalorder %v5312, 3
        %vm5334 = vcmp.lt.s32.totalorder %v5312, 4
        %v5335 = vsel %vm5331, %v5315, %v5318
        %v5336 = vsel %vm5334, %v5324, 2102212464
        %v5337 = vsel %vm5333, %v5321, %v5336
        %v5338 = vsel %vm5332, %v5335, %v5337
        %v5339 = vsel %vm5331, %v5318, %v5321
        %v5340 = vsel %vm5334, %v5327, 920167782
        %v5341 = vsel %vm5333, %v5324, %v5340
        %v5342 = vsel %vm5332, %v5339, %v5341
        %v5343 = vsel %vm5331, %v5321, %v5324
        %v5344 = vsel %vm5334, %v5330, 1326507024
        %v5345 = vsel %vm5333, %v5327, %v5344
        %v5346 = vsel %vm5332, %v5343, %v5345
        %v5347 = vshll.u32 %v5307, 8
        %v5348 = vmul.u32.u64.compose %v5347, %v5346
        %v5349 = vextract.low.u32 %v5348
        %v5350 = vextract.high.u32 %v5348
        %v5351 = vmul.u32.u64.compose %v5347, %v5342
        %v5352 = vextract.low.u32 %v5351
        %v5353 = vextract.high.u32 %v5351
        %v5354 = vmul.u32 %v5347, %v5338
        %v5355 = vadd.s32 %v5350, %v5352
        %vm5356 = vc.u32 %v5350, %v5352
        %v5357 = vadd.s32 %v5353, 1
        %v5358 = vsel %vm5356, %v5357, %v5353
        %v5359 = vadd.s32 %v5354, %v5358
        %v5360 = vadd.s32 %v5359, 536870912
        %v5361 = vshrl.u32 %v5360, 30
        %v5362 = vshll.u32 %v5361, 30
        %v5363 = vsub.s32 %v5359, %v5362
        %vm5364 = vcmp.lt.s32.totalorder %v5363, 0
        %v5365 = vsub.s32 0, %v5363
        %v5366 = vsel %vm5364, %v5365, %v5363
        %v5367 = vclz %v5366
        %v5368 = vsub.s32 %v5367, 2
        %vm5369 = vcmp.gt.s32.totalorder 0, %v5368
        %v5370 = vsel %vm5369, 0, %v5368
        %v5371 = vsub.s32 32, %v5370
        %v5372 = vshll.u32 %v5363, %v5370
        %v5373 = vshrl.u32 %v5355, %v5371
        %v5374 = vor.u32 %v5372, %v5373
        %v5375 = vsub.s32 4294967266, %v5370
        %v5376 = vadd.s32 %v5375, 127
        %v5377 = vshll.u32 %v5376, 23
        %v5378 = vor.u32 4788187, %v5377
        %v5379 = vand.u32 2147483647, %v5378
        %v5381 = vcvt.s32.f32 %v5374
        %v5382 = vmul.f32 %v5381, %v5379
        %v5383 = vxor.u32 %v5382, 2147483648
        %v5384 = vsel %vm5301, %v5383, %v5382
        %v5385 = vsub.s32 4, %v5361
        %v5386 = vsel %vm5301, %v5385, %v5361
        %v5387 = vsel %vm5300, %v441, %v5384
        %v5388 = vsel %vm5300, 0, %v5386
        %v5389 = vcosq.f32.pop %v5387
        %v5390 = vsinq.f32.pop %v5387
        %vm5391 = vweird.f32 %v441
        %v5392 = vand.u32 %v5388, 3
        %vm5393 = vcmp.lt.s32.totalorder %v5392, 2
        %vm5394 = vcmp.eq.s32.totalorder %v5392, 0
        %v5395 = vxor.u32 %v5390, 2147483648
        %v5396 = vsel %vm5394, %v5389, %v5395
        %vm5397 = vcmp.eq.s32.totalorder %v5392, 2
        %v5398 = vxor.u32 %v5389, 2147483648
        %v5399 = vsel %vm5397, %v5398, %v5390
        %v5400 = vsel %vm5393, %v5396, %v5399
        %v5401 = vsel %vm5391, nan, %v5400
        %v5402 = vand.u32 2147483647, %v446
        %vm5403 = vcmp.le.f32.partialorder %v5402, 0.7853982
        %vm5404 = vcmp.lt.s32.totalorder %v446, 0
        %v5405 = vand.u32 %v446, 2139095040
        %v5406 = vshrl.u32 %v5405, 23
        %v5407 = vsub.s32 %v5406, 127
        %v5408 = vand.u32 2147483647, %v446
        %v5409 = vand.u32 %v5408, 8388607
        %v5410 = vor.u32 %v5409, 8388608
        %v5411 = vsub.s32 0, %v5410
        %v5412 = vadd.s32 %v5407, 1
        %vm5413 = vcmp.gt.s32.totalorder %v5412, 0
        %v5414 = vsel %vm5413, %v5412, 0
        %v5415 = vshrl.u32 %v5414, 5
        %v5416 = vand.u32 %v5414, 31
        %v5417 = vsub.s32 32, %v5416
        %v5418 = vshrl.u32 683565275, %v5417
        %v5419 = vshll.u32 683565275, %v5416
        %v5420 = vshrl.u32 2475754826, %v5417
        %v5421 = vor.u32 %v5419, %v5420
        %v5422 = vshll.u32 2475754826, %v5416
        %v5423 = vshrl.u32 2131351028, %v5417
        %v5424 = vor.u32 %v5422, %v5423
        %v5425 = vshll.u32 2131351028, %v5416
        %v5426 = vshrl.u32 2102212464, %v5417
        %v5427 = vor.u32 %v5425, %v5426
        %v5428 = vshll.u32 2102212464, %v5416
        %v5429 = vshrl.u32 920167782, %v5417
        %v5430 = vor.u32 %v5428, %v5429
        %v5431 = vshll.u32 920167782, %v5416
        %v5432 = vshrl.u32 1326507024, %v5417
        %v5433 = vor.u32 %v5431, %v5432
        %vm5434 = vcmp.lt.s32.totalorder %v5415, 1
        %vm5435 = vcmp.lt.s32.totalorder %v5415, 2
        %vm5436 = vcmp.lt.s32.totalorder %v5415, 3
        %vm5437 = vcmp.lt.s32.totalorder %v5415, 4
        %v5438 = vsel %vm5434, %v5418, %v5421
        %v5439 = vsel %vm5437, %v5427, 2102212464
        %v5440 = vsel %vm5436, %v5424, %v5439
        %v5441 = vsel %vm5435, %v5438, %v5440
        %v5442 = vsel %vm5434, %v5421, %v5424
        %v5443 = vsel %vm5437, %v5430, 920167782
        %v5444 = vsel %vm5436, %v5427, %v5443
        %v5445 = vsel %vm5435, %v5442, %v5444
        %v5446 = vsel %vm5434, %v5424, %v5427
        %v5447 = vsel %vm5437, %v5433, 1326507024
        %v5448 = vsel %vm5436, %v5430, %v5447
        %v5449 = vsel %vm5435, %v5446, %v5448
        %v5450 = vshll.u32 %v5410, 8
        %v5451 = vmul.u32.u64.compose %v5450, %v5449
        %v5452 = vextract.low.u32 %v5451
        %v5453 = vextract.high.u32 %v5451
        %v5454 = vmul.u32.u64.compose %v5450, %v5445
        %v5455 = vextract.low.u32 %v5454
        %v5456 = vextract.high.u32 %v5454
        %v5457 = vmul.u32 %v5450, %v5441
        %v5458 = vadd.s32 %v5453, %v5455
        %vm5459 = vc.u32 %v5453, %v5455
        %v5460 = vadd.s32 %v5456, 1
        %v5461 = vsel %vm5459, %v5460, %v5456
        %v5462 = vadd.s32 %v5457, %v5461
        %v5463 = vadd.s32 %v5462, 536870912
        %v5464 = vshrl.u32 %v5463, 30
        %v5465 = vshll.u32 %v5464, 30
        %v5466 = vsub.s32 %v5462, %v5465
        %vm5467 = vcmp.lt.s32.totalorder %v5466, 0
        %v5468 = vsub.s32 0, %v5466
        %v5469 = vsel %vm5467, %v5468, %v5466
        %v5470 = vclz %v5469
        %v5471 = vsub.s32 %v5470, 2
        %vm5472 = vcmp.gt.s32.totalorder 0, %v5471
        %v5473 = vsel %vm5472, 0, %v5471
        %v5474 = vsub.s32 32, %v5473
        %v5475 = vshll.u32 %v5466, %v5473
        %v5476 = vshrl.u32 %v5458, %v5474
        %v5477 = vor.u32 %v5475, %v5476
        %v5478 = vsub.s32 4294967266, %v5473
        %v5479 = vadd.s32 %v5478, 127
        %v5480 = vshll.u32 %v5479, 23
        %v5481 = vor.u32 4788187, %v5480
        %v5482 = vand.u32 2147483647, %v5481
        %v5484 = vcvt.s32.f32 %v5477
        %v5485 = vmul.f32 %v5484, %v5482
        %v5486 = vxor.u32 %v5485, 2147483648
        %v5487 = vsel %vm5404, %v5486, %v5485
        %v5488 = vsub.s32 4, %v5464
        %v5489 = vsel %vm5404, %v5488, %v5464
        %v5490 = vsel %vm5403, %v446, %v5487
        %v5491 = vsel %vm5403, 0, %v5489
        %v5492 = vcosq.f32.pop %v5490
        %v5493 = vsinq.f32.pop %v5490
        %vm5494 = vweird.f32 %v446
        %v5495 = vand.u32 %v5491, 3
        %vm5496 = vcmp.lt.s32.totalorder %v5495, 2
        %vm5497 = vcmp.eq.s32.totalorder %v5495, 0
        %v5498 = vxor.u32 %v5493, 2147483648
        %v5499 = vsel %vm5497, %v5492, %v5498
        %vm5500 = vcmp.eq.s32.totalorder %v5495, 2
        %v5501 = vxor.u32 %v5492, 2147483648
        %v5502 = vsel %vm5500, %v5501, %v5493
        %v5503 = vsel %vm5496, %v5499, %v5502
        %v5504 = vsel %vm5494, nan, %v5503
        %v5505 = vand.u32 2147483647, %v451
        %vm5506 = vcmp.le.f32.partialorder %v5505, 0.7853982
        %vm5507 = vcmp.lt.s32.totalorder %v451, 0
        %v5508 = vand.u32 %v451, 2139095040
        %v5509 = vshrl.u32 %v5508, 23
        %v5510 = vsub.s32 %v5509, 127
        %v5511 = vand.u32 2147483647, %v451
        %v5512 = vand.u32 %v5511, 8388607
        %v5513 = vor.u32 %v5512, 8388608
        %v5514 = vsub.s32 0, %v5513
        %v5515 = vadd.s32 %v5510, 1
        %vm5516 = vcmp.gt.s32.totalorder %v5515, 0
        %v5517 = vsel %vm5516, %v5515, 0
        %v5518 = vshrl.u32 %v5517, 5
        %v5519 = vand.u32 %v5517, 31
        %v5520 = vsub.s32 32, %v5519
        %v5521 = vshrl.u32 683565275, %v5520
        %v5522 = vshll.u32 683565275, %v5519
        %v5523 = vshrl.u32 2475754826, %v5520
        %v5524 = vor.u32 %v5522, %v5523
        %v5525 = vshll.u32 2475754826, %v5519
        %v5526 = vshrl.u32 2131351028, %v5520
        %v5527 = vor.u32 %v5525, %v5526
        %v5528 = vshll.u32 2131351028, %v5519
        %v5529 = vshrl.u32 2102212464, %v5520
        %v5530 = vor.u32 %v5528, %v5529
        %v5531 = vshll.u32 2102212464, %v5519
        %v5532 = vshrl.u32 920167782, %v5520
        %v5533 = vor.u32 %v5531, %v5532
        %v5534 = vshll.u32 920167782, %v5519
        %v5535 = vshrl.u32 1326507024, %v5520
        %v5536 = vor.u32 %v5534, %v5535
        %vm5537 = vcmp.lt.s32.totalorder %v5518, 1
        %vm5538 = vcmp.lt.s32.totalorder %v5518, 2
        %vm5539 = vcmp.lt.s32.totalorder %v5518, 3
        %vm5540 = vcmp.lt.s32.totalorder %v5518, 4
        %v5541 = vsel %vm5537, %v5521, %v5524
        %v5542 = vsel %vm5540, %v5530, 2102212464
        %v5543 = vsel %vm5539, %v5527, %v5542
        %v5544 = vsel %vm5538, %v5541, %v5543
        %v5545 = vsel %vm5537, %v5524, %v5527
        %v5546 = vsel %vm5540, %v5533, 920167782
        %v5547 = vsel %vm5539, %v5530, %v5546
        %v5548 = vsel %vm5538, %v5545, %v5547
        %v5549 = vsel %vm5537, %v5527, %v5530
        %v5550 = vsel %vm5540, %v5536, 1326507024
        %v5551 = vsel %vm5539, %v5533, %v5550
        %v5552 = vsel %vm5538, %v5549, %v5551
        %v5553 = vshll.u32 %v5513, 8
        %v5554 = vmul.u32.u64.compose %v5553, %v5552
        %v5555 = vextract.low.u32 %v5554
        %v5556 = vextract.high.u32 %v5554
        %v5557 = vmul.u32.u64.compose %v5553, %v5548
        %v5558 = vextract.low.u32 %v5557
        %v5559 = vextract.high.u32 %v5557
        %v5560 = vmul.u32 %v5553, %v5544
        %v5561 = vadd.s32 %v5556, %v5558
        %vm5562 = vc.u32 %v5556, %v5558
        %v5563 = vadd.s32 %v5559, 1
        %v5564 = vsel %vm5562, %v5563, %v5559
        %v5565 = vadd.s32 %v5560, %v5564
        %v5566 = vadd.s32 %v5565, 536870912
        %v5567 = vshrl.u32 %v5566, 30
        %v5568 = vshll.u32 %v5567, 30
        %v5569 = vsub.s32 %v5565, %v5568
        %vm5570 = vcmp.lt.s32.totalorder %v5569, 0
        %v5571 = vsub.s32 0, %v5569
        %v5572 = vsel %vm5570, %v5571, %v5569
        %v5573 = vclz %v5572
        %v5574 = vsub.s32 %v5573, 2
        %vm5575 = vcmp.gt.s32.totalorder 0, %v5574
        %v5576 = vsel %vm5575, 0, %v5574
        %v5577 = vsub.s32 32, %v5576
        %v5578 = vshll.u32 %v5569, %v5576
        %v5579 = vshrl.u32 %v5561, %v5577
        %v5580 = vor.u32 %v5578, %v5579
        %v5581 = vsub.s32 4294967266, %v5576
        %v5582 = vadd.s32 %v5581, 127
        %v5583 = vshll.u32 %v5582, 23
        %v5584 = vor.u32 4788187, %v5583
        %v5585 = vand.u32 2147483647, %v5584
        %v5587 = vcvt.s32.f32 %v5580
        %v5588 = vmul.f32 %v5587, %v5585
        %v5589 = vxor.u32 %v5588, 2147483648
        %v5590 = vsel %vm5507, %v5589, %v5588
        %v5591 = vsub.s32 4, %v5567
        %v5592 = vsel %vm5507, %v5591, %v5567
        %v5593 = vsel %vm5506, %v451, %v5590
        %v5594 = vsel %vm5506, 0, %v5592
        %v5595 = vcosq.f32.pop %v5593
        %v5596 = vsinq.f32.pop %v5593
        %vm5597 = vweird.f32 %v451
        %v5598 = vand.u32 %v5594, 3
        %vm5599 = vcmp.lt.s32.totalorder %v5598, 2
        %vm5600 = vcmp.eq.s32.totalorder %v5598, 0
        %v5601 = vxor.u32 %v5596, 2147483648
        %v5602 = vsel %vm5600, %v5595, %v5601
        %vm5603 = vcmp.eq.s32.totalorder %v5598, 2
        %v5604 = vxor.u32 %v5595, 2147483648
        %v5605 = vsel %vm5603, %v5604, %v5596
        %v5606 = vsel %vm5599, %v5602, %v5605
        %v5607 = vsel %vm5597, nan, %v5606
        %v5608 = vand.u32 2147483647, %v456
        %vm5609 = vcmp.le.f32.partialorder %v5608, 0.7853982
        %vm5610 = vcmp.lt.s32.totalorder %v456, 0
        %v5611 = vand.u32 %v456, 2139095040
        %v5612 = vshrl.u32 %v5611, 23
        %v5613 = vsub.s32 %v5612, 127
        %v5614 = vand.u32 2147483647, %v456
        %v5615 = vand.u32 %v5614, 8388607
        %v5616 = vor.u32 %v5615, 8388608
        %v5617 = vsub.s32 0, %v5616
        %v5618 = vadd.s32 %v5613, 1
        %vm5619 = vcmp.gt.s32.totalorder %v5618, 0
        %v5620 = vsel %vm5619, %v5618, 0
        %v5621 = vshrl.u32 %v5620, 5
        %v5622 = vand.u32 %v5620, 31
        %v5623 = vsub.s32 32, %v5622
        %v5624 = vshrl.u32 683565275, %v5623
        %v5625 = vshll.u32 683565275, %v5622
        %v5626 = vshrl.u32 2475754826, %v5623
        %v5627 = vor.u32 %v5625, %v5626
        %v5628 = vshll.u32 2475754826, %v5622
        %v5629 = vshrl.u32 2131351028, %v5623
        %v5630 = vor.u32 %v5628, %v5629
        %v5631 = vshll.u32 2131351028, %v5622
        %v5632 = vshrl.u32 2102212464, %v5623
        %v5633 = vor.u32 %v5631, %v5632
        %v5634 = vshll.u32 2102212464, %v5622
        %v5635 = vshrl.u32 920167782, %v5623
        %v5636 = vor.u32 %v5634, %v5635
        %v5637 = vshll.u32 920167782, %v5622
        %v5638 = vshrl.u32 1326507024, %v5623
        %v5639 = vor.u32 %v5637, %v5638
        %vm5640 = vcmp.lt.s32.totalorder %v5621, 1
        %vm5641 = vcmp.lt.s32.totalorder %v5621, 2
        %vm5642 = vcmp.lt.s32.totalorder %v5621, 3
        %vm5643 = vcmp.lt.s32.totalorder %v5621, 4
        %v5644 = vsel %vm5640, %v5624, %v5627
        %v5645 = vsel %vm5643, %v5633, 2102212464
        %v5646 = vsel %vm5642, %v5630, %v5645
        %v5647 = vsel %vm5641, %v5644, %v5646
        %v5648 = vsel %vm5640, %v5627, %v5630
        %v5649 = vsel %vm5643, %v5636, 920167782
        %v5650 = vsel %vm5642, %v5633, %v5649
        %v5651 = vsel %vm5641, %v5648, %v5650
        %v5652 = vsel %vm5640, %v5630, %v5633
        %v5653 = vsel %vm5643, %v5639, 1326507024
        %v5654 = vsel %vm5642, %v5636, %v5653
        %v5655 = vsel %vm5641, %v5652, %v5654
        %v5656 = vshll.u32 %v5616, 8
        %v5657 = vmul.u32.u64.compose %v5656, %v5655
        %v5658 = vextract.low.u32 %v5657
        %v5659 = vextract.high.u32 %v5657
        %v5660 = vmul.u32.u64.compose %v5656, %v5651
        %v5661 = vextract.low.u32 %v5660
        %v5662 = vextract.high.u32 %v5660
        %v5663 = vmul.u32 %v5656, %v5647
        %v5664 = vadd.s32 %v5659, %v5661
        %vm5665 = vc.u32 %v5659, %v5661
        %v5666 = vadd.s32 %v5662, 1
        %v5667 = vsel %vm5665, %v5666, %v5662
        %v5668 = vadd.s32 %v5663, %v5667
        %v5669 = vadd.s32 %v5668, 536870912
        %v5670 = vshrl.u32 %v5669, 30
        %v5671 = vshll.u32 %v5670, 30
        %v5672 = vsub.s32 %v5668, %v5671
        %vm5673 = vcmp.lt.s32.totalorder %v5672, 0
        %v5674 = vsub.s32 0, %v5672
        %v5675 = vsel %vm5673, %v5674, %v5672
        %v5676 = vclz %v5675
        %v5677 = vsub.s32 %v5676, 2
        %vm5678 = vcmp.gt.s32.totalorder 0, %v5677
        %v5679 = vsel %vm5678, 0, %v5677
        %v5680 = vsub.s32 32, %v5679
        %v5681 = vshll.u32 %v5672, %v5679
        %v5682 = vshrl.u32 %v5664, %v5680
        %v5683 = vor.u32 %v5681, %v5682
        %v5684 = vsub.s32 4294967266, %v5679
        %v5685 = vadd.s32 %v5684, 127
        %v5686 = vshll.u32 %v5685, 23
        %v5687 = vor.u32 4788187, %v5686
        %v5688 = vand.u32 2147483647, %v5687
        %v5690 = vcvt.s32.f32 %v5683
        %v5691 = vmul.f32 %v5690, %v5688
        %v5692 = vxor.u32 %v5691, 2147483648
        %v5693 = vsel %vm5610, %v5692, %v5691
        %v5694 = vsub.s32 4, %v5670
        %v5695 = vsel %vm5610, %v5694, %v5670
        %v5696 = vsel %vm5609, %v456, %v5693
        %v5697 = vsel %vm5609, 0, %v5695
        %v5698 = vcosq.f32.pop %v5696
        %v5699 = vsinq.f32.pop %v5696
        %vm5700 = vweird.f32 %v456
        %v5701 = vand.u32 %v5697, 3
        %vm5702 = vcmp.lt.s32.totalorder %v5701, 2
        %vm5703 = vcmp.eq.s32.totalorder %v5701, 0
        %v5704 = vxor.u32 %v5699, 2147483648
        %v5705 = vsel %vm5703, %v5698, %v5704
        %vm5706 = vcmp.eq.s32.totalorder %v5701, 2
        %v5707 = vxor.u32 %v5698, 2147483648
        %v5708 = vsel %vm5706, %v5707, %v5699
        %v5709 = vsel %vm5702, %v5705, %v5708
        %v5710 = vsel %vm5700, nan, %v5709
        %v5711 = vand.u32 2147483647, %v461
        %vm5712 = vcmp.le.f32.partialorder %v5711, 0.7853982
        %vm5713 = vcmp.lt.s32.totalorder %v461, 0
        %v5714 = vand.u32 %v461, 2139095040
        %v5715 = vshrl.u32 %v5714, 23
        %v5716 = vsub.s32 %v5715, 127
        %v5717 = vand.u32 2147483647, %v461
        %v5718 = vand.u32 %v5717, 8388607
        %v5719 = vor.u32 %v5718, 8388608
        %v5720 = vsub.s32 0, %v5719
        %v5721 = vadd.s32 %v5716, 1
        %vm5722 = vcmp.gt.s32.totalorder %v5721, 0
        %v5723 = vsel %vm5722, %v5721, 0
        %v5724 = vshrl.u32 %v5723, 5
        %v5725 = vand.u32 %v5723, 31
        %v5726 = vsub.s32 32, %v5725
        %v5727 = vshrl.u32 683565275, %v5726
        %v5728 = vshll.u32 683565275, %v5725
        %v5729 = vshrl.u32 2475754826, %v5726
        %v5730 = vor.u32 %v5728, %v5729
        %v5731 = vshll.u32 2475754826, %v5725
        %v5732 = vshrl.u32 2131351028, %v5726
        %v5733 = vor.u32 %v5731, %v5732
        %v5734 = vshll.u32 2131351028, %v5725
        %v5735 = vshrl.u32 2102212464, %v5726
        %v5736 = vor.u32 %v5734, %v5735
        %v5737 = vshll.u32 2102212464, %v5725
        %v5738 = vshrl.u32 920167782, %v5726
        %v5739 = vor.u32 %v5737, %v5738
        %v5740 = vshll.u32 920167782, %v5725
        %v5741 = vshrl.u32 1326507024, %v5726
        %v5742 = vor.u32 %v5740, %v5741
        %vm5743 = vcmp.lt.s32.totalorder %v5724, 1
        %vm5744 = vcmp.lt.s32.totalorder %v5724, 2
        %vm5745 = vcmp.lt.s32.totalorder %v5724, 3
        %vm5746 = vcmp.lt.s32.totalorder %v5724, 4
        %v5747 = vsel %vm5743, %v5727, %v5730
        %v5748 = vsel %vm5746, %v5736, 2102212464
        %v5749 = vsel %vm5745, %v5733, %v5748
        %v5750 = vsel %vm5744, %v5747, %v5749
        %v5751 = vsel %vm5743, %v5730, %v5733
        %v5752 = vsel %vm5746, %v5739, 920167782
        %v5753 = vsel %vm5745, %v5736, %v5752
        %v5754 = vsel %vm5744, %v5751, %v5753
        %v5755 = vsel %vm5743, %v5733, %v5736
        %v5756 = vsel %vm5746, %v5742, 1326507024
        %v5757 = vsel %vm5745, %v5739, %v5756
        %v5758 = vsel %vm5744, %v5755, %v5757
        %v5759 = vshll.u32 %v5719, 8
        %v5760 = vmul.u32.u64.compose %v5759, %v5758
        %v5761 = vextract.low.u32 %v5760
        %v5762 = vextract.high.u32 %v5760
        %v5763 = vmul.u32.u64.compose %v5759, %v5754
        %v5764 = vextract.low.u32 %v5763
        %v5765 = vextract.high.u32 %v5763
        %v5766 = vmul.u32 %v5759, %v5750
        %v5767 = vadd.s32 %v5762, %v5764
        %vm5768 = vc.u32 %v5762, %v5764
        %v5769 = vadd.s32 %v5765, 1
        %v5770 = vsel %vm5768, %v5769, %v5765
        %v5771 = vadd.s32 %v5766, %v5770
        %v5772 = vadd.s32 %v5771, 536870912
        %v5773 = vshrl.u32 %v5772, 30
        %v5774 = vshll.u32 %v5773, 30
        %v5775 = vsub.s32 %v5771, %v5774
        %vm5776 = vcmp.lt.s32.totalorder %v5775, 0
        %v5777 = vsub.s32 0, %v5775
        %v5778 = vsel %vm5776, %v5777, %v5775
        %v5779 = vclz %v5778
        %v5780 = vsub.s32 %v5779, 2
        %vm5781 = vcmp.gt.s32.totalorder 0, %v5780
        %v5782 = vsel %vm5781, 0, %v5780
        %v5783 = vsub.s32 32, %v5782
        %v5784 = vshll.u32 %v5775, %v5782
        %v5785 = vshrl.u32 %v5767, %v5783
        %v5786 = vor.u32 %v5784, %v5785
        %v5787 = vsub.s32 4294967266, %v5782
        %v5788 = vadd.s32 %v5787, 127
        %v5789 = vshll.u32 %v5788, 23
        %v5790 = vor.u32 4788187, %v5789
        %v5791 = vand.u32 2147483647, %v5790
        %v5793 = vcvt.s32.f32 %v5786
        %v5794 = vmul.f32 %v5793, %v5791
        %v5795 = vxor.u32 %v5794, 2147483648
        %v5796 = vsel %vm5713, %v5795, %v5794
        %v5797 = vsub.s32 4, %v5773
        %v5798 = vsel %vm5713, %v5797, %v5773
        %v5799 = vsel %vm5712, %v461, %v5796
        %v5800 = vsel %vm5712, 0, %v5798
        %v5801 = vcosq.f32.pop %v5799
        %v5802 = vsinq.f32.pop %v5799
        %vm5803 = vweird.f32 %v461
        %v5804 = vand.u32 %v5800, 3
        %vm5805 = vcmp.lt.s32.totalorder %v5804, 2
        %vm5806 = vcmp.eq.s32.totalorder %v5804, 0
        %v5807 = vxor.u32 %v5802, 2147483648
        %v5808 = vsel %vm5806, %v5801, %v5807
        %vm5809 = vcmp.eq.s32.totalorder %v5804, 2
        %v5810 = vxor.u32 %v5801, 2147483648
        %v5811 = vsel %vm5809, %v5810, %v5802
        %v5812 = vsel %vm5805, %v5808, %v5811
        %v5813 = vsel %vm5803, nan, %v5812
        %v5814 = vand.u32 2147483647, %v466
        %vm5815 = vcmp.le.f32.partialorder %v5814, 0.7853982
        %vm5816 = vcmp.lt.s32.totalorder %v466, 0
        %v5817 = vand.u32 %v466, 2139095040
        %v5818 = vshrl.u32 %v5817, 23
        %v5819 = vsub.s32 %v5818, 127
        %v5820 = vand.u32 2147483647, %v466
        %v5821 = vand.u32 %v5820, 8388607
        %v5822 = vor.u32 %v5821, 8388608
        %v5823 = vsub.s32 0, %v5822
        %v5824 = vadd.s32 %v5819, 1
        %vm5825 = vcmp.gt.s32.totalorder %v5824, 0
        %v5826 = vsel %vm5825, %v5824, 0
        %v5827 = vshrl.u32 %v5826, 5
        %v5828 = vand.u32 %v5826, 31
        %v5829 = vsub.s32 32, %v5828
        %v5830 = vshrl.u32 683565275, %v5829
        %v5831 = vshll.u32 683565275, %v5828
        %v5832 = vshrl.u32 2475754826, %v5829
        %v5833 = vor.u32 %v5831, %v5832
        %v5834 = vshll.u32 2475754826, %v5828
        %v5835 = vshrl.u32 2131351028, %v5829
        %v5836 = vor.u32 %v5834, %v5835
        %v5837 = vshll.u32 2131351028, %v5828
        %v5838 = vshrl.u32 2102212464, %v5829
        %v5839 = vor.u32 %v5837, %v5838
        %v5840 = vshll.u32 2102212464, %v5828
        %v5841 = vshrl.u32 920167782, %v5829
        %v5842 = vor.u32 %v5840, %v5841
        %v5843 = vshll.u32 920167782, %v5828
        %v5844 = vshrl.u32 1326507024, %v5829
        %v5845 = vor.u32 %v5843, %v5844
        %vm5846 = vcmp.lt.s32.totalorder %v5827, 1
        %vm5847 = vcmp.lt.s32.totalorder %v5827, 2
        %vm5848 = vcmp.lt.s32.totalorder %v5827, 3
        %vm5849 = vcmp.lt.s32.totalorder %v5827, 4
        %v5850 = vsel %vm5846, %v5830, %v5833
        %v5851 = vsel %vm5849, %v5839, 2102212464
        %v5852 = vsel %vm5848, %v5836, %v5851
        %v5853 = vsel %vm5847, %v5850, %v5852
        %v5854 = vsel %vm5846, %v5833, %v5836
        %v5855 = vsel %vm5849, %v5842, 920167782
        %v5856 = vsel %vm5848, %v5839, %v5855
        %v5857 = vsel %vm5847, %v5854, %v5856
        %v5858 = vsel %vm5846, %v5836, %v5839
        %v5859 = vsel %vm5849, %v5845, 1326507024
        %v5860 = vsel %vm5848, %v5842, %v5859
        %v5861 = vsel %vm5847, %v5858, %v5860
        %v5862 = vshll.u32 %v5822, 8
        %v5863 = vmul.u32.u64.compose %v5862, %v5861
        %v5864 = vextract.low.u32 %v5863
        %v5865 = vextract.high.u32 %v5863
        %v5866 = vmul.u32.u64.compose %v5862, %v5857
        %v5867 = vextract.low.u32 %v5866
        %v5868 = vextract.high.u32 %v5866
        %v5869 = vmul.u32 %v5862, %v5853
        %v5870 = vadd.s32 %v5865, %v5867
        %vm5871 = vc.u32 %v5865, %v5867
        %v5872 = vadd.s32 %v5868, 1
        %v5873 = vsel %vm5871, %v5872, %v5868
        %v5874 = vadd.s32 %v5869, %v5873
        %v5875 = vadd.s32 %v5874, 536870912
        %v5876 = vshrl.u32 %v5875, 30
        %v5877 = vshll.u32 %v5876, 30
        %v5878 = vsub.s32 %v5874, %v5877
        %vm5879 = vcmp.lt.s32.totalorder %v5878, 0
        %v5880 = vsub.s32 0, %v5878
        %v5881 = vsel %vm5879, %v5880, %v5878
        %v5882 = vclz %v5881
        %v5883 = vsub.s32 %v5882, 2
        %vm5884 = vcmp.gt.s32.totalorder 0, %v5883
        %v5885 = vsel %vm5884, 0, %v5883
        %v5886 = vsub.s32 32, %v5885
        %v5887 = vshll.u32 %v5878, %v5885
        %v5888 = vshrl.u32 %v5870, %v5886
        %v5889 = vor.u32 %v5887, %v5888
        %v5890 = vsub.s32 4294967266, %v5885
        %v5891 = vadd.s32 %v5890, 127
        %v5892 = vshll.u32 %v5891, 23
        %v5893 = vor.u32 4788187, %v5892
        %v5894 = vand.u32 2147483647, %v5893
        %v5896 = vcvt.s32.f32 %v5889
        %v5897 = vmul.f32 %v5896, %v5894
        %v5898 = vxor.u32 %v5897, 2147483648
        %v5899 = vsel %vm5816, %v5898, %v5897
        %v5900 = vsub.s32 4, %v5876
        %v5901 = vsel %vm5816, %v5900, %v5876
        %v5902 = vsel %vm5815, %v466, %v5899
        %v5903 = vsel %vm5815, 0, %v5901
        %v5904 = vcosq.f32.pop %v5902
        %v5905 = vsinq.f32.pop %v5902
        %vm5906 = vweird.f32 %v466
        %v5907 = vand.u32 %v5903, 3
        %vm5908 = vcmp.lt.s32.totalorder %v5907, 2
        %vm5909 = vcmp.eq.s32.totalorder %v5907, 0
        %v5910 = vxor.u32 %v5905, 2147483648
        %v5911 = vsel %vm5909, %v5904, %v5910
        %vm5912 = vcmp.eq.s32.totalorder %v5907, 2
        %v5913 = vxor.u32 %v5904, 2147483648
        %v5914 = vsel %vm5912, %v5913, %v5905
        %v5915 = vsel %vm5908, %v5911, %v5914
        %v5916 = vsel %vm5906, nan, %v5915
        %v5917 = vand.u32 2147483647, %v471
        %vm5918 = vcmp.le.f32.partialorder %v5917, 0.7853982
        %vm5919 = vcmp.lt.s32.totalorder %v471, 0
        %v5920 = vand.u32 %v471, 2139095040
        %v5921 = vshrl.u32 %v5920, 23
        %v5922 = vsub.s32 %v5921, 127
        %v5923 = vand.u32 2147483647, %v471
        %v5924 = vand.u32 %v5923, 8388607
        %v5925 = vor.u32 %v5924, 8388608
        %v5926 = vsub.s32 0, %v5925
        %v5927 = vadd.s32 %v5922, 1
        %vm5928 = vcmp.gt.s32.totalorder %v5927, 0
        %v5929 = vsel %vm5928, %v5927, 0
        %v5930 = vshrl.u32 %v5929, 5
        %v5931 = vand.u32 %v5929, 31
        %v5932 = vsub.s32 32, %v5931
        %v5933 = vshrl.u32 683565275, %v5932
        %v5934 = vshll.u32 683565275, %v5931
        %v5935 = vshrl.u32 2475754826, %v5932
        %v5936 = vor.u32 %v5934, %v5935
        %v5937 = vshll.u32 2475754826, %v5931
        %v5938 = vshrl.u32 2131351028, %v5932
        %v5939 = vor.u32 %v5937, %v5938
        %v5940 = vshll.u32 2131351028, %v5931
        %v5941 = vshrl.u32 2102212464, %v5932
        %v5942 = vor.u32 %v5940, %v5941
        %v5943 = vshll.u32 2102212464, %v5931
        %v5944 = vshrl.u32 920167782, %v5932
        %v5945 = vor.u32 %v5943, %v5944
        %v5946 = vshll.u32 920167782, %v5931
        %v5947 = vshrl.u32 1326507024, %v5932
        %v5948 = vor.u32 %v5946, %v5947
        %vm5949 = vcmp.lt.s32.totalorder %v5930, 1
        %vm5950 = vcmp.lt.s32.totalorder %v5930, 2
        %vm5951 = vcmp.lt.s32.totalorder %v5930, 3
        %vm5952 = vcmp.lt.s32.totalorder %v5930, 4
        %v5953 = vsel %vm5949, %v5933, %v5936
        %v5954 = vsel %vm5952, %v5942, 2102212464
        %v5955 = vsel %vm5951, %v5939, %v5954
        %v5956 = vsel %vm5950, %v5953, %v5955
        %v5957 = vsel %vm5949, %v5936, %v5939
        %v5958 = vsel %vm5952, %v5945, 920167782
        %v5959 = vsel %vm5951, %v5942, %v5958
        %v5960 = vsel %vm5950, %v5957, %v5959
        %v5961 = vsel %vm5949, %v5939, %v5942
        %v5962 = vsel %vm5952, %v5948, 1326507024
        %v5963 = vsel %vm5951, %v5945, %v5962
        %v5964 = vsel %vm5950, %v5961, %v5963
        %v5965 = vshll.u32 %v5925, 8
        %v5966 = vmul.u32.u64.compose %v5965, %v5964
        %v5967 = vextract.low.u32 %v5966
        %v5968 = vextract.high.u32 %v5966
        %v5969 = vmul.u32.u64.compose %v5965, %v5960
        %v5970 = vextract.low.u32 %v5969
        %v5971 = vextract.high.u32 %v5969
        %v5972 = vmul.u32 %v5965, %v5956
        %v5973 = vadd.s32 %v5968, %v5970
        %vm5974 = vc.u32 %v5968, %v5970
        %v5975 = vadd.s32 %v5971, 1
        %v5976 = vsel %vm5974, %v5975, %v5971
        %v5977 = vadd.s32 %v5972, %v5976
        %v5978 = vadd.s32 %v5977, 536870912
        %v5979 = vshrl.u32 %v5978, 30
        %v5980 = vshll.u32 %v5979, 30
        %v5981 = vsub.s32 %v5977, %v5980
        %vm5982 = vcmp.lt.s32.totalorder %v5981, 0
        %v5983 = vsub.s32 0, %v5981
        %v5984 = vsel %vm5982, %v5983, %v5981
        %v5985 = vclz %v5984
        %v5986 = vsub.s32 %v5985, 2
        %vm5987 = vcmp.gt.s32.totalorder 0, %v5986
        %v5988 = vsel %vm5987, 0, %v5986
        %v5989 = vsub.s32 32, %v5988
        %v5990 = vshll.u32 %v5981, %v5988
        %v5991 = vshrl.u32 %v5973, %v5989
        %v5992 = vor.u32 %v5990, %v5991
        %v5993 = vsub.s32 4294967266, %v5988
        %v5994 = vadd.s32 %v5993, 127
        %v5995 = vshll.u32 %v5994, 23
        %v5996 = vor.u32 4788187, %v5995
        %v5997 = vand.u32 2147483647, %v5996
        %v5999 = vcvt.s32.f32 %v5992
        %v6000 = vmul.f32 %v5999, %v5997
        %v6001 = vxor.u32 %v6000, 2147483648
        %v6002 = vsel %vm5919, %v6001, %v6000
        %v6003 = vsub.s32 4, %v5979
        %v6004 = vsel %vm5919, %v6003, %v5979
        %v6005 = vsel %vm5918, %v471, %v6002
        %v6006 = vsel %vm5918, 0, %v6004
        %v6007 = vcosq.f32.pop %v6005
        %v6008 = vsinq.f32.pop %v6005
        %vm6009 = vweird.f32 %v471
        %v6010 = vand.u32 %v6006, 3
        %vm6011 = vcmp.lt.s32.totalorder %v6010, 2
        %vm6012 = vcmp.eq.s32.totalorder %v6010, 0
        %v6013 = vxor.u32 %v6008, 2147483648
        %v6014 = vsel %vm6012, %v6007, %v6013
        %vm6015 = vcmp.eq.s32.totalorder %v6010, 2
        %v6016 = vxor.u32 %v6007, 2147483648
        %v6017 = vsel %vm6015, %v6016, %v6008
        %v6018 = vsel %vm6011, %v6014, %v6017
        %v6019 = vsel %vm6009, nan, %v6018
        %v6020 = vand.u32 2147483647, %v476
        %vm6021 = vcmp.le.f32.partialorder %v6020, 0.7853982
        %vm6022 = vcmp.lt.s32.totalorder %v476, 0
        %v6023 = vand.u32 %v476, 2139095040
        %v6024 = vshrl.u32 %v6023, 23
        %v6025 = vsub.s32 %v6024, 127
        %v6026 = vand.u32 2147483647, %v476
        %v6027 = vand.u32 %v6026, 8388607
        %v6028 = vor.u32 %v6027, 8388608
        %v6029 = vsub.s32 0, %v6028
        %v6030 = vadd.s32 %v6025, 1
        %vm6031 = vcmp.gt.s32.totalorder %v6030, 0
        %v6032 = vsel %vm6031, %v6030, 0
        %v6033 = vshrl.u32 %v6032, 5
        %v6034 = vand.u32 %v6032, 31
        %v6035 = vsub.s32 32, %v6034
        %v6036 = vshrl.u32 683565275, %v6035
        %v6037 = vshll.u32 683565275, %v6034
        %v6038 = vshrl.u32 2475754826, %v6035
        %v6039 = vor.u32 %v6037, %v6038
        %v6040 = vshll.u32 2475754826, %v6034
        %v6041 = vshrl.u32 2131351028, %v6035
        %v6042 = vor.u32 %v6040, %v6041
        %v6043 = vshll.u32 2131351028, %v6034
        %v6044 = vshrl.u32 2102212464, %v6035
        %v6045 = vor.u32 %v6043, %v6044
        %v6046 = vshll.u32 2102212464, %v6034
        %v6047 = vshrl.u32 920167782, %v6035
        %v6048 = vor.u32 %v6046, %v6047
        %v6049 = vshll.u32 920167782, %v6034
        %v6050 = vshrl.u32 1326507024, %v6035
        %v6051 = vor.u32 %v6049, %v6050
        %vm6052 = vcmp.lt.s32.totalorder %v6033, 1
        %vm6053 = vcmp.lt.s32.totalorder %v6033, 2
        %vm6054 = vcmp.lt.s32.totalorder %v6033, 3
        %vm6055 = vcmp.lt.s32.totalorder %v6033, 4
        %v6056 = vsel %vm6052, %v6036, %v6039
        %v6057 = vsel %vm6055, %v6045, 2102212464
        %v6058 = vsel %vm6054, %v6042, %v6057
        %v6059 = vsel %vm6053, %v6056, %v6058
        %v6060 = vsel %vm6052, %v6039, %v6042
        %v6061 = vsel %vm6055, %v6048, 920167782
        %v6062 = vsel %vm6054, %v6045, %v6061
        %v6063 = vsel %vm6053, %v6060, %v6062
        %v6064 = vsel %vm6052, %v6042, %v6045
        %v6065 = vsel %vm6055, %v6051, 1326507024
        %v6066 = vsel %vm6054, %v6048, %v6065
        %v6067 = vsel %vm6053, %v6064, %v6066
        %v6068 = vshll.u32 %v6028, 8
        %v6069 = vmul.u32.u64.compose %v6068, %v6067
        %v6070 = vextract.low.u32 %v6069
        %v6071 = vextract.high.u32 %v6069
        %v6072 = vmul.u32.u64.compose %v6068, %v6063
        %v6073 = vextract.low.u32 %v6072
        %v6074 = vextract.high.u32 %v6072
        %v6075 = vmul.u32 %v6068, %v6059
        %v6076 = vadd.s32 %v6071, %v6073
        %vm6077 = vc.u32 %v6071, %v6073
        %v6078 = vadd.s32 %v6074, 1
        %v6079 = vsel %vm6077, %v6078, %v6074
        %v6080 = vadd.s32 %v6075, %v6079
        %v6081 = vadd.s32 %v6080, 536870912
        %v6082 = vshrl.u32 %v6081, 30
        %v6083 = vshll.u32 %v6082, 30
        %v6084 = vsub.s32 %v6080, %v6083
        %vm6085 = vcmp.lt.s32.totalorder %v6084, 0
        %v6086 = vsub.s32 0, %v6084
        %v6087 = vsel %vm6085, %v6086, %v6084
        %v6088 = vclz %v6087
        %v6089 = vsub.s32 %v6088, 2
        %vm6090 = vcmp.gt.s32.totalorder 0, %v6089
        %v6091 = vsel %vm6090, 0, %v6089
        %v6092 = vsub.s32 32, %v6091
        %v6093 = vshll.u32 %v6084, %v6091
        %v6094 = vshrl.u32 %v6076, %v6092
        %v6095 = vor.u32 %v6093, %v6094
        %v6096 = vsub.s32 4294967266, %v6091
        %v6097 = vadd.s32 %v6096, 127
        %v6098 = vshll.u32 %v6097, 23
        %v6099 = vor.u32 4788187, %v6098
        %v6100 = vand.u32 2147483647, %v6099
        %v6102 = vcvt.s32.f32 %v6095
        %v6103 = vmul.f32 %v6102, %v6100
        %v6104 = vxor.u32 %v6103, 2147483648
        %v6105 = vsel %vm6022, %v6104, %v6103
        %v6106 = vsub.s32 4, %v6082
        %v6107 = vsel %vm6022, %v6106, %v6082
        %v6108 = vsel %vm6021, %v476, %v6105
        %v6109 = vsel %vm6021, 0, %v6107
        %v6110 = vcosq.f32.pop %v6108
        %v6111 = vsinq.f32.pop %v6108
        %vm6112 = vweird.f32 %v476
        %v6113 = vand.u32 %v6109, 3
        %vm6114 = vcmp.lt.s32.totalorder %v6113, 2
        %vm6115 = vcmp.eq.s32.totalorder %v6113, 0
        %v6116 = vxor.u32 %v6111, 2147483648
        %v6117 = vsel %vm6115, %v6110, %v6116
        %vm6118 = vcmp.eq.s32.totalorder %v6113, 2
        %v6119 = vxor.u32 %v6110, 2147483648
        %v6120 = vsel %vm6118, %v6119, %v6111
        %v6121 = vsel %vm6114, %v6117, %v6120
        %v6122 = vsel %vm6112, nan, %v6121
        %v6123 = vand.u32 2147483647, %v481
        %vm6124 = vcmp.le.f32.partialorder %v6123, 0.7853982
        %vm6125 = vcmp.lt.s32.totalorder %v481, 0
        %v6126 = vand.u32 %v481, 2139095040
        %v6127 = vshrl.u32 %v6126, 23
        %v6128 = vsub.s32 %v6127, 127
        %v6129 = vand.u32 2147483647, %v481
        %v6130 = vand.u32 %v6129, 8388607
        %v6131 = vor.u32 %v6130, 8388608
        %v6132 = vsub.s32 0, %v6131
        %v6133 = vadd.s32 %v6128, 1
        %vm6134 = vcmp.gt.s32.totalorder %v6133, 0
        %v6135 = vsel %vm6134, %v6133, 0
        %v6136 = vshrl.u32 %v6135, 5
        %v6137 = vand.u32 %v6135, 31
        %v6138 = vsub.s32 32, %v6137
        %v6139 = vshrl.u32 683565275, %v6138
        %v6140 = vshll.u32 683565275, %v6137
        %v6141 = vshrl.u32 2475754826, %v6138
        %v6142 = vor.u32 %v6140, %v6141
        %v6143 = vshll.u32 2475754826, %v6137
        %v6144 = vshrl.u32 2131351028, %v6138
        %v6145 = vor.u32 %v6143, %v6144
        %v6146 = vshll.u32 2131351028, %v6137
        %v6147 = vshrl.u32 2102212464, %v6138
        %v6148 = vor.u32 %v6146, %v6147
        %v6149 = vshll.u32 2102212464, %v6137
        %v6150 = vshrl.u32 920167782, %v6138
        %v6151 = vor.u32 %v6149, %v6150
        %v6152 = vshll.u32 920167782, %v6137
        %v6153 = vshrl.u32 1326507024, %v6138
        %v6154 = vor.u32 %v6152, %v6153
        %vm6155 = vcmp.lt.s32.totalorder %v6136, 1
        %vm6156 = vcmp.lt.s32.totalorder %v6136, 2
        %vm6157 = vcmp.lt.s32.totalorder %v6136, 3
        %vm6158 = vcmp.lt.s32.totalorder %v6136, 4
        %v6159 = vsel %vm6155, %v6139, %v6142
        %v6160 = vsel %vm6158, %v6148, 2102212464
        %v6161 = vsel %vm6157, %v6145, %v6160
        %v6162 = vsel %vm6156, %v6159, %v6161
        %v6163 = vsel %vm6155, %v6142, %v6145
        %v6164 = vsel %vm6158, %v6151, 920167782
        %v6165 = vsel %vm6157, %v6148, %v6164
        %v6166 = vsel %vm6156, %v6163, %v6165
        %v6167 = vsel %vm6155, %v6145, %v6148
        %v6168 = vsel %vm6158, %v6154, 1326507024
        %v6169 = vsel %vm6157, %v6151, %v6168
        %v6170 = vsel %vm6156, %v6167, %v6169
        %v6171 = vshll.u32 %v6131, 8
        %v6172 = vmul.u32.u64.compose %v6171, %v6170
        %v6173 = vextract.low.u32 %v6172
        %v6174 = vextract.high.u32 %v6172
        %v6175 = vmul.u32.u64.compose %v6171, %v6166
        %v6176 = vextract.low.u32 %v6175
        %v6177 = vextract.high.u32 %v6175
        %v6178 = vmul.u32 %v6171, %v6162
        %v6179 = vadd.s32 %v6174, %v6176
        %vm6180 = vc.u32 %v6174, %v6176
        %v6181 = vadd.s32 %v6177, 1
        %v6182 = vsel %vm6180, %v6181, %v6177
        %v6183 = vadd.s32 %v6178, %v6182
        %v6184 = vadd.s32 %v6183, 536870912
        %v6185 = vshrl.u32 %v6184, 30
        %v6186 = vshll.u32 %v6185, 30
        %v6187 = vsub.s32 %v6183, %v6186
        %vm6188 = vcmp.lt.s32.totalorder %v6187, 0
        %v6189 = vsub.s32 0, %v6187
        %v6190 = vsel %vm6188, %v6189, %v6187
        %v6191 = vclz %v6190
        %v6192 = vsub.s32 %v6191, 2
        %vm6193 = vcmp.gt.s32.totalorder 0, %v6192
        %v6194 = vsel %vm6193, 0, %v6192
        %v6195 = vsub.s32 32, %v6194
        %v6196 = vshll.u32 %v6187, %v6194
        %v6197 = vshrl.u32 %v6179, %v6195
        %v6198 = vor.u32 %v6196, %v6197
        %v6199 = vsub.s32 4294967266, %v6194
        %v6200 = vadd.s32 %v6199, 127
        %v6201 = vshll.u32 %v6200, 23
        %v6202 = vor.u32 4788187, %v6201
        %v6203 = vand.u32 2147483647, %v6202
        %v6205 = vcvt.s32.f32 %v6198
        %v6206 = vmul.f32 %v6205, %v6203
        %v6207 = vxor.u32 %v6206, 2147483648
        %v6208 = vsel %vm6125, %v6207, %v6206
        %v6209 = vsub.s32 4, %v6185
        %v6210 = vsel %vm6125, %v6209, %v6185
        %v6211 = vsel %vm6124, %v481, %v6208
        %v6212 = vsel %vm6124, 0, %v6210
        %v6213 = vcosq.f32.pop %v6211
        %v6214 = vsinq.f32.pop %v6211
        %vm6215 = vweird.f32 %v481
        %v6216 = vand.u32 %v6212, 3
        %vm6217 = vcmp.lt.s32.totalorder %v6216, 2
        %vm6218 = vcmp.eq.s32.totalorder %v6216, 0
        %v6219 = vxor.u32 %v6214, 2147483648
        %v6220 = vsel %vm6218, %v6213, %v6219
        %vm6221 = vcmp.eq.s32.totalorder %v6216, 2
        %v6222 = vxor.u32 %v6213, 2147483648
        %v6223 = vsel %vm6221, %v6222, %v6214
        %v6224 = vsel %vm6217, %v6220, %v6223
        %v6225 = vsel %vm6215, nan, %v6224
        %v6226 = vand.u32 2147483647, %v486
        %vm6227 = vcmp.le.f32.partialorder %v6226, 0.7853982
        %vm6228 = vcmp.lt.s32.totalorder %v486, 0
        %v6229 = vand.u32 %v486, 2139095040
        %v6230 = vshrl.u32 %v6229, 23
        %v6231 = vsub.s32 %v6230, 127
        %v6232 = vand.u32 2147483647, %v486
        %v6233 = vand.u32 %v6232, 8388607
        %v6234 = vor.u32 %v6233, 8388608
        %v6235 = vsub.s32 0, %v6234
        %v6236 = vadd.s32 %v6231, 1
        %vm6237 = vcmp.gt.s32.totalorder %v6236, 0
        %v6238 = vsel %vm6237, %v6236, 0
        %v6239 = vshrl.u32 %v6238, 5
        %v6240 = vand.u32 %v6238, 31
        %v6241 = vsub.s32 32, %v6240
        %v6242 = vshrl.u32 683565275, %v6241
        %v6243 = vshll.u32 683565275, %v6240
        %v6244 = vshrl.u32 2475754826, %v6241
        %v6245 = vor.u32 %v6243, %v6244
        %v6246 = vshll.u32 2475754826, %v6240
        %v6247 = vshrl.u32 2131351028, %v6241
        %v6248 = vor.u32 %v6246, %v6247
        %v6249 = vshll.u32 2131351028, %v6240
        %v6250 = vshrl.u32 2102212464, %v6241
        %v6251 = vor.u32 %v6249, %v6250
        %v6252 = vshll.u32 2102212464, %v6240
        %v6253 = vshrl.u32 920167782, %v6241
        %v6254 = vor.u32 %v6252, %v6253
        %v6255 = vshll.u32 920167782, %v6240
        %v6256 = vshrl.u32 1326507024, %v6241
        %v6257 = vor.u32 %v6255, %v6256
        %vm6258 = vcmp.lt.s32.totalorder %v6239, 1
        %vm6259 = vcmp.lt.s32.totalorder %v6239, 2
        %vm6260 = vcmp.lt.s32.totalorder %v6239, 3
        %vm6261 = vcmp.lt.s32.totalorder %v6239, 4
        %v6262 = vsel %vm6258, %v6242, %v6245
        %v6263 = vsel %vm6261, %v6251, 2102212464
        %v6264 = vsel %vm6260, %v6248, %v6263
        %v6265 = vsel %vm6259, %v6262, %v6264
        %v6266 = vsel %vm6258, %v6245, %v6248
        %v6267 = vsel %vm6261, %v6254, 920167782
        %v6268 = vsel %vm6260, %v6251, %v6267
        %v6269 = vsel %vm6259, %v6266, %v6268
        %v6270 = vsel %vm6258, %v6248, %v6251
        %v6271 = vsel %vm6261, %v6257, 1326507024
        %v6272 = vsel %vm6260, %v6254, %v6271
        %v6273 = vsel %vm6259, %v6270, %v6272
        %v6274 = vshll.u32 %v6234, 8
        %v6275 = vmul.u32.u64.compose %v6274, %v6273
        %v6276 = vextract.low.u32 %v6275
        %v6277 = vextract.high.u32 %v6275
        %v6278 = vmul.u32.u64.compose %v6274, %v6269
        %v6279 = vextract.low.u32 %v6278
        %v6280 = vextract.high.u32 %v6278
        %v6281 = vmul.u32 %v6274, %v6265
        %v6282 = vadd.s32 %v6277, %v6279
        %vm6283 = vc.u32 %v6277, %v6279
        %v6284 = vadd.s32 %v6280, 1
        %v6285 = vsel %vm6283, %v6284, %v6280
        %v6286 = vadd.s32 %v6281, %v6285
        %v6287 = vadd.s32 %v6286, 536870912
        %v6288 = vshrl.u32 %v6287, 30
        %v6289 = vshll.u32 %v6288, 30
        %v6290 = vsub.s32 %v6286, %v6289
        %vm6291 = vcmp.lt.s32.totalorder %v6290, 0
        %v6292 = vsub.s32 0, %v6290
        %v6293 = vsel %vm6291, %v6292, %v6290
        %v6294 = vclz %v6293
        %v6295 = vsub.s32 %v6294, 2
        %vm6296 = vcmp.gt.s32.totalorder 0, %v6295
        %v6297 = vsel %vm6296, 0, %v6295
        %v6298 = vsub.s32 32, %v6297
        %v6299 = vshll.u32 %v6290, %v6297
        %v6300 = vshrl.u32 %v6282, %v6298
        %v6301 = vor.u32 %v6299, %v6300
        %v6302 = vsub.s32 4294967266, %v6297
        %v6303 = vadd.s32 %v6302, 127
        %v6304 = vshll.u32 %v6303, 23
        %v6305 = vor.u32 4788187, %v6304
        %v6306 = vand.u32 2147483647, %v6305
        %v6308 = vcvt.s32.f32 %v6301
        %v6309 = vmul.f32 %v6308, %v6306
        %v6310 = vxor.u32 %v6309, 2147483648
        %v6311 = vsel %vm6228, %v6310, %v6309
        %v6312 = vsub.s32 4, %v6288
        %v6313 = vsel %vm6228, %v6312, %v6288
        %v6314 = vsel %vm6227, %v486, %v6311
        %v6315 = vsel %vm6227, 0, %v6313
        %v6316 = vcosq.f32.pop %v6314
        %v6317 = vsinq.f32.pop %v6314
        %vm6318 = vweird.f32 %v486
        %v6319 = vand.u32 %v6315, 3
        %vm6320 = vcmp.lt.s32.totalorder %v6319, 2
        %vm6321 = vcmp.eq.s32.totalorder %v6319, 0
        %v6322 = vxor.u32 %v6317, 2147483648
        %v6323 = vsel %vm6321, %v6316, %v6322
        %vm6324 = vcmp.eq.s32.totalorder %v6319, 2
        %v6325 = vxor.u32 %v6316, 2147483648
        %v6326 = vsel %vm6324, %v6325, %v6317
        %v6327 = vsel %vm6320, %v6323, %v6326
        %v6328 = vsel %vm6318, nan, %v6327
        %v6329 = vand.u32 2147483647, %v491
        %vm6330 = vcmp.le.f32.partialorder %v6329, 0.7853982
        %vm6331 = vcmp.lt.s32.totalorder %v491, 0
        %v6332 = vand.u32 %v491, 2139095040
        %v6333 = vshrl.u32 %v6332, 23
        %v6334 = vsub.s32 %v6333, 127
        %v6335 = vand.u32 2147483647, %v491
        %v6336 = vand.u32 %v6335, 8388607
        %v6337 = vor.u32 %v6336, 8388608
        %v6338 = vsub.s32 0, %v6337
        %v6339 = vadd.s32 %v6334, 1
        %vm6340 = vcmp.gt.s32.totalorder %v6339, 0
        %v6341 = vsel %vm6340, %v6339, 0
        %v6342 = vshrl.u32 %v6341, 5
        %v6343 = vand.u32 %v6341, 31
        %v6344 = vsub.s32 32, %v6343
        %v6345 = vshrl.u32 683565275, %v6344
        %v6346 = vshll.u32 683565275, %v6343
        %v6347 = vshrl.u32 2475754826, %v6344
        %v6348 = vor.u32 %v6346, %v6347
        %v6349 = vshll.u32 2475754826, %v6343
        %v6350 = vshrl.u32 2131351028, %v6344
        %v6351 = vor.u32 %v6349, %v6350
        %v6352 = vshll.u32 2131351028, %v6343
        %v6353 = vshrl.u32 2102212464, %v6344
        %v6354 = vor.u32 %v6352, %v6353
        %v6355 = vshll.u32 2102212464, %v6343
        %v6356 = vshrl.u32 920167782, %v6344
        %v6357 = vor.u32 %v6355, %v6356
        %v6358 = vshll.u32 920167782, %v6343
        %v6359 = vshrl.u32 1326507024, %v6344
        %v6360 = vor.u32 %v6358, %v6359
        %vm6361 = vcmp.lt.s32.totalorder %v6342, 1
        %vm6362 = vcmp.lt.s32.totalorder %v6342, 2
        %vm6363 = vcmp.lt.s32.totalorder %v6342, 3
        %vm6364 = vcmp.lt.s32.totalorder %v6342, 4
        %v6365 = vsel %vm6361, %v6345, %v6348
        %v6366 = vsel %vm6364, %v6354, 2102212464
        %v6367 = vsel %vm6363, %v6351, %v6366
        %v6368 = vsel %vm6362, %v6365, %v6367
        %v6369 = vsel %vm6361, %v6348, %v6351
        %v6370 = vsel %vm6364, %v6357, 920167782
        %v6371 = vsel %vm6363, %v6354, %v6370
        %v6372 = vsel %vm6362, %v6369, %v6371
        %v6373 = vsel %vm6361, %v6351, %v6354
        %v6374 = vsel %vm6364, %v6360, 1326507024
        %v6375 = vsel %vm6363, %v6357, %v6374
        %v6376 = vsel %vm6362, %v6373, %v6375
        %v6377 = vshll.u32 %v6337, 8
        %v6378 = vmul.u32.u64.compose %v6377, %v6376
        %v6379 = vextract.low.u32 %v6378
        %v6380 = vextract.high.u32 %v6378
        %v6381 = vmul.u32.u64.compose %v6377, %v6372
        %v6382 = vextract.low.u32 %v6381
        %v6383 = vextract.high.u32 %v6381
        %v6384 = vmul.u32 %v6377, %v6368
        %v6385 = vadd.s32 %v6380, %v6382
        %vm6386 = vc.u32 %v6380, %v6382
        %v6387 = vadd.s32 %v6383, 1
        %v6388 = vsel %vm6386, %v6387, %v6383
        %v6389 = vadd.s32 %v6384, %v6388
        %v6390 = vadd.s32 %v6389, 536870912
        %v6391 = vshrl.u32 %v6390, 30
        %v6392 = vshll.u32 %v6391, 30
        %v6393 = vsub.s32 %v6389, %v6392
        %vm6394 = vcmp.lt.s32.totalorder %v6393, 0
        %v6395 = vsub.s32 0, %v6393
        %v6396 = vsel %vm6394, %v6395, %v6393
        %v6397 = vclz %v6396
        %v6398 = vsub.s32 %v6397, 2
        %vm6399 = vcmp.gt.s32.totalorder 0, %v6398
        %v6400 = vsel %vm6399, 0, %v6398
        %v6401 = vsub.s32 32, %v6400
        %v6402 = vshll.u32 %v6393, %v6400
        %v6403 = vshrl.u32 %v6385, %v6401
        %v6404 = vor.u32 %v6402, %v6403
        %v6405 = vsub.s32 4294967266, %v6400
        %v6406 = vadd.s32 %v6405, 127
        %v6407 = vshll.u32 %v6406, 23
        %v6408 = vor.u32 4788187, %v6407
        %v6409 = vand.u32 2147483647, %v6408
        %v6411 = vcvt.s32.f32 %v6404
        %v6412 = vmul.f32 %v6411, %v6409
        %v6413 = vxor.u32 %v6412, 2147483648
        %v6414 = vsel %vm6331, %v6413, %v6412
        %v6415 = vsub.s32 4, %v6391
        %v6416 = vsel %vm6331, %v6415, %v6391
        %v6417 = vsel %vm6330, %v491, %v6414
        %v6418 = vsel %vm6330, 0, %v6416
        %v6419 = vcosq.f32.pop %v6417
        %v6420 = vsinq.f32.pop %v6417
        %vm6421 = vweird.f32 %v491
        %v6422 = vand.u32 %v6418, 3
        %vm6423 = vcmp.lt.s32.totalorder %v6422, 2
        %vm6424 = vcmp.eq.s32.totalorder %v6422, 0
        %v6425 = vxor.u32 %v6420, 2147483648
        %v6426 = vsel %vm6424, %v6419, %v6425
        %vm6427 = vcmp.eq.s32.totalorder %v6422, 2
        %v6428 = vxor.u32 %v6419, 2147483648
        %v6429 = vsel %vm6427, %v6428, %v6420
        %v6430 = vsel %vm6423, %v6426, %v6429
        %v6431 = vsel %vm6421, nan, %v6430
        %v6432 = vand.u32 2147483647, %v496
        %vm6433 = vcmp.le.f32.partialorder %v6432, 0.7853982
        %vm6434 = vcmp.lt.s32.totalorder %v496, 0
        %v6435 = vand.u32 %v496, 2139095040
        %v6436 = vshrl.u32 %v6435, 23
        %v6437 = vsub.s32 %v6436, 127
        %v6438 = vand.u32 2147483647, %v496
        %v6439 = vand.u32 %v6438, 8388607
        %v6440 = vor.u32 %v6439, 8388608
        %v6441 = vsub.s32 0, %v6440
        %v6442 = vadd.s32 %v6437, 1
        %vm6443 = vcmp.gt.s32.totalorder %v6442, 0
        %v6444 = vsel %vm6443, %v6442, 0
        %v6445 = vshrl.u32 %v6444, 5
        %v6446 = vand.u32 %v6444, 31
        %v6447 = vsub.s32 32, %v6446
        %v6448 = vshrl.u32 683565275, %v6447
        %v6449 = vshll.u32 683565275, %v6446
        %v6450 = vshrl.u32 2475754826, %v6447
        %v6451 = vor.u32 %v6449, %v6450
        %v6452 = vshll.u32 2475754826, %v6446
        %v6453 = vshrl.u32 2131351028, %v6447
        %v6454 = vor.u32 %v6452, %v6453
        %v6455 = vshll.u32 2131351028, %v6446
        %v6456 = vshrl.u32 2102212464, %v6447
        %v6457 = vor.u32 %v6455, %v6456
        %v6458 = vshll.u32 2102212464, %v6446
        %v6459 = vshrl.u32 920167782, %v6447
        %v6460 = vor.u32 %v6458, %v6459
        %v6461 = vshll.u32 920167782, %v6446
        %v6462 = vshrl.u32 1326507024, %v6447
        %v6463 = vor.u32 %v6461, %v6462
        %vm6464 = vcmp.lt.s32.totalorder %v6445, 1
        %vm6465 = vcmp.lt.s32.totalorder %v6445, 2
        %vm6466 = vcmp.lt.s32.totalorder %v6445, 3
        %vm6467 = vcmp.lt.s32.totalorder %v6445, 4
        %v6468 = vsel %vm6464, %v6448, %v6451
        %v6469 = vsel %vm6467, %v6457, 2102212464
        %v6470 = vsel %vm6466, %v6454, %v6469
        %v6471 = vsel %vm6465, %v6468, %v6470
        %v6472 = vsel %vm6464, %v6451, %v6454
        %v6473 = vsel %vm6467, %v6460, 920167782
        %v6474 = vsel %vm6466, %v6457, %v6473
        %v6475 = vsel %vm6465, %v6472, %v6474
        %v6476 = vsel %vm6464, %v6454, %v6457
        %v6477 = vsel %vm6467, %v6463, 1326507024
        %v6478 = vsel %vm6466, %v6460, %v6477
        %v6479 = vsel %vm6465, %v6476, %v6478
        %v6480 = vshll.u32 %v6440, 8
        %v6481 = vmul.u32.u64.compose %v6480, %v6479
        %v6482 = vextract.low.u32 %v6481
        %v6483 = vextract.high.u32 %v6481
        %v6484 = vmul.u32.u64.compose %v6480, %v6475
        %v6485 = vextract.low.u32 %v6484
        %v6486 = vextract.high.u32 %v6484
        %v6487 = vmul.u32 %v6480, %v6471
        %v6488 = vadd.s32 %v6483, %v6485
        %vm6489 = vc.u32 %v6483, %v6485
        %v6490 = vadd.s32 %v6486, 1
        %v6491 = vsel %vm6489, %v6490, %v6486
        %v6492 = vadd.s32 %v6487, %v6491
        %v6493 = vadd.s32 %v6492, 536870912
        %v6494 = vshrl.u32 %v6493, 30
        %v6495 = vshll.u32 %v6494, 30
        %v6496 = vsub.s32 %v6492, %v6495
        %vm6497 = vcmp.lt.s32.totalorder %v6496, 0
        %v6498 = vsub.s32 0, %v6496
        %v6499 = vsel %vm6497, %v6498, %v6496
        %v6500 = vclz %v6499
        %v6501 = vsub.s32 %v6500, 2
        %vm6502 = vcmp.gt.s32.totalorder 0, %v6501
        %v6503 = vsel %vm6502, 0, %v6501
        %v6504 = vsub.s32 32, %v6503
        %v6505 = vshll.u32 %v6496, %v6503
        %v6506 = vshrl.u32 %v6488, %v6504
        %v6507 = vor.u32 %v6505, %v6506
        %v6508 = vsub.s32 4294967266, %v6503
        %v6509 = vadd.s32 %v6508, 127
        %v6510 = vshll.u32 %v6509, 23
        %v6511 = vor.u32 4788187, %v6510
        %v6512 = vand.u32 2147483647, %v6511
        %v6514 = vcvt.s32.f32 %v6507
        %v6515 = vmul.f32 %v6514, %v6512
        %v6516 = vxor.u32 %v6515, 2147483648
        %v6517 = vsel %vm6434, %v6516, %v6515
        %v6518 = vsub.s32 4, %v6494
        %v6519 = vsel %vm6434, %v6518, %v6494
        %v6520 = vsel %vm6433, %v496, %v6517
        %v6521 = vsel %vm6433, 0, %v6519
        %v6522 = vcosq.f32.pop %v6520
        %v6523 = vsinq.f32.pop %v6520
        %vm6524 = vweird.f32 %v496
        %v6525 = vand.u32 %v6521, 3
        %vm6526 = vcmp.lt.s32.totalorder %v6525, 2
        %vm6527 = vcmp.eq.s32.totalorder %v6525, 0
        %v6528 = vxor.u32 %v6523, 2147483648
        %v6529 = vsel %vm6527, %v6522, %v6528
        %vm6530 = vcmp.eq.s32.totalorder %v6525, 2
        %v6531 = vxor.u32 %v6522, 2147483648
        %v6532 = vsel %vm6530, %v6531, %v6523
        %v6533 = vsel %vm6526, %v6529, %v6532
        %v6534 = vsel %vm6524, nan, %v6533
        %v6535 = vand.u32 2147483647, %v501
        %vm6536 = vcmp.le.f32.partialorder %v6535, 0.7853982
        %vm6537 = vcmp.lt.s32.totalorder %v501, 0
        %v6538 = vand.u32 %v501, 2139095040
        %v6539 = vshrl.u32 %v6538, 23
        %v6540 = vsub.s32 %v6539, 127
        %v6541 = vand.u32 2147483647, %v501
        %v6542 = vand.u32 %v6541, 8388607
        %v6543 = vor.u32 %v6542, 8388608
        %v6544 = vsub.s32 0, %v6543
        %v6545 = vadd.s32 %v6540, 1
        %vm6546 = vcmp.gt.s32.totalorder %v6545, 0
        %v6547 = vsel %vm6546, %v6545, 0
        %v6548 = vshrl.u32 %v6547, 5
        %v6549 = vand.u32 %v6547, 31
        %v6550 = vsub.s32 32, %v6549
        %v6551 = vshrl.u32 683565275, %v6550
        %v6552 = vshll.u32 683565275, %v6549
        %v6553 = vshrl.u32 2475754826, %v6550
        %v6554 = vor.u32 %v6552, %v6553
        %v6555 = vshll.u32 2475754826, %v6549
        %v6556 = vshrl.u32 2131351028, %v6550
        %v6557 = vor.u32 %v6555, %v6556
        %v6558 = vshll.u32 2131351028, %v6549
        %v6559 = vshrl.u32 2102212464, %v6550
        %v6560 = vor.u32 %v6558, %v6559
        %v6561 = vshll.u32 2102212464, %v6549
        %v6562 = vshrl.u32 920167782, %v6550
        %v6563 = vor.u32 %v6561, %v6562
        %v6564 = vshll.u32 920167782, %v6549
        %v6565 = vshrl.u32 1326507024, %v6550
        %v6566 = vor.u32 %v6564, %v6565
        %vm6567 = vcmp.lt.s32.totalorder %v6548, 1
        %vm6568 = vcmp.lt.s32.totalorder %v6548, 2
        %vm6569 = vcmp.lt.s32.totalorder %v6548, 3
        %vm6570 = vcmp.lt.s32.totalorder %v6548, 4
        %v6571 = vsel %vm6567, %v6551, %v6554
        %v6572 = vsel %vm6570, %v6560, 2102212464
        %v6573 = vsel %vm6569, %v6557, %v6572
        %v6574 = vsel %vm6568, %v6571, %v6573
        %v6575 = vsel %vm6567, %v6554, %v6557
        %v6576 = vsel %vm6570, %v6563, 920167782
        %v6577 = vsel %vm6569, %v6560, %v6576
        %v6578 = vsel %vm6568, %v6575, %v6577
        %v6579 = vsel %vm6567, %v6557, %v6560
        %v6580 = vsel %vm6570, %v6566, 1326507024
        %v6581 = vsel %vm6569, %v6563, %v6580
        %v6582 = vsel %vm6568, %v6579, %v6581
        %v6583 = vshll.u32 %v6543, 8
        %v6584 = vmul.u32.u64.compose %v6583, %v6582
        %v6585 = vextract.low.u32 %v6584
        %v6586 = vextract.high.u32 %v6584
        %v6587 = vmul.u32.u64.compose %v6583, %v6578
        %v6588 = vextract.low.u32 %v6587
        %v6589 = vextract.high.u32 %v6587
        %v6590 = vmul.u32 %v6583, %v6574
        %v6591 = vadd.s32 %v6586, %v6588
        %vm6592 = vc.u32 %v6586, %v6588
        %v6593 = vadd.s32 %v6589, 1
        %v6594 = vsel %vm6592, %v6593, %v6589
        %v6595 = vadd.s32 %v6590, %v6594
        %v6596 = vadd.s32 %v6595, 536870912
        %v6597 = vshrl.u32 %v6596, 30
        %v6598 = vshll.u32 %v6597, 30
        %v6599 = vsub.s32 %v6595, %v6598
        %vm6600 = vcmp.lt.s32.totalorder %v6599, 0
        %v6601 = vsub.s32 0, %v6599
        %v6602 = vsel %vm6600, %v6601, %v6599
        %v6603 = vclz %v6602
        %v6604 = vsub.s32 %v6603, 2
        %vm6605 = vcmp.gt.s32.totalorder 0, %v6604
        %v6606 = vsel %vm6605, 0, %v6604
        %v6607 = vsub.s32 32, %v6606
        %v6608 = vshll.u32 %v6599, %v6606
        %v6609 = vshrl.u32 %v6591, %v6607
        %v6610 = vor.u32 %v6608, %v6609
        %v6611 = vsub.s32 4294967266, %v6606
        %v6612 = vadd.s32 %v6611, 127
        %v6613 = vshll.u32 %v6612, 23
        %v6614 = vor.u32 4788187, %v6613
        %v6615 = vand.u32 2147483647, %v6614
        %v6617 = vcvt.s32.f32 %v6610
        %v6618 = vmul.f32 %v6617, %v6615
        %v6619 = vxor.u32 %v6618, 2147483648
        %v6620 = vsel %vm6537, %v6619, %v6618
        %v6621 = vsub.s32 4, %v6597
        %v6622 = vsel %vm6537, %v6621, %v6597
        %v6623 = vsel %vm6536, %v501, %v6620
        %v6624 = vsel %vm6536, 0, %v6622
        %v6625 = vcosq.f32.pop %v6623
        %v6626 = vsinq.f32.pop %v6623
        %vm6627 = vweird.f32 %v501
        %v6628 = vand.u32 %v6624, 3
        %vm6629 = vcmp.lt.s32.totalorder %v6628, 2
        %vm6630 = vcmp.eq.s32.totalorder %v6628, 0
        %v6631 = vxor.u32 %v6626, 2147483648
        %v6632 = vsel %vm6630, %v6625, %v6631
        %vm6633 = vcmp.eq.s32.totalorder %v6628, 2
        %v6634 = vxor.u32 %v6625, 2147483648
        %v6635 = vsel %vm6633, %v6634, %v6626
        %v6636 = vsel %vm6629, %v6632, %v6635
        %v6637 = vsel %vm6627, nan, %v6636
        %v6638 = vand.u32 2147483647, %v506
        %vm6639 = vcmp.le.f32.partialorder %v6638, 0.7853982
        %vm6640 = vcmp.lt.s32.totalorder %v506, 0
        %v6641 = vand.u32 %v506, 2139095040
        %v6642 = vshrl.u32 %v6641, 23
        %v6643 = vsub.s32 %v6642, 127
        %v6644 = vand.u32 2147483647, %v506
        %v6645 = vand.u32 %v6644, 8388607
        %v6646 = vor.u32 %v6645, 8388608
        %v6647 = vsub.s32 0, %v6646
        %v6648 = vadd.s32 %v6643, 1
        %vm6649 = vcmp.gt.s32.totalorder %v6648, 0
        %v6650 = vsel %vm6649, %v6648, 0
        %v6651 = vshrl.u32 %v6650, 5
        %v6652 = vand.u32 %v6650, 31
        %v6653 = vsub.s32 32, %v6652
        %v6654 = vshrl.u32 683565275, %v6653
        %v6655 = vshll.u32 683565275, %v6652
        %v6656 = vshrl.u32 2475754826, %v6653
        %v6657 = vor.u32 %v6655, %v6656
        %v6658 = vshll.u32 2475754826, %v6652
        %v6659 = vshrl.u32 2131351028, %v6653
        %v6660 = vor.u32 %v6658, %v6659
        %v6661 = vshll.u32 2131351028, %v6652
        %v6662 = vshrl.u32 2102212464, %v6653
        %v6663 = vor.u32 %v6661, %v6662
        %v6664 = vshll.u32 2102212464, %v6652
        %v6665 = vshrl.u32 920167782, %v6653
        %v6666 = vor.u32 %v6664, %v6665
        %v6667 = vshll.u32 920167782, %v6652
        %v6668 = vshrl.u32 1326507024, %v6653
        %v6669 = vor.u32 %v6667, %v6668
        %vm6670 = vcmp.lt.s32.totalorder %v6651, 1
        %vm6671 = vcmp.lt.s32.totalorder %v6651, 2
        %vm6672 = vcmp.lt.s32.totalorder %v6651, 3
        %vm6673 = vcmp.lt.s32.totalorder %v6651, 4
        %v6674 = vsel %vm6670, %v6654, %v6657
        %v6675 = vsel %vm6673, %v6663, 2102212464
        %v6676 = vsel %vm6672, %v6660, %v6675
        %v6677 = vsel %vm6671, %v6674, %v6676
        %v6678 = vsel %vm6670, %v6657, %v6660
        %v6679 = vsel %vm6673, %v6666, 920167782
        %v6680 = vsel %vm6672, %v6663, %v6679
        %v6681 = vsel %vm6671, %v6678, %v6680
        %v6682 = vsel %vm6670, %v6660, %v6663
        %v6683 = vsel %vm6673, %v6669, 1326507024
        %v6684 = vsel %vm6672, %v6666, %v6683
        %v6685 = vsel %vm6671, %v6682, %v6684
        %v6686 = vshll.u32 %v6646, 8
        %v6687 = vmul.u32.u64.compose %v6686, %v6685
        %v6688 = vextract.low.u32 %v6687
        %v6689 = vextract.high.u32 %v6687
        %v6690 = vmul.u32.u64.compose %v6686, %v6681
        %v6691 = vextract.low.u32 %v6690
        %v6692 = vextract.high.u32 %v6690
        %v6693 = vmul.u32 %v6686, %v6677
        %v6694 = vadd.s32 %v6689, %v6691
        %vm6695 = vc.u32 %v6689, %v6691
        %v6696 = vadd.s32 %v6692, 1
        %v6697 = vsel %vm6695, %v6696, %v6692
        %v6698 = vadd.s32 %v6693, %v6697
        %v6699 = vadd.s32 %v6698, 536870912
        %v6700 = vshrl.u32 %v6699, 30
        %v6701 = vshll.u32 %v6700, 30
        %v6702 = vsub.s32 %v6698, %v6701
        %vm6703 = vcmp.lt.s32.totalorder %v6702, 0
        %v6704 = vsub.s32 0, %v6702
        %v6705 = vsel %vm6703, %v6704, %v6702
        %v6706 = vclz %v6705
        %v6707 = vsub.s32 %v6706, 2
        %vm6708 = vcmp.gt.s32.totalorder 0, %v6707
        %v6709 = vsel %vm6708, 0, %v6707
        %v6710 = vsub.s32 32, %v6709
        %v6711 = vshll.u32 %v6702, %v6709
        %v6712 = vshrl.u32 %v6694, %v6710
        %v6713 = vor.u32 %v6711, %v6712
        %v6714 = vsub.s32 4294967266, %v6709
        %v6715 = vadd.s32 %v6714, 127
        %v6716 = vshll.u32 %v6715, 23
        %v6717 = vor.u32 4788187, %v6716
        %v6718 = vand.u32 2147483647, %v6717
        %v6720 = vcvt.s32.f32 %v6713
        %v6721 = vmul.f32 %v6720, %v6718
        %v6722 = vxor.u32 %v6721, 2147483648
        %v6723 = vsel %vm6640, %v6722, %v6721
        %v6724 = vsub.s32 4, %v6700
        %v6725 = vsel %vm6640, %v6724, %v6700
        %v6726 = vsel %vm6639, %v506, %v6723
        %v6727 = vsel %vm6639, 0, %v6725
        %v6728 = vcosq.f32.pop %v6726
        %v6729 = vsinq.f32.pop %v6726
        %vm6730 = vweird.f32 %v506
        %v6731 = vand.u32 %v6727, 3
        %vm6732 = vcmp.lt.s32.totalorder %v6731, 2
        %vm6733 = vcmp.eq.s32.totalorder %v6731, 0
        %v6734 = vxor.u32 %v6729, 2147483648
        %v6735 = vsel %vm6733, %v6728, %v6734
        %vm6736 = vcmp.eq.s32.totalorder %v6731, 2
        %v6737 = vxor.u32 %v6728, 2147483648
        %v6738 = vsel %vm6736, %v6737, %v6729
        %v6739 = vsel %vm6732, %v6735, %v6738
        %v6740 = vsel %vm6730, nan, %v6739
        %v6741 = vand.u32 2147483647, %v511
        %vm6742 = vcmp.le.f32.partialorder %v6741, 0.7853982
        %vm6743 = vcmp.lt.s32.totalorder %v511, 0
        %v6744 = vand.u32 %v511, 2139095040
        %v6745 = vshrl.u32 %v6744, 23
        %v6746 = vsub.s32 %v6745, 127
        %v6747 = vand.u32 2147483647, %v511
        %v6748 = vand.u32 %v6747, 8388607
        %v6749 = vor.u32 %v6748, 8388608
        %v6750 = vsub.s32 0, %v6749
        %v6751 = vadd.s32 %v6746, 1
        %vm6752 = vcmp.gt.s32.totalorder %v6751, 0
        %v6753 = vsel %vm6752, %v6751, 0
        %v6754 = vshrl.u32 %v6753, 5
        %v6755 = vand.u32 %v6753, 31
        %v6756 = vsub.s32 32, %v6755
        %v6757 = vshrl.u32 683565275, %v6756
        %v6758 = vshll.u32 683565275, %v6755
        %v6759 = vshrl.u32 2475754826, %v6756
        %v6760 = vor.u32 %v6758, %v6759
        %v6761 = vshll.u32 2475754826, %v6755
        %v6762 = vshrl.u32 2131351028, %v6756
        %v6763 = vor.u32 %v6761, %v6762
        %v6764 = vshll.u32 2131351028, %v6755
        %v6765 = vshrl.u32 2102212464, %v6756
        %v6766 = vor.u32 %v6764, %v6765
        %v6767 = vshll.u32 2102212464, %v6755
        %v6768 = vshrl.u32 920167782, %v6756
        %v6769 = vor.u32 %v6767, %v6768
        %v6770 = vshll.u32 920167782, %v6755
        %v6771 = vshrl.u32 1326507024, %v6756
        %v6772 = vor.u32 %v6770, %v6771
        %vm6773 = vcmp.lt.s32.totalorder %v6754, 1
        %vm6774 = vcmp.lt.s32.totalorder %v6754, 2
        %vm6775 = vcmp.lt.s32.totalorder %v6754, 3
        %vm6776 = vcmp.lt.s32.totalorder %v6754, 4
        %v6777 = vsel %vm6773, %v6757, %v6760
        %v6778 = vsel %vm6776, %v6766, 2102212464
        %v6779 = vsel %vm6775, %v6763, %v6778
        %v6780 = vsel %vm6774, %v6777, %v6779
        %v6781 = vsel %vm6773, %v6760, %v6763
        %v6782 = vsel %vm6776, %v6769, 920167782
        %v6783 = vsel %vm6775, %v6766, %v6782
        %v6784 = vsel %vm6774, %v6781, %v6783
        %v6785 = vsel %vm6773, %v6763, %v6766
        %v6786 = vsel %vm6776, %v6772, 1326507024
        %v6787 = vsel %vm6775, %v6769, %v6786
        %v6788 = vsel %vm6774, %v6785, %v6787
        %v6789 = vshll.u32 %v6749, 8
        %v6790 = vmul.u32.u64.compose %v6789, %v6788
        %v6791 = vextract.low.u32 %v6790
        %v6792 = vextract.high.u32 %v6790
        %v6793 = vmul.u32.u64.compose %v6789, %v6784
        %v6794 = vextract.low.u32 %v6793
        %v6795 = vextract.high.u32 %v6793
        %v6796 = vmul.u32 %v6789, %v6780
        %v6797 = vadd.s32 %v6792, %v6794
        %vm6798 = vc.u32 %v6792, %v6794
        %v6799 = vadd.s32 %v6795, 1
        %v6800 = vsel %vm6798, %v6799, %v6795
        %v6801 = vadd.s32 %v6796, %v6800
        %v6802 = vadd.s32 %v6801, 536870912
        %v6803 = vshrl.u32 %v6802, 30
        %v6804 = vshll.u32 %v6803, 30
        %v6805 = vsub.s32 %v6801, %v6804
        %vm6806 = vcmp.lt.s32.totalorder %v6805, 0
        %v6807 = vsub.s32 0, %v6805
        %v6808 = vsel %vm6806, %v6807, %v6805
        %v6809 = vclz %v6808
        %v6810 = vsub.s32 %v6809, 2
        %vm6811 = vcmp.gt.s32.totalorder 0, %v6810
        %v6812 = vsel %vm6811, 0, %v6810
        %v6813 = vsub.s32 32, %v6812
        %v6814 = vshll.u32 %v6805, %v6812
        %v6815 = vshrl.u32 %v6797, %v6813
        %v6816 = vor.u32 %v6814, %v6815
        %v6817 = vsub.s32 4294967266, %v6812
        %v6818 = vadd.s32 %v6817, 127
        %v6819 = vshll.u32 %v6818, 23
        %v6820 = vor.u32 4788187, %v6819
        %v6821 = vand.u32 2147483647, %v6820
        %v6823 = vcvt.s32.f32 %v6816
        %v6824 = vmul.f32 %v6823, %v6821
        %v6825 = vxor.u32 %v6824, 2147483648
        %v6826 = vsel %vm6743, %v6825, %v6824
        %v6827 = vsub.s32 4, %v6803
        %v6828 = vsel %vm6743, %v6827, %v6803
        %v6829 = vsel %vm6742, %v511, %v6826
        %v6830 = vsel %vm6742, 0, %v6828
        %v6831 = vcosq.f32.pop %v6829
        %v6832 = vsinq.f32.pop %v6829
        %vm6833 = vweird.f32 %v511
        %v6834 = vand.u32 %v6830, 3
        %vm6835 = vcmp.lt.s32.totalorder %v6834, 2
        %vm6836 = vcmp.eq.s32.totalorder %v6834, 0
        %v6837 = vxor.u32 %v6832, 2147483648
        %v6838 = vsel %vm6836, %v6831, %v6837
        %vm6839 = vcmp.eq.s32.totalorder %v6834, 2
        %v6840 = vxor.u32 %v6831, 2147483648
        %v6841 = vsel %vm6839, %v6840, %v6832
        %v6842 = vsel %vm6835, %v6838, %v6841
        %v6843 = vsel %vm6833, nan, %v6842
        %v6844 = vand.u32 2147483647, %v516
        %vm6845 = vcmp.le.f32.partialorder %v6844, 0.7853982
        %vm6846 = vcmp.lt.s32.totalorder %v516, 0
        %v6847 = vand.u32 %v516, 2139095040
        %v6848 = vshrl.u32 %v6847, 23
        %v6849 = vsub.s32 %v6848, 127
        %v6850 = vand.u32 2147483647, %v516
        %v6851 = vand.u32 %v6850, 8388607
        %v6852 = vor.u32 %v6851, 8388608
        %v6853 = vsub.s32 0, %v6852
        %v6854 = vadd.s32 %v6849, 1
        %vm6855 = vcmp.gt.s32.totalorder %v6854, 0
        %v6856 = vsel %vm6855, %v6854, 0
        %v6857 = vshrl.u32 %v6856, 5
        %v6858 = vand.u32 %v6856, 31
        %v6859 = vsub.s32 32, %v6858
        %v6860 = vshrl.u32 683565275, %v6859
        %v6861 = vshll.u32 683565275, %v6858
        %v6862 = vshrl.u32 2475754826, %v6859
        %v6863 = vor.u32 %v6861, %v6862
        %v6864 = vshll.u32 2475754826, %v6858
        %v6865 = vshrl.u32 2131351028, %v6859
        %v6866 = vor.u32 %v6864, %v6865
        %v6867 = vshll.u32 2131351028, %v6858
        %v6868 = vshrl.u32 2102212464, %v6859
        %v6869 = vor.u32 %v6867, %v6868
        %v6870 = vshll.u32 2102212464, %v6858
        %v6871 = vshrl.u32 920167782, %v6859
        %v6872 = vor.u32 %v6870, %v6871
        %v6873 = vshll.u32 920167782, %v6858
        %v6874 = vshrl.u32 1326507024, %v6859
        %v6875 = vor.u32 %v6873, %v6874
        %vm6876 = vcmp.lt.s32.totalorder %v6857, 1
        %vm6877 = vcmp.lt.s32.totalorder %v6857, 2
        %vm6878 = vcmp.lt.s32.totalorder %v6857, 3
        %vm6879 = vcmp.lt.s32.totalorder %v6857, 4
        %v6880 = vsel %vm6876, %v6860, %v6863
        %v6881 = vsel %vm6879, %v6869, 2102212464
        %v6882 = vsel %vm6878, %v6866, %v6881
        %v6883 = vsel %vm6877, %v6880, %v6882
        %v6884 = vsel %vm6876, %v6863, %v6866
        %v6885 = vsel %vm6879, %v6872, 920167782
        %v6886 = vsel %vm6878, %v6869, %v6885
        %v6887 = vsel %vm6877, %v6884, %v6886
        %v6888 = vsel %vm6876, %v6866, %v6869
        %v6889 = vsel %vm6879, %v6875, 1326507024
        %v6890 = vsel %vm6878, %v6872, %v6889
        %v6891 = vsel %vm6877, %v6888, %v6890
        %v6892 = vshll.u32 %v6852, 8
        %v6893 = vmul.u32.u64.compose %v6892, %v6891
        %v6894 = vextract.low.u32 %v6893
        %v6895 = vextract.high.u32 %v6893
        %v6896 = vmul.u32.u64.compose %v6892, %v6887
        %v6897 = vextract.low.u32 %v6896
        %v6898 = vextract.high.u32 %v6896
        %v6899 = vmul.u32 %v6892, %v6883
        %v6900 = vadd.s32 %v6895, %v6897
        %vm6901 = vc.u32 %v6895, %v6897
        %v6902 = vadd.s32 %v6898, 1
        %v6903 = vsel %vm6901, %v6902, %v6898
        %v6904 = vadd.s32 %v6899, %v6903
        %v6905 = vadd.s32 %v6904, 536870912
        %v6906 = vshrl.u32 %v6905, 30
        %v6907 = vshll.u32 %v6906, 30
        %v6908 = vsub.s32 %v6904, %v6907
        %vm6909 = vcmp.lt.s32.totalorder %v6908, 0
        %v6910 = vsub.s32 0, %v6908
        %v6911 = vsel %vm6909, %v6910, %v6908
        %v6912 = vclz %v6911
        %v6913 = vsub.s32 %v6912, 2
        %vm6914 = vcmp.gt.s32.totalorder 0, %v6913
        %v6915 = vsel %vm6914, 0, %v6913
        %v6916 = vsub.s32 32, %v6915
        %v6917 = vshll.u32 %v6908, %v6915
        %v6918 = vshrl.u32 %v6900, %v6916
        %v6919 = vor.u32 %v6917, %v6918
        %v6920 = vsub.s32 4294967266, %v6915
        %v6921 = vadd.s32 %v6920, 127
        %v6922 = vshll.u32 %v6921, 23
        %v6923 = vor.u32 4788187, %v6922
        %v6924 = vand.u32 2147483647, %v6923
        %v6926 = vcvt.s32.f32 %v6919
        %v6927 = vmul.f32 %v6926, %v6924
        %v6928 = vxor.u32 %v6927, 2147483648
        %v6929 = vsel %vm6846, %v6928, %v6927
        %v6930 = vsub.s32 4, %v6906
        %v6931 = vsel %vm6846, %v6930, %v6906
        %v6932 = vsel %vm6845, %v516, %v6929
        %v6933 = vsel %vm6845, 0, %v6931
        %v6934 = vcosq.f32.pop %v6932
        %v6935 = vsinq.f32.pop %v6932
        %vm6936 = vweird.f32 %v516
        %v6937 = vand.u32 %v6933, 3
        %vm6938 = vcmp.lt.s32.totalorder %v6937, 2
        %vm6939 = vcmp.eq.s32.totalorder %v6937, 0
        %v6940 = vxor.u32 %v6935, 2147483648
        %v6941 = vsel %vm6939, %v6934, %v6940
        %vm6942 = vcmp.eq.s32.totalorder %v6937, 2
        %v6943 = vxor.u32 %v6934, 2147483648
        %v6944 = vsel %vm6942, %v6943, %v6935
        %v6945 = vsel %vm6938, %v6941, %v6944
        %v6946 = vsel %vm6936, nan, %v6945
        %v6947 = vand.u32 2147483647, %v521
        %vm6948 = vcmp.le.f32.partialorder %v6947, 0.7853982
        %vm6949 = vcmp.lt.s32.totalorder %v521, 0
        %v6950 = vand.u32 %v521, 2139095040
        %v6951 = vshrl.u32 %v6950, 23
        %v6952 = vsub.s32 %v6951, 127
        %v6953 = vand.u32 2147483647, %v521
        %v6954 = vand.u32 %v6953, 8388607
        %v6955 = vor.u32 %v6954, 8388608
        %v6956 = vsub.s32 0, %v6955
        %v6957 = vadd.s32 %v6952, 1
        %vm6958 = vcmp.gt.s32.totalorder %v6957, 0
        %v6959 = vsel %vm6958, %v6957, 0
        %v6960 = vshrl.u32 %v6959, 5
        %v6961 = vand.u32 %v6959, 31
        %v6962 = vsub.s32 32, %v6961
        %v6963 = vshrl.u32 683565275, %v6962
        %v6964 = vshll.u32 683565275, %v6961
        %v6965 = vshrl.u32 2475754826, %v6962
        %v6966 = vor.u32 %v6964, %v6965
        %v6967 = vshll.u32 2475754826, %v6961
        %v6968 = vshrl.u32 2131351028, %v6962
        %v6969 = vor.u32 %v6967, %v6968
        %v6970 = vshll.u32 2131351028, %v6961
        %v6971 = vshrl.u32 2102212464, %v6962
        %v6972 = vor.u32 %v6970, %v6971
        %v6973 = vshll.u32 2102212464, %v6961
        %v6974 = vshrl.u32 920167782, %v6962
        %v6975 = vor.u32 %v6973, %v6974
        %v6976 = vshll.u32 920167782, %v6961
        %v6977 = vshrl.u32 1326507024, %v6962
        %v6978 = vor.u32 %v6976, %v6977
        %vm6979 = vcmp.lt.s32.totalorder %v6960, 1
        %vm6980 = vcmp.lt.s32.totalorder %v6960, 2
        %vm6981 = vcmp.lt.s32.totalorder %v6960, 3
        %vm6982 = vcmp.lt.s32.totalorder %v6960, 4
        %v6983 = vsel %vm6979, %v6963, %v6966
        %v6984 = vsel %vm6982, %v6972, 2102212464
        %v6985 = vsel %vm6981, %v6969, %v6984
        %v6986 = vsel %vm6980, %v6983, %v6985
        %v6987 = vsel %vm6979, %v6966, %v6969
        %v6988 = vsel %vm6982, %v6975, 920167782
        %v6989 = vsel %vm6981, %v6972, %v6988
        %v6990 = vsel %vm6980, %v6987, %v6989
        %v6991 = vsel %vm6979, %v6969, %v6972
        %v6992 = vsel %vm6982, %v6978, 1326507024
        %v6993 = vsel %vm6981, %v6975, %v6992
        %v6994 = vsel %vm6980, %v6991, %v6993
        %v6995 = vshll.u32 %v6955, 8
        %v6996 = vmul.u32.u64.compose %v6995, %v6994
        %v6997 = vextract.low.u32 %v6996
        %v6998 = vextract.high.u32 %v6996
        %v6999 = vmul.u32.u64.compose %v6995, %v6990
        %v7000 = vextract.low.u32 %v6999
        %v7001 = vextract.high.u32 %v6999
        %v7002 = vmul.u32 %v6995, %v6986
        %v7003 = vadd.s32 %v6998, %v7000
        %vm7004 = vc.u32 %v6998, %v7000
        %v7005 = vadd.s32 %v7001, 1
        %v7006 = vsel %vm7004, %v7005, %v7001
        %v7007 = vadd.s32 %v7002, %v7006
        %v7008 = vadd.s32 %v7007, 536870912
        %v7009 = vshrl.u32 %v7008, 30
        %v7010 = vshll.u32 %v7009, 30
        %v7011 = vsub.s32 %v7007, %v7010
        %vm7012 = vcmp.lt.s32.totalorder %v7011, 0
        %v7013 = vsub.s32 0, %v7011
        %v7014 = vsel %vm7012, %v7013, %v7011
        %v7015 = vclz %v7014
        %v7016 = vsub.s32 %v7015, 2
        %vm7017 = vcmp.gt.s32.totalorder 0, %v7016
        %v7018 = vsel %vm7017, 0, %v7016
        %v7019 = vsub.s32 32, %v7018
        %v7020 = vshll.u32 %v7011, %v7018
        %v7021 = vshrl.u32 %v7003, %v7019
        %v7022 = vor.u32 %v7020, %v7021
        %v7023 = vsub.s32 4294967266, %v7018
        %v7024 = vadd.s32 %v7023, 127
        %v7025 = vshll.u32 %v7024, 23
        %v7026 = vor.u32 4788187, %v7025
        %v7027 = vand.u32 2147483647, %v7026
        %v7029 = vcvt.s32.f32 %v7022
        %v7030 = vmul.f32 %v7029, %v7027
        %v7031 = vxor.u32 %v7030, 2147483648
        %v7032 = vsel %vm6949, %v7031, %v7030
        %v7033 = vsub.s32 4, %v7009
        %v7034 = vsel %vm6949, %v7033, %v7009
        %v7035 = vsel %vm6948, %v521, %v7032
        %v7036 = vsel %vm6948, 0, %v7034
        %v7037 = vcosq.f32.pop %v7035
        %v7038 = vsinq.f32.pop %v7035
        %vm7039 = vweird.f32 %v521
        %v7040 = vand.u32 %v7036, 3
        %vm7041 = vcmp.lt.s32.totalorder %v7040, 2
        %vm7042 = vcmp.eq.s32.totalorder %v7040, 0
        %v7043 = vxor.u32 %v7038, 2147483648
        %v7044 = vsel %vm7042, %v7037, %v7043
        %vm7045 = vcmp.eq.s32.totalorder %v7040, 2
        %v7046 = vxor.u32 %v7037, 2147483648
        %v7047 = vsel %vm7045, %v7046, %v7038
        %v7048 = vsel %vm7041, %v7044, %v7047
        %v7049 = vsel %vm7039, nan, %v7048
        %v7050 = vand.u32 2147483647, %v526
        %vm7051 = vcmp.le.f32.partialorder %v7050, 0.7853982
        %vm7052 = vcmp.lt.s32.totalorder %v526, 0
        %v7053 = vand.u32 %v526, 2139095040
        %v7054 = vshrl.u32 %v7053, 23
        %v7055 = vsub.s32 %v7054, 127
        %v7056 = vand.u32 2147483647, %v526
        %v7057 = vand.u32 %v7056, 8388607
        %v7058 = vor.u32 %v7057, 8388608
        %v7059 = vsub.s32 0, %v7058
        %v7060 = vadd.s32 %v7055, 1
        %vm7061 = vcmp.gt.s32.totalorder %v7060, 0
        %v7062 = vsel %vm7061, %v7060, 0
        %v7063 = vshrl.u32 %v7062, 5
        %v7064 = vand.u32 %v7062, 31
        %v7065 = vsub.s32 32, %v7064
        %v7066 = vshrl.u32 683565275, %v7065
        %v7067 = vshll.u32 683565275, %v7064
        %v7068 = vshrl.u32 2475754826, %v7065
        %v7069 = vor.u32 %v7067, %v7068
        %v7070 = vshll.u32 2475754826, %v7064
        %v7071 = vshrl.u32 2131351028, %v7065
        %v7072 = vor.u32 %v7070, %v7071
        %v7073 = vshll.u32 2131351028, %v7064
        %v7074 = vshrl.u32 2102212464, %v7065
        %v7075 = vor.u32 %v7073, %v7074
        %v7076 = vshll.u32 2102212464, %v7064
        %v7077 = vshrl.u32 920167782, %v7065
        %v7078 = vor.u32 %v7076, %v7077
        %v7079 = vshll.u32 920167782, %v7064
        %v7080 = vshrl.u32 1326507024, %v7065
        %v7081 = vor.u32 %v7079, %v7080
        %vm7082 = vcmp.lt.s32.totalorder %v7063, 1
        %vm7083 = vcmp.lt.s32.totalorder %v7063, 2
        %vm7084 = vcmp.lt.s32.totalorder %v7063, 3
        %vm7085 = vcmp.lt.s32.totalorder %v7063, 4
        %v7086 = vsel %vm7082, %v7066, %v7069
        %v7087 = vsel %vm7085, %v7075, 2102212464
        %v7088 = vsel %vm7084, %v7072, %v7087
        %v7089 = vsel %vm7083, %v7086, %v7088
        %v7090 = vsel %vm7082, %v7069, %v7072
        %v7091 = vsel %vm7085, %v7078, 920167782
        %v7092 = vsel %vm7084, %v7075, %v7091
        %v7093 = vsel %vm7083, %v7090, %v7092
        %v7094 = vsel %vm7082, %v7072, %v7075
        %v7095 = vsel %vm7085, %v7081, 1326507024
        %v7096 = vsel %vm7084, %v7078, %v7095
        %v7097 = vsel %vm7083, %v7094, %v7096
        %v7098 = vshll.u32 %v7058, 8
        %v7099 = vmul.u32.u64.compose %v7098, %v7097
        %v7100 = vextract.low.u32 %v7099
        %v7101 = vextract.high.u32 %v7099
        %v7102 = vmul.u32.u64.compose %v7098, %v7093
        %v7103 = vextract.low.u32 %v7102
        %v7104 = vextract.high.u32 %v7102
        %v7105 = vmul.u32 %v7098, %v7089
        %v7106 = vadd.s32 %v7101, %v7103
        %vm7107 = vc.u32 %v7101, %v7103
        %v7108 = vadd.s32 %v7104, 1
        %v7109 = vsel %vm7107, %v7108, %v7104
        %v7110 = vadd.s32 %v7105, %v7109
        %v7111 = vadd.s32 %v7110, 536870912
        %v7112 = vshrl.u32 %v7111, 30
        %v7113 = vshll.u32 %v7112, 30
        %v7114 = vsub.s32 %v7110, %v7113
        %vm7115 = vcmp.lt.s32.totalorder %v7114, 0
        %v7116 = vsub.s32 0, %v7114
        %v7117 = vsel %vm7115, %v7116, %v7114
        %v7118 = vclz %v7117
        %v7119 = vsub.s32 %v7118, 2
        %vm7120 = vcmp.gt.s32.totalorder 0, %v7119
        %v7121 = vsel %vm7120, 0, %v7119
        %v7122 = vsub.s32 32, %v7121
        %v7123 = vshll.u32 %v7114, %v7121
        %v7124 = vshrl.u32 %v7106, %v7122
        %v7125 = vor.u32 %v7123, %v7124
        %v7126 = vsub.s32 4294967266, %v7121
        %v7127 = vadd.s32 %v7126, 127
        %v7128 = vshll.u32 %v7127, 23
        %v7129 = vor.u32 4788187, %v7128
        %v7130 = vand.u32 2147483647, %v7129
        %v7132 = vcvt.s32.f32 %v7125
        %v7133 = vmul.f32 %v7132, %v7130
        %v7134 = vxor.u32 %v7133, 2147483648
        %v7135 = vsel %vm7052, %v7134, %v7133
        %v7136 = vsub.s32 4, %v7112
        %v7137 = vsel %vm7052, %v7136, %v7112
        %v7138 = vsel %vm7051, %v526, %v7135
        %v7139 = vsel %vm7051, 0, %v7137
        %v7140 = vcosq.f32.pop %v7138
        %v7141 = vsinq.f32.pop %v7138
        %vm7142 = vweird.f32 %v526
        %v7143 = vand.u32 %v7139, 3
        %vm7144 = vcmp.lt.s32.totalorder %v7143, 2
        %vm7145 = vcmp.eq.s32.totalorder %v7143, 0
        %v7146 = vxor.u32 %v7141, 2147483648
        %v7147 = vsel %vm7145, %v7140, %v7146
        %vm7148 = vcmp.eq.s32.totalorder %v7143, 2
        %v7149 = vxor.u32 %v7140, 2147483648
        %v7150 = vsel %vm7148, %v7149, %v7141
        %v7151 = vsel %vm7144, %v7147, %v7150
        %v7152 = vsel %vm7142, nan, %v7151
        %7153 = vst [vmem:[%s149] sm:$0xff] %v632
        %7154 = vst [vmem:[%s149 + $0x10] sm:$0xff] %v736
        %7155 = vst [vmem:[%s149 + $0x20] sm:$0xff] %v840
        %7156 = vst [vmem:[%s149 + $0x30] sm:$0xff] %v944
        %7157 = vst [vmem:[%s149 + $0x40] sm:$0xff] %v1048
        %7158 = vst [vmem:[%s149 + $0x50] sm:$0xff] %v1152
        %7159 = vst [vmem:[%s149 + $0x60] sm:$0xff] %v1256
        %7160 = vst [vmem:[%s149 + $0x70] sm:$0xff] %v1360
        %7161 = vst [vmem:[%s149 + $0x80] sm:$0xff] %v1464
        %7162 = vst [vmem:[%s149 + $0x90] sm:$0xff] %v1568
        %7163 = vst [vmem:[%s149 + $0xa0] sm:$0xff] %v1672
        %7164 = vst [vmem:[%s149 + $0xb0] sm:$0xff] %v1776
        %7165 = vst [vmem:[%s149 + $0xc0] sm:$0xff] %v1880
        %7166 = vst [vmem:[%s149 + $0xd0] sm:$0xff] %v1984
        %7167 = vst [vmem:[%s149 + $0xe0] sm:$0xff] %v2088
        %7168 = vst [vmem:[%s149 + $0xf0] sm:$0xff] %v2192
        %7169 = vst [vmem:[%s149 + $0x100] sm:$0xff] %v2296
        %7170 = vst [vmem:[%s149 + $0x110] sm:$0xff] %v2400
        %7171 = vst [vmem:[%s149 + $0x120] sm:$0xff] %v2504
        %7172 = vst [vmem:[%s149 + $0x130] sm:$0xff] %v2608
        %7173 = vst [vmem:[%s149 + $0x140] sm:$0xff] %v2712
        %7174 = vst [vmem:[%s149 + $0x150] sm:$0xff] %v2816
        %7175 = vst [vmem:[%s149 + $0x160] sm:$0xff] %v2920
        %7176 = vst [vmem:[%s149 + $0x170] sm:$0xff] %v3024
        %7177 = vst [vmem:[%s149 + $0x180] sm:$0xff] %v3128
        %7178 = vst [vmem:[%s149 + $0x190] sm:$0xff] %v3232
        %7179 = vst [vmem:[%s149 + $0x1a0] sm:$0xff] %v3336
        %7180 = vst [vmem:[%s149 + $0x1b0] sm:$0xff] %v3440
        %7181 = vst [vmem:[%s149 + $0x1c0] sm:$0xff] %v3544
        %7182 = vst [vmem:[%s149 + $0x1d0] sm:$0xff] %v3648
        %7183 = vst [vmem:[%s149 + $0x1e0] sm:$0xff] %v3752
        %7184 = vst [vmem:[%s149 + $0x1f0] sm:$0xff] %v3856
        %7185 = vst [vmem:[%s149 + $0x8] sm:$0xff] %v3959
        %7186 = vst [vmem:[%s149 + $0x18] sm:$0xff] %v4062
        %7187 = vst [vmem:[%s149 + $0x28] sm:$0xff] %v4165
        %7188 = vst [vmem:[%s149 + $0x38] sm:$0xff] %v4268
        %7189 = vst [vmem:[%s149 + $0x48] sm:$0xff] %v4371
        %7190 = vst [vmem:[%s149 + $0x58] sm:$0xff] %v4474
        %7191 = vst [vmem:[%s149 + $0x68] sm:$0xff] %v4577
        %7192 = vst [vmem:[%s149 + $0x78] sm:$0xff] %v4680
        %7193 = vst [vmem:[%s149 + $0x88] sm:$0xff] %v4783
        %7194 = vst [vmem:[%s149 + $0x98] sm:$0xff] %v4886
        %7195 = vst [vmem:[%s149 + $0xa8] sm:$0xff] %v4989
        %7196 = vst [vmem:[%s149 + $0xb8] sm:$0xff] %v5092
        %7197 = vst [vmem:[%s149 + $0xc8] sm:$0xff] %v5195
        %7198 = vst [vmem:[%s149 + $0xd8] sm:$0xff] %v5298
        %7199 = vst [vmem:[%s149 + $0xe8] sm:$0xff] %v5401
        %7200 = vst [vmem:[%s149 + $0xf8] sm:$0xff] %v5504
        %7201 = vst [vmem:[%s149 + $0x108] sm:$0xff] %v5607
        %7202 = vst [vmem:[%s149 + $0x118] sm:$0xff] %v5710
        %7203 = vst [vmem:[%s149 + $0x128] sm:$0xff] %v5813
        %7204 = vst [vmem:[%s149 + $0x138] sm:$0xff] %v5916
        %7205 = vst [vmem:[%s149 + $0x148] sm:$0xff] %v6019
        %7206 = vst [vmem:[%s149 + $0x158] sm:$0xff] %v6122
        %7207 = vst [vmem:[%s149 + $0x168] sm:$0xff] %v6225
        %7208 = vst [vmem:[%s149 + $0x178] sm:$0xff] %v6328
        %7209 = vst [vmem:[%s149 + $0x188] sm:$0xff] %v6431
        %7210 = vst [vmem:[%s149 + $0x198] sm:$0xff] %v6534
        %7211 = vst [vmem:[%s149 + $0x1a8] sm:$0xff] %v6637
        %7212 = vst [vmem:[%s149 + $0x1b8] sm:$0xff] %v6740
        %7213 = vst [vmem:[%s149 + $0x1c8] sm:$0xff] %v6843
        %7214 = vst [vmem:[%s149 + $0x1d8] sm:$0xff] %v6946
        %7215 = vst [vmem:[%s149 + $0x1e8] sm:$0xff] %v7049
        %7216 = vst [vmem:[%s149 + $0x1f8] sm:$0xff] %v7152
        %s7217 = sand.u32 %s71, 1
        %s7218 = scalar_lea.sflag [#allocation3], %s7217
        %s7219 = sand.u32 %s71, 1
        %s7220 = smul.addr %s7219, 512
        %s7221 = scalar_lea.vmem [#allocation2], %s7220
        // Predicated region
        $region29: #{tpu_custom_call.1} parent=27 // pred_check
          %p7222 = pneg %p81
        $region30: #{tpu_custom_call.1} parent=27 // pred_check_branch
          %7224 = sbr.rel (%p7222) target = $region32
        $region31: #{tpu_custom_call.1} parent=27 // pred_region
          %s7225 = smul.u32 32, %s16
          %s7226 = ssub.s32 125, %s7225
          %p7227 = scmp.lt.s32.totalorder %s7226, 32
          %s7228 = scalar_select %p7227, %s7226, 32
          %s7229 = smul.u32 128, %s7228
          %s7230 = smul.u32 %s7229, 2
          %s7232 = ssub.s32 8192, %s7230
          %7233 = vsyncadd %s7218, %s7232
          %p7234 = scmp.ne.s32.totalorder 0, %s7230
          %s7235 = smul.addr %s7225, 2
          %s7236 = smul.addr %s7235, 128
          %s7237 = scalar_lea.hbm %s2, %s7236
          %s7238 = smul.u32 16, %s7228
          %s7239 = sshll.u32 %s7221, 4
          %s7240 = int_to_ptr.vmem [resolvable:$true] %s7239
          %s7241 = sshll.u32 %s7238, 4
          %7245 = dma.vmem_to_hbm [thread:$0]  (%p7234), %s7240, %s7241, %s7237, %s7218, 256, 256, 16
        $region32: #{tpu_custom_call.1} parent=27 // pred_fallthru
          _
      $region28: #{tpu_custom_call.1} parent=5 // pred_fallthru
        _
      %p7246 = scmp.le.s32.totalorder 2, %s11
      // Predicated region
      $region33: #{tpu_custom_call.1} parent=5 // pred_check
        %p7247 = pneg %p7246
      $region34: #{tpu_custom_call.1} parent=5 // pred_check_branch
        %7249 = sbr.rel (%p7247) target = $region36
      $region35: #{tpu_custom_call.1} parent=5 // pred_region
        %s7250 = ssub.s32 %s11, 2
        // Predicated region
        $region37: #{tpu_custom_call.1} parent=35 // pred_check
          %p7251 = pneg %p87
        $region38: #{tpu_custom_call.1} parent=35 // pred_check_branch
          %7253 = sbr.rel (%p7251) target = $region40
        $region39: #{tpu_custom_call.1} parent=35 // pred_region
          %s7254 = sand.u32 %s72, 1
          %s7255 = scalar_lea.sflag [#allocation3], %s7254
          %s7256 = sand.u32 %s72, 1
          %s7257 = smul.addr %s7256, 512
          %s7258 = scalar_lea.vmem [#allocation2], %s7257
          %7259 = dma.done %s7255, 8192
        $region40: #{tpu_custom_call.1} parent=35 // pred_fallthru
          _
      $region36: #{tpu_custom_call.1} parent=5 // pred_fallthru
        _
    $region6: #{tpu_custom_call.1} parent=1 // loop_footer
      %s15 = sadd.s32 1, %s11
    $region7: #{tpu_custom_call.1} parent=1 // loop_footer_branch
      %10 = sbr.rel target = $region3
    $region8: #{tpu_custom_call.1} parent=1 // loop_exit
      _
    %7260 = vsyncpa [#allocation3], 1
    %s7261 = scalar_lea.sflag [#allocation3], 1
    %7262 = vsyncpa %s7261, 1

</llo_original>
